<compile_context>
chip_gen: v6e
topology: v6e:2x2x1
jax: 0.10.0
libtpu: 0.0.40
codegen_flags: <defaults>
</compile_context>

<pallas_src>
import jax
import jax.numpy as jnp
import numpy as np
from jax import lax
from jax.experimental import pallas as pl
from jax.experimental.pallas import tpu as pltpu

HIDDEN = 128
IN_SIZE = 128          # LOCATION_DATA_BOOL = False
SEQ_LEN = 5 * 5        # 25
NUM_CLASSES = 10
FC_PAD = 128           # lane-dense padded FC output width


def _fast_sigmoid(x):
    # sigmoid(x) == 0.5 * tanh(0.5 * x) + 0.5  (exact identity).
    # One EUP push (tanh) + two VPU ops; avoids a chained exp+reciprocal on
    # the single EUP slot of the serial per-step critical path.
    return 0.5 * jnp.tanh(0.5 * x) + 0.5


def lstm_fc_kernel(x_ref, wih_ref, b_ref, whh_hbm, wfc_hbm, bfc_hbm,
                   out_ref, gx_ref, whh_vmem, wfc_vmem, bfc_vmem, dma_sems):
    """Single-invocation LSTM + FC.

    x_ref   : (T*B, IN)   time-major, rows [t*B, (t+1)*B) are timestep t
    whh_hbm : (IN, 4H)    raw HBM ref (manual DMA)
    wfc_hbm : (H, FC_PAD) raw HBM ref (manual DMA)
    bfc_hbm : (1, FC_PAD) raw HBM ref (manual DMA)
    gx_ref  : (T*B, 4H)   VMEM scratch for the hoisted input projection
    out_ref : (B, FC_PAD) lane-dense padded logits
    """
    b_sz = out_ref.shape[0]          # padded batch (multiple of 8)

    # --- kick off weight DMAs; they overlap the projection matmul below ----
    whh_cp = pltpu.make_async_copy(whh_hbm, whh_vmem, dma_sems.at[0])
    wfc_cp = pltpu.make_async_copy(wfc_hbm, wfc_vmem, dma_sems.at[1])
    bfc_cp = pltpu.make_async_copy(bfc_hbm, bfc_vmem, dma_sems.at[2])
    whh_cp.start()
    wfc_cp.start()
    bfc_cp.start()

    # --- time-parallel input projection: one big MXU matmul + bias ---------
    gx_ref[...] = (jnp.dot(x_ref[...], wih_ref[...],
                           preferred_element_type=jnp.float32)
                   + b_ref[...])                                  # (T*B, 4H)

    # Recurrent weights must be resident before the serial loop starts.
    whh_cp.wait()

    h0 = jnp.zeros((b_sz, HIDDEN), jnp.float32)
    c0 = jnp.zeros((b_sz, HIDDEN), jnp.float32)

    def step(t, carry):
        h, c = carry
        start = pl.multiple_of(t * b_sz, 8)
        gx = gx_ref[pl.ds(start, b_sz), :]                        # (B, 4H)

        # Per-gate 128x128 RHS slices, read from VMEM inside the loop body:
        # no loop-invariant 64-vreg W_hh value to spill; the compiler streams
        # the RHS from the resident VMEM scratch per MXU pass.
        def gate_pre(g):
            whh_g = whh_vmem[:, g * HIDDEN:(g + 1) * HIDDEN]      # (H, H)
            return (gx[:, g * HIDDEN:(g + 1) * HIDDEN]
                    + jnp.dot(h, whh_g, preferred_element_type=jnp.float32))

        # PyTorch LSTM gate order: i, f, g, o (each slice lane-aligned)
        i_g = _fast_sigmoid(gate_pre(0))
        f_g = _fast_sigmoid(gate_pre(1))
        g_g = jnp.tanh(gate_pre(2))
        o_g = _fast_sigmoid(gate_pre(3))

        c_new = f_g * c + i_g * g_g
        h_new = o_g * jnp.tanh(c_new)
        return (h_new, c_new)

    h_last, _ = lax.fori_loop(0, SEQ_LEN, step, (h0, c0), unroll=True)

    # FC weights/bias were DMA'd while the projection + recurrence ran.
    wfc_cp.wait()
    bfc_cp.wait()

    # --- final Linear(128 -> 10), padded to a lane-dense 128-wide store ----
    out_ref[...] = (jnp.dot(h_last, wfc_vmem[...],
                            preferred_element_type=jnp.float32)
                    + bfc_vmem[...])


@jax.jit
def rnn_model_forward(x, params):
    """x: (B, 128*25) float32 (flattened SDR input, as in RNNModel.forward)."""
    w_ih, w_hh, b_ih, b_hh, w_fc, b_fc = params
    B = x.shape[0]
    B_pad = max(8, ((B + 7) // 8) * 8)   # sublane-aligned batch

    # Single transpose to time-major: out[t, b, f] = x[b, f, t]
    # (matches torch: reshape(-1, 128, 25) then moveaxis(2, 1) -> (B, T, IN)).
    # TODO(synk): have the caller supply x already time-major to avoid even
    # this one HBM copy.
    x_tm = jnp.transpose(x.reshape(B, IN_SIZE, SEQ_LEN),
                         (2, 0, 1)).astype(jnp.float32)           # (T, B, IN)
    if B_pad != B:
        x_tm = jnp.pad(x_tm, ((0, 0), (0, B_pad - B), (0, 0)))
    x_flat = x_tm.reshape(SEQ_LEN * B_pad, IN_SIZE)               # (T*B, IN)

    wih_t = jnp.transpose(w_ih).astype(jnp.float32)               # (IN, 4H)
    whh_t = jnp.transpose(w_hh).astype(jnp.float32)               # (H, 4H)
    b = (b_ih + b_hh).reshape(1, 4 * HIDDEN).astype(jnp.float32)

    # Zero-pad the FC weights/bias to a lane-dense 128-wide output slab.
    wfc_t = jnp.zeros((HIDDEN, FC_PAD), jnp.float32)
    wfc_t = wfc_t.at[:, :NUM_CLASSES].set(jnp.transpose(w_fc).astype(jnp.float32))
    bfc = jnp.zeros((1, FC_PAD), jnp.float32)
    bfc = bfc.at[:, :NUM_CLASSES].set(b_fc.astype(jnp.float32))

    out_pad = pl.pallas_call(
        lstm_fc_kernel,
        out_shape=jax.ShapeDtypeStruct((B_pad, FC_PAD), jnp.float32),
        grid_spec=pltpu.PrefetchScalarGridSpec(
            num_scalar_prefetch=0,
            grid=(1,),
            in_specs=[
                pl.BlockSpec((SEQ_LEN * B_pad, IN_SIZE), lambda i: (0, 0)),
                pl.BlockSpec((IN_SIZE, 4 * HIDDEN), lambda i: (0, 0)),
                pl.BlockSpec((1, 4 * HIDDEN), lambda i: (0, 0)),
                pl.BlockSpec(memory_space=pl.ANY),   # W_hh^T  (manual DMA)
                pl.BlockSpec(memory_space=pl.ANY),   # W_fc^T  (manual DMA)
                pl.BlockSpec(memory_space=pl.ANY),   # b_fc    (manual DMA)
            ],
            out_specs=pl.BlockSpec((B_pad, FC_PAD), lambda i: (0, 0)),
            scratch_shapes=[
                pltpu.VMEM((SEQ_LEN * B_pad, 4 * HIDDEN), jnp.float32),  # gates_x
                pltpu.VMEM((HIDDEN, 4 * HIDDEN), jnp.float32),           # W_hh^T
                pltpu.VMEM((HIDDEN, FC_PAD), jnp.float32),               # W_fc^T
                pltpu.VMEM((1, FC_PAD), jnp.float32),                    # b_fc
                pltpu.SemaphoreType.DMA((3,)),
            ],
        ),
        compiler_params=pltpu.CompilerParams(
            dimension_semantics=("arbitrary",)),
    )(x_flat, wih_t, b, whh_t, wfc_t, bfc)

    return out_pad[:B, :NUM_CLASSES]


def reference_forward(x, params):
    """Pure-JAX reference (lax.scan) mirroring torch.nn.LSTM + Linear."""
    w_ih, w_hh, b_ih, b_hh, w_fc, b_fc = params
    B = x.shape[0]
    x_seq = jnp.moveaxis(x.reshape(B, IN_SIZE, SEQ_LEN), 2, 1)   # (B, T, IN)

    def step(carry, x_t):
        h, c = carry
        gates = x_t @ w_ih.T + b_ih + h @ w_hh.T + b_hh
        i = jax.nn.sigmoid(gates[:, 0 * HIDDEN:1 * HIDDEN])
        f = jax.nn.sigmoid(gates[:, 1 * HIDDEN:2 * HIDDEN])
        g = jnp.tanh(gates[:, 2 * HIDDEN:3 * HIDDEN])
        o = jax.nn.sigmoid(gates[:, 3 * HIDDEN:4 * HIDDEN])
        c = f * c + i * g
        h = o * jnp.tanh(c)
        return (h, c), None

    h0 = jnp.zeros((B, HIDDEN), jnp.float32)
    c0 = jnp.zeros((B, HIDDEN), jnp.float32)
    (h_last, _), _ = lax.scan(step, (h0, c0),
                              jnp.transpose(x_seq, (1, 0, 2)))
    return h_last @ w_fc.T + b_fc


def init_params(key):
    """Deterministic init matching torch.nn.LSTM / Linear shapes & U(-k, k)."""
    k_lstm = 1.0 / np.sqrt(HIDDEN)
    k_fc = 1.0 / np.sqrt(HIDDEN)
    ks = jax.random.split(key, 6)
    w_ih = jax.random.uniform(ks[0], (4 * HIDDEN, IN_SIZE),
                              minval=-k_lstm, maxval=k_lstm, dtype=jnp.float32)
    w_hh = jax.random.uniform(ks[1], (4 * HIDDEN, HIDDEN),
                              minval=-k_lstm, maxval=k_lstm, dtype=jnp.float32)
    b_ih = jax.random.uniform(ks[2], (4 * HIDDEN,),
                              minval=-k_lstm, maxval=k_lstm, dtype=jnp.float32)
    b_hh = jax.random.uniform(ks[3], (4 * HIDDEN,),
                              minval=-k_lstm, maxval=k_lstm, dtype=jnp.float32)
    w_fc = jax.random.uniform(ks[4], (NUM_CLASSES, HIDDEN),
                              minval=-k_fc, maxval=k_fc, dtype=jnp.float32)
    b_fc = jax.random.uniform(ks[5], (NUM_CLASSES,),
                              minval=-k_fc, maxval=k_fc, dtype=jnp.float32)
    return (w_ih, w_hh, b_ih, b_hh, w_fc, b_fc)


if __name__ == "__main__":
    key = jax.random.PRNGKey(0)
    k_x, k_p = jax.random.split(key)

    B = 8  # multiple of 8 (f32 sublane); wrapper pads otherwise
    # SDR-like input: flattened (B, 128*25), sparse binary-ish values
    x = (jax.random.uniform(k_x, (B, IN_SIZE * SEQ_LEN)) < 0.1).astype(jnp.float32)
    params = init_params(k_p)

    out = rnn_model_forward(x, params)
    out = jax.block_until_ready(out)

    ref = reference_forward(x, params)
    assert out.shape == (B, NUM_CLASSES)
    np.testing.assert_allclose(np.asarray(out), np.asarray(ref),
                               rtol=1e-5, atol=1e-5)
    print("KERNEL_OK")
</pallas_src>

<mosaic_0001>
module attributes {stable_mosaic.version = 11 : i64} {
  func.func @lstm_fc_kernel(%arg0: i32, %arg1: memref<200x128xf32, #tpu.memory_space<vmem>>, %arg2: memref<128x512xf32, #tpu.memory_space<vmem>>, %arg3: memref<1x512xf32, #tpu.memory_space<vmem>>, %arg4: memref<128x512xf32, #tpu.memory_space<any>>, %arg5: memref<128x128xf32, #tpu.memory_space<any>>, %arg6: memref<1x128xf32, #tpu.memory_space<any>>, %arg7: memref<8x128xf32, #tpu.memory_space<vmem>>, %arg8: memref<200x512xf32, #tpu.memory_space<vmem>>, %arg9: memref<128x512xf32, #tpu.memory_space<vmem>>, %arg10: memref<128x128xf32, #tpu.memory_space<vmem>>, %arg11: memref<1x128xf32, #tpu.memory_space<vmem>>, %arg12: memref<3x!tpu.dma_semaphore, #tpu.memory_space<semaphore_mem>>) attributes {dimension_semantics = [#tpu.dimension_semantics<arbitrary>], iteration_bounds = array<i64: 1>, scalar_prefetch = 0 : i64, scratch_operands = 5 : i64, tpu.core_type = #tpu.core_type<tc>, window_params = [{pipeline_mode = #tpu.pipeline_mode<synchronous>, transform_indices = @transform_0, window_bounds = array<i64: 200, 128>}, {pipeline_mode = #tpu.pipeline_mode<synchronous>, transform_indices = @transform_1, window_bounds = array<i64: 128, 512>}, {pipeline_mode = #tpu.pipeline_mode<synchronous>, transform_indices = @transform_2, window_bounds = array<i64: 1, 512>}, {}, {}, {}, {pipeline_mode = #tpu.pipeline_mode<synchronous>, transform_indices = @transform_6, window_bounds = array<i64: 8, 128>}]} {
    %c0_i32 = arith.constant 0 : i32
    %0 = tpu.memref_slice %arg12[%c0_i32] : memref<3x!tpu.dma_semaphore, #tpu.memory_space<semaphore_mem>> -> memref<1x!tpu.dma_semaphore, #tpu.memory_space<semaphore_mem>>
    %1 = tpu.memref_squeeze %0 : memref<1x!tpu.dma_semaphore, #tpu.memory_space<semaphore_mem>> -> memref<!tpu.dma_semaphore, #tpu.memory_space<semaphore_mem>>
    tpu.enqueue_dma source(%arg4 : memref<128x512xf32, #tpu.memory_space<any>>) target(%arg9 : memref<128x512xf32, #tpu.memory_space<vmem>>) target_semaphore(%1 : memref<!tpu.dma_semaphore, #tpu.memory_space<semaphore_mem>>)
    %c1_i32 = arith.constant 1 : i32
    %2 = tpu.memref_slice %arg12[%c1_i32] : memref<3x!tpu.dma_semaphore, #tpu.memory_space<semaphore_mem>> -> memref<1x!tpu.dma_semaphore, #tpu.memory_space<semaphore_mem>>
    %3 = tpu.memref_squeeze %2 : memref<1x!tpu.dma_semaphore, #tpu.memory_space<semaphore_mem>> -> memref<!tpu.dma_semaphore, #tpu.memory_space<semaphore_mem>>
    tpu.enqueue_dma source(%arg5 : memref<128x128xf32, #tpu.memory_space<any>>) target(%arg10 : memref<128x128xf32, #tpu.memory_space<vmem>>) target_semaphore(%3 : memref<!tpu.dma_semaphore, #tpu.memory_space<semaphore_mem>>)
    %c2_i32 = arith.constant 2 : i32
    %4 = tpu.memref_slice %arg12[%c2_i32] : memref<3x!tpu.dma_semaphore, #tpu.memory_space<semaphore_mem>> -> memref<1x!tpu.dma_semaphore, #tpu.memory_space<semaphore_mem>>
    %5 = tpu.memref_squeeze %4 : memref<1x!tpu.dma_semaphore, #tpu.memory_space<semaphore_mem>> -> memref<!tpu.dma_semaphore, #tpu.memory_space<semaphore_mem>>
    tpu.enqueue_dma source(%arg6 : memref<1x128xf32, #tpu.memory_space<any>>) target(%arg11 : memref<1x128xf32, #tpu.memory_space<vmem>>) target_semaphore(%5 : memref<!tpu.dma_semaphore, #tpu.memory_space<semaphore_mem>>)
    %c0 = arith.constant 0 : index
    %c0_0 = arith.constant 0 : index
    %6 = vector.load %arg1[%c0, %c0_0] : memref<200x128xf32, #tpu.memory_space<vmem>>, vector<200x128xf32>
    %c0_1 = arith.constant 0 : index
    %c0_2 = arith.constant 0 : index
    %7 = vector.load %arg2[%c0_1, %c0_2] : memref<128x512xf32, #tpu.memory_space<vmem>>, vector<128x512xf32>
    %cst = arith.constant dense<0.000000e+00> : vector<200x512xf32>
    %8 = tpu.matmul %6, %7, %cst {dimension_numbers = #tpu.dot_dimension_numbers<[1], [0], [0], [1], [0, 0, 1, 1], [], []>} : vector<200x128xf32>, vector<128x512xf32>, vector<200x512xf32> -> vector<200x512xf32>
    %c0_3 = arith.constant 0 : index
    %c0_4 = arith.constant 0 : index
    %9 = vector.load %arg3[%c0_3, %c0_4] : memref<1x512xf32, #tpu.memory_space<vmem>>, vector<1x512xf32>
    %10 = vector.broadcast %9 : vector<1x512xf32> to vector<200x512xf32>
    %11 = arith.addf %8, %10 : vector<200x512xf32>
    %c0_5 = arith.constant 0 : index
    %c0_6 = arith.constant 0 : index
    %12 = vector.load %arg8[%c0_5, %c0_6] : memref<200x512xf32, #tpu.memory_space<vmem>>, vector<200x512xf32>
    tpu.vector_store %arg8[%c0_5, %c0_6], %11 {strides = array<i32>} : memref<200x512xf32, #tpu.memory_space<vmem>>, vector<200x512xf32>,
    %c0_i32_7 = arith.constant 0 : i32
    %13 = tpu.memref_slice %arg12[%c0_i32_7] : memref<3x!tpu.dma_semaphore, #tpu.memory_space<semaphore_mem>> -> memref<1x!tpu.dma_semaphore, #tpu.memory_space<semaphore_mem>>
    %14 = tpu.memref_squeeze %13 : memref<1x!tpu.dma_semaphore, #tpu.memory_space<semaphore_mem>> -> memref<!tpu.dma_semaphore, #tpu.memory_space<semaphore_mem>>
    tpu.wait_dma2 semaphore(%14 : memref<!tpu.dma_semaphore, #tpu.memory_space<semaphore_mem>>) src(%arg4 : memref<128x512xf32, #tpu.memory_space<any>>) dst(%arg9 : memref<128x512xf32, #tpu.memory_space<vmem>>)
    %cst_8 = arith.constant 0.000000e+00 : f32
    %15 = vector.broadcast %cst_8 : f32 to vector<8x128xf32>
    %cst_9 = arith.constant 0.000000e+00 : f32
    %16 = vector.broadcast %cst_9 : f32 to vector<8x128xf32>
    %c0_i32_10 = arith.constant 0 : i32
    %c8_i32 = arith.constant 8 : i32
    %17 = arith.muli %c0_i32_10, %c8_i32 : i32
    %18 = tpu.assume_multiple %17, 8 : i32
    %19 = arith.index_cast %18 : i32 to index
    %c0_11 = arith.constant 0 : index
    %20 = vector.load %arg8[%19, %c0_11] : memref<200x512xf32, #tpu.memory_space<vmem>>, vector<8x512xf32>
    %c0_12 = arith.constant 0 : index
    %c0_13 = arith.constant 0 : index
    %21 = vector.load %arg9[%c0_12, %c0_13] : memref<128x512xf32, #tpu.memory_space<vmem>>, vector<128x128xf32>
    %22 = vector.extract_strided_slice %20 {offsets = [0, 0], sizes = [8, 128], strides = [1, 1]} : vector<8x512xf32> to vector<8x128xf32>
    %cst_14 = arith.constant dense<0.000000e+00> : vector<8x128xf32>
    %23 = tpu.matmul %15, %21, %cst_14 {dimension_numbers = #tpu.dot_dimension_numbers<[1], [0], [0], [1], [0, 0, 1, 1], [], []>} : vector<8x128xf32>, vector<128x128xf32>, vector<8x128xf32> -> vector<8x128xf32>
    %24 = arith.addf %22, %23 : vector<8x128xf32>
    %cst_15 = arith.constant 5.000000e-01 : f32
    %25 = vector.broadcast %cst_15 : f32 to vector<8x128xf32>
    %26 = arith.mulf %25, %24 : vector<8x128xf32>
    %27 = math.tanh %26 : vector<8x128xf32>
    %cst_16 = arith.constant 5.000000e-01 : f32
    %28 = vector.broadcast %cst_16 : f32 to vector<8x128xf32>
    %29 = arith.mulf %28, %27 : vector<8x128xf32>
    %cst_17 = arith.constant 5.000000e-01 : f32
    %30 = vector.broadcast %cst_17 : f32 to vector<8x128xf32>
    %31 = arith.addf %29, %30 : vector<8x128xf32>
    %c0_18 = arith.constant 0 : index
    %c128 = arith.constant 128 : index
    %32 = vector.load %arg9[%c0_18, %c128] : memref<128x512xf32, #tpu.memory_space<vmem>>, vector<128x128xf32>
    %33 = vector.extract_strided_slice %20 {offsets = [0, 128], sizes = [8, 128], strides = [1, 1]} : vector<8x512xf32> to vector<8x128xf32>
    %cst_19 = arith.constant dense<0.000000e+00> : vector<8x128xf32>
    %34 = tpu.matmul %15, %32, %cst_19 {dimension_numbers = #tpu.dot_dimension_numbers<[1], [0], [0], [1], [0, 0, 1, 1], [], []>} : vector<8x128xf32>, vector<128x128xf32>, vector<8x128xf32> -> vector<8x128xf32>
    %35 = arith.addf %33, %34 : vector<8x128xf32>
    %cst_20 = arith.constant 5.000000e-01 : f32
    %36 = vector.broadcast %cst_20 : f32 to vector<8x128xf32>
    %37 = arith.mulf %36, %35 : vector<8x128xf32>
    %38 = math.tanh %37 : vector<8x128xf32>
    %cst_21 = arith.constant 5.000000e-01 : f32
    %39 = vector.broadcast %cst_21 : f32 to vector<8x128xf32>
    %40 = arith.mulf %39, %38 : vector<8x128xf32>
    %cst_22 = arith.constant 5.000000e-01 : f32
    %41 = vector.broadcast %cst_22 : f32 to vector<8x128xf32>
    %42 = arith.addf %40, %41 : vector<8x128xf32>
    %c0_23 = arith.constant 0 : index
    %c256 = arith.constant 256 : index
    %43 = vector.load %arg9[%c0_23, %c256] : memref<128x512xf32, #tpu.memory_space<vmem>>, vector<128x128xf32>
    %44 = vector.extract_strided_slice %20 {offsets = [0, 256], sizes = [8, 128], strides = [1, 1]} : vector<8x512xf32> to vector<8x128xf32>
    %cst_24 = arith.constant dense<0.000000e+00> : vector<8x128xf32>
    %45 = tpu.matmul %15, %43, %cst_24 {dimension_numbers = #tpu.dot_dimension_numbers<[1], [0], [0], [1], [0, 0, 1, 1], [], []>} : vector<8x128xf32>, vector<128x128xf32>, vector<8x128xf32> -> vector<8x128xf32>
    %46 = arith.addf %44, %45 : vector<8x128xf32>
    %47 = math.tanh %46 : vector<8x128xf32>
    %c0_25 = arith.constant 0 : index
    %c384 = arith.constant 384 : index
    %48 = vector.load %arg9[%c0_25, %c384] : memref<128x512xf32, #tpu.memory_space<vmem>>, vector<128x128xf32>
    %49 = vector.extract_strided_slice %20 {offsets = [0, 384], sizes = [8, 128], strides = [1, 1]} : vector<8x512xf32> to vector<8x128xf32>
    %cst_26 = arith.constant dense<0.000000e+00> : vector<8x128xf32>
    %50 = tpu.matmul %15, %48, %cst_26 {dimension_numbers = #tpu.dot_dimension_numbers<[1], [0], [0], [1], [0, 0, 1, 1], [], []>} : vector<8x128xf32>, vector<128x128xf32>, vector<8x128xf32> -> vector<8x128xf32>
    %51 = arith.addf %49, %50 : vector<8x128xf32>
    %cst_27 = arith.constant 5.000000e-01 : f32
    %52 = vector.broadcast %cst_27 : f32 to vector<8x128xf32>
    %53 = arith.mulf %52, %51 : vector<8x128xf32>
    %54 = math.tanh %53 : vector<8x128xf32>
    %cst_28 = arith.constant 5.000000e-01 : f32
    %55 = vector.broadcast %cst_28 : f32 to vector<8x128xf32>
    %56 = arith.mulf %55, %54 : vector<8x128xf32>
    %cst_29 = arith.constant 5.000000e-01 : f32
    %57 = vector.broadcast %cst_29 : f32 to vector<8x128xf32>
    %58 = arith.addf %56, %57 : vector<8x128xf32>
    %59 = arith.mulf %42, %16 : vector<8x128xf32>
    %60 = arith.mulf %31, %47 : vector<8x128xf32>
    %61 = arith.addf %59, %60 : vector<8x128xf32>
    %62 = math.tanh %61 : vector<8x128xf32>
    %63 = arith.mulf %58, %62 : vector<8x128xf32>
    %c1_i32_30 = arith.constant 1 : i32
    %c8_i32_31 = arith.constant 8 : i32
    %64 = arith.muli %c1_i32_30, %c8_i32_31 : i32
    %65 = tpu.assume_multiple %64, 8 : i32
    %66 = arith.index_cast %65 : i32 to index
    %c0_32 = arith.constant 0 : index
    %67 = vector.load %arg8[%66, %c0_32] : memref<200x512xf32, #tpu.memory_space<vmem>>, vector<8x512xf32>
    %c0_33 = arith.constant 0 : index
    %c0_34 = arith.constant 0 : index
    %68 = vector.load %arg9[%c0_33, %c0_34] : memref<128x512xf32, #tpu.memory_space<vmem>>, vector<128x128xf32>
    %69 = vector.extract_strided_slice %67 {offsets = [0, 0], sizes = [8, 128], strides = [1, 1]} : vector<8x512xf32> to vector<8x128xf32>
    %cst_35 = arith.constant dense<0.000000e+00> : vector<8x128xf32>
    %70 = tpu.matmul %63, %68, %cst_35 {dimension_numbers = #tpu.dot_dimension_numbers<[1], [0], [0], [1], [0, 0, 1, 1], [], []>} : vector<8x128xf32>, vector<128x128xf32>, vector<8x128xf32> -> vector<8x128xf32>
    %71 = arith.addf %69, %70 : vector<8x128xf32>
    %cst_36 = arith.constant 5.000000e-01 : f32
    %72 = vector.broadcast %cst_36 : f32 to vector<8x128xf32>
    %73 = arith.mulf %72, %71 : vector<8x128xf32>
    %74 = math.tanh %73 : vector<8x128xf32>
    %cst_37 = arith.constant 5.000000e-01 : f32
    %75 = vector.broadcast %cst_37 : f32 to vector<8x128xf32>
    %76 = arith.mulf %75, %74 : vector<8x128xf32>
    %cst_38 = arith.constant 5.000000e-01 : f32
    %77 = vector.broadcast %cst_38 : f32 to vector<8x128xf32>
    %78 = arith.addf %76, %77 : vector<8x128xf32>
    %c0_39 = arith.constant 0 : index
    %c128_40 = arith.constant 128 : index
    %79 = vector.load %arg9[%c0_39, %c128_40] : memref<128x512xf32, #tpu.memory_space<vmem>>, vector<128x128xf32>
    %80 = vector.extract_strided_slice %67 {offsets = [0, 128], sizes = [8, 128], strides = [1, 1]} : vector<8x512xf32> to vector<8x128xf32>
    %cst_41 = arith.constant dense<0.000000e+00> : vector<8x128xf32>
    %81 = tpu.matmul %63, %79, %cst_41 {dimension_numbers = #tpu.dot_dimension_numbers<[1], [0], [0], [1], [0, 0, 1, 1], [], []>} : vector<8x128xf32>, vector<128x128xf32>, vector<8x128xf32> -> vector<8x128xf32>
    %82 = arith.addf %80, %81 : vector<8x128xf32>
    %cst_42 = arith.constant 5.000000e-01 : f32
    %83 = vector.broadcast %cst_42 : f32 to vector<8x128xf32>
    %84 = arith.mulf %83, %82 : vector<8x128xf32>
    %85 = math.tanh %84 : vector<8x128xf32>
    %cst_43 = arith.constant 5.000000e-01 : f32
    %86 = vector.broadcast %cst_43 : f32 to vector<8x128xf32>
    %87 = arith.mulf %86, %85 : vector<8x128xf32>
    %cst_44 = arith.constant 5.000000e-01 : f32
    %88 = vector.broadcast %cst_44 : f32 to vector<8x128xf32>
    %89 = arith.addf %87, %88 : vector<8x128xf32>
    %c0_45 = arith.constant 0 : index
    %c256_46 = arith.constant 256 : index
    %90 = vector.load %arg9[%c0_45, %c256_46] : memref<128x512xf32, #tpu.memory_space<vmem>>, vector<128x128xf32>
    %91 = vector.extract_strided_slice %67 {offsets = [0, 256], sizes = [8, 128], strides = [1, 1]} : vector<8x512xf32> to vector<8x128xf32>
    %cst_47 = arith.constant dense<0.000000e+00> : vector<8x128xf32>
    %92 = tpu.matmul %63, %90, %cst_47 {dimension_numbers = #tpu.dot_dimension_numbers<[1], [0], [0], [1], [0, 0, 1, 1], [], []>} : vector<8x128xf32>, vector<128x128xf32>, vector<8x128xf32> -> vector<8x128xf32>
    %93 = arith.addf %91, %92 : vector<8x128xf32>
    %94 = math.tanh %93 : vector<8x128xf32>
    %c0_48 = arith.constant 0 : index
    %c384_49 = arith.constant 384 : index
    %95 = vector.load %arg9[%c0_48, %c384_49] : memref<128x512xf32, #tpu.memory_space<vmem>>, vector<128x128xf32>
    %96 = vector.extract_strided_slice %67 {offsets = [0, 384], sizes = [8, 128], strides = [1, 1]} : vector<8x512xf32> to vector<8x128xf32>
    %cst_50 = arith.constant dense<0.000000e+00> : vector<8x128xf32>
    %97 = tpu.matmul %63, %95, %cst_50 {dimension_numbers = #tpu.dot_dimension_numbers<[1], [0], [0], [1], [0, 0, 1, 1], [], []>} : vector<8x128xf32>, vector<128x128xf32>, vector<8x128xf32> -> vector<8x128xf32>
    %98 = arith.addf %96, %97 : vector<8x128xf32>
    %cst_51 = arith.constant 5.000000e-01 : f32
    %99 = vector.broadcast %cst_51 : f32 to vector<8x128xf32>
    %100 = arith.mulf %99, %98 : vector<8x128xf32>
    %101 = math.tanh %100 : vector<8x128xf32>
    %cst_52 = arith.constant 5.000000e-01 : f32
    %102 = vector.broadcast %cst_52 : f32 to vector<8x128xf32>
    %103 = arith.mulf %102, %101 : vector<8x128xf32>
    %cst_53 = arith.constant 5.000000e-01 : f32
    %104 = vector.broadcast %cst_53 : f32 to vector<8x128xf32>
    %105 = arith.addf %103, %104 : vector<8x128xf32>
    %106 = arith.mulf %89, %61 : vector<8x128xf32>
    %107 = arith.mulf %78, %94 : vector<8x128xf32>
    %108 = arith.addf %106, %107 : vector<8x128xf32>
    %109 = math.tanh %108 : vector<8x128xf32>
    %110 = arith.mulf %105, %109 : vector<8x128xf32>
    %c2_i32_54 = arith.constant 2 : i32
    %c8_i32_55 = arith.constant 8 : i32
    %111 = arith.muli %c2_i32_54, %c8_i32_55 : i32
    %112 = tpu.assume_multiple %111, 8 : i32
    %113 = arith.index_cast %112 : i32 to index
    %c0_56 = arith.constant 0 : index
    %114 = vector.load %arg8[%113, %c0_56] : memref<200x512xf32, #tpu.memory_space<vmem>>, vector<8x512xf32>
    %c0_57 = arith.constant 0 : index
    %c0_58 = arith.constant 0 : index
    %115 = vector.load %arg9[%c0_57, %c0_58] : memref<128x512xf32, #tpu.memory_space<vmem>>, vector<128x128xf32>
    %116 = vector.extract_strided_slice %114 {offsets = [0, 0], sizes = [8, 128], strides = [1, 1]} : vector<8x512xf32> to vector<8x128xf32>
    %cst_59 = arith.constant dense<0.000000e+00> : vector<8x128xf32>
    %117 = tpu.matmul %110, %115, %cst_59 {dimension_numbers = #tpu.dot_dimension_numbers<[1], [0], [0], [1], [0, 0, 1, 1], [], []>} : vector<8x128xf32>, vector<128x128xf32>, vector<8x128xf32> -> vector<8x128xf32>
    %118 = arith.addf %116, %117 : vector<8x128xf32>
    %cst_60 = arith.constant 5.000000e-01 : f32
    %119 = vector.broadcast %cst_60 : f32 to vector<8x128xf32>
    %120 = arith.mulf %119, %118 : vector<8x128xf32>
    %121 = math.tanh %120 : vector<8x128xf32>
    %cst_61 = arith.constant 5.000000e-01 : f32
    %122 = vector.broadcast %cst_61 : f32 to vector<8x128xf32>
    %123 = arith.mulf %122, %121 : vector<8x128xf32>
    %cst_62 = arith.constant 5.000000e-01 : f32
    %124 = vector.broadcast %cst_62 : f32 to vector<8x128xf32>
    %125 = arith.addf %123, %124 : vector<8x128xf32>
    %c0_63 = arith.constant 0 : index
    %c128_64 = arith.constant 128 : index
    %126 = vector.load %arg9[%c0_63, %c128_64] : memref<128x512xf32, #tpu.memory_space<vmem>>, vector<128x128xf32>
    %127 = vector.extract_strided_slice %114 {offsets = [0, 128], sizes = [8, 128], strides = [1, 1]} : vector<8x512xf32> to vector<8x128xf32>
    %cst_65 = arith.constant dense<0.000000e+00> : vector<8x128xf32>
    %128 = tpu.matmul %110, %126, %cst_65 {dimension_numbers = #tpu.dot_dimension_numbers<[1], [0], [0], [1], [0, 0, 1, 1], [], []>} : vector<8x128xf32>, vector<128x128xf32>, vector<8x128xf32> -> vector<8x128xf32>
    %129 = arith.addf %127, %128 : vector<8x128xf32>
    %cst_66 = arith.constant 5.000000e-01 : f32
    %130 = vector.broadcast %cst_66 : f32 to vector<8x128xf32>
    %131 = arith.mulf %130, %129 : vector<8x128xf32>
    %132 = math.tanh %131 : vector<8x128xf32>
    %cst_67 = arith.constant 5.000000e-01 : f32
    %133 = vector.broadcast %cst_67 : f32 to vector<8x128xf32>
    %134 = arith.mulf %133, %132 : vector<8x128xf32>
    %cst_68 = arith.constant 5.000000e-01 : f32
    %135 = vector.broadcast %cst_68 : f32 to vector<8x128xf32>
    %136 = arith.addf %134, %135 : vector<8x128xf32>
    %c0_69 = arith.constant 0 : index
    %c256_70 = arith.constant 256 : index
    %137 = vector.load %arg9[%c0_69, %c256_70] : memref<128x512xf32, #tpu.memory_space<vmem>>, vector<128x128xf32>
    %138 = vector.extract_strided_slice %114 {offsets = [0, 256], sizes = [8, 128], strides = [1, 1]} : vector<8x512xf32> to vector<8x128xf32>
    %cst_71 = arith.constant dense<0.000000e+00> : vector<8x128xf32>
    %139 = tpu.matmul %110, %137, %cst_71 {dimension_numbers = #tpu.dot_dimension_numbers<[1], [0], [0], [1], [0, 0, 1, 1], [], []>} : vector<8x128xf32>, vector<128x128xf32>, vector<8x128xf32> -> vector<8x128xf32>
    %140 = arith.addf %138, %139 : vector<8x128xf32>
    %141 = math.tanh %140 : vector<8x128xf32>
    %c0_72 = arith.constant 0 : index
    %c384_73 = arith.constant 384 : index
    %142 = vector.load %arg9[%c0_72, %c384_73] : memref<128x512xf32, #tpu.memory_space<vmem>>, vector<128x128xf32>
    %143 = vector.extract_strided_slice %114 {offsets = [0, 384], sizes = [8, 128], strides = [1, 1]} : vector<8x512xf32> to vector<8x128xf32>
    %cst_74 = arith.constant dense<0.000000e+00> : vector<8x128xf32>
    %144 = tpu.matmul %110, %142, %cst_74 {dimension_numbers = #tpu.dot_dimension_numbers<[1], [0], [0], [1], [0, 0, 1, 1], [], []>} : vector<8x128xf32>, vector<128x128xf32>, vector<8x128xf32> -> vector<8x128xf32>
    %145 = arith.addf %143, %144 : vector<8x128xf32>
    %cst_75 = arith.constant 5.000000e-01 : f32
    %146 = vector.broadcast %cst_75 : f32 to vector<8x128xf32>
    %147 = arith.mulf %146, %145 : vector<8x128xf32>
    %148 = math.tanh %147 : vector<8x128xf32>
    %cst_76 = arith.constant 5.000000e-01 : f32
    %149 = vector.broadcast %cst_76 : f32 to vector<8x128xf32>
    %150 = arith.mulf %149, %148 : vector<8x128xf32>
    %cst_77 = arith.constant 5.000000e-01 : f32
    %151 = vector.broadcast %cst_77 : f32 to vector<8x128xf32>
    %152 = arith.addf %150, %151 : vector<8x128xf32>
    %153 = arith.mulf %136, %108 : vector<8x128xf32>
    %154 = arith.mulf %125, %141 : vector<8x128xf32>
    %155 = arith.addf %153, %154 : vector<8x128xf32>
    %156 = math.tanh %155 : vector<8x128xf32>
    %157 = arith.mulf %152, %156 : vector<8x128xf32>
    %c3_i32 = arith.constant 3 : i32
    %c8_i32_78 = arith.constant 8 : i32
    %158 = arith.muli %c3_i32, %c8_i32_78 : i32
    %159 = tpu.assume_multiple %158, 8 : i32
    %160 = arith.index_cast %159 : i32 to index
    %c0_79 = arith.constant 0 : index
    %161 = vector.load %arg8[%160, %c0_79] : memref<200x512xf32, #tpu.memory_space<vmem>>, vector<8x512xf32>
    %c0_80 = arith.constant 0 : index
    %c0_81 = arith.constant 0 : index
    %162 = vector.load %arg9[%c0_80, %c0_81] : memref<128x512xf32, #tpu.memory_space<vmem>>, vector<128x128xf32>
    %163 = vector.extract_strided_slice %161 {offsets = [0, 0], sizes = [8, 128], strides = [1, 1]} : vector<8x512xf32> to vector<8x128xf32>
    %cst_82 = arith.constant dense<0.000000e+00> : vector<8x128xf32>
    %164 = tpu.matmul %157, %162, %cst_82 {dimension_numbers = #tpu.dot_dimension_numbers<[1], [0], [0], [1], [0, 0, 1, 1], [], []>} : vector<8x128xf32>, vector<128x128xf32>, vector<8x128xf32> -> vector<8x128xf32>
    %165 = arith.addf %163, %164 : vector<8x128xf32>
    %cst_83 = arith.constant 5.000000e-01 : f32
    %166 = vector.broadcast %cst_83 : f32 to vector<8x128xf32>
    %167 = arith.mulf %166, %165 : vector<8x128xf32>
    %168 = math.tanh %167 : vector<8x128xf32>
    %cst_84 = arith.constant 5.000000e-01 : f32
    %169 = vector.broadcast %cst_84 : f32 to vector<8x128xf32>
    %170 = arith.mulf %169, %168 : vector<8x128xf32>
    %cst_85 = arith.constant 5.000000e-01 : f32
    %171 = vector.broadcast %cst_85 : f32 to vector<8x128xf32>
    %172 = arith.addf %170, %171 : vector<8x128xf32>
    %c0_86 = arith.constant 0 : index
    %c128_87 = arith.constant 128 : index
    %173 = vector.load %arg9[%c0_86, %c128_87] : memref<128x512xf32, #tpu.memory_space<vmem>>, vector<128x128xf32>
    %174 = vector.extract_strided_slice %161 {offsets = [0, 128], sizes = [8, 128], strides = [1, 1]} : vector<8x512xf32> to vector<8x128xf32>
    %cst_88 = arith.constant dense<0.000000e+00> : vector<8x128xf32>
    %175 = tpu.matmul %157, %173, %cst_88 {dimension_numbers = #tpu.dot_dimension_numbers<[1], [0], [0], [1], [0, 0, 1, 1], [], []>} : vector<8x128xf32>, vector<128x128xf32>, vector<8x128xf32> -> vector<8x128xf32>
    %176 = arith.addf %174, %175 : vector<8x128xf32>
    %cst_89 = arith.constant 5.000000e-01 : f32
    %177 = vector.broadcast %cst_89 : f32 to vector<8x128xf32>
    %178 = arith.mulf %177, %176 : vector<8x128xf32>
    %179 = math.tanh %178 : vector<8x128xf32>
    %cst_90 = arith.constant 5.000000e-01 : f32
    %180 = vector.broadcast %cst_90 : f32 to vector<8x128xf32>
    %181 = arith.mulf %180, %179 : vector<8x128xf32>
    %cst_91 = arith.constant 5.000000e-01 : f32
    %182 = vector.broadcast %cst_91 : f32 to vector<8x128xf32>
    %183 = arith.addf %181, %182 : vector<8x128xf32>
    %c0_92 = arith.constant 0 : index
    %c256_93 = arith.constant 256 : index
    %184 = vector.load %arg9[%c0_92, %c256_93] : memref<128x512xf32, #tpu.memory_space<vmem>>, vector<128x128xf32>
    %185 = vector.extract_strided_slice %161 {offsets = [0, 256], sizes = [8, 128], strides = [1, 1]} : vector<8x512xf32> to vector<8x128xf32>
    %cst_94 = arith.constant dense<0.000000e+00> : vector<8x128xf32>
    %186 = tpu.matmul %157, %184, %cst_94 {dimension_numbers = #tpu.dot_dimension_numbers<[1], [0], [0], [1], [0, 0, 1, 1], [], []>} : vector<8x128xf32>, vector<128x128xf32>, vector<8x128xf32> -> vector<8x128xf32>
    %187 = arith.addf %185, %186 : vector<8x128xf32>
    %188 = math.tanh %187 : vector<8x128xf32>
    %c0_95 = arith.constant 0 : index
    %c384_96 = arith.constant 384 : index
    %189 = vector.load %arg9[%c0_95, %c384_96] : memref<128x512xf32, #tpu.memory_space<vmem>>, vector<128x128xf32>
    %190 = vector.extract_strided_slice %161 {offsets = [0, 384], sizes = [8, 128], strides = [1, 1]} : vector<8x512xf32> to vector<8x128xf32>
    %cst_97 = arith.constant dense<0.000000e+00> : vector<8x128xf32>
    %191 = tpu.matmul %157, %189, %cst_97 {dimension_numbers = #tpu.dot_dimension_numbers<[1], [0], [0], [1], [0, 0, 1, 1], [], []>} : vector<8x128xf32>, vector<128x128xf32>, vector<8x128xf32> -> vector<8x128xf32>
    %192 = arith.addf %190, %191 : vector<8x128xf32>
    %cst_98 = arith.constant 5.000000e-01 : f32
    %193 = vector.broadcast %cst_98 : f32 to vector<8x128xf32>
    %194 = arith.mulf %193, %192 : vector<8x128xf32>
    %195 = math.tanh %194 : vector<8x128xf32>
    %cst_99 = arith.constant 5.000000e-01 : f32
    %196 = vector.broadcast %cst_99 : f32 to vector<8x128xf32>
    %197 = arith.mulf %196, %195 : vector<8x128xf32>
    %cst_100 = arith.constant 5.000000e-01 : f32
    %198 = vector.broadcast %cst_100 : f32 to vector<8x128xf32>
    %199 = arith.addf %197, %198 : vector<8x128xf32>
    %200 = arith.mulf %183, %155 : vector<8x128xf32>
    %201 = arith.mulf %172, %188 : vector<8x128xf32>
    %202 = arith.addf %200, %201 : vector<8x128xf32>
    %203 = math.tanh %202 : vector<8x128xf32>
    %204 = arith.mulf %199, %203 : vector<8x128xf32>
    %c4_i32 = arith.constant 4 : i32
    %c8_i32_101 = arith.constant 8 : i32
    %205 = arith.muli %c4_i32, %c8_i32_101 : i32
    %206 = tpu.assume_multiple %205, 8 : i32
    %207 = arith.index_cast %206 : i32 to index
    %c0_102 = arith.constant 0 : index
    %208 = vector.load %arg8[%207, %c0_102] : memref<200x512xf32, #tpu.memory_space<vmem>>, vector<8x512xf32>
    %c0_103 = arith.constant 0 : index
    %c0_104 = arith.constant 0 : index
    %209 = vector.load %arg9[%c0_103, %c0_104] : memref<128x512xf32, #tpu.memory_space<vmem>>, vector<128x128xf32>
    %210 = vector.extract_strided_slice %208 {offsets = [0, 0], sizes = [8, 128], strides = [1, 1]} : vector<8x512xf32> to vector<8x128xf32>
    %cst_105 = arith.constant dense<0.000000e+00> : vector<8x128xf32>
    %211 = tpu.matmul %204, %209, %cst_105 {dimension_numbers = #tpu.dot_dimension_numbers<[1], [0], [0], [1], [0, 0, 1, 1], [], []>} : vector<8x128xf32>, vector<128x128xf32>, vector<8x128xf32> -> vector<8x128xf32>
    %212 = arith.addf %210, %211 : vector<8x128xf32>
    %cst_106 = arith.constant 5.000000e-01 : f32
    %213 = vector.broadcast %cst_106 : f32 to vector<8x128xf32>
    %214 = arith.mulf %213, %212 : vector<8x128xf32>
    %215 = math.tanh %214 : vector<8x128xf32>
    %cst_107 = arith.constant 5.000000e-01 : f32
    %216 = vector.broadcast %cst_107 : f32 to vector<8x128xf32>
    %217 = arith.mulf %216, %215 : vector<8x128xf32>
    %cst_108 = arith.constant 5.000000e-01 : f32
    %218 = vector.broadcast %cst_108 : f32 to vector<8x128xf32>
    %219 = arith.addf %217, %218 : vector<8x128xf32>
    %c0_109 = arith.constant 0 : index
    %c128_110 = arith.constant 128 : index
    %220 = vector.load %arg9[%c0_109, %c128_110] : memref<128x512xf32, #tpu.memory_space<vmem>>, vector<128x128xf32>
    %221 = vector.extract_strided_slice %208 {offsets = [0, 128], sizes = [8, 128], strides = [1, 1]} : vector<8x512xf32> to vector<8x128xf32>
    %cst_111 = arith.constant dense<0.000000e+00> : vector<8x128xf32>
    %222 = tpu.matmul %204, %220, %cst_111 {dimension_numbers = #tpu.dot_dimension_numbers<[1], [0], [0], [1], [0, 0, 1, 1], [], []>} : vector<8x128xf32>, vector<128x128xf32>, vector<8x128xf32> -> vector<8x128xf32>
    %223 = arith.addf %221, %222 : vector<8x128xf32>
    %cst_112 = arith.constant 5.000000e-01 : f32
    %224 = vector.broadcast %cst_112 : f32 to vector<8x128xf32>
    %225 = arith.mulf %224, %223 : vector<8x128xf32>
    %226 = math.tanh %225 : vector<8x128xf32>
    %cst_113 = arith.constant 5.000000e-01 : f32
    %227 = vector.broadcast %cst_113 : f32 to vector<8x128xf32>
    %228 = arith.mulf %227, %226 : vector<8x128xf32>
    %cst_114 = arith.constant 5.000000e-01 : f32
    %229 = vector.broadcast %cst_114 : f32 to vector<8x128xf32>
    %230 = arith.addf %228, %229 : vector<8x128xf32>
    %c0_115 = arith.constant 0 : index
    %c256_116 = arith.constant 256 : index
    %231 = vector.load %arg9[%c0_115, %c256_116] : memref<128x512xf32, #tpu.memory_space<vmem>>, vector<128x128xf32>
    %232 = vector.extract_strided_slice %208 {offsets = [0, 256], sizes = [8, 128], strides = [1, 1]} : vector<8x512xf32> to vector<8x128xf32>
    %cst_117 = arith.constant dense<0.000000e+00> : vector<8x128xf32>
    %233 = tpu.matmul %204, %231, %cst_117 {dimension_numbers = #tpu.dot_dimension_numbers<[1], [0], [0], [1], [0, 0, 1, 1], [], []>} : vector<8x128xf32>, vector<128x128xf32>, vector<8x128xf32> -> vector<8x128xf32>
    %234 = arith.addf %232, %233 : vector<8x128xf32>
    %235 = math.tanh %234 : vector<8x128xf32>
    %c0_118 = arith.constant 0 : index
    %c384_119 = arith.constant 384 : index
    %236 = vector.load %arg9[%c0_118, %c384_119] : memref<128x512xf32, #tpu.memory_space<vmem>>, vector<128x128xf32>
    %237 = vector.extract_strided_slice %208 {offsets = [0, 384], sizes = [8, 128], strides = [1, 1]} : vector<8x512xf32> to vector<8x128xf32>
    %cst_120 = arith.constant dense<0.000000e+00> : vector<8x128xf32>
    %238 = tpu.matmul %204, %236, %cst_120 {dimension_numbers = #tpu.dot_dimension_numbers<[1], [0], [0], [1], [0, 0, 1, 1], [], []>} : vector<8x128xf32>, vector<128x128xf32>, vector<8x128xf32> -> vector<8x128xf32>
    %239 = arith.addf %237, %238 : vector<8x128xf32>
    %cst_121 = arith.constant 5.000000e-01 : f32
    %240 = vector.broadcast %cst_121 : f32 to vector<8x128xf32>
    %241 = arith.mulf %240, %239 : vector<8x128xf32>
    %242 = math.tanh %241 : vector<8x128xf32>
    %cst_122 = arith.constant 5.000000e-01 : f32
    %243 = vector.broadcast %cst_122 : f32 to vector<8x128xf32>
    %244 = arith.mulf %243, %242 : vector<8x128xf32>
    %cst_123 = arith.constant 5.000000e-01 : f32
    %245 = vector.broadcast %cst_123 : f32 to vector<8x128xf32>
    %246 = arith.addf %244, %245 : vector<8x128xf32>
    %247 = arith.mulf %230, %202 : vector<8x128xf32>
    %248 = arith.mulf %219, %235 : vector<8x128xf32>
    %249 = arith.addf %247, %248 : vector<8x128xf32>
    %250 = math.tanh %249 : vector<8x128xf32>
    %251 = arith.mulf %246, %250 : vector<8x128xf32>
    %c5_i32 = arith.constant 5 : i32
    %c8_i32_124 = arith.constant 8 : i32
    %252 = arith.muli %c5_i32, %c8_i32_124 : i32
    %253 = tpu.assume_multiple %252, 8 : i32
    %254 = arith.index_cast %253 : i32 to index
    %c0_125 = arith.constant 0 : index
    %255 = vector.load %arg8[%254, %c0_125] : memref<200x512xf32, #tpu.memory_space<vmem>>, vector<8x512xf32>
    %c0_126 = arith.constant 0 : index
    %c0_127 = arith.constant 0 : index
    %256 = vector.load %arg9[%c0_126, %c0_127] : memref<128x512xf32, #tpu.memory_space<vmem>>, vector<128x128xf32>
    %257 = vector.extract_strided_slice %255 {offsets = [0, 0], sizes = [8, 128], strides = [1, 1]} : vector<8x512xf32> to vector<8x128xf32>
    %cst_128 = arith.constant dense<0.000000e+00> : vector<8x128xf32>
    %258 = tpu.matmul %251, %256, %cst_128 {dimension_numbers = #tpu.dot_dimension_numbers<[1], [0], [0], [1], [0, 0, 1, 1], [], []>} : vector<8x128xf32>, vector<128x128xf32>, vector<8x128xf32> -> vector<8x128xf32>
    %259 = arith.addf %257, %258 : vector<8x128xf32>
    %cst_129 = arith.constant 5.000000e-01 : f32
    %260 = vector.broadcast %cst_129 : f32 to vector<8x128xf32>
    %261 = arith.mulf %260, %259 : vector<8x128xf32>
    %262 = math.tanh %261 : vector<8x128xf32>
    %cst_130 = arith.constant 5.000000e-01 : f32
    %263 = vector.broadcast %cst_130 : f32 to vector<8x128xf32>
    %264 = arith.mulf %263, %262 : vector<8x128xf32>
    %cst_131 = arith.constant 5.000000e-01 : f32
    %265 = vector.broadcast %cst_131 : f32 to vector<8x128xf32>
    %266 = arith.addf %264, %265 : vector<8x128xf32>
    %c0_132 = arith.constant 0 : index
    %c128_133 = arith.constant 128 : index
    %267 = vector.load %arg9[%c0_132, %c128_133] : memref<128x512xf32, #tpu.memory_space<vmem>>, vector<128x128xf32>
    %268 = vector.extract_strided_slice %255 {offsets = [0, 128], sizes = [8, 128], strides = [1, 1]} : vector<8x512xf32> to vector<8x128xf32>
    %cst_134 = arith.constant dense<0.000000e+00> : vector<8x128xf32>
    %269 = tpu.matmul %251, %267, %cst_134 {dimension_numbers = #tpu.dot_dimension_numbers<[1], [0], [0], [1], [0, 0, 1, 1], [], []>} : vector<8x128xf32>, vector<128x128xf32>, vector<8x128xf32> -> vector<8x128xf32>
    %270 = arith.addf %268, %269 : vector<8x128xf32>
    %cst_135 = arith.constant 5.000000e-01 : f32
    %271 = vector.broadcast %cst_135 : f32 to vector<8x128xf32>
    %272 = arith.mulf %271, %270 : vector<8x128xf32>
    %273 = math.tanh %272 : vector<8x128xf32>
    %cst_136 = arith.constant 5.000000e-01 : f32
    %274 = vector.broadcast %cst_136 : f32 to vector<8x128xf32>
    %275 = arith.mulf %274, %273 : vector<8x128xf32>
    %cst_137 = arith.constant 5.000000e-01 : f32
    %276 = vector.broadcast %cst_137 : f32 to vector<8x128xf32>
    %277 = arith.addf %275, %276 : vector<8x128xf32>
    %c0_138 = arith.constant 0 : index
    %c256_139 = arith.constant 256 : index
    %278 = vector.load %arg9[%c0_138, %c256_139] : memref<128x512xf32, #tpu.memory_space<vmem>>, vector<128x128xf32>
    %279 = vector.extract_strided_slice %255 {offsets = [0, 256], sizes = [8, 128], strides = [1, 1]} : vector<8x512xf32> to vector<8x128xf32>
    %cst_140 = arith.constant dense<0.000000e+00> : vector<8x128xf32>
    %280 = tpu.matmul %251, %278, %cst_140 {dimension_numbers = #tpu.dot_dimension_numbers<[1], [0], [0], [1], [0, 0, 1, 1], [], []>} : vector<8x128xf32>, vector<128x128xf32>, vector<8x128xf32> -> vector<8x128xf32>
    %281 = arith.addf %279, %280 : vector<8x128xf32>
    %282 = math.tanh %281 : vector<8x128xf32>
    %c0_141 = arith.constant 0 : index
    %c384_142 = arith.constant 384 : index
    %283 = vector.load %arg9[%c0_141, %c384_142] : memref<128x512xf32, #tpu.memory_space<vmem>>, vector<128x128xf32>
    %284 = vector.extract_strided_slice %255 {offsets = [0, 384], sizes = [8, 128], strides = [1, 1]} : vector<8x512xf32> to vector<8x128xf32>
    %cst_143 = arith.constant dense<0.000000e+00> : vector<8x128xf32>
    %285 = tpu.matmul %251, %283, %cst_143 {dimension_numbers = #tpu.dot_dimension_numbers<[1], [0], [0], [1], [0, 0, 1, 1], [], []>} : vector<8x128xf32>, vector<128x128xf32>, vector<8x128xf32> -> vector<8x128xf32>
    %286 = arith.addf %284, %285 : vector<8x128xf32>
    %cst_144 = arith.constant 5.000000e-01 : f32
    %287 = vector.broadcast %cst_144 : f32 to vector<8x128xf32>
    %288 = arith.mulf %287, %286 : vector<8x128xf32>
    %289 = math.tanh %288 : vector<8x128xf32>
    %cst_145 = arith.constant 5.000000e-01 : f32
    %290 = vector.broadcast %cst_145 : f32 to vector<8x128xf32>
    %291 = arith.mulf %290, %289 : vector<8x128xf32>
    %cst_146 = arith.constant 5.000000e-01 : f32
    %292 = vector.broadcast %cst_146 : f32 to vector<8x128xf32>
    %293 = arith.addf %291, %292 : vector<8x128xf32>
    %294 = arith.mulf %277, %249 : vector<8x128xf32>
    %295 = arith.mulf %266, %282 : vector<8x128xf32>
    %296 = arith.addf %294, %295 : vector<8x128xf32>
    %297 = math.tanh %296 : vector<8x128xf32>
    %298 = arith.mulf %293, %297 : vector<8x128xf32>
    %c6_i32 = arith.constant 6 : i32
    %c8_i32_147 = arith.constant 8 : i32
    %299 = arith.muli %c6_i32, %c8_i32_147 : i32
    %300 = tpu.assume_multiple %299, 8 : i32
    %301 = arith.index_cast %300 : i32 to index
    %c0_148 = arith.constant 0 : index
    %302 = vector.load %arg8[%301, %c0_148] : memref<200x512xf32, #tpu.memory_space<vmem>>, vector<8x512xf32>
    %c0_149 = arith.constant 0 : index
    %c0_150 = arith.constant 0 : index
    %303 = vector.load %arg9[%c0_149, %c0_150] : memref<128x512xf32, #tpu.memory_space<vmem>>, vector<128x128xf32>
    %304 = vector.extract_strided_slice %302 {offsets = [0, 0], sizes = [8, 128], strides = [1, 1]} : vector<8x512xf32> to vector<8x128xf32>
    %cst_151 = arith.constant dense<0.000000e+00> : vector<8x128xf32>
    %305 = tpu.matmul %298, %303, %cst_151 {dimension_numbers = #tpu.dot_dimension_numbers<[1], [0], [0], [1], [0, 0, 1, 1], [], []>} : vector<8x128xf32>, vector<128x128xf32>, vector<8x128xf32> -> vector<8x128xf32>
    %306 = arith.addf %304, %305 : vector<8x128xf32>
    %cst_152 = arith.constant 5.000000e-01 : f32
    %307 = vector.broadcast %cst_152 : f32 to vector<8x128xf32>
    %308 = arith.mulf %307, %306 : vector<8x128xf32>
    %309 = math.tanh %308 : vector<8x128xf32>
    %cst_153 = arith.constant 5.000000e-01 : f32
    %310 = vector.broadcast %cst_153 : f32 to vector<8x128xf32>
    %311 = arith.mulf %310, %309 : vector<8x128xf32>
    %cst_154 = arith.constant 5.000000e-01 : f32
    %312 = vector.broadcast %cst_154 : f32 to vector<8x128xf32>
    %313 = arith.addf %311, %312 : vector<8x128xf32>
    %c0_155 = arith.constant 0 : index
    %c128_156 = arith.constant 128 : index
    %314 = vector.load %arg9[%c0_155, %c128_156] : memref<128x512xf32, #tpu.memory_space<vmem>>, vector<128x128xf32>
    %315 = vector.extract_strided_slice %302 {offsets = [0, 128], sizes = [8, 128], strides = [1, 1]} : vector<8x512xf32> to vector<8x128xf32>
    %cst_157 = arith.constant dense<0.000000e+00> : vector<8x128xf32>
    %316 = tpu.matmul %298, %314, %cst_157 {dimension_numbers = #tpu.dot_dimension_numbers<[1], [0], [0], [1], [0, 0, 1, 1], [], []>} : vector<8x128xf32>, vector<128x128xf32>, vector<8x128xf32> -> vector<8x128xf32>
    %317 = arith.addf %315, %316 : vector<8x128xf32>
    %cst_158 = arith.constant 5.000000e-01 : f32
    %318 = vector.broadcast %cst_158 : f32 to vector<8x128xf32>
    %319 = arith.mulf %318, %317 : vector<8x128xf32>
    %320 = math.tanh %319 : vector<8x128xf32>
    %cst_159 = arith.constant 5.000000e-01 : f32
    %321 = vector.broadcast %cst_159 : f32 to vector<8x128xf32>
    %322 = arith.mulf %321, %320 : vector<8x128xf32>
    %cst_160 = arith.constant 5.000000e-01 : f32
    %323 = vector.broadcast %cst_160 : f32 to vector<8x128xf32>
    %324 = arith.addf %322, %323 : vector<8x128xf32>
    %c0_161 = arith.constant 0 : index
    %c256_162 = arith.constant 256 : index
    %325 = vector.load %arg9[%c0_161, %c256_162] : memref<128x512xf32, #tpu.memory_space<vmem>>, vector<128x128xf32>
    %326 = vector.extract_strided_slice %302 {offsets = [0, 256], sizes = [8, 128], strides = [1, 1]} : vector<8x512xf32> to vector<8x128xf32>
    %cst_163 = arith.constant dense<0.000000e+00> : vector<8x128xf32>
    %327 = tpu.matmul %298, %325, %cst_163 {dimension_numbers = #tpu.dot_dimension_numbers<[1], [0], [0], [1], [0, 0, 1, 1], [], []>} : vector<8x128xf32>, vector<128x128xf32>, vector<8x128xf32> -> vector<8x128xf32>
    %328 = arith.addf %326, %327 : vector<8x128xf32>
    %329 = math.tanh %328 : vector<8x128xf32>
    %c0_164 = arith.constant 0 : index
    %c384_165 = arith.constant 384 : index
    %330 = vector.load %arg9[%c0_164, %c384_165] : memref<128x512xf32, #tpu.memory_space<vmem>>, vector<128x128xf32>
    %331 = vector.extract_strided_slice %302 {offsets = [0, 384], sizes = [8, 128], strides = [1, 1]} : vector<8x512xf32> to vector<8x128xf32>
    %cst_166 = arith.constant dense<0.000000e+00> : vector<8x128xf32>
    %332 = tpu.matmul %298, %330, %cst_166 {dimension_numbers = #tpu.dot_dimension_numbers<[1], [0], [0], [1], [0, 0, 1, 1], [], []>} : vector<8x128xf32>, vector<128x128xf32>, vector<8x128xf32> -> vector<8x128xf32>
    %333 = arith.addf %331, %332 : vector<8x128xf32>
    %cst_167 = arith.constant 5.000000e-01 : f32
    %334 = vector.broadcast %cst_167 : f32 to vector<8x128xf32>
    %335 = arith.mulf %334, %333 : vector<8x128xf32>
    %336 = math.tanh %335 : vector<8x128xf32>
    %cst_168 = arith.constant 5.000000e-01 : f32
    %337 = vector.broadcast %cst_168 : f32 to vector<8x128xf32>
    %338 = arith.mulf %337, %336 : vector<8x128xf32>
    %cst_169 = arith.constant 5.000000e-01 : f32
    %339 = vector.broadcast %cst_169 : f32 to vector<8x128xf32>
    %340 = arith.addf %338, %339 : vector<8x128xf32>
    %341 = arith.mulf %324, %296 : vector<8x128xf32>
    %342 = arith.mulf %313, %329 : vector<8x128xf32>
    %343 = arith.addf %341, %342 : vector<8x128xf32>
    %344 = math.tanh %343 : vector<8x128xf32>
    %345 = arith.mulf %340, %344 : vector<8x128xf32>
    %c7_i32 = arith.constant 7 : i32
    %c8_i32_170 = arith.constant 8 : i32
    %346 = arith.muli %c7_i32, %c8_i32_170 : i32
    %347 = tpu.assume_multiple %346, 8 : i32
    %348 = arith.index_cast %347 : i32 to index
    %c0_171 = arith.constant 0 : index
    %349 = vector.load %arg8[%348, %c0_171] : memref<200x512xf32, #tpu.memory_space<vmem>>, vector<8x512xf32>
    %c0_172 = arith.constant 0 : index
    %c0_173 = arith.constant 0 : index
    %350 = vector.load %arg9[%c0_172, %c0_173] : memref<128x512xf32, #tpu.memory_space<vmem>>, vector<128x128xf32>
    %351 = vector.extract_strided_slice %349 {offsets = [0, 0], sizes = [8, 128], strides = [1, 1]} : vector<8x512xf32> to vector<8x128xf32>
    %cst_174 = arith.constant dense<0.000000e+00> : vector<8x128xf32>
    %352 = tpu.matmul %345, %350, %cst_174 {dimension_numbers = #tpu.dot_dimension_numbers<[1], [0], [0], [1], [0, 0, 1, 1], [], []>} : vector<8x128xf32>, vector<128x128xf32>, vector<8x128xf32> -> vector<8x128xf32>
    %353 = arith.addf %351, %352 : vector<8x128xf32>
    %cst_175 = arith.constant 5.000000e-01 : f32
    %354 = vector.broadcast %cst_175 : f32 to vector<8x128xf32>
    %355 = arith.mulf %354, %353 : vector<8x128xf32>
    %356 = math.tanh %355 : vector<8x128xf32>
    %cst_176 = arith.constant 5.000000e-01 : f32
    %357 = vector.broadcast %cst_176 : f32 to vector<8x128xf32>
    %358 = arith.mulf %357, %356 : vector<8x128xf32>
    %cst_177 = arith.constant 5.000000e-01 : f32
    %359 = vector.broadcast %cst_177 : f32 to vector<8x128xf32>
    %360 = arith.addf %358, %359 : vector<8x128xf32>
    %c0_178 = arith.constant 0 : index
    %c128_179 = arith.constant 128 : index
    %361 = vector.load %arg9[%c0_178, %c128_179] : memref<128x512xf32, #tpu.memory_space<vmem>>, vector<128x128xf32>
    %362 = vector.extract_strided_slice %349 {offsets = [0, 128], sizes = [8, 128], strides = [1, 1]} : vector<8x512xf32> to vector<8x128xf32>
    %cst_180 = arith.constant dense<0.000000e+00> : vector<8x128xf32>
    %363 = tpu.matmul %345, %361, %cst_180 {dimension_numbers = #tpu.dot_dimension_numbers<[1], [0], [0], [1], [0, 0, 1, 1], [], []>} : vector<8x128xf32>, vector<128x128xf32>, vector<8x128xf32> -> vector<8x128xf32>
    %364 = arith.addf %362, %363 : vector<8x128xf32>
    %cst_181 = arith.constant 5.000000e-01 : f32
    %365 = vector.broadcast %cst_181 : f32 to vector<8x128xf32>
    %366 = arith.mulf %365, %364 : vector<8x128xf32>
    %367 = math.tanh %366 : vector<8x128xf32>
    %cst_182 = arith.constant 5.000000e-01 : f32
    %368 = vector.broadcast %cst_182 : f32 to vector<8x128xf32>
    %369 = arith.mulf %368, %367 : vector<8x128xf32>
    %cst_183 = arith.constant 5.000000e-01 : f32
    %370 = vector.broadcast %cst_183 : f32 to vector<8x128xf32>
    %371 = arith.addf %369, %370 : vector<8x128xf32>
    %c0_184 = arith.constant 0 : index
    %c256_185 = arith.constant 256 : index
    %372 = vector.load %arg9[%c0_184, %c256_185] : memref<128x512xf32, #tpu.memory_space<vmem>>, vector<128x128xf32>
    %373 = vector.extract_strided_slice %349 {offsets = [0, 256], sizes = [8, 128], strides = [1, 1]} : vector<8x512xf32> to vector<8x128xf32>
    %cst_186 = arith.constant dense<0.000000e+00> : vector<8x128xf32>
    %374 = tpu.matmul %345, %372, %cst_186 {dimension_numbers = #tpu.dot_dimension_numbers<[1], [0], [0], [1], [0, 0, 1, 1], [], []>} : vector<8x128xf32>, vector<128x128xf32>, vector<8x128xf32> -> vector<8x128xf32>
    %375 = arith.addf %373, %374 : vector<8x128xf32>
    %376 = math.tanh %375 : vector<8x128xf32>
    %c0_187 = arith.constant 0 : index
    %c384_188 = arith.constant 384 : index
    %377 = vector.load %arg9[%c0_187, %c384_188] : memref<128x512xf32, #tpu.memory_space<vmem>>, vector<128x128xf32>
    %378 = vector.extract_strided_slice %349 {offsets = [0, 384], sizes = [8, 128], strides = [1, 1]} : vector<8x512xf32> to vector<8x128xf32>
    %cst_189 = arith.constant dense<0.000000e+00> : vector<8x128xf32>
    %379 = tpu.matmul %345, %377, %cst_189 {dimension_numbers = #tpu.dot_dimension_numbers<[1], [0], [0], [1], [0, 0, 1, 1], [], []>} : vector<8x128xf32>, vector<128x128xf32>, vector<8x128xf32> -> vector<8x128xf32>
    %380 = arith.addf %378, %379 : vector<8x128xf32>
    %cst_190 = arith.constant 5.000000e-01 : f32
    %381 = vector.broadcast %cst_190 : f32 to vector<8x128xf32>
    %382 = arith.mulf %381, %380 : vector<8x128xf32>
    %383 = math.tanh %382 : vector<8x128xf32>
    %cst_191 = arith.constant 5.000000e-01 : f32
    %384 = vector.broadcast %cst_191 : f32 to vector<8x128xf32>
    %385 = arith.mulf %384, %383 : vector<8x128xf32>
    %cst_192 = arith.constant 5.000000e-01 : f32
    %386 = vector.broadcast %cst_192 : f32 to vector<8x128xf32>
    %387 = arith.addf %385, %386 : vector<8x128xf32>
    %388 = arith.mulf %371, %343 : vector<8x128xf32>
    %389 = arith.mulf %360, %376 : vector<8x128xf32>
    %390 = arith.addf %388, %389 : vector<8x128xf32>
    %391 = math.tanh %390 : vector<8x128xf32>
    %392 = arith.mulf %387, %391 : vector<8x128xf32>
    %c8_i32_193 = arith.constant 8 : i32
    %c8_i32_194 = arith.constant 8 : i32
    %393 = arith.muli %c8_i32_193, %c8_i32_194 : i32
    %394 = tpu.assume_multiple %393, 8 : i32
    %395 = arith.index_cast %394 : i32 to index
    %c0_195 = arith.constant 0 : index
    %396 = vector.load %arg8[%395, %c0_195] : memref<200x512xf32, #tpu.memory_space<vmem>>, vector<8x512xf32>
    %c0_196 = arith.constant 0 : index
    %c0_197 = arith.constant 0 : index
    %397 = vector.load %arg9[%c0_196, %c0_197] : memref<128x512xf32, #tpu.memory_space<vmem>>, vector<128x128xf32>
    %398 = vector.extract_strided_slice %396 {offsets = [0, 0], sizes = [8, 128], strides = [1, 1]} : vector<8x512xf32> to vector<8x128xf32>
    %cst_198 = arith.constant dense<0.000000e+00> : vector<8x128xf32>
    %399 = tpu.matmul %392, %397, %cst_198 {dimension_numbers = #tpu.dot_dimension_numbers<[1], [0], [0], [1], [0, 0, 1, 1], [], []>} : vector<8x128xf32>, vector<128x128xf32>, vector<8x128xf32> -> vector<8x128xf32>
    %400 = arith.addf %398, %399 : vector<8x128xf32>
    %cst_199 = arith.constant 5.000000e-01 : f32
    %401 = vector.broadcast %cst_199 : f32 to vector<8x128xf32>
    %402 = arith.mulf %401, %400 : vector<8x128xf32>
    %403 = math.tanh %402 : vector<8x128xf32>
    %cst_200 = arith.constant 5.000000e-01 : f32
    %404 = vector.broadcast %cst_200 : f32 to vector<8x128xf32>
    %405 = arith.mulf %404, %403 : vector<8x128xf32>
    %cst_201 = arith.constant 5.000000e-01 : f32
    %406 = vector.broadcast %cst_201 : f32 to vector<8x128xf32>
    %407 = arith.addf %405, %406 : vector<8x128xf32>
    %c0_202 = arith.constant 0 : index
    %c128_203 = arith.constant 128 : index
    %408 = vector.load %arg9[%c0_202, %c128_203] : memref<128x512xf32, #tpu.memory_space<vmem>>, vector<128x128xf32>
    %409 = vector.extract_strided_slice %396 {offsets = [0, 128], sizes = [8, 128], strides = [1, 1]} : vector<8x512xf32> to vector<8x128xf32>
    %cst_204 = arith.constant dense<0.000000e+00> : vector<8x128xf32>
    %410 = tpu.matmul %392, %408, %cst_204 {dimension_numbers = #tpu.dot_dimension_numbers<[1], [0], [0], [1], [0, 0, 1, 1], [], []>} : vector<8x128xf32>, vector<128x128xf32>, vector<8x128xf32> -> vector<8x128xf32>
    %411 = arith.addf %409, %410 : vector<8x128xf32>
    %cst_205 = arith.constant 5.000000e-01 : f32
    %412 = vector.broadcast %cst_205 : f32 to vector<8x128xf32>
    %413 = arith.mulf %412, %411 : vector<8x128xf32>
    %414 = math.tanh %413 : vector<8x128xf32>
    %cst_206 = arith.constant 5.000000e-01 : f32
    %415 = vector.broadcast %cst_206 : f32 to vector<8x128xf32>
    %416 = arith.mulf %415, %414 : vector<8x128xf32>
    %cst_207 = arith.constant 5.000000e-01 : f32
    %417 = vector.broadcast %cst_207 : f32 to vector<8x128xf32>
    %418 = arith.addf %416, %417 : vector<8x128xf32>
    %c0_208 = arith.constant 0 : index
    %c256_209 = arith.constant 256 : index
    %419 = vector.load %arg9[%c0_208, %c256_209] : memref<128x512xf32, #tpu.memory_space<vmem>>, vector<128x128xf32>
    %420 = vector.extract_strided_slice %396 {offsets = [0, 256], sizes = [8, 128], strides = [1, 1]} : vector<8x512xf32> to vector<8x128xf32>
    %cst_210 = arith.constant dense<0.000000e+00> : vector<8x128xf32>
    %421 = tpu.matmul %392, %419, %cst_210 {dimension_numbers = #tpu.dot_dimension_numbers<[1], [0], [0], [1], [0, 0, 1, 1], [], []>} : vector<8x128xf32>, vector<128x128xf32>, vector<8x128xf32> -> vector<8x128xf32>
    %422 = arith.addf %420, %421 : vector<8x128xf32>
    %423 = math.tanh %422 : vector<8x128xf32>
    %c0_211 = arith.constant 0 : index
    %c384_212 = arith.constant 384 : index
    %424 = vector.load %arg9[%c0_211, %c384_212] : memref<128x512xf32, #tpu.memory_space<vmem>>, vector<128x128xf32>
    %425 = vector.extract_strided_slice %396 {offsets = [0, 384], sizes = [8, 128], strides = [1, 1]} : vector<8x512xf32> to vector<8x128xf32>
    %cst_213 = arith.constant dense<0.000000e+00> : vector<8x128xf32>
    %426 = tpu.matmul %392, %424, %cst_213 {dimension_numbers = #tpu.dot_dimension_numbers<[1], [0], [0], [1], [0, 0, 1, 1], [], []>} : vector<8x128xf32>, vector<128x128xf32>, vector<8x128xf32> -> vector<8x128xf32>
    %427 = arith.addf %425, %426 : vector<8x128xf32>
    %cst_214 = arith.constant 5.000000e-01 : f32
    %428 = vector.broadcast %cst_214 : f32 to vector<8x128xf32>
    %429 = arith.mulf %428, %427 : vector<8x128xf32>
    %430 = math.tanh %429 : vector<8x128xf32>
    %cst_215 = arith.constant 5.000000e-01 : f32
    %431 = vector.broadcast %cst_215 : f32 to vector<8x128xf32>
    %432 = arith.mulf %431, %430 : vector<8x128xf32>
    %cst_216 = arith.constant 5.000000e-01 : f32
    %433 = vector.broadcast %cst_216 : f32 to vector<8x128xf32>
    %434 = arith.addf %432, %433 : vector<8x128xf32>
    %435 = arith.mulf %418, %390 : vector<8x128xf32>
    %436 = arith.mulf %407, %423 : vector<8x128xf32>
    %437 = arith.addf %435, %436 : vector<8x128xf32>
    %438 = math.tanh %437 : vector<8x128xf32>
    %439 = arith.mulf %434, %438 : vector<8x128xf32>
    %c9_i32 = arith.constant 9 : i32
    %c8_i32_217 = arith.constant 8 : i32
    %440 = arith.muli %c9_i32, %c8_i32_217 : i32
    %441 = tpu.assume_multiple %440, 8 : i32
    %442 = arith.index_cast %441 : i32 to index
    %c0_218 = arith.constant 0 : index
    %443 = vector.load %arg8[%442, %c0_218] : memref<200x512xf32, #tpu.memory_space<vmem>>, vector<8x512xf32>
    %c0_219 = arith.constant 0 : index
    %c0_220 = arith.constant 0 : index
    %444 = vector.load %arg9[%c0_219, %c0_220] : memref<128x512xf32, #tpu.memory_space<vmem>>, vector<128x128xf32>
    %445 = vector.extract_strided_slice %443 {offsets = [0, 0], sizes = [8, 128], strides = [1, 1]} : vector<8x512xf32> to vector<8x128xf32>
    %cst_221 = arith.constant dense<0.000000e+00> : vector<8x128xf32>
    %446 = tpu.matmul %439, %444, %cst_221 {dimension_numbers = #tpu.dot_dimension_numbers<[1], [0], [0], [1], [0, 0, 1, 1], [], []>} : vector<8x128xf32>, vector<128x128xf32>, vector<8x128xf32> -> vector<8x128xf32>
    %447 = arith.addf %445, %446 : vector<8x128xf32>
    %cst_222 = arith.constant 5.000000e-01 : f32
    %448 = vector.broadcast %cst_222 : f32 to vector<8x128xf32>
    %449 = arith.mulf %448, %447 : vector<8x128xf32>
    %450 = math.tanh %449 : vector<8x128xf32>
    %cst_223 = arith.constant 5.000000e-01 : f32
    %451 = vector.broadcast %cst_223 : f32 to vector<8x128xf32>
    %452 = arith.mulf %451, %450 : vector<8x128xf32>
    %cst_224 = arith.constant 5.000000e-01 : f32
    %453 = vector.broadcast %cst_224 : f32 to vector<8x128xf32>
    %454 = arith.addf %452, %453 : vector<8x128xf32>
    %c0_225 = arith.constant 0 : index
    %c128_226 = arith.constant 128 : index
    %455 = vector.load %arg9[%c0_225, %c128_226] : memref<128x512xf32, #tpu.memory_space<vmem>>, vector<128x128xf32>
    %456 = vector.extract_strided_slice %443 {offsets = [0, 128], sizes = [8, 128], strides = [1, 1]} : vector<8x512xf32> to vector<8x128xf32>
    %cst_227 = arith.constant dense<0.000000e+00> : vector<8x128xf32>
    %457 = tpu.matmul %439, %455, %cst_227 {dimension_numbers = #tpu.dot_dimension_numbers<[1], [0], [0], [1], [0, 0, 1, 1], [], []>} : vector<8x128xf32>, vector<128x128xf32>, vector<8x128xf32> -> vector<8x128xf32>
    %458 = arith.addf %456, %457 : vector<8x128xf32>
    %cst_228 = arith.constant 5.000000e-01 : f32
    %459 = vector.broadcast %cst_228 : f32 to vector<8x128xf32>
    %460 = arith.mulf %459, %458 : vector<8x128xf32>
    %461 = math.tanh %460 : vector<8x128xf32>
    %cst_229 = arith.constant 5.000000e-01 : f32
    %462 = vector.broadcast %cst_229 : f32 to vector<8x128xf32>
    %463 = arith.mulf %462, %461 : vector<8x128xf32>
    %cst_230 = arith.constant 5.000000e-01 : f32
    %464 = vector.broadcast %cst_230 : f32 to vector<8x128xf32>
    %465 = arith.addf %463, %464 : vector<8x128xf32>
    %c0_231 = arith.constant 0 : index
    %c256_232 = arith.constant 256 : index
    %466 = vector.load %arg9[%c0_231, %c256_232] : memref<128x512xf32, #tpu.memory_space<vmem>>, vector<128x128xf32>
    %467 = vector.extract_strided_slice %443 {offsets = [0, 256], sizes = [8, 128], strides = [1, 1]} : vector<8x512xf32> to vector<8x128xf32>
    %cst_233 = arith.constant dense<0.000000e+00> : vector<8x128xf32>
    %468 = tpu.matmul %439, %466, %cst_233 {dimension_numbers = #tpu.dot_dimension_numbers<[1], [0], [0], [1], [0, 0, 1, 1], [], []>} : vector<8x128xf32>, vector<128x128xf32>, vector<8x128xf32> -> vector<8x128xf32>
    %469 = arith.addf %467, %468 : vector<8x128xf32>
    %470 = math.tanh %469 : vector<8x128xf32>
    %c0_234 = arith.constant 0 : index
    %c384_235 = arith.constant 384 : index
    %471 = vector.load %arg9[%c0_234, %c384_235] : memref<128x512xf32, #tpu.memory_space<vmem>>, vector<128x128xf32>
    %472 = vector.extract_strided_slice %443 {offsets = [0, 384], sizes = [8, 128], strides = [1, 1]} : vector<8x512xf32> to vector<8x128xf32>
    %cst_236 = arith.constant dense<0.000000e+00> : vector<8x128xf32>
    %473 = tpu.matmul %439, %471, %cst_236 {dimension_numbers = #tpu.dot_dimension_numbers<[1], [0], [0], [1], [0, 0, 1, 1], [], []>} : vector<8x128xf32>, vector<128x128xf32>, vector<8x128xf32> -> vector<8x128xf32>
    %474 = arith.addf %472, %473 : vector<8x128xf32>
    %cst_237 = arith.constant 5.000000e-01 : f32
    %475 = vector.broadcast %cst_237 : f32 to vector<8x128xf32>
    %476 = arith.mulf %475, %474 : vector<8x128xf32>
    %477 = math.tanh %476 : vector<8x128xf32>
    %cst_238 = arith.constant 5.000000e-01 : f32
    %478 = vector.broadcast %cst_238 : f32 to vector<8x128xf32>
    %479 = arith.mulf %478, %477 : vector<8x128xf32>
    %cst_239 = arith.constant 5.000000e-01 : f32
    %480 = vector.broadcast %cst_239 : f32 to vector<8x128xf32>
    %481 = arith.addf %479, %480 : vector<8x128xf32>
    %482 = arith.mulf %465, %437 : vector<8x128xf32>
    %483 = arith.mulf %454, %470 : vector<8x128xf32>
    %484 = arith.addf %482, %483 : vector<8x128xf32>
    %485 = math.tanh %484 : vector<8x128xf32>
    %486 = arith.mulf %481, %485 : vector<8x128xf32>
    %c10_i32 = arith.constant 10 : i32
    %c8_i32_240 = arith.constant 8 : i32
    %487 = arith.muli %c10_i32, %c8_i32_240 : i32
    %488 = tpu.assume_multiple %487, 8 : i32
    %489 = arith.index_cast %488 : i32 to index
    %c0_241 = arith.constant 0 : index
    %490 = vector.load %arg8[%489, %c0_241] : memref<200x512xf32, #tpu.memory_space<vmem>>, vector<8x512xf32>
    %c0_242 = arith.constant 0 : index
    %c0_243 = arith.constant 0 : index
    %491 = vector.load %arg9[%c0_242, %c0_243] : memref<128x512xf32, #tpu.memory_space<vmem>>, vector<128x128xf32>
    %492 = vector.extract_strided_slice %490 {offsets = [0, 0], sizes = [8, 128], strides = [1, 1]} : vector<8x512xf32> to vector<8x128xf32>
    %cst_244 = arith.constant dense<0.000000e+00> : vector<8x128xf32>
    %493 = tpu.matmul %486, %491, %cst_244 {dimension_numbers = #tpu.dot_dimension_numbers<[1], [0], [0], [1], [0, 0, 1, 1], [], []>} : vector<8x128xf32>, vector<128x128xf32>, vector<8x128xf32> -> vector<8x128xf32>
    %494 = arith.addf %492, %493 : vector<8x128xf32>
    %cst_245 = arith.constant 5.000000e-01 : f32
    %495 = vector.broadcast %cst_245 : f32 to vector<8x128xf32>
    %496 = arith.mulf %495, %494 : vector<8x128xf32>
    %497 = math.tanh %496 : vector<8x128xf32>
    %cst_246 = arith.constant 5.000000e-01 : f32
    %498 = vector.broadcast %cst_246 : f32 to vector<8x128xf32>
    %499 = arith.mulf %498, %497 : vector<8x128xf32>
    %cst_247 = arith.constant 5.000000e-01 : f32
    %500 = vector.broadcast %cst_247 : f32 to vector<8x128xf32>
    %501 = arith.addf %499, %500 : vector<8x128xf32>
    %c0_248 = arith.constant 0 : index
    %c128_249 = arith.constant 128 : index
    %502 = vector.load %arg9[%c0_248, %c128_249] : memref<128x512xf32, #tpu.memory_space<vmem>>, vector<128x128xf32>
    %503 = vector.extract_strided_slice %490 {offsets = [0, 128], sizes = [8, 128], strides = [1, 1]} : vector<8x512xf32> to vector<8x128xf32>
    %cst_250 = arith.constant dense<0.000000e+00> : vector<8x128xf32>
    %504 = tpu.matmul %486, %502, %cst_250 {dimension_numbers = #tpu.dot_dimension_numbers<[1], [0], [0], [1], [0, 0, 1, 1], [], []>} : vector<8x128xf32>, vector<128x128xf32>, vector<8x128xf32> -> vector<8x128xf32>
    %505 = arith.addf %503, %504 : vector<8x128xf32>
    %cst_251 = arith.constant 5.000000e-01 : f32
    %506 = vector.broadcast %cst_251 : f32 to vector<8x128xf32>
    %507 = arith.mulf %506, %505 : vector<8x128xf32>
    %508 = math.tanh %507 : vector<8x128xf32>
    %cst_252 = arith.constant 5.000000e-01 : f32
    %509 = vector.broadcast %cst_252 : f32 to vector<8x128xf32>
    %510 = arith.mulf %509, %508 : vector<8x128xf32>
    %cst_253 = arith.constant 5.000000e-01 : f32
    %511 = vector.broadcast %cst_253 : f32 to vector<8x128xf32>
    %512 = arith.addf %510, %511 : vector<8x128xf32>
    %c0_254 = arith.constant 0 : index
    %c256_255 = arith.constant 256 : index
    %513 = vector.load %arg9[%c0_254, %c256_255] : memref<128x512xf32, #tpu.memory_space<vmem>>, vector<128x128xf32>
    %514 = vector.extract_strided_slice %490 {offsets = [0, 256], sizes = [8, 128], strides = [1, 1]} : vector<8x512xf32> to vector<8x128xf32>
    %cst_256 = arith.constant dense<0.000000e+00> : vector<8x128xf32>
    %515 = tpu.matmul %486, %513, %cst_256 {dimension_numbers = #tpu.dot_dimension_numbers<[1], [0], [0], [1], [0, 0, 1, 1], [], []>} : vector<8x128xf32>, vector<128x128xf32>, vector<8x128xf32> -> vector<8x128xf32>
    %516 = arith.addf %514, %515 : vector<8x128xf32>
    %517 = math.tanh %516 : vector<8x128xf32>
    %c0_257 = arith.constant 0 : index
    %c384_258 = arith.constant 384 : index
    %518 = vector.load %arg9[%c0_257, %c384_258] : memref<128x512xf32, #tpu.memory_space<vmem>>, vector<128x128xf32>
    %519 = vector.extract_strided_slice %490 {offsets = [0, 384], sizes = [8, 128], strides = [1, 1]} : vector<8x512xf32> to vector<8x128xf32>
    %cst_259 = arith.constant dense<0.000000e+00> : vector<8x128xf32>
    %520 = tpu.matmul %486, %518, %cst_259 {dimension_numbers = #tpu.dot_dimension_numbers<[1], [0], [0], [1], [0, 0, 1, 1], [], []>} : vector<8x128xf32>, vector<128x128xf32>, vector<8x128xf32> -> vector<8x128xf32>
    %521 = arith.addf %519, %520 : vector<8x128xf32>
    %cst_260 = arith.constant 5.000000e-01 : f32
    %522 = vector.broadcast %cst_260 : f32 to vector<8x128xf32>
    %523 = arith.mulf %522, %521 : vector<8x128xf32>
    %524 = math.tanh %523 : vector<8x128xf32>
    %cst_261 = arith.constant 5.000000e-01 : f32
    %525 = vector.broadcast %cst_261 : f32 to vector<8x128xf32>
    %526 = arith.mulf %525, %524 : vector<8x128xf32>
    %cst_262 = arith.constant 5.000000e-01 : f32
    %527 = vector.broadcast %cst_262 : f32 to vector<8x128xf32>
    %528 = arith.addf %526, %527 : vector<8x128xf32>
    %529 = arith.mulf %512, %484 : vector<8x128xf32>
    %530 = arith.mulf %501, %517 : vector<8x128xf32>
    %531 = arith.addf %529, %530 : vector<8x128xf32>
    %532 = math.tanh %531 : vector<8x128xf32>
    %533 = arith.mulf %528, %532 : vector<8x128xf32>
    %c11_i32 = arith.constant 11 : i32
    %c8_i32_263 = arith.constant 8 : i32
    %534 = arith.muli %c11_i32, %c8_i32_263 : i32
    %535 = tpu.assume_multiple %534, 8 : i32
    %536 = arith.index_cast %535 : i32 to index
    %c0_264 = arith.constant 0 : index
    %537 = vector.load %arg8[%536, %c0_264] : memref<200x512xf32, #tpu.memory_space<vmem>>, vector<8x512xf32>
    %c0_265 = arith.constant 0 : index
    %c0_266 = arith.constant 0 : index
    %538 = vector.load %arg9[%c0_265, %c0_266] : memref<128x512xf32, #tpu.memory_space<vmem>>, vector<128x128xf32>
    %539 = vector.extract_strided_slice %537 {offsets = [0, 0], sizes = [8, 128], strides = [1, 1]} : vector<8x512xf32> to vector<8x128xf32>
    %cst_267 = arith.constant dense<0.000000e+00> : vector<8x128xf32>
    %540 = tpu.matmul %533, %538, %cst_267 {dimension_numbers = #tpu.dot_dimension_numbers<[1], [0], [0], [1], [0, 0, 1, 1], [], []>} : vector<8x128xf32>, vector<128x128xf32>, vector<8x128xf32> -> vector<8x128xf32>
    %541 = arith.addf %539, %540 : vector<8x128xf32>
    %cst_268 = arith.constant 5.000000e-01 : f32
    %542 = vector.broadcast %cst_268 : f32 to vector<8x128xf32>
    %543 = arith.mulf %542, %541 : vector<8x128xf32>
    %544 = math.tanh %543 : vector<8x128xf32>
    %cst_269 = arith.constant 5.000000e-01 : f32
    %545 = vector.broadcast %cst_269 : f32 to vector<8x128xf32>
    %546 = arith.mulf %545, %544 : vector<8x128xf32>
    %cst_270 = arith.constant 5.000000e-01 : f32
    %547 = vector.broadcast %cst_270 : f32 to vector<8x128xf32>
    %548 = arith.addf %546, %547 : vector<8x128xf32>
    %c0_271 = arith.constant 0 : index
    %c128_272 = arith.constant 128 : index
    %549 = vector.load %arg9[%c0_271, %c128_272] : memref<128x512xf32, #tpu.memory_space<vmem>>, vector<128x128xf32>
    %550 = vector.extract_strided_slice %537 {offsets = [0, 128], sizes = [8, 128], strides = [1, 1]} : vector<8x512xf32> to vector<8x128xf32>
    %cst_273 = arith.constant dense<0.000000e+00> : vector<8x128xf32>
    %551 = tpu.matmul %533, %549, %cst_273 {dimension_numbers = #tpu.dot_dimension_numbers<[1], [0], [0], [1], [0, 0, 1, 1], [], []>} : vector<8x128xf32>, vector<128x128xf32>, vector<8x128xf32> -> vector<8x128xf32>
    %552 = arith.addf %550, %551 : vector<8x128xf32>
    %cst_274 = arith.constant 5.000000e-01 : f32
    %553 = vector.broadcast %cst_274 : f32 to vector<8x128xf32>
    %554 = arith.mulf %553, %552 : vector<8x128xf32>
    %555 = math.tanh %554 : vector<8x128xf32>
    %cst_275 = arith.constant 5.000000e-01 : f32
    %556 = vector.broadcast %cst_275 : f32 to vector<8x128xf32>
    %557 = arith.mulf %556, %555 : vector<8x128xf32>
    %cst_276 = arith.constant 5.000000e-01 : f32
    %558 = vector.broadcast %cst_276 : f32 to vector<8x128xf32>
    %559 = arith.addf %557, %558 : vector<8x128xf32>
    %c0_277 = arith.constant 0 : index
    %c256_278 = arith.constant 256 : index
    %560 = vector.load %arg9[%c0_277, %c256_278] : memref<128x512xf32, #tpu.memory_space<vmem>>, vector<128x128xf32>
    %561 = vector.extract_strided_slice %537 {offsets = [0, 256], sizes = [8, 128], strides = [1, 1]} : vector<8x512xf32> to vector<8x128xf32>
    %cst_279 = arith.constant dense<0.000000e+00> : vector<8x128xf32>
    %562 = tpu.matmul %533, %560, %cst_279 {dimension_numbers = #tpu.dot_dimension_numbers<[1], [0], [0], [1], [0, 0, 1, 1], [], []>} : vector<8x128xf32>, vector<128x128xf32>, vector<8x128xf32> -> vector<8x128xf32>
    %563 = arith.addf %561, %562 : vector<8x128xf32>
    %564 = math.tanh %563 : vector<8x128xf32>
    %c0_280 = arith.constant 0 : index
    %c384_281 = arith.constant 384 : index
    %565 = vector.load %arg9[%c0_280, %c384_281] : memref<128x512xf32, #tpu.memory_space<vmem>>, vector<128x128xf32>
    %566 = vector.extract_strided_slice %537 {offsets = [0, 384], sizes = [8, 128], strides = [1, 1]} : vector<8x512xf32> to vector<8x128xf32>
    %cst_282 = arith.constant dense<0.000000e+00> : vector<8x128xf32>
    %567 = tpu.matmul %533, %565, %cst_282 {dimension_numbers = #tpu.dot_dimension_numbers<[1], [0], [0], [1], [0, 0, 1, 1], [], []>} : vector<8x128xf32>, vector<128x128xf32>, vector<8x128xf32> -> vector<8x128xf32>
    %568 = arith.addf %566, %567 : vector<8x128xf32>
    %cst_283 = arith.constant 5.000000e-01 : f32
    %569 = vector.broadcast %cst_283 : f32 to vector<8x128xf32>
    %570 = arith.mulf %569, %568 : vector<8x128xf32>
    %571 = math.tanh %570 : vector<8x128xf32>
    %cst_284 = arith.constant 5.000000e-01 : f32
    %572 = vector.broadcast %cst_284 : f32 to vector<8x128xf32>
    %573 = arith.mulf %572, %571 : vector<8x128xf32>
    %cst_285 = arith.constant 5.000000e-01 : f32
    %574 = vector.broadcast %cst_285 : f32 to vector<8x128xf32>
    %575 = arith.addf %573, %574 : vector<8x128xf32>
    %576 = arith.mulf %559, %531 : vector<8x128xf32>
    %577 = arith.mulf %548, %564 : vector<8x128xf32>
    %578 = arith.addf %576, %577 : vector<8x128xf32>
    %579 = math.tanh %578 : vector<8x128xf32>
    %580 = arith.mulf %575, %579 : vector<8x128xf32>
    %c12_i32 = arith.constant 12 : i32
    %c8_i32_286 = arith.constant 8 : i32
    %581 = arith.muli %c12_i32, %c8_i32_286 : i32
    %582 = tpu.assume_multiple %581, 8 : i32
    %583 = arith.index_cast %582 : i32 to index
    %c0_287 = arith.constant 0 : index
    %584 = vector.load %arg8[%583, %c0_287] : memref<200x512xf32, #tpu.memory_space<vmem>>, vector<8x512xf32>
    %c0_288 = arith.constant 0 : index
    %c0_289 = arith.constant 0 : index
    %585 = vector.load %arg9[%c0_288, %c0_289] : memref<128x512xf32, #tpu.memory_space<vmem>>, vector<128x128xf32>
    %586 = vector.extract_strided_slice %584 {offsets = [0, 0], sizes = [8, 128], strides = [1, 1]} : vector<8x512xf32> to vector<8x128xf32>
    %cst_290 = arith.constant dense<0.000000e+00> : vector<8x128xf32>
    %587 = tpu.matmul %580, %585, %cst_290 {dimension_numbers = #tpu.dot_dimension_numbers<[1], [0], [0], [1], [0, 0, 1, 1], [], []>} : vector<8x128xf32>, vector<128x128xf32>, vector<8x128xf32> -> vector<8x128xf32>
    %588 = arith.addf %586, %587 : vector<8x128xf32>
    %cst_291 = arith.constant 5.000000e-01 : f32
    %589 = vector.broadcast %cst_291 : f32 to vector<8x128xf32>
    %590 = arith.mulf %589, %588 : vector<8x128xf32>
    %591 = math.tanh %590 : vector<8x128xf32>
    %cst_292 = arith.constant 5.000000e-01 : f32
    %592 = vector.broadcast %cst_292 : f32 to vector<8x128xf32>
    %593 = arith.mulf %592, %591 : vector<8x128xf32>
    %cst_293 = arith.constant 5.000000e-01 : f32
    %594 = vector.broadcast %cst_293 : f32 to vector<8x128xf32>
    %595 = arith.addf %593, %594 : vector<8x128xf32>
    %c0_294 = arith.constant 0 : index
    %c128_295 = arith.constant 128 : index
    %596 = vector.load %arg9[%c0_294, %c128_295] : memref<128x512xf32, #tpu.memory_space<vmem>>, vector<128x128xf32>
    %597 = vector.extract_strided_slice %584 {offsets = [0, 128], sizes = [8, 128], strides = [1, 1]} : vector<8x512xf32> to vector<8x128xf32>
    %cst_296 = arith.constant dense<0.000000e+00> : vector<8x128xf32>
    %598 = tpu.matmul %580, %596, %cst_296 {dimension_numbers = #tpu.dot_dimension_numbers<[1], [0], [0], [1], [0, 0, 1, 1], [], []>} : vector<8x128xf32>, vector<128x128xf32>, vector<8x128xf32> -> vector<8x128xf32>
    %599 = arith.addf %597, %598 : vector<8x128xf32>
    %cst_297 = arith.constant 5.000000e-01 : f32
    %600 = vector.broadcast %cst_297 : f32 to vector<8x128xf32>
    %601 = arith.mulf %600, %599 : vector<8x128xf32>
    %602 = math.tanh %601 : vector<8x128xf32>
    %cst_298 = arith.constant 5.000000e-01 : f32
    %603 = vector.broadcast %cst_298 : f32 to vector<8x128xf32>
    %604 = arith.mulf %603, %602 : vector<8x128xf32>
    %cst_299 = arith.constant 5.000000e-01 : f32
    %605 = vector.broadcast %cst_299 : f32 to vector<8x128xf32>
    %606 = arith.addf %604, %605 : vector<8x128xf32>
    %c0_300 = arith.constant 0 : index
    %c256_301 = arith.constant 256 : index
    %607 = vector.load %arg9[%c0_300, %c256_301] : memref<128x512xf32, #tpu.memory_space<vmem>>, vector<128x128xf32>
    %608 = vector.extract_strided_slice %584 {offsets = [0, 256], sizes = [8, 128], strides = [1, 1]} : vector<8x512xf32> to vector<8x128xf32>
    %cst_302 = arith.constant dense<0.000000e+00> : vector<8x128xf32>
    %609 = tpu.matmul %580, %607, %cst_302 {dimension_numbers = #tpu.dot_dimension_numbers<[1], [0], [0], [1], [0, 0, 1, 1], [], []>} : vector<8x128xf32>, vector<128x128xf32>, vector<8x128xf32> -> vector<8x128xf32>
    %610 = arith.addf %608, %609 : vector<8x128xf32>
    %611 = math.tanh %610 : vector<8x128xf32>
    %c0_303 = arith.constant 0 : index
    %c384_304 = arith.constant 384 : index
    %612 = vector.load %arg9[%c0_303, %c384_304] : memref<128x512xf32, #tpu.memory_space<vmem>>, vector<128x128xf32>
    %613 = vector.extract_strided_slice %584 {offsets = [0, 384], sizes = [8, 128], strides = [1, 1]} : vector<8x512xf32> to vector<8x128xf32>
    %cst_305 = arith.constant dense<0.000000e+00> : vector<8x128xf32>
    %614 = tpu.matmul %580, %612, %cst_305 {dimension_numbers = #tpu.dot_dimension_numbers<[1], [0], [0], [1], [0, 0, 1, 1], [], []>} : vector<8x128xf32>, vector<128x128xf32>, vector<8x128xf32> -> vector<8x128xf32>
    %615 = arith.addf %613, %614 : vector<8x128xf32>
    %cst_306 = arith.constant 5.000000e-01 : f32
    %616 = vector.broadcast %cst_306 : f32 to vector<8x128xf32>
    %617 = arith.mulf %616, %615 : vector<8x128xf32>
    %618 = math.tanh %617 : vector<8x128xf32>
    %cst_307 = arith.constant 5.000000e-01 : f32
    %619 = vector.broadcast %cst_307 : f32 to vector<8x128xf32>
    %620 = arith.mulf %619, %618 : vector<8x128xf32>
    %cst_308 = arith.constant 5.000000e-01 : f32
    %621 = vector.broadcast %cst_308 : f32 to vector<8x128xf32>
    %622 = arith.addf %620, %621 : vector<8x128xf32>
    %623 = arith.mulf %606, %578 : vector<8x128xf32>
    %624 = arith.mulf %595, %611 : vector<8x128xf32>
    %625 = arith.addf %623, %624 : vector<8x128xf32>
    %626 = math.tanh %625 : vector<8x128xf32>
    %627 = arith.mulf %622, %626 : vector<8x128xf32>
    %c13_i32 = arith.constant 13 : i32
    %c8_i32_309 = arith.constant 8 : i32
    %628 = arith.muli %c13_i32, %c8_i32_309 : i32
    %629 = tpu.assume_multiple %628, 8 : i32
    %630 = arith.index_cast %629 : i32 to index
    %c0_310 = arith.constant 0 : index
    %631 = vector.load %arg8[%630, %c0_310] : memref<200x512xf32, #tpu.memory_space<vmem>>, vector<8x512xf32>
    %c0_311 = arith.constant 0 : index
    %c0_312 = arith.constant 0 : index
    %632 = vector.load %arg9[%c0_311, %c0_312] : memref<128x512xf32, #tpu.memory_space<vmem>>, vector<128x128xf32>
    %633 = vector.extract_strided_slice %631 {offsets = [0, 0], sizes = [8, 128], strides = [1, 1]} : vector<8x512xf32> to vector<8x128xf32>
    %cst_313 = arith.constant dense<0.000000e+00> : vector<8x128xf32>
    %634 = tpu.matmul %627, %632, %cst_313 {dimension_numbers = #tpu.dot_dimension_numbers<[1], [0], [0], [1], [0, 0, 1, 1], [], []>} : vector<8x128xf32>, vector<128x128xf32>, vector<8x128xf32> -> vector<8x128xf32>
    %635 = arith.addf %633, %634 : vector<8x128xf32>
    %cst_314 = arith.constant 5.000000e-01 : f32
    %636 = vector.broadcast %cst_314 : f32 to vector<8x128xf32>
    %637 = arith.mulf %636, %635 : vector<8x128xf32>
    %638 = math.tanh %637 : vector<8x128xf32>
    %cst_315 = arith.constant 5.000000e-01 : f32
    %639 = vector.broadcast %cst_315 : f32 to vector<8x128xf32>
    %640 = arith.mulf %639, %638 : vector<8x128xf32>
    %cst_316 = arith.constant 5.000000e-01 : f32
    %641 = vector.broadcast %cst_316 : f32 to vector<8x128xf32>
    %642 = arith.addf %640, %641 : vector<8x128xf32>
    %c0_317 = arith.constant 0 : index
    %c128_318 = arith.constant 128 : index
    %643 = vector.load %arg9[%c0_317, %c128_318] : memref<128x512xf32, #tpu.memory_space<vmem>>, vector<128x128xf32>
    %644 = vector.extract_strided_slice %631 {offsets = [0, 128], sizes = [8, 128], strides = [1, 1]} : vector<8x512xf32> to vector<8x128xf32>
    %cst_319 = arith.constant dense<0.000000e+00> : vector<8x128xf32>
    %645 = tpu.matmul %627, %643, %cst_319 {dimension_numbers = #tpu.dot_dimension_numbers<[1], [0], [0], [1], [0, 0, 1, 1], [], []>} : vector<8x128xf32>, vector<128x128xf32>, vector<8x128xf32> -> vector<8x128xf32>
    %646 = arith.addf %644, %645 : vector<8x128xf32>
    %cst_320 = arith.constant 5.000000e-01 : f32
    %647 = vector.broadcast %cst_320 : f32 to vector<8x128xf32>
    %648 = arith.mulf %647, %646 : vector<8x128xf32>
    %649 = math.tanh %648 : vector<8x128xf32>
    %cst_321 = arith.constant 5.000000e-01 : f32
    %650 = vector.broadcast %cst_321 : f32 to vector<8x128xf32>
    %651 = arith.mulf %650, %649 : vector<8x128xf32>
    %cst_322 = arith.constant 5.000000e-01 : f32
    %652 = vector.broadcast %cst_322 : f32 to vector<8x128xf32>
    %653 = arith.addf %651, %652 : vector<8x128xf32>
    %c0_323 = arith.constant 0 : index
    %c256_324 = arith.constant 256 : index
    %654 = vector.load %arg9[%c0_323, %c256_324] : memref<128x512xf32, #tpu.memory_space<vmem>>, vector<128x128xf32>
    %655 = vector.extract_strided_slice %631 {offsets = [0, 256], sizes = [8, 128], strides = [1, 1]} : vector<8x512xf32> to vector<8x128xf32>
    %cst_325 = arith.constant dense<0.000000e+00> : vector<8x128xf32>
    %656 = tpu.matmul %627, %654, %cst_325 {dimension_numbers = #tpu.dot_dimension_numbers<[1], [0], [0], [1], [0, 0, 1, 1], [], []>} : vector<8x128xf32>, vector<128x128xf32>, vector<8x128xf32> -> vector<8x128xf32>
    %657 = arith.addf %655, %656 : vector<8x128xf32>
    %658 = math.tanh %657 : vector<8x128xf32>
    %c0_326 = arith.constant 0 : index
    %c384_327 = arith.constant 384 : index
    %659 = vector.load %arg9[%c0_326, %c384_327] : memref<128x512xf32, #tpu.memory_space<vmem>>, vector<128x128xf32>
    %660 = vector.extract_strided_slice %631 {offsets = [0, 384], sizes = [8, 128], strides = [1, 1]} : vector<8x512xf32> to vector<8x128xf32>
    %cst_328 = arith.constant dense<0.000000e+00> : vector<8x128xf32>
    %661 = tpu.matmul %627, %659, %cst_328 {dimension_numbers = #tpu.dot_dimension_numbers<[1], [0], [0], [1], [0, 0, 1, 1], [], []>} : vector<8x128xf32>, vector<128x128xf32>, vector<8x128xf32> -> vector<8x128xf32>
    %662 = arith.addf %660, %661 : vector<8x128xf32>
    %cst_329 = arith.constant 5.000000e-01 : f32
    %663 = vector.broadcast %cst_329 : f32 to vector<8x128xf32>
    %664 = arith.mulf %663, %662 : vector<8x128xf32>
    %665 = math.tanh %664 : vector<8x128xf32>
    %cst_330 = arith.constant 5.000000e-01 : f32
    %666 = vector.broadcast %cst_330 : f32 to vector<8x128xf32>
    %667 = arith.mulf %666, %665 : vector<8x128xf32>
    %cst_331 = arith.constant 5.000000e-01 : f32
    %668 = vector.broadcast %cst_331 : f32 to vector<8x128xf32>
    %669 = arith.addf %667, %668 : vector<8x128xf32>
    %670 = arith.mulf %653, %625 : vector<8x128xf32>
    %671 = arith.mulf %642, %658 : vector<8x128xf32>
    %672 = arith.addf %670, %671 : vector<8x128xf32>
    %673 = math.tanh %672 : vector<8x128xf32>
    %674 = arith.mulf %669, %673 : vector<8x128xf32>
    %c14_i32 = arith.constant 14 : i32
    %c8_i32_332 = arith.constant 8 : i32
    %675 = arith.muli %c14_i32, %c8_i32_332 : i32
    %676 = tpu.assume_multiple %675, 8 : i32
    %677 = arith.index_cast %676 : i32 to index
    %c0_333 = arith.constant 0 : index
    %678 = vector.load %arg8[%677, %c0_333] : memref<200x512xf32, #tpu.memory_space<vmem>>, vector<8x512xf32>
    %c0_334 = arith.constant 0 : index
    %c0_335 = arith.constant 0 : index
    %679 = vector.load %arg9[%c0_334, %c0_335] : memref<128x512xf32, #tpu.memory_space<vmem>>, vector<128x128xf32>
    %680 = vector.extract_strided_slice %678 {offsets = [0, 0], sizes = [8, 128], strides = [1, 1]} : vector<8x512xf32> to vector<8x128xf32>
    %cst_336 = arith.constant dense<0.000000e+00> : vector<8x128xf32>
    %681 = tpu.matmul %674, %679, %cst_336 {dimension_numbers = #tpu.dot_dimension_numbers<[1], [0], [0], [1], [0, 0, 1, 1], [], []>} : vector<8x128xf32>, vector<128x128xf32>, vector<8x128xf32> -> vector<8x128xf32>
    %682 = arith.addf %680, %681 : vector<8x128xf32>
    %cst_337 = arith.constant 5.000000e-01 : f32
    %683 = vector.broadcast %cst_337 : f32 to vector<8x128xf32>
    %684 = arith.mulf %683, %682 : vector<8x128xf32>
    %685 = math.tanh %684 : vector<8x128xf32>
    %cst_338 = arith.constant 5.000000e-01 : f32
    %686 = vector.broadcast %cst_338 : f32 to vector<8x128xf32>
    %687 = arith.mulf %686, %685 : vector<8x128xf32>
    %cst_339 = arith.constant 5.000000e-01 : f32
    %688 = vector.broadcast %cst_339 : f32 to vector<8x128xf32>
    %689 = arith.addf %687, %688 : vector<8x128xf32>
    %c0_340 = arith.constant 0 : index
    %c128_341 = arith.constant 128 : index
    %690 = vector.load %arg9[%c0_340, %c128_341] : memref<128x512xf32, #tpu.memory_space<vmem>>, vector<128x128xf32>
    %691 = vector.extract_strided_slice %678 {offsets = [0, 128], sizes = [8, 128], strides = [1, 1]} : vector<8x512xf32> to vector<8x128xf32>
    %cst_342 = arith.constant dense<0.000000e+00> : vector<8x128xf32>
    %692 = tpu.matmul %674, %690, %cst_342 {dimension_numbers = #tpu.dot_dimension_numbers<[1], [0], [0], [1], [0, 0, 1, 1], [], []>} : vector<8x128xf32>, vector<128x128xf32>, vector<8x128xf32> -> vector<8x128xf32>
    %693 = arith.addf %691, %692 : vector<8x128xf32>
    %cst_343 = arith.constant 5.000000e-01 : f32
    %694 = vector.broadcast %cst_343 : f32 to vector<8x128xf32>
    %695 = arith.mulf %694, %693 : vector<8x128xf32>
    %696 = math.tanh %695 : vector<8x128xf32>
    %cst_344 = arith.constant 5.000000e-01 : f32
    %697 = vector.broadcast %cst_344 : f32 to vector<8x128xf32>
    %698 = arith.mulf %697, %696 : vector<8x128xf32>
    %cst_345 = arith.constant 5.000000e-01 : f32
    %699 = vector.broadcast %cst_345 : f32 to vector<8x128xf32>
    %700 = arith.addf %698, %699 : vector<8x128xf32>
    %c0_346 = arith.constant 0 : index
    %c256_347 = arith.constant 256 : index
    %701 = vector.load %arg9[%c0_346, %c256_347] : memref<128x512xf32, #tpu.memory_space<vmem>>, vector<128x128xf32>
    %702 = vector.extract_strided_slice %678 {offsets = [0, 256], sizes = [8, 128], strides = [1, 1]} : vector<8x512xf32> to vector<8x128xf32>
    %cst_348 = arith.constant dense<0.000000e+00> : vector<8x128xf32>
    %703 = tpu.matmul %674, %701, %cst_348 {dimension_numbers = #tpu.dot_dimension_numbers<[1], [0], [0], [1], [0, 0, 1, 1], [], []>} : vector<8x128xf32>, vector<128x128xf32>, vector<8x128xf32> -> vector<8x128xf32>
    %704 = arith.addf %702, %703 : vector<8x128xf32>
    %705 = math.tanh %704 : vector<8x128xf32>
    %c0_349 = arith.constant 0 : index
    %c384_350 = arith.constant 384 : index
    %706 = vector.load %arg9[%c0_349, %c384_350] : memref<128x512xf32, #tpu.memory_space<vmem>>, vector<128x128xf32>
    %707 = vector.extract_strided_slice %678 {offsets = [0, 384], sizes = [8, 128], strides = [1, 1]} : vector<8x512xf32> to vector<8x128xf32>
    %cst_351 = arith.constant dense<0.000000e+00> : vector<8x128xf32>
    %708 = tpu.matmul %674, %706, %cst_351 {dimension_numbers = #tpu.dot_dimension_numbers<[1], [0], [0], [1], [0, 0, 1, 1], [], []>} : vector<8x128xf32>, vector<128x128xf32>, vector<8x128xf32> -> vector<8x128xf32>
    %709 = arith.addf %707, %708 : vector<8x128xf32>
    %cst_352 = arith.constant 5.000000e-01 : f32
    %710 = vector.broadcast %cst_352 : f32 to vector<8x128xf32>
    %711 = arith.mulf %710, %709 : vector<8x128xf32>
    %712 = math.tanh %711 : vector<8x128xf32>
    %cst_353 = arith.constant 5.000000e-01 : f32
    %713 = vector.broadcast %cst_353 : f32 to vector<8x128xf32>
    %714 = arith.mulf %713, %712 : vector<8x128xf32>
    %cst_354 = arith.constant 5.000000e-01 : f32
    %715 = vector.broadcast %cst_354 : f32 to vector<8x128xf32>
    %716 = arith.addf %714, %715 : vector<8x128xf32>
    %717 = arith.mulf %700, %672 : vector<8x128xf32>
    %718 = arith.mulf %689, %705 : vector<8x128xf32>
    %719 = arith.addf %717, %718 : vector<8x128xf32>
    %720 = math.tanh %719 : vector<8x128xf32>
    %721 = arith.mulf %716, %720 : vector<8x128xf32>
    %c15_i32 = arith.constant 15 : i32
    %c8_i32_355 = arith.constant 8 : i32
    %722 = arith.muli %c15_i32, %c8_i32_355 : i32
    %723 = tpu.assume_multiple %722, 8 : i32
    %724 = arith.index_cast %723 : i32 to index
    %c0_356 = arith.constant 0 : index
    %725 = vector.load %arg8[%724, %c0_356] : memref<200x512xf32, #tpu.memory_space<vmem>>, vector<8x512xf32>
    %c0_357 = arith.constant 0 : index
    %c0_358 = arith.constant 0 : index
    %726 = vector.load %arg9[%c0_357, %c0_358] : memref<128x512xf32, #tpu.memory_space<vmem>>, vector<128x128xf32>
    %727 = vector.extract_strided_slice %725 {offsets = [0, 0], sizes = [8, 128], strides = [1, 1]} : vector<8x512xf32> to vector<8x128xf32>
    %cst_359 = arith.constant dense<0.000000e+00> : vector<8x128xf32>
    %728 = tpu.matmul %721, %726, %cst_359 {dimension_numbers = #tpu.dot_dimension_numbers<[1], [0], [0], [1], [0, 0, 1, 1], [], []>} : vector<8x128xf32>, vector<128x128xf32>, vector<8x128xf32> -> vector<8x128xf32>
    %729 = arith.addf %727, %728 : vector<8x128xf32>
    %cst_360 = arith.constant 5.000000e-01 : f32
    %730 = vector.broadcast %cst_360 : f32 to vector<8x128xf32>
    %731 = arith.mulf %730, %729 : vector<8x128xf32>
    %732 = math.tanh %731 : vector<8x128xf32>
    %cst_361 = arith.constant 5.000000e-01 : f32
    %733 = vector.broadcast %cst_361 : f32 to vector<8x128xf32>
    %734 = arith.mulf %733, %732 : vector<8x128xf32>
    %cst_362 = arith.constant 5.000000e-01 : f32
    %735 = vector.broadcast %cst_362 : f32 to vector<8x128xf32>
    %736 = arith.addf %734, %735 : vector<8x128xf32>
    %c0_363 = arith.constant 0 : index
    %c128_364 = arith.constant 128 : index
    %737 = vector.load %arg9[%c0_363, %c128_364] : memref<128x512xf32, #tpu.memory_space<vmem>>, vector<128x128xf32>
    %738 = vector.extract_strided_slice %725 {offsets = [0, 128], sizes = [8, 128], strides = [1, 1]} : vector<8x512xf32> to vector<8x128xf32>
    %cst_365 = arith.constant dense<0.000000e+00> : vector<8x128xf32>
    %739 = tpu.matmul %721, %737, %cst_365 {dimension_numbers = #tpu.dot_dimension_numbers<[1], [0], [0], [1], [0, 0, 1, 1], [], []>} : vector<8x128xf32>, vector<128x128xf32>, vector<8x128xf32> -> vector<8x128xf32>
    %740 = arith.addf %738, %739 : vector<8x128xf32>
    %cst_366 = arith.constant 5.000000e-01 : f32
    %741 = vector.broadcast %cst_366 : f32 to vector<8x128xf32>
    %742 = arith.mulf %741, %740 : vector<8x128xf32>
    %743 = math.tanh %742 : vector<8x128xf32>
    %cst_367 = arith.constant 5.000000e-01 : f32
    %744 = vector.broadcast %cst_367 : f32 to vector<8x128xf32>
    %745 = arith.mulf %744, %743 : vector<8x128xf32>
    %cst_368 = arith.constant 5.000000e-01 : f32
    %746 = vector.broadcast %cst_368 : f32 to vector<8x128xf32>
    %747 = arith.addf %745, %746 : vector<8x128xf32>
    %c0_369 = arith.constant 0 : index
    %c256_370 = arith.constant 256 : index
    %748 = vector.load %arg9[%c0_369, %c256_370] : memref<128x512xf32, #tpu.memory_space<vmem>>, vector<128x128xf32>
    %749 = vector.extract_strided_slice %725 {offsets = [0, 256], sizes = [8, 128], strides = [1, 1]} : vector<8x512xf32> to vector<8x128xf32>
    %cst_371 = arith.constant dense<0.000000e+00> : vector<8x128xf32>
    %750 = tpu.matmul %721, %748, %cst_371 {dimension_numbers = #tpu.dot_dimension_numbers<[1], [0], [0], [1], [0, 0, 1, 1], [], []>} : vector<8x128xf32>, vector<128x128xf32>, vector<8x128xf32> -> vector<8x128xf32>
    %751 = arith.addf %749, %750 : vector<8x128xf32>
    %752 = math.tanh %751 : vector<8x128xf32>
    %c0_372 = arith.constant 0 : index
    %c384_373 = arith.constant 384 : index
    %753 = vector.load %arg9[%c0_372, %c384_373] : memref<128x512xf32, #tpu.memory_space<vmem>>, vector<128x128xf32>
    %754 = vector.extract_strided_slice %725 {offsets = [0, 384], sizes = [8, 128], strides = [1, 1]} : vector<8x512xf32> to vector<8x128xf32>
    %cst_374 = arith.constant dense<0.000000e+00> : vector<8x128xf32>
    %755 = tpu.matmul %721, %753, %cst_374 {dimension_numbers = #tpu.dot_dimension_numbers<[1], [0], [0], [1], [0, 0, 1, 1], [], []>} : vector<8x128xf32>, vector<128x128xf32>, vector<8x128xf32> -> vector<8x128xf32>
    %756 = arith.addf %754, %755 : vector<8x128xf32>
    %cst_375 = arith.constant 5.000000e-01 : f32
    %757 = vector.broadcast %cst_375 : f32 to vector<8x128xf32>
    %758 = arith.mulf %757, %756 : vector<8x128xf32>
    %759 = math.tanh %758 : vector<8x128xf32>
    %cst_376 = arith.constant 5.000000e-01 : f32
    %760 = vector.broadcast %cst_376 : f32 to vector<8x128xf32>
    %761 = arith.mulf %760, %759 : vector<8x128xf32>
    %cst_377 = arith.constant 5.000000e-01 : f32
    %762 = vector.broadcast %cst_377 : f32 to vector<8x128xf32>
    %763 = arith.addf %761, %762 : vector<8x128xf32>
    %764 = arith.mulf %747, %719 : vector<8x128xf32>
    %765 = arith.mulf %736, %752 : vector<8x128xf32>
    %766 = arith.addf %764, %765 : vector<8x128xf32>
    %767 = math.tanh %766 : vector<8x128xf32>
    %768 = arith.mulf %763, %767 : vector<8x128xf32>
    %c16_i32 = arith.constant 16 : i32
    %c8_i32_378 = arith.constant 8 : i32
    %769 = arith.muli %c16_i32, %c8_i32_378 : i32
    %770 = tpu.assume_multiple %769, 8 : i32
    %771 = arith.index_cast %770 : i32 to index
    %c0_379 = arith.constant 0 : index
    %772 = vector.load %arg8[%771, %c0_379] : memref<200x512xf32, #tpu.memory_space<vmem>>, vector<8x512xf32>
    %c0_380 = arith.constant 0 : index
    %c0_381 = arith.constant 0 : index
    %773 = vector.load %arg9[%c0_380, %c0_381] : memref<128x512xf32, #tpu.memory_space<vmem>>, vector<128x128xf32>
    %774 = vector.extract_strided_slice %772 {offsets = [0, 0], sizes = [8, 128], strides = [1, 1]} : vector<8x512xf32> to vector<8x128xf32>
    %cst_382 = arith.constant dense<0.000000e+00> : vector<8x128xf32>
    %775 = tpu.matmul %768, %773, %cst_382 {dimension_numbers = #tpu.dot_dimension_numbers<[1], [0], [0], [1], [0, 0, 1, 1], [], []>} : vector<8x128xf32>, vector<128x128xf32>, vector<8x128xf32> -> vector<8x128xf32>
    %776 = arith.addf %774, %775 : vector<8x128xf32>
    %cst_383 = arith.constant 5.000000e-01 : f32
    %777 = vector.broadcast %cst_383 : f32 to vector<8x128xf32>
    %778 = arith.mulf %777, %776 : vector<8x128xf32>
    %779 = math.tanh %778 : vector<8x128xf32>
    %cst_384 = arith.constant 5.000000e-01 : f32
    %780 = vector.broadcast %cst_384 : f32 to vector<8x128xf32>
    %781 = arith.mulf %780, %779 : vector<8x128xf32>
    %cst_385 = arith.constant 5.000000e-01 : f32
    %782 = vector.broadcast %cst_385 : f32 to vector<8x128xf32>
    %783 = arith.addf %781, %782 : vector<8x128xf32>
    %c0_386 = arith.constant 0 : index
    %c128_387 = arith.constant 128 : index
    %784 = vector.load %arg9[%c0_386, %c128_387] : memref<128x512xf32, #tpu.memory_space<vmem>>, vector<128x128xf32>
    %785 = vector.extract_strided_slice %772 {offsets = [0, 128], sizes = [8, 128], strides = [1, 1]} : vector<8x512xf32> to vector<8x128xf32>
    %cst_388 = arith.constant dense<0.000000e+00> : vector<8x128xf32>
    %786 = tpu.matmul %768, %784, %cst_388 {dimension_numbers = #tpu.dot_dimension_numbers<[1], [0], [0], [1], [0, 0, 1, 1], [], []>} : vector<8x128xf32>, vector<128x128xf32>, vector<8x128xf32> -> vector<8x128xf32>
    %787 = arith.addf %785, %786 : vector<8x128xf32>
    %cst_389 = arith.constant 5.000000e-01 : f32
    %788 = vector.broadcast %cst_389 : f32 to vector<8x128xf32>
    %789 = arith.mulf %788, %787 : vector<8x128xf32>
    %790 = math.tanh %789 : vector<8x128xf32>
    %cst_390 = arith.constant 5.000000e-01 : f32
    %791 = vector.broadcast %cst_390 : f32 to vector<8x128xf32>
    %792 = arith.mulf %791, %790 : vector<8x128xf32>
    %cst_391 = arith.constant 5.000000e-01 : f32
    %793 = vector.broadcast %cst_391 : f32 to vector<8x128xf32>
    %794 = arith.addf %792, %793 : vector<8x128xf32>
    %c0_392 = arith.constant 0 : index
    %c256_393 = arith.constant 256 : index
    %795 = vector.load %arg9[%c0_392, %c256_393] : memref<128x512xf32, #tpu.memory_space<vmem>>, vector<128x128xf32>
    %796 = vector.extract_strided_slice %772 {offsets = [0, 256], sizes = [8, 128], strides = [1, 1]} : vector<8x512xf32> to vector<8x128xf32>
    %cst_394 = arith.constant dense<0.000000e+00> : vector<8x128xf32>
    %797 = tpu.matmul %768, %795, %cst_394 {dimension_numbers = #tpu.dot_dimension_numbers<[1], [0], [0], [1], [0, 0, 1, 1], [], []>} : vector<8x128xf32>, vector<128x128xf32>, vector<8x128xf32> -> vector<8x128xf32>
    %798 = arith.addf %796, %797 : vector<8x128xf32>
    %799 = math.tanh %798 : vector<8x128xf32>
    %c0_395 = arith.constant 0 : index
    %c384_396 = arith.constant 384 : index
    %800 = vector.load %arg9[%c0_395, %c384_396] : memref<128x512xf32, #tpu.memory_space<vmem>>, vector<128x128xf32>
    %801 = vector.extract_strided_slice %772 {offsets = [0, 384], sizes = [8, 128], strides = [1, 1]} : vector<8x512xf32> to vector<8x128xf32>
    %cst_397 = arith.constant dense<0.000000e+00> : vector<8x128xf32>
    %802 = tpu.matmul %768, %800, %cst_397 {dimension_numbers = #tpu.dot_dimension_numbers<[1], [0], [0], [1], [0, 0, 1, 1], [], []>} : vector<8x128xf32>, vector<128x128xf32>, vector<8x128xf32> -> vector<8x128xf32>
    %803 = arith.addf %801, %802 : vector<8x128xf32>
    %cst_398 = arith.constant 5.000000e-01 : f32
    %804 = vector.broadcast %cst_398 : f32 to vector<8x128xf32>
    %805 = arith.mulf %804, %803 : vector<8x128xf32>
    %806 = math.tanh %805 : vector<8x128xf32>
    %cst_399 = arith.constant 5.000000e-01 : f32
    %807 = vector.broadcast %cst_399 : f32 to vector<8x128xf32>
    %808 = arith.mulf %807, %806 : vector<8x128xf32>
    %cst_400 = arith.constant 5.000000e-01 : f32
    %809 = vector.broadcast %cst_400 : f32 to vector<8x128xf32>
    %810 = arith.addf %808, %809 : vector<8x128xf32>
    %811 = arith.mulf %794, %766 : vector<8x128xf32>
    %812 = arith.mulf %783, %799 : vector<8x128xf32>
    %813 = arith.addf %811, %812 : vector<8x128xf32>
    %814 = math.tanh %813 : vector<8x128xf32>
    %815 = arith.mulf %810, %814 : vector<8x128xf32>
    %c17_i32 = arith.constant 17 : i32
    %c8_i32_401 = arith.constant 8 : i32
    %816 = arith.muli %c17_i32, %c8_i32_401 : i32
    %817 = tpu.assume_multiple %816, 8 : i32
    %818 = arith.index_cast %817 : i32 to index
    %c0_402 = arith.constant 0 : index
    %819 = vector.load %arg8[%818, %c0_402] : memref<200x512xf32, #tpu.memory_space<vmem>>, vector<8x512xf32>
    %c0_403 = arith.constant 0 : index
    %c0_404 = arith.constant 0 : index
    %820 = vector.load %arg9[%c0_403, %c0_404] : memref<128x512xf32, #tpu.memory_space<vmem>>, vector<128x128xf32>
    %821 = vector.extract_strided_slice %819 {offsets = [0, 0], sizes = [8, 128], strides = [1, 1]} : vector<8x512xf32> to vector<8x128xf32>
    %cst_405 = arith.constant dense<0.000000e+00> : vector<8x128xf32>
    %822 = tpu.matmul %815, %820, %cst_405 {dimension_numbers = #tpu.dot_dimension_numbers<[1], [0], [0], [1], [0, 0, 1, 1], [], []>} : vector<8x128xf32>, vector<128x128xf32>, vector<8x128xf32> -> vector<8x128xf32>
    %823 = arith.addf %821, %822 : vector<8x128xf32>
    %cst_406 = arith.constant 5.000000e-01 : f32
    %824 = vector.broadcast %cst_406 : f32 to vector<8x128xf32>
    %825 = arith.mulf %824, %823 : vector<8x128xf32>
    %826 = math.tanh %825 : vector<8x128xf32>
    %cst_407 = arith.constant 5.000000e-01 : f32
    %827 = vector.broadcast %cst_407 : f32 to vector<8x128xf32>
    %828 = arith.mulf %827, %826 : vector<8x128xf32>
    %cst_408 = arith.constant 5.000000e-01 : f32
    %829 = vector.broadcast %cst_408 : f32 to vector<8x128xf32>
    %830 = arith.addf %828, %829 : vector<8x128xf32>
    %c0_409 = arith.constant 0 : index
    %c128_410 = arith.constant 128 : index
    %831 = vector.load %arg9[%c0_409, %c128_410] : memref<128x512xf32, #tpu.memory_space<vmem>>, vector<128x128xf32>
    %832 = vector.extract_strided_slice %819 {offsets = [0, 128], sizes = [8, 128], strides = [1, 1]} : vector<8x512xf32> to vector<8x128xf32>
    %cst_411 = arith.constant dense<0.000000e+00> : vector<8x128xf32>
    %833 = tpu.matmul %815, %831, %cst_411 {dimension_numbers = #tpu.dot_dimension_numbers<[1], [0], [0], [1], [0, 0, 1, 1], [], []>} : vector<8x128xf32>, vector<128x128xf32>, vector<8x128xf32> -> vector<8x128xf32>
    %834 = arith.addf %832, %833 : vector<8x128xf32>
    %cst_412 = arith.constant 5.000000e-01 : f32
    %835 = vector.broadcast %cst_412 : f32 to vector<8x128xf32>
    %836 = arith.mulf %835, %834 : vector<8x128xf32>
    %837 = math.tanh %836 : vector<8x128xf32>
    %cst_413 = arith.constant 5.000000e-01 : f32
    %838 = vector.broadcast %cst_413 : f32 to vector<8x128xf32>
    %839 = arith.mulf %838, %837 : vector<8x128xf32>
    %cst_414 = arith.constant 5.000000e-01 : f32
    %840 = vector.broadcast %cst_414 : f32 to vector<8x128xf32>
    %841 = arith.addf %839, %840 : vector<8x128xf32>
    %c0_415 = arith.constant 0 : index
    %c256_416 = arith.constant 256 : index
    %842 = vector.load %arg9[%c0_415, %c256_416] : memref<128x512xf32, #tpu.memory_space<vmem>>, vector<128x128xf32>
    %843 = vector.extract_strided_slice %819 {offsets = [0, 256], sizes = [8, 128], strides = [1, 1]} : vector<8x512xf32> to vector<8x128xf32>
    %cst_417 = arith.constant dense<0.000000e+00> : vector<8x128xf32>
    %844 = tpu.matmul %815, %842, %cst_417 {dimension_numbers = #tpu.dot_dimension_numbers<[1], [0], [0], [1], [0, 0, 1, 1], [], []>} : vector<8x128xf32>, vector<128x128xf32>, vector<8x128xf32> -> vector<8x128xf32>
    %845 = arith.addf %843, %844 : vector<8x128xf32>
    %846 = math.tanh %845 : vector<8x128xf32>
    %c0_418 = arith.constant 0 : index
    %c384_419 = arith.constant 384 : index
    %847 = vector.load %arg9[%c0_418, %c384_419] : memref<128x512xf32, #tpu.memory_space<vmem>>, vector<128x128xf32>
    %848 = vector.extract_strided_slice %819 {offsets = [0, 384], sizes = [8, 128], strides = [1, 1]} : vector<8x512xf32> to vector<8x128xf32>
    %cst_420 = arith.constant dense<0.000000e+00> : vector<8x128xf32>
    %849 = tpu.matmul %815, %847, %cst_420 {dimension_numbers = #tpu.dot_dimension_numbers<[1], [0], [0], [1], [0, 0, 1, 1], [], []>} : vector<8x128xf32>, vector<128x128xf32>, vector<8x128xf32> -> vector<8x128xf32>
    %850 = arith.addf %848, %849 : vector<8x128xf32>
    %cst_421 = arith.constant 5.000000e-01 : f32
    %851 = vector.broadcast %cst_421 : f32 to vector<8x128xf32>
    %852 = arith.mulf %851, %850 : vector<8x128xf32>
    %853 = math.tanh %852 : vector<8x128xf32>
    %cst_422 = arith.constant 5.000000e-01 : f32
    %854 = vector.broadcast %cst_422 : f32 to vector<8x128xf32>
    %855 = arith.mulf %854, %853 : vector<8x128xf32>
    %cst_423 = arith.constant 5.000000e-01 : f32
    %856 = vector.broadcast %cst_423 : f32 to vector<8x128xf32>
    %857 = arith.addf %855, %856 : vector<8x128xf32>
    %858 = arith.mulf %841, %813 : vector<8x128xf32>
    %859 = arith.mulf %830, %846 : vector<8x128xf32>
    %860 = arith.addf %858, %859 : vector<8x128xf32>
    %861 = math.tanh %860 : vector<8x128xf32>
    %862 = arith.mulf %857, %861 : vector<8x128xf32>
    %c18_i32 = arith.constant 18 : i32
    %c8_i32_424 = arith.constant 8 : i32
    %863 = arith.muli %c18_i32, %c8_i32_424 : i32
    %864 = tpu.assume_multiple %863, 8 : i32
    %865 = arith.index_cast %864 : i32 to index
    %c0_425 = arith.constant 0 : index
    %866 = vector.load %arg8[%865, %c0_425] : memref<200x512xf32, #tpu.memory_space<vmem>>, vector<8x512xf32>
    %c0_426 = arith.constant 0 : index
    %c0_427 = arith.constant 0 : index
    %867 = vector.load %arg9[%c0_426, %c0_427] : memref<128x512xf32, #tpu.memory_space<vmem>>, vector<128x128xf32>
    %868 = vector.extract_strided_slice %866 {offsets = [0, 0], sizes = [8, 128], strides = [1, 1]} : vector<8x512xf32> to vector<8x128xf32>
    %cst_428 = arith.constant dense<0.000000e+00> : vector<8x128xf32>
    %869 = tpu.matmul %862, %867, %cst_428 {dimension_numbers = #tpu.dot_dimension_numbers<[1], [0], [0], [1], [0, 0, 1, 1], [], []>} : vector<8x128xf32>, vector<128x128xf32>, vector<8x128xf32> -> vector<8x128xf32>
    %870 = arith.addf %868, %869 : vector<8x128xf32>
    %cst_429 = arith.constant 5.000000e-01 : f32
    %871 = vector.broadcast %cst_429 : f32 to vector<8x128xf32>
    %872 = arith.mulf %871, %870 : vector<8x128xf32>
    %873 = math.tanh %872 : vector<8x128xf32>
    %cst_430 = arith.constant 5.000000e-01 : f32
    %874 = vector.broadcast %cst_430 : f32 to vector<8x128xf32>
    %875 = arith.mulf %874, %873 : vector<8x128xf32>
    %cst_431 = arith.constant 5.000000e-01 : f32
    %876 = vector.broadcast %cst_431 : f32 to vector<8x128xf32>
    %877 = arith.addf %875, %876 : vector<8x128xf32>
    %c0_432 = arith.constant 0 : index
    %c128_433 = arith.constant 128 : index
    %878 = vector.load %arg9[%c0_432, %c128_433] : memref<128x512xf32, #tpu.memory_space<vmem>>, vector<128x128xf32>
    %879 = vector.extract_strided_slice %866 {offsets = [0, 128], sizes = [8, 128], strides = [1, 1]} : vector<8x512xf32> to vector<8x128xf32>
    %cst_434 = arith.constant dense<0.000000e+00> : vector<8x128xf32>
    %880 = tpu.matmul %862, %878, %cst_434 {dimension_numbers = #tpu.dot_dimension_numbers<[1], [0], [0], [1], [0, 0, 1, 1], [], []>} : vector<8x128xf32>, vector<128x128xf32>, vector<8x128xf32> -> vector<8x128xf32>
    %881 = arith.addf %879, %880 : vector<8x128xf32>
    %cst_435 = arith.constant 5.000000e-01 : f32
    %882 = vector.broadcast %cst_435 : f32 to vector<8x128xf32>
    %883 = arith.mulf %882, %881 : vector<8x128xf32>
    %884 = math.tanh %883 : vector<8x128xf32>
    %cst_436 = arith.constant 5.000000e-01 : f32
    %885 = vector.broadcast %cst_436 : f32 to vector<8x128xf32>
    %886 = arith.mulf %885, %884 : vector<8x128xf32>
    %cst_437 = arith.constant 5.000000e-01 : f32
    %887 = vector.broadcast %cst_437 : f32 to vector<8x128xf32>
    %888 = arith.addf %886, %887 : vector<8x128xf32>
    %c0_438 = arith.constant 0 : index
    %c256_439 = arith.constant 256 : index
    %889 = vector.load %arg9[%c0_438, %c256_439] : memref<128x512xf32, #tpu.memory_space<vmem>>, vector<128x128xf32>
    %890 = vector.extract_strided_slice %866 {offsets = [0, 256], sizes = [8, 128], strides = [1, 1]} : vector<8x512xf32> to vector<8x128xf32>
    %cst_440 = arith.constant dense<0.000000e+00> : vector<8x128xf32>
    %891 = tpu.matmul %862, %889, %cst_440 {dimension_numbers = #tpu.dot_dimension_numbers<[1], [0], [0], [1], [0, 0, 1, 1], [], []>} : vector<8x128xf32>, vector<128x128xf32>, vector<8x128xf32> -> vector<8x128xf32>
    %892 = arith.addf %890, %891 : vector<8x128xf32>
    %893 = math.tanh %892 : vector<8x128xf32>
    %c0_441 = arith.constant 0 : index
    %c384_442 = arith.constant 384 : index
    %894 = vector.load %arg9[%c0_441, %c384_442] : memref<128x512xf32, #tpu.memory_space<vmem>>, vector<128x128xf32>
    %895 = vector.extract_strided_slice %866 {offsets = [0, 384], sizes = [8, 128], strides = [1, 1]} : vector<8x512xf32> to vector<8x128xf32>
    %cst_443 = arith.constant dense<0.000000e+00> : vector<8x128xf32>
    %896 = tpu.matmul %862, %894, %cst_443 {dimension_numbers = #tpu.dot_dimension_numbers<[1], [0], [0], [1], [0, 0, 1, 1], [], []>} : vector<8x128xf32>, vector<128x128xf32>, vector<8x128xf32> -> vector<8x128xf32>
    %897 = arith.addf %895, %896 : vector<8x128xf32>
    %cst_444 = arith.constant 5.000000e-01 : f32
    %898 = vector.broadcast %cst_444 : f32 to vector<8x128xf32>
    %899 = arith.mulf %898, %897 : vector<8x128xf32>
    %900 = math.tanh %899 : vector<8x128xf32>
    %cst_445 = arith.constant 5.000000e-01 : f32
    %901 = vector.broadcast %cst_445 : f32 to vector<8x128xf32>
    %902 = arith.mulf %901, %900 : vector<8x128xf32>
    %cst_446 = arith.constant 5.000000e-01 : f32
    %903 = vector.broadcast %cst_446 : f32 to vector<8x128xf32>
    %904 = arith.addf %902, %903 : vector<8x128xf32>
    %905 = arith.mulf %888, %860 : vector<8x128xf32>
    %906 = arith.mulf %877, %893 : vector<8x128xf32>
    %907 = arith.addf %905, %906 : vector<8x128xf32>
    %908 = math.tanh %907 : vector<8x128xf32>
    %909 = arith.mulf %904, %908 : vector<8x128xf32>
    %c19_i32 = arith.constant 19 : i32
    %c8_i32_447 = arith.constant 8 : i32
    %910 = arith.muli %c19_i32, %c8_i32_447 : i32
    %911 = tpu.assume_multiple %910, 8 : i32
    %912 = arith.index_cast %911 : i32 to index
    %c0_448 = arith.constant 0 : index
    %913 = vector.load %arg8[%912, %c0_448] : memref<200x512xf32, #tpu.memory_space<vmem>>, vector<8x512xf32>
    %c0_449 = arith.constant 0 : index
    %c0_450 = arith.constant 0 : index
    %914 = vector.load %arg9[%c0_449, %c0_450] : memref<128x512xf32, #tpu.memory_space<vmem>>, vector<128x128xf32>
    %915 = vector.extract_strided_slice %913 {offsets = [0, 0], sizes = [8, 128], strides = [1, 1]} : vector<8x512xf32> to vector<8x128xf32>
    %cst_451 = arith.constant dense<0.000000e+00> : vector<8x128xf32>
    %916 = tpu.matmul %909, %914, %cst_451 {dimension_numbers = #tpu.dot_dimension_numbers<[1], [0], [0], [1], [0, 0, 1, 1], [], []>} : vector<8x128xf32>, vector<128x128xf32>, vector<8x128xf32> -> vector<8x128xf32>
    %917 = arith.addf %915, %916 : vector<8x128xf32>
    %cst_452 = arith.constant 5.000000e-01 : f32
    %918 = vector.broadcast %cst_452 : f32 to vector<8x128xf32>
    %919 = arith.mulf %918, %917 : vector<8x128xf32>
    %920 = math.tanh %919 : vector<8x128xf32>
    %cst_453 = arith.constant 5.000000e-01 : f32
    %921 = vector.broadcast %cst_453 : f32 to vector<8x128xf32>
    %922 = arith.mulf %921, %920 : vector<8x128xf32>
    %cst_454 = arith.constant 5.000000e-01 : f32
    %923 = vector.broadcast %cst_454 : f32 to vector<8x128xf32>
    %924 = arith.addf %922, %923 : vector<8x128xf32>
    %c0_455 = arith.constant 0 : index
    %c128_456 = arith.constant 128 : index
    %925 = vector.load %arg9[%c0_455, %c128_456] : memref<128x512xf32, #tpu.memory_space<vmem>>, vector<128x128xf32>
    %926 = vector.extract_strided_slice %913 {offsets = [0, 128], sizes = [8, 128], strides = [1, 1]} : vector<8x512xf32> to vector<8x128xf32>
    %cst_457 = arith.constant dense<0.000000e+00> : vector<8x128xf32>
    %927 = tpu.matmul %909, %925, %cst_457 {dimension_numbers = #tpu.dot_dimension_numbers<[1], [0], [0], [1], [0, 0, 1, 1], [], []>} : vector<8x128xf32>, vector<128x128xf32>, vector<8x128xf32> -> vector<8x128xf32>
    %928 = arith.addf %926, %927 : vector<8x128xf32>
    %cst_458 = arith.constant 5.000000e-01 : f32
    %929 = vector.broadcast %cst_458 : f32 to vector<8x128xf32>
    %930 = arith.mulf %929, %928 : vector<8x128xf32>
    %931 = math.tanh %930 : vector<8x128xf32>
    %cst_459 = arith.constant 5.000000e-01 : f32
    %932 = vector.broadcast %cst_459 : f32 to vector<8x128xf32>
    %933 = arith.mulf %932, %931 : vector<8x128xf32>
    %cst_460 = arith.constant 5.000000e-01 : f32
    %934 = vector.broadcast %cst_460 : f32 to vector<8x128xf32>
    %935 = arith.addf %933, %934 : vector<8x128xf32>
    %c0_461 = arith.constant 0 : index
    %c256_462 = arith.constant 256 : index
    %936 = vector.load %arg9[%c0_461, %c256_462] : memref<128x512xf32, #tpu.memory_space<vmem>>, vector<128x128xf32>
    %937 = vector.extract_strided_slice %913 {offsets = [0, 256], sizes = [8, 128], strides = [1, 1]} : vector<8x512xf32> to vector<8x128xf32>
    %cst_463 = arith.constant dense<0.000000e+00> : vector<8x128xf32>
    %938 = tpu.matmul %909, %936, %cst_463 {dimension_numbers = #tpu.dot_dimension_numbers<[1], [0], [0], [1], [0, 0, 1, 1], [], []>} : vector<8x128xf32>, vector<128x128xf32>, vector<8x128xf32> -> vector<8x128xf32>
    %939 = arith.addf %937, %938 : vector<8x128xf32>
    %940 = math.tanh %939 : vector<8x128xf32>
    %c0_464 = arith.constant 0 : index
    %c384_465 = arith.constant 384 : index
    %941 = vector.load %arg9[%c0_464, %c384_465] : memref<128x512xf32, #tpu.memory_space<vmem>>, vector<128x128xf32>
    %942 = vector.extract_strided_slice %913 {offsets = [0, 384], sizes = [8, 128], strides = [1, 1]} : vector<8x512xf32> to vector<8x128xf32>
    %cst_466 = arith.constant dense<0.000000e+00> : vector<8x128xf32>
    %943 = tpu.matmul %909, %941, %cst_466 {dimension_numbers = #tpu.dot_dimension_numbers<[1], [0], [0], [1], [0, 0, 1, 1], [], []>} : vector<8x128xf32>, vector<128x128xf32>, vector<8x128xf32> -> vector<8x128xf32>
    %944 = arith.addf %942, %943 : vector<8x128xf32>
    %cst_467 = arith.constant 5.000000e-01 : f32
    %945 = vector.broadcast %cst_467 : f32 to vector<8x128xf32>
    %946 = arith.mulf %945, %944 : vector<8x128xf32>
    %947 = math.tanh %946 : vector<8x128xf32>
    %cst_468 = arith.constant 5.000000e-01 : f32
    %948 = vector.broadcast %cst_468 : f32 to vector<8x128xf32>
    %949 = arith.mulf %948, %947 : vector<8x128xf32>
    %cst_469 = arith.constant 5.000000e-01 : f32
    %950 = vector.broadcast %cst_469 : f32 to vector<8x128xf32>
    %951 = arith.addf %949, %950 : vector<8x128xf32>
    %952 = arith.mulf %935, %907 : vector<8x128xf32>
    %953 = arith.mulf %924, %940 : vector<8x128xf32>
    %954 = arith.addf %952, %953 : vector<8x128xf32>
    %955 = math.tanh %954 : vector<8x128xf32>
    %956 = arith.mulf %951, %955 : vector<8x128xf32>
    %c20_i32 = arith.constant 20 : i32
    %c8_i32_470 = arith.constant 8 : i32
    %957 = arith.muli %c20_i32, %c8_i32_470 : i32
    %958 = tpu.assume_multiple %957, 8 : i32
    %959 = arith.index_cast %958 : i32 to index
    %c0_471 = arith.constant 0 : index
    %960 = vector.load %arg8[%959, %c0_471] : memref<200x512xf32, #tpu.memory_space<vmem>>, vector<8x512xf32>
    %c0_472 = arith.constant 0 : index
    %c0_473 = arith.constant 0 : index
    %961 = vector.load %arg9[%c0_472, %c0_473] : memref<128x512xf32, #tpu.memory_space<vmem>>, vector<128x128xf32>
    %962 = vector.extract_strided_slice %960 {offsets = [0, 0], sizes = [8, 128], strides = [1, 1]} : vector<8x512xf32> to vector<8x128xf32>
    %cst_474 = arith.constant dense<0.000000e+00> : vector<8x128xf32>
    %963 = tpu.matmul %956, %961, %cst_474 {dimension_numbers = #tpu.dot_dimension_numbers<[1], [0], [0], [1], [0, 0, 1, 1], [], []>} : vector<8x128xf32>, vector<128x128xf32>, vector<8x128xf32> -> vector<8x128xf32>
    %964 = arith.addf %962, %963 : vector<8x128xf32>
    %cst_475 = arith.constant 5.000000e-01 : f32
    %965 = vector.broadcast %cst_475 : f32 to vector<8x128xf32>
    %966 = arith.mulf %965, %964 : vector<8x128xf32>
    %967 = math.tanh %966 : vector<8x128xf32>
    %cst_476 = arith.constant 5.000000e-01 : f32
    %968 = vector.broadcast %cst_476 : f32 to vector<8x128xf32>
    %969 = arith.mulf %968, %967 : vector<8x128xf32>
    %cst_477 = arith.constant 5.000000e-01 : f32
    %970 = vector.broadcast %cst_477 : f32 to vector<8x128xf32>
    %971 = arith.addf %969, %970 : vector<8x128xf32>
    %c0_478 = arith.constant 0 : index
    %c128_479 = arith.constant 128 : index
    %972 = vector.load %arg9[%c0_478, %c128_479] : memref<128x512xf32, #tpu.memory_space<vmem>>, vector<128x128xf32>
    %973 = vector.extract_strided_slice %960 {offsets = [0, 128], sizes = [8, 128], strides = [1, 1]} : vector<8x512xf32> to vector<8x128xf32>
    %cst_480 = arith.constant dense<0.000000e+00> : vector<8x128xf32>
    %974 = tpu.matmul %956, %972, %cst_480 {dimension_numbers = #tpu.dot_dimension_numbers<[1], [0], [0], [1], [0, 0, 1, 1], [], []>} : vector<8x128xf32>, vector<128x128xf32>, vector<8x128xf32> -> vector<8x128xf32>
    %975 = arith.addf %973, %974 : vector<8x128xf32>
    %cst_481 = arith.constant 5.000000e-01 : f32
    %976 = vector.broadcast %cst_481 : f32 to vector<8x128xf32>
    %977 = arith.mulf %976, %975 : vector<8x128xf32>
    %978 = math.tanh %977 : vector<8x128xf32>
    %cst_482 = arith.constant 5.000000e-01 : f32
    %979 = vector.broadcast %cst_482 : f32 to vector<8x128xf32>
    %980 = arith.mulf %979, %978 : vector<8x128xf32>
    %cst_483 = arith.constant 5.000000e-01 : f32
    %981 = vector.broadcast %cst_483 : f32 to vector<8x128xf32>
    %982 = arith.addf %980, %981 : vector<8x128xf32>
    %c0_484 = arith.constant 0 : index
    %c256_485 = arith.constant 256 : index
    %983 = vector.load %arg9[%c0_484, %c256_485] : memref<128x512xf32, #tpu.memory_space<vmem>>, vector<128x128xf32>
    %984 = vector.extract_strided_slice %960 {offsets = [0, 256], sizes = [8, 128], strides = [1, 1]} : vector<8x512xf32> to vector<8x128xf32>
    %cst_486 = arith.constant dense<0.000000e+00> : vector<8x128xf32>
    %985 = tpu.matmul %956, %983, %cst_486 {dimension_numbers = #tpu.dot_dimension_numbers<[1], [0], [0], [1], [0, 0, 1, 1], [], []>} : vector<8x128xf32>, vector<128x128xf32>, vector<8x128xf32> -> vector<8x128xf32>
    %986 = arith.addf %984, %985 : vector<8x128xf32>
    %987 = math.tanh %986 : vector<8x128xf32>
    %c0_487 = arith.constant 0 : index
    %c384_488 = arith.constant 384 : index
    %988 = vector.load %arg9[%c0_487, %c384_488] : memref<128x512xf32, #tpu.memory_space<vmem>>, vector<128x128xf32>
    %989 = vector.extract_strided_slice %960 {offsets = [0, 384], sizes = [8, 128], strides = [1, 1]} : vector<8x512xf32> to vector<8x128xf32>
    %cst_489 = arith.constant dense<0.000000e+00> : vector<8x128xf32>
    %990 = tpu.matmul %956, %988, %cst_489 {dimension_numbers = #tpu.dot_dimension_numbers<[1], [0], [0], [1], [0, 0, 1, 1], [], []>} : vector<8x128xf32>, vector<128x128xf32>, vector<8x128xf32> -> vector<8x128xf32>
    %991 = arith.addf %989, %990 : vector<8x128xf32>
    %cst_490 = arith.constant 5.000000e-01 : f32
    %992 = vector.broadcast %cst_490 : f32 to vector<8x128xf32>
    %993 = arith.mulf %992, %991 : vector<8x128xf32>
    %994 = math.tanh %993 : vector<8x128xf32>
    %cst_491 = arith.constant 5.000000e-01 : f32
    %995 = vector.broadcast %cst_491 : f32 to vector<8x128xf32>
    %996 = arith.mulf %995, %994 : vector<8x128xf32>
    %cst_492 = arith.constant 5.000000e-01 : f32
    %997 = vector.broadcast %cst_492 : f32 to vector<8x128xf32>
    %998 = arith.addf %996, %997 : vector<8x128xf32>
    %999 = arith.mulf %982, %954 : vector<8x128xf32>
    %1000 = arith.mulf %971, %987 : vector<8x128xf32>
    %1001 = arith.addf %999, %1000 : vector<8x128xf32>
    %1002 = math.tanh %1001 : vector<8x128xf32>
    %1003 = arith.mulf %998, %1002 : vector<8x128xf32>
    %c21_i32 = arith.constant 21 : i32
    %c8_i32_493 = arith.constant 8 : i32
    %1004 = arith.muli %c21_i32, %c8_i32_493 : i32
    %1005 = tpu.assume_multiple %1004, 8 : i32
    %1006 = arith.index_cast %1005 : i32 to index
    %c0_494 = arith.constant 0 : index
    %1007 = vector.load %arg8[%1006, %c0_494] : memref<200x512xf32, #tpu.memory_space<vmem>>, vector<8x512xf32>
    %c0_495 = arith.constant 0 : index
    %c0_496 = arith.constant 0 : index
    %1008 = vector.load %arg9[%c0_495, %c0_496] : memref<128x512xf32, #tpu.memory_space<vmem>>, vector<128x128xf32>
    %1009 = vector.extract_strided_slice %1007 {offsets = [0, 0], sizes = [8, 128], strides = [1, 1]} : vector<8x512xf32> to vector<8x128xf32>
    %cst_497 = arith.constant dense<0.000000e+00> : vector<8x128xf32>
    %1010 = tpu.matmul %1003, %1008, %cst_497 {dimension_numbers = #tpu.dot_dimension_numbers<[1], [0], [0], [1], [0, 0, 1, 1], [], []>} : vector<8x128xf32>, vector<128x128xf32>, vector<8x128xf32> -> vector<8x128xf32>
    %1011 = arith.addf %1009, %1010 : vector<8x128xf32>
    %cst_498 = arith.constant 5.000000e-01 : f32
    %1012 = vector.broadcast %cst_498 : f32 to vector<8x128xf32>
    %1013 = arith.mulf %1012, %1011 : vector<8x128xf32>
    %1014 = math.tanh %1013 : vector<8x128xf32>
    %cst_499 = arith.constant 5.000000e-01 : f32
    %1015 = vector.broadcast %cst_499 : f32 to vector<8x128xf32>
    %1016 = arith.mulf %1015, %1014 : vector<8x128xf32>
    %cst_500 = arith.constant 5.000000e-01 : f32
    %1017 = vector.broadcast %cst_500 : f32 to vector<8x128xf32>
    %1018 = arith.addf %1016, %1017 : vector<8x128xf32>
    %c0_501 = arith.constant 0 : index
    %c128_502 = arith.constant 128 : index
    %1019 = vector.load %arg9[%c0_501, %c128_502] : memref<128x512xf32, #tpu.memory_space<vmem>>, vector<128x128xf32>
    %1020 = vector.extract_strided_slice %1007 {offsets = [0, 128], sizes = [8, 128], strides = [1, 1]} : vector<8x512xf32> to vector<8x128xf32>
    %cst_503 = arith.constant dense<0.000000e+00> : vector<8x128xf32>
    %1021 = tpu.matmul %1003, %1019, %cst_503 {dimension_numbers = #tpu.dot_dimension_numbers<[1], [0], [0], [1], [0, 0, 1, 1], [], []>} : vector<8x128xf32>, vector<128x128xf32>, vector<8x128xf32> -> vector<8x128xf32>
    %1022 = arith.addf %1020, %1021 : vector<8x128xf32>
    %cst_504 = arith.constant 5.000000e-01 : f32
    %1023 = vector.broadcast %cst_504 : f32 to vector<8x128xf32>
    %1024 = arith.mulf %1023, %1022 : vector<8x128xf32>
    %1025 = math.tanh %1024 : vector<8x128xf32>
    %cst_505 = arith.constant 5.000000e-01 : f32
    %1026 = vector.broadcast %cst_505 : f32 to vector<8x128xf32>
    %1027 = arith.mulf %1026, %1025 : vector<8x128xf32>
    %cst_506 = arith.constant 5.000000e-01 : f32
    %1028 = vector.broadcast %cst_506 : f32 to vector<8x128xf32>
    %1029 = arith.addf %1027, %1028 : vector<8x128xf32>
    %c0_507 = arith.constant 0 : index
    %c256_508 = arith.constant 256 : index
    %1030 = vector.load %arg9[%c0_507, %c256_508] : memref<128x512xf32, #tpu.memory_space<vmem>>, vector<128x128xf32>
    %1031 = vector.extract_strided_slice %1007 {offsets = [0, 256], sizes = [8, 128], strides = [1, 1]} : vector<8x512xf32> to vector<8x128xf32>
    %cst_509 = arith.constant dense<0.000000e+00> : vector<8x128xf32>
    %1032 = tpu.matmul %1003, %1030, %cst_509 {dimension_numbers = #tpu.dot_dimension_numbers<[1], [0], [0], [1], [0, 0, 1, 1], [], []>} : vector<8x128xf32>, vector<128x128xf32>, vector<8x128xf32> -> vector<8x128xf32>
    %1033 = arith.addf %1031, %1032 : vector<8x128xf32>
    %1034 = math.tanh %1033 : vector<8x128xf32>
    %c0_510 = arith.constant 0 : index
    %c384_511 = arith.constant 384 : index
    %1035 = vector.load %arg9[%c0_510, %c384_511] : memref<128x512xf32, #tpu.memory_space<vmem>>, vector<128x128xf32>
    %1036 = vector.extract_strided_slice %1007 {offsets = [0, 384], sizes = [8, 128], strides = [1, 1]} : vector<8x512xf32> to vector<8x128xf32>
    %cst_512 = arith.constant dense<0.000000e+00> : vector<8x128xf32>
    %1037 = tpu.matmul %1003, %1035, %cst_512 {dimension_numbers = #tpu.dot_dimension_numbers<[1], [0], [0], [1], [0, 0, 1, 1], [], []>} : vector<8x128xf32>, vector<128x128xf32>, vector<8x128xf32> -> vector<8x128xf32>
    %1038 = arith.addf %1036, %1037 : vector<8x128xf32>
    %cst_513 = arith.constant 5.000000e-01 : f32
    %1039 = vector.broadcast %cst_513 : f32 to vector<8x128xf32>
    %1040 = arith.mulf %1039, %1038 : vector<8x128xf32>
    %1041 = math.tanh %1040 : vector<8x128xf32>
    %cst_514 = arith.constant 5.000000e-01 : f32
    %1042 = vector.broadcast %cst_514 : f32 to vector<8x128xf32>
    %1043 = arith.mulf %1042, %1041 : vector<8x128xf32>
    %cst_515 = arith.constant 5.000000e-01 : f32
    %1044 = vector.broadcast %cst_515 : f32 to vector<8x128xf32>
    %1045 = arith.addf %1043, %1044 : vector<8x128xf32>
    %1046 = arith.mulf %1029, %1001 : vector<8x128xf32>
    %1047 = arith.mulf %1018, %1034 : vector<8x128xf32>
    %1048 = arith.addf %1046, %1047 : vector<8x128xf32>
    %1049 = math.tanh %1048 : vector<8x128xf32>
    %1050 = arith.mulf %1045, %1049 : vector<8x128xf32>
    %c22_i32 = arith.constant 22 : i32
    %c8_i32_516 = arith.constant 8 : i32
    %1051 = arith.muli %c22_i32, %c8_i32_516 : i32
    %1052 = tpu.assume_multiple %1051, 8 : i32
    %1053 = arith.index_cast %1052 : i32 to index
    %c0_517 = arith.constant 0 : index
    %1054 = vector.load %arg8[%1053, %c0_517] : memref<200x512xf32, #tpu.memory_space<vmem>>, vector<8x512xf32>
    %c0_518 = arith.constant 0 : index
    %c0_519 = arith.constant 0 : index
    %1055 = vector.load %arg9[%c0_518, %c0_519] : memref<128x512xf32, #tpu.memory_space<vmem>>, vector<128x128xf32>
    %1056 = vector.extract_strided_slice %1054 {offsets = [0, 0], sizes = [8, 128], strides = [1, 1]} : vector<8x512xf32> to vector<8x128xf32>
    %cst_520 = arith.constant dense<0.000000e+00> : vector<8x128xf32>
    %1057 = tpu.matmul %1050, %1055, %cst_520 {dimension_numbers = #tpu.dot_dimension_numbers<[1], [0], [0], [1], [0, 0, 1, 1], [], []>} : vector<8x128xf32>, vector<128x128xf32>, vector<8x128xf32> -> vector<8x128xf32>
    %1058 = arith.addf %1056, %1057 : vector<8x128xf32>
    %cst_521 = arith.constant 5.000000e-01 : f32
    %1059 = vector.broadcast %cst_521 : f32 to vector<8x128xf32>
    %1060 = arith.mulf %1059, %1058 : vector<8x128xf32>
    %1061 = math.tanh %1060 : vector<8x128xf32>
    %cst_522 = arith.constant 5.000000e-01 : f32
    %1062 = vector.broadcast %cst_522 : f32 to vector<8x128xf32>
    %1063 = arith.mulf %1062, %1061 : vector<8x128xf32>
    %cst_523 = arith.constant 5.000000e-01 : f32
    %1064 = vector.broadcast %cst_523 : f32 to vector<8x128xf32>
    %1065 = arith.addf %1063, %1064 : vector<8x128xf32>
    %c0_524 = arith.constant 0 : index
    %c128_525 = arith.constant 128 : index
    %1066 = vector.load %arg9[%c0_524, %c128_525] : memref<128x512xf32, #tpu.memory_space<vmem>>, vector<128x128xf32>
    %1067 = vector.extract_strided_slice %1054 {offsets = [0, 128], sizes = [8, 128], strides = [1, 1]} : vector<8x512xf32> to vector<8x128xf32>
    %cst_526 = arith.constant dense<0.000000e+00> : vector<8x128xf32>
    %1068 = tpu.matmul %1050, %1066, %cst_526 {dimension_numbers = #tpu.dot_dimension_numbers<[1], [0], [0], [1], [0, 0, 1, 1], [], []>} : vector<8x128xf32>, vector<128x128xf32>, vector<8x128xf32> -> vector<8x128xf32>
    %1069 = arith.addf %1067, %1068 : vector<8x128xf32>
    %cst_527 = arith.constant 5.000000e-01 : f32
    %1070 = vector.broadcast %cst_527 : f32 to vector<8x128xf32>
    %1071 = arith.mulf %1070, %1069 : vector<8x128xf32>
    %1072 = math.tanh %1071 : vector<8x128xf32>
    %cst_528 = arith.constant 5.000000e-01 : f32
    %1073 = vector.broadcast %cst_528 : f32 to vector<8x128xf32>
    %1074 = arith.mulf %1073, %1072 : vector<8x128xf32>
    %cst_529 = arith.constant 5.000000e-01 : f32
    %1075 = vector.broadcast %cst_529 : f32 to vector<8x128xf32>
    %1076 = arith.addf %1074, %1075 : vector<8x128xf32>
    %c0_530 = arith.constant 0 : index
    %c256_531 = arith.constant 256 : index
    %1077 = vector.load %arg9[%c0_530, %c256_531] : memref<128x512xf32, #tpu.memory_space<vmem>>, vector<128x128xf32>
    %1078 = vector.extract_strided_slice %1054 {offsets = [0, 256], sizes = [8, 128], strides = [1, 1]} : vector<8x512xf32> to vector<8x128xf32>
    %cst_532 = arith.constant dense<0.000000e+00> : vector<8x128xf32>
    %1079 = tpu.matmul %1050, %1077, %cst_532 {dimension_numbers = #tpu.dot_dimension_numbers<[1], [0], [0], [1], [0, 0, 1, 1], [], []>} : vector<8x128xf32>, vector<128x128xf32>, vector<8x128xf32> -> vector<8x128xf32>
    %1080 = arith.addf %1078, %1079 : vector<8x128xf32>
    %1081 = math.tanh %1080 : vector<8x128xf32>
    %c0_533 = arith.constant 0 : index
    %c384_534 = arith.constant 384 : index
    %1082 = vector.load %arg9[%c0_533, %c384_534] : memref<128x512xf32, #tpu.memory_space<vmem>>, vector<128x128xf32>
    %1083 = vector.extract_strided_slice %1054 {offsets = [0, 384], sizes = [8, 128], strides = [1, 1]} : vector<8x512xf32> to vector<8x128xf32>
    %cst_535 = arith.constant dense<0.000000e+00> : vector<8x128xf32>
    %1084 = tpu.matmul %1050, %1082, %cst_535 {dimension_numbers = #tpu.dot_dimension_numbers<[1], [0], [0], [1], [0, 0, 1, 1], [], []>} : vector<8x128xf32>, vector<128x128xf32>, vector<8x128xf32> -> vector<8x128xf32>
    %1085 = arith.addf %1083, %1084 : vector<8x128xf32>
    %cst_536 = arith.constant 5.000000e-01 : f32
    %1086 = vector.broadcast %cst_536 : f32 to vector<8x128xf32>
    %1087 = arith.mulf %1086, %1085 : vector<8x128xf32>
    %1088 = math.tanh %1087 : vector<8x128xf32>
    %cst_537 = arith.constant 5.000000e-01 : f32
    %1089 = vector.broadcast %cst_537 : f32 to vector<8x128xf32>
    %1090 = arith.mulf %1089, %1088 : vector<8x128xf32>
    %cst_538 = arith.constant 5.000000e-01 : f32
    %1091 = vector.broadcast %cst_538 : f32 to vector<8x128xf32>
    %1092 = arith.addf %1090, %1091 : vector<8x128xf32>
    %1093 = arith.mulf %1076, %1048 : vector<8x128xf32>
    %1094 = arith.mulf %1065, %1081 : vector<8x128xf32>
    %1095 = arith.addf %1093, %1094 : vector<8x128xf32>
    %1096 = math.tanh %1095 : vector<8x128xf32>
    %1097 = arith.mulf %1092, %1096 : vector<8x128xf32>
    %c23_i32 = arith.constant 23 : i32
    %c8_i32_539 = arith.constant 8 : i32
    %1098 = arith.muli %c23_i32, %c8_i32_539 : i32
    %1099 = tpu.assume_multiple %1098, 8 : i32
    %1100 = arith.index_cast %1099 : i32 to index
    %c0_540 = arith.constant 0 : index
    %1101 = vector.load %arg8[%1100, %c0_540] : memref<200x512xf32, #tpu.memory_space<vmem>>, vector<8x512xf32>
    %c0_541 = arith.constant 0 : index
    %c0_542 = arith.constant 0 : index
    %1102 = vector.load %arg9[%c0_541, %c0_542] : memref<128x512xf32, #tpu.memory_space<vmem>>, vector<128x128xf32>
    %1103 = vector.extract_strided_slice %1101 {offsets = [0, 0], sizes = [8, 128], strides = [1, 1]} : vector<8x512xf32> to vector<8x128xf32>
    %cst_543 = arith.constant dense<0.000000e+00> : vector<8x128xf32>
    %1104 = tpu.matmul %1097, %1102, %cst_543 {dimension_numbers = #tpu.dot_dimension_numbers<[1], [0], [0], [1], [0, 0, 1, 1], [], []>} : vector<8x128xf32>, vector<128x128xf32>, vector<8x128xf32> -> vector<8x128xf32>
    %1105 = arith.addf %1103, %1104 : vector<8x128xf32>
    %cst_544 = arith.constant 5.000000e-01 : f32
    %1106 = vector.broadcast %cst_544 : f32 to vector<8x128xf32>
    %1107 = arith.mulf %1106, %1105 : vector<8x128xf32>
    %1108 = math.tanh %1107 : vector<8x128xf32>
    %cst_545 = arith.constant 5.000000e-01 : f32
    %1109 = vector.broadcast %cst_545 : f32 to vector<8x128xf32>
    %1110 = arith.mulf %1109, %1108 : vector<8x128xf32>
    %cst_546 = arith.constant 5.000000e-01 : f32
    %1111 = vector.broadcast %cst_546 : f32 to vector<8x128xf32>
    %1112 = arith.addf %1110, %1111 : vector<8x128xf32>
    %c0_547 = arith.constant 0 : index
    %c128_548 = arith.constant 128 : index
    %1113 = vector.load %arg9[%c0_547, %c128_548] : memref<128x512xf32, #tpu.memory_space<vmem>>, vector<128x128xf32>
    %1114 = vector.extract_strided_slice %1101 {offsets = [0, 128], sizes = [8, 128], strides = [1, 1]} : vector<8x512xf32> to vector<8x128xf32>
    %cst_549 = arith.constant dense<0.000000e+00> : vector<8x128xf32>
    %1115 = tpu.matmul %1097, %1113, %cst_549 {dimension_numbers = #tpu.dot_dimension_numbers<[1], [0], [0], [1], [0, 0, 1, 1], [], []>} : vector<8x128xf32>, vector<128x128xf32>, vector<8x128xf32> -> vector<8x128xf32>
    %1116 = arith.addf %1114, %1115 : vector<8x128xf32>
    %cst_550 = arith.constant 5.000000e-01 : f32
    %1117 = vector.broadcast %cst_550 : f32 to vector<8x128xf32>
    %1118 = arith.mulf %1117, %1116 : vector<8x128xf32>
    %1119 = math.tanh %1118 : vector<8x128xf32>
    %cst_551 = arith.constant 5.000000e-01 : f32
    %1120 = vector.broadcast %cst_551 : f32 to vector<8x128xf32>
    %1121 = arith.mulf %1120, %1119 : vector<8x128xf32>
    %cst_552 = arith.constant 5.000000e-01 : f32
    %1122 = vector.broadcast %cst_552 : f32 to vector<8x128xf32>
    %1123 = arith.addf %1121, %1122 : vector<8x128xf32>
    %c0_553 = arith.constant 0 : index
    %c256_554 = arith.constant 256 : index
    %1124 = vector.load %arg9[%c0_553, %c256_554] : memref<128x512xf32, #tpu.memory_space<vmem>>, vector<128x128xf32>
    %1125 = vector.extract_strided_slice %1101 {offsets = [0, 256], sizes = [8, 128], strides = [1, 1]} : vector<8x512xf32> to vector<8x128xf32>
    %cst_555 = arith.constant dense<0.000000e+00> : vector<8x128xf32>
    %1126 = tpu.matmul %1097, %1124, %cst_555 {dimension_numbers = #tpu.dot_dimension_numbers<[1], [0], [0], [1], [0, 0, 1, 1], [], []>} : vector<8x128xf32>, vector<128x128xf32>, vector<8x128xf32> -> vector<8x128xf32>
    %1127 = arith.addf %1125, %1126 : vector<8x128xf32>
    %1128 = math.tanh %1127 : vector<8x128xf32>
    %c0_556 = arith.constant 0 : index
    %c384_557 = arith.constant 384 : index
    %1129 = vector.load %arg9[%c0_556, %c384_557] : memref<128x512xf32, #tpu.memory_space<vmem>>, vector<128x128xf32>
    %1130 = vector.extract_strided_slice %1101 {offsets = [0, 384], sizes = [8, 128], strides = [1, 1]} : vector<8x512xf32> to vector<8x128xf32>
    %cst_558 = arith.constant dense<0.000000e+00> : vector<8x128xf32>
    %1131 = tpu.matmul %1097, %1129, %cst_558 {dimension_numbers = #tpu.dot_dimension_numbers<[1], [0], [0], [1], [0, 0, 1, 1], [], []>} : vector<8x128xf32>, vector<128x128xf32>, vector<8x128xf32> -> vector<8x128xf32>
    %1132 = arith.addf %1130, %1131 : vector<8x128xf32>
    %cst_559 = arith.constant 5.000000e-01 : f32
    %1133 = vector.broadcast %cst_559 : f32 to vector<8x128xf32>
    %1134 = arith.mulf %1133, %1132 : vector<8x128xf32>
    %1135 = math.tanh %1134 : vector<8x128xf32>
    %cst_560 = arith.constant 5.000000e-01 : f32
    %1136 = vector.broadcast %cst_560 : f32 to vector<8x128xf32>
    %1137 = arith.mulf %1136, %1135 : vector<8x128xf32>
    %cst_561 = arith.constant 5.000000e-01 : f32
    %1138 = vector.broadcast %cst_561 : f32 to vector<8x128xf32>
    %1139 = arith.addf %1137, %1138 : vector<8x128xf32>
    %1140 = arith.mulf %1123, %1095 : vector<8x128xf32>
    %1141 = arith.mulf %1112, %1128 : vector<8x128xf32>
    %1142 = arith.addf %1140, %1141 : vector<8x128xf32>
    %1143 = math.tanh %1142 : vector<8x128xf32>
    %1144 = arith.mulf %1139, %1143 : vector<8x128xf32>
    %c24_i32 = arith.constant 24 : i32
    %c8_i32_562 = arith.constant 8 : i32
    %1145 = arith.muli %c24_i32, %c8_i32_562 : i32
    %1146 = tpu.assume_multiple %1145, 8 : i32
    %1147 = arith.index_cast %1146 : i32 to index
    %c0_563 = arith.constant 0 : index
    %1148 = vector.load %arg8[%1147, %c0_563] : memref<200x512xf32, #tpu.memory_space<vmem>>, vector<8x512xf32>
    %c0_564 = arith.constant 0 : index
    %c0_565 = arith.constant 0 : index
    %1149 = vector.load %arg9[%c0_564, %c0_565] : memref<128x512xf32, #tpu.memory_space<vmem>>, vector<128x128xf32>
    %1150 = vector.extract_strided_slice %1148 {offsets = [0, 0], sizes = [8, 128], strides = [1, 1]} : vector<8x512xf32> to vector<8x128xf32>
    %cst_566 = arith.constant dense<0.000000e+00> : vector<8x128xf32>
    %1151 = tpu.matmul %1144, %1149, %cst_566 {dimension_numbers = #tpu.dot_dimension_numbers<[1], [0], [0], [1], [0, 0, 1, 1], [], []>} : vector<8x128xf32>, vector<128x128xf32>, vector<8x128xf32> -> vector<8x128xf32>
    %1152 = arith.addf %1150, %1151 : vector<8x128xf32>
    %cst_567 = arith.constant 5.000000e-01 : f32
    %1153 = vector.broadcast %cst_567 : f32 to vector<8x128xf32>
    %1154 = arith.mulf %1153, %1152 : vector<8x128xf32>
    %1155 = math.tanh %1154 : vector<8x128xf32>
    %cst_568 = arith.constant 5.000000e-01 : f32
    %1156 = vector.broadcast %cst_568 : f32 to vector<8x128xf32>
    %1157 = arith.mulf %1156, %1155 : vector<8x128xf32>
    %cst_569 = arith.constant 5.000000e-01 : f32
    %1158 = vector.broadcast %cst_569 : f32 to vector<8x128xf32>
    %1159 = arith.addf %1157, %1158 : vector<8x128xf32>
    %c0_570 = arith.constant 0 : index
    %c128_571 = arith.constant 128 : index
    %1160 = vector.load %arg9[%c0_570, %c128_571] : memref<128x512xf32, #tpu.memory_space<vmem>>, vector<128x128xf32>
    %1161 = vector.extract_strided_slice %1148 {offsets = [0, 128], sizes = [8, 128], strides = [1, 1]} : vector<8x512xf32> to vector<8x128xf32>
    %cst_572 = arith.constant dense<0.000000e+00> : vector<8x128xf32>
    %1162 = tpu.matmul %1144, %1160, %cst_572 {dimension_numbers = #tpu.dot_dimension_numbers<[1], [0], [0], [1], [0, 0, 1, 1], [], []>} : vector<8x128xf32>, vector<128x128xf32>, vector<8x128xf32> -> vector<8x128xf32>
    %1163 = arith.addf %1161, %1162 : vector<8x128xf32>
    %cst_573 = arith.constant 5.000000e-01 : f32
    %1164 = vector.broadcast %cst_573 : f32 to vector<8x128xf32>
    %1165 = arith.mulf %1164, %1163 : vector<8x128xf32>
    %1166 = math.tanh %1165 : vector<8x128xf32>
    %cst_574 = arith.constant 5.000000e-01 : f32
    %1167 = vector.broadcast %cst_574 : f32 to vector<8x128xf32>
    %1168 = arith.mulf %1167, %1166 : vector<8x128xf32>
    %cst_575 = arith.constant 5.000000e-01 : f32
    %1169 = vector.broadcast %cst_575 : f32 to vector<8x128xf32>
    %1170 = arith.addf %1168, %1169 : vector<8x128xf32>
    %c0_576 = arith.constant 0 : index
    %c256_577 = arith.constant 256 : index
    %1171 = vector.load %arg9[%c0_576, %c256_577] : memref<128x512xf32, #tpu.memory_space<vmem>>, vector<128x128xf32>
    %1172 = vector.extract_strided_slice %1148 {offsets = [0, 256], sizes = [8, 128], strides = [1, 1]} : vector<8x512xf32> to vector<8x128xf32>
    %cst_578 = arith.constant dense<0.000000e+00> : vector<8x128xf32>
    %1173 = tpu.matmul %1144, %1171, %cst_578 {dimension_numbers = #tpu.dot_dimension_numbers<[1], [0], [0], [1], [0, 0, 1, 1], [], []>} : vector<8x128xf32>, vector<128x128xf32>, vector<8x128xf32> -> vector<8x128xf32>
    %1174 = arith.addf %1172, %1173 : vector<8x128xf32>
    %1175 = math.tanh %1174 : vector<8x128xf32>
    %c0_579 = arith.constant 0 : index
    %c384_580 = arith.constant 384 : index
    %1176 = vector.load %arg9[%c0_579, %c384_580] : memref<128x512xf32, #tpu.memory_space<vmem>>, vector<128x128xf32>
    %1177 = vector.extract_strided_slice %1148 {offsets = [0, 384], sizes = [8, 128], strides = [1, 1]} : vector<8x512xf32> to vector<8x128xf32>
    %cst_581 = arith.constant dense<0.000000e+00> : vector<8x128xf32>
    %1178 = tpu.matmul %1144, %1176, %cst_581 {dimension_numbers = #tpu.dot_dimension_numbers<[1], [0], [0], [1], [0, 0, 1, 1], [], []>} : vector<8x128xf32>, vector<128x128xf32>, vector<8x128xf32> -> vector<8x128xf32>
    %1179 = arith.addf %1177, %1178 : vector<8x128xf32>
    %cst_582 = arith.constant 5.000000e-01 : f32
    %1180 = vector.broadcast %cst_582 : f32 to vector<8x128xf32>
    %1181 = arith.mulf %1180, %1179 : vector<8x128xf32>
    %1182 = math.tanh %1181 : vector<8x128xf32>
    %cst_583 = arith.constant 5.000000e-01 : f32
    %1183 = vector.broadcast %cst_583 : f32 to vector<8x128xf32>
    %1184 = arith.mulf %1183, %1182 : vector<8x128xf32>
    %cst_584 = arith.constant 5.000000e-01 : f32
    %1185 = vector.broadcast %cst_584 : f32 to vector<8x128xf32>
    %1186 = arith.addf %1184, %1185 : vector<8x128xf32>
    %1187 = arith.mulf %1170, %1142 : vector<8x128xf32>
    %1188 = arith.mulf %1159, %1175 : vector<8x128xf32>
    %1189 = arith.addf %1187, %1188 : vector<8x128xf32>
    %1190 = math.tanh %1189 : vector<8x128xf32>
    %1191 = arith.mulf %1186, %1190 : vector<8x128xf32>
    %c25_i32 = arith.constant 25 : i32
    %c1_i32_585 = arith.constant 1 : i32
    %1192 = tpu.memref_slice %arg12[%c1_i32_585] : memref<3x!tpu.dma_semaphore, #tpu.memory_space<semaphore_mem>> -> memref<1x!tpu.dma_semaphore, #tpu.memory_space<semaphore_mem>>
    %1193 = tpu.memref_squeeze %1192 : memref<1x!tpu.dma_semaphore, #tpu.memory_space<semaphore_mem>> -> memref<!tpu.dma_semaphore, #tpu.memory_space<semaphore_mem>>
    tpu.wait_dma2 semaphore(%1193 : memref<!tpu.dma_semaphore, #tpu.memory_space<semaphore_mem>>) src(%arg5 : memref<128x128xf32, #tpu.memory_space<any>>) dst(%arg10 : memref<128x128xf32, #tpu.memory_space<vmem>>)
    %c2_i32_586 = arith.constant 2 : i32
    %1194 = tpu.memref_slice %arg12[%c2_i32_586] : memref<3x!tpu.dma_semaphore, #tpu.memory_space<semaphore_mem>> -> memref<1x!tpu.dma_semaphore, #tpu.memory_space<semaphore_mem>>
    %1195 = tpu.memref_squeeze %1194 : memref<1x!tpu.dma_semaphore, #tpu.memory_space<semaphore_mem>> -> memref<!tpu.dma_semaphore, #tpu.memory_space<semaphore_mem>>
    tpu.wait_dma2 semaphore(%1195 : memref<!tpu.dma_semaphore, #tpu.memory_space<semaphore_mem>>) src(%arg6 : memref<1x128xf32, #tpu.memory_space<any>>) dst(%arg11 : memref<1x128xf32, #tpu.memory_space<vmem>>)
    %c0_587 = arith.constant 0 : index
    %c0_588 = arith.constant 0 : index
    %1196 = vector.load %arg10[%c0_587, %c0_588] : memref<128x128xf32, #tpu.memory_space<vmem>>, vector<128x128xf32>
    %cst_589 = arith.constant dense<0.000000e+00> : vector<8x128xf32>
    %1197 = tpu.matmul %1191, %1196, %cst_589 {dimension_numbers = #tpu.dot_dimension_numbers<[1], [0], [0], [1], [0, 0, 1, 1], [], []>} : vector<8x128xf32>, vector<128x128xf32>, vector<8x128xf32> -> vector<8x128xf32>
    %c0_590 = arith.constant 0 : index
    %c0_591 = arith.constant 0 : index
    %1198 = vector.load %arg11[%c0_590, %c0_591] : memref<1x128xf32, #tpu.memory_space<vmem>>, vector<1x128xf32>
    %1199 = vector.broadcast %1198 : vector<1x128xf32> to vector<8x128xf32>
    %1200 = arith.addf %1197, %1199 : vector<8x128xf32>
    %c0_592 = arith.constant 0 : index
    %c0_593 = arith.constant 0 : index
    %1201 = vector.load %arg7[%c0_592, %c0_593] : memref<8x128xf32, #tpu.memory_space<vmem>>, vector<8x128xf32>
    tpu.vector_store %arg7[%c0_592, %c0_593], %1200 {strides = array<i32>} : memref<8x128xf32, #tpu.memory_space<vmem>>, vector<8x128xf32>,
    return
  }
  func.func @transform_0(%arg0: i32) -> (i32, i32) {
    %c0_i32 = arith.constant 0 : i32
    %c0_i32_0 = arith.constant 0 : i32
    %c0_i32_1 = arith.constant 0 : i32
    return %c0_i32, %c0_i32_0 : i32, i32
  }
  func.func @transform_1(%arg0: i32) -> (i32, i32) {
    %c0_i32 = arith.constant 0 : i32
    %c0_i32_0 = arith.constant 0 : i32
    %c0_i32_1 = arith.constant 0 : i32
    return %c0_i32, %c0_i32_0 : i32, i32
  }
  func.func @transform_2(%arg0: i32) -> (i32, i32) {
    %c0_i32 = arith.constant 0 : i32
    %c0_i32_0 = arith.constant 0 : i32
    %c0_i32_1 = arith.constant 0 : i32
    return %c0_i32, %c0_i32_0 : i32, i32
  }
  func.func @transform_6(%arg0: i32) -> (i32, i32) {
    %c0_i32 = arith.constant 0 : i32
    %c0_i32_0 = arith.constant 0 : i32
    %c0_i32_1 = arith.constant 0 : i32
    return %c0_i32, %c0_i32_0 : i32, i32
  }
}

</mosaic_0001>

<llo_original>
// kernel: rnn_model_forward.1
$region0: #{rnn_model_forward.1}
  #allocation0 [shape = 'u32[]', space=smem, size = 0x4, offset = 0x4, fixed_abs, tag = 'smem constant byte address 0x4 - core index']
  #allocation1 [shape = 'u32[144,128]{1,0:T(1,128)}', space=vmem, size = 0x12000, scoped, tag = 'internal scratch']
  #allocation2 [shape = 'f32[200,512]{1,0:T(8,128)}', space=vmem, size = 0x64000, scoped, tag = 'scratch operand']
  #allocation3 [shape = 'f32[128,512]{1,0:T(8,128)}', space=vmem, size = 0x40000, scoped, tag = 'scratch operand']
  #allocation4 [shape = 'f32[128,128]{1,0:T(8,128)}', space=vmem, size = 0x10000, scoped, tag = 'scratch operand']
  #allocation5 [shape = 'f32[1,128]{1,0:T(1,128)}', space=vmem, size = 0x200, scoped, tag = 'scratch operand']
  #allocation6 [shape = 's32[3]{0}', space=sflag, size = 0xc, scoped, tag = 'scratch operand']
  #allocation9 [shape = 's32[]', space=sflag, size = 0x4, offset = 0, fixed_abs, tag = 'sflag constant byte address 0x0 - dummy sync flag']
  #allocation10 [shape = 's32[]', space=sflag, size = 0x4, offset = 0, fixed_abs, tag = 'sflag constant byte address 0x0 - dummy sync flag']
  #allocation11 [shape = 's32[]', space=sflag, size = 0x4, offset = 0, fixed_abs, tag = 'sflag constant byte address 0x0 - dummy sync flag']
  %s0 = inlined_call_operand.vmem [shape: f32[200,128], index: 0, kind: input, shape index: {}]
  %s1 = inlined_call_operand.vmem [shape: f32[128,512], index: 1, kind: input, shape index: {}]
  %s2 = inlined_call_operand.vmem [shape: f32[1,512], index: 2, kind: input, shape index: {}]
  %s3 = inlined_call_operand.vmem [shape: f32[128,512], index: 3, kind: input, shape index: {}]
  %s4 = inlined_call_operand.vmem [shape: f32[128,128], index: 4, kind: input, shape index: {}]
  %s5 = inlined_call_operand.vmem [shape: f32[1,128], index: 5, kind: input, shape index: {}]
  %s6 = inlined_call_operand.hbm [shape: f32[8,128], index: 6, kind: output, shape index: {}]
  %s7 = sld [smem:[#allocation0]]
  $region120: #{rnn_model_forward.1} parent=0
    _
  %s9 = ssub.s32 1, %s7
  %s10 = scalar_select 0, %s9, %s7
  $region1: #{rnn_model_forward.1} parent=0
    #allocation7 [shape = 'u8[4096]{0}', space=vmem, size = 0x1000, scoped, tag = 'output window, operand 0, single buffered']
    #allocation8 [shape = 's32[1]{0}', space=sflag, size = 0x4, scoped, tag = 'scoped memory for rnn_model_forward.1']
    %11 = vsyncpa [#allocation8], 0
    // Predicated region
    $region2: #{rnn_model_forward.1} parent=1 // pred_check
      _
    $region3: #{rnn_model_forward.1} parent=1 // pred_check_branch
      %13 = sbr.rel (0) target = $region5
    $region4: #{rnn_model_forward.1} parent=1 // pred_region
      _
    $region5: #{rnn_model_forward.1} parent=1 // pred_fallthru
      _
    // Predicated region
    $region6: #{rnn_model_forward.1} parent=1 // pred_check
      _
    $region7: #{rnn_model_forward.1} parent=1 // pred_check_branch
      %15 = sbr.rel (0) target = $region9
    $region8: #{rnn_model_forward.1} parent=1 // pred_region
      _
    $region9: #{rnn_model_forward.1} parent=1 // pred_fallthru
      _
    // Predicated region
    $region10: #{rnn_model_forward.1} parent=1 // pred_check
      _
    $region11: #{rnn_model_forward.1} parent=1 // pred_check_branch
      %17 = sbr.rel (0) target = $region13
    $region12: #{rnn_model_forward.1} parent=1 // pred_region
      _
    $region13: #{rnn_model_forward.1} parent=1 // pred_fallthru
      _
    %p19 = scmp.lt.u32.totalorder 512, 8
    %p20 = pneg %p19
    // Predicated region
    $region14: #{rnn_model_forward.1} parent=1 // pred_check
      _
    $region15: #{rnn_model_forward.1} parent=1 // pred_check_branch
      %22 = sbr.rel (%p19) target = $region17
    $region16: #{rnn_model_forward.1} parent=1 // pred_region
      %s38 = sand.u32 512, 7
      %p39 = scmp.eq.s32.totalorder %s38, 0
      // Predicated region
      $region29: #{rnn_model_forward.1} parent=16 // pred_check
        %p40 = pneg %p39
      $region30: #{rnn_model_forward.1} parent=16 // pred_check_branch
        %42 = sbr.rel (%p40) target = $region32
      $region31: #{rnn_model_forward.1} parent=16 // pred_region
        loop: start=0, step=1, limit=1
        $region33: #{rnn_model_forward.1} parent=31 // loop_pre_header
          _
        $region34: #{rnn_model_forward.1} parent=31 // loop_header
          %s44 = sphi 0, %s48
          %p45 = scmp.ge.s32.totalorder %s44, 1
          %s49 = sphi %s3, %s3
          %s50 = sphi [#allocation3], [#allocation3]
        $region35: #{rnn_model_forward.1} parent=31 // loop_header_branch
          %47 = sbr.rel (%p45) target = $region39
        $region36: #{rnn_model_forward.1} parent=31 // loop_body
          %v51 = vld [vmem:[%s49] sm:$0xff]
          %52 = vst [vmem:[%s50] sm:$0xff] %v51
          %v53 = vld [vmem:[%s49 + $0x8] sm:$0xff]
          %54 = vst [vmem:[%s50 + $0x8] sm:$0xff] %v53
          %v55 = vld [vmem:[%s49 + $0x10] sm:$0xff]
          %56 = vst [vmem:[%s50 + $0x10] sm:$0xff] %v55
          %v57 = vld [vmem:[%s49 + $0x18] sm:$0xff]
          %58 = vst [vmem:[%s50 + $0x18] sm:$0xff] %v57
          %v59 = vld [vmem:[%s49 + $0x20] sm:$0xff]
          %60 = vst [vmem:[%s50 + $0x20] sm:$0xff] %v59
          %v61 = vld [vmem:[%s49 + $0x28] sm:$0xff]
          %62 = vst [vmem:[%s50 + $0x28] sm:$0xff] %v61
          %v63 = vld [vmem:[%s49 + $0x30] sm:$0xff]
          %64 = vst [vmem:[%s50 + $0x30] sm:$0xff] %v63
          %v65 = vld [vmem:[%s49 + $0x38] sm:$0xff]
          %66 = vst [vmem:[%s50 + $0x38] sm:$0xff] %v65
          %v67 = vld [vmem:[%s49 + $0x40] sm:$0xff]
          %68 = vst [vmem:[%s50 + $0x40] sm:$0xff] %v67
          %v69 = vld [vmem:[%s49 + $0x48] sm:$0xff]
          %70 = vst [vmem:[%s50 + $0x48] sm:$0xff] %v69
          %v71 = vld [vmem:[%s49 + $0x50] sm:$0xff]
          %72 = vst [vmem:[%s50 + $0x50] sm:$0xff] %v71
          %v73 = vld [vmem:[%s49 + $0x58] sm:$0xff]
          %74 = vst [vmem:[%s50 + $0x58] sm:$0xff] %v73
          %v75 = vld [vmem:[%s49 + $0x60] sm:$0xff]
          %76 = vst [vmem:[%s50 + $0x60] sm:$0xff] %v75
          %v77 = vld [vmem:[%s49 + $0x68] sm:$0xff]
          %78 = vst [vmem:[%s50 + $0x68] sm:$0xff] %v77
          %v79 = vld [vmem:[%s49 + $0x70] sm:$0xff]
          %80 = vst [vmem:[%s50 + $0x70] sm:$0xff] %v79
          %v81 = vld [vmem:[%s49 + $0x78] sm:$0xff]
          %82 = vst [vmem:[%s50 + $0x78] sm:$0xff] %v81
          %v83 = vld [vmem:[%s49 + $0x80] sm:$0xff]
          %84 = vst [vmem:[%s50 + $0x80] sm:$0xff] %v83
          %v85 = vld [vmem:[%s49 + $0x88] sm:$0xff]
          %86 = vst [vmem:[%s50 + $0x88] sm:$0xff] %v85
          %v87 = vld [vmem:[%s49 + $0x90] sm:$0xff]
          %88 = vst [vmem:[%s50 + $0x90] sm:$0xff] %v87
          %v89 = vld [vmem:[%s49 + $0x98] sm:$0xff]
          %90 = vst [vmem:[%s50 + $0x98] sm:$0xff] %v89
          %v91 = vld [vmem:[%s49 + $0xa0] sm:$0xff]
          %92 = vst [vmem:[%s50 + $0xa0] sm:$0xff] %v91
          %v93 = vld [vmem:[%s49 + $0xa8] sm:$0xff]
          %94 = vst [vmem:[%s50 + $0xa8] sm:$0xff] %v93
          %v95 = vld [vmem:[%s49 + $0xb0] sm:$0xff]
          %96 = vst [vmem:[%s50 + $0xb0] sm:$0xff] %v95
          %v97 = vld [vmem:[%s49 + $0xb8] sm:$0xff]
          %98 = vst [vmem:[%s50 + $0xb8] sm:$0xff] %v97
          %v99 = vld [vmem:[%s49 + $0xc0] sm:$0xff]
          %100 = vst [vmem:[%s50 + $0xc0] sm:$0xff] %v99
          %v101 = vld [vmem:[%s49 + $0xc8] sm:$0xff]
          %102 = vst [vmem:[%s50 + $0xc8] sm:$0xff] %v101
          %v103 = vld [vmem:[%s49 + $0xd0] sm:$0xff]
          %104 = vst [vmem:[%s50 + $0xd0] sm:$0xff] %v103
          %v105 = vld [vmem:[%s49 + $0xd8] sm:$0xff]
          %106 = vst [vmem:[%s50 + $0xd8] sm:$0xff] %v105
          %v107 = vld [vmem:[%s49 + $0xe0] sm:$0xff]
          %108 = vst [vmem:[%s50 + $0xe0] sm:$0xff] %v107
          %v109 = vld [vmem:[%s49 + $0xe8] sm:$0xff]
          %110 = vst [vmem:[%s50 + $0xe8] sm:$0xff] %v109
          %v111 = vld [vmem:[%s49 + $0xf0] sm:$0xff]
          %112 = vst [vmem:[%s50 + $0xf0] sm:$0xff] %v111
          %v113 = vld [vmem:[%s49 + $0xf8] sm:$0xff]
          %114 = vst [vmem:[%s50 + $0xf8] sm:$0xff] %v113
          %v115 = vld [vmem:[%s49 + $0x100] sm:$0xff]
          %116 = vst [vmem:[%s50 + $0x100] sm:$0xff] %v115
          %v117 = vld [vmem:[%s49 + $0x108] sm:$0xff]
          %118 = vst [vmem:[%s50 + $0x108] sm:$0xff] %v117
          %v119 = vld [vmem:[%s49 + $0x110] sm:$0xff]
          %120 = vst [vmem:[%s50 + $0x110] sm:$0xff] %v119
          %v121 = vld [vmem:[%s49 + $0x118] sm:$0xff]
          %122 = vst [vmem:[%s50 + $0x118] sm:$0xff] %v121
          %v123 = vld [vmem:[%s49 + $0x120] sm:$0xff]
          %124 = vst [vmem:[%s50 + $0x120] sm:$0xff] %v123
          %v125 = vld [vmem:[%s49 + $0x128] sm:$0xff]
          %126 = vst [vmem:[%s50 + $0x128] sm:$0xff] %v125
          %v127 = vld [vmem:[%s49 + $0x130] sm:$0xff]
          %128 = vst [vmem:[%s50 + $0x130] sm:$0xff] %v127
          %v129 = vld [vmem:[%s49 + $0x138] sm:$0xff]
          %130 = vst [vmem:[%s50 + $0x138] sm:$0xff] %v129
          %v131 = vld [vmem:[%s49 + $0x140] sm:$0xff]
          %132 = vst [vmem:[%s50 + $0x140] sm:$0xff] %v131
          %v133 = vld [vmem:[%s49 + $0x148] sm:$0xff]
          %134 = vst [vmem:[%s50 + $0x148] sm:$0xff] %v133
          %v135 = vld [vmem:[%s49 + $0x150] sm:$0xff]
          %136 = vst [vmem:[%s50 + $0x150] sm:$0xff] %v135
          %v137 = vld [vmem:[%s49 + $0x158] sm:$0xff]
          %138 = vst [vmem:[%s50 + $0x158] sm:$0xff] %v137
          %v139 = vld [vmem:[%s49 + $0x160] sm:$0xff]
          %140 = vst [vmem:[%s50 + $0x160] sm:$0xff] %v139
          %v141 = vld [vmem:[%s49 + $0x168] sm:$0xff]
          %142 = vst [vmem:[%s50 + $0x168] sm:$0xff] %v141
          %v143 = vld [vmem:[%s49 + $0x170] sm:$0xff]
          %144 = vst [vmem:[%s50 + $0x170] sm:$0xff] %v143
          %v145 = vld [vmem:[%s49 + $0x178] sm:$0xff]
          %146 = vst [vmem:[%s50 + $0x178] sm:$0xff] %v145
          %v147 = vld [vmem:[%s49 + $0x180] sm:$0xff]
          %148 = vst [vmem:[%s50 + $0x180] sm:$0xff] %v147
          %v149 = vld [vmem:[%s49 + $0x188] sm:$0xff]
          %150 = vst [vmem:[%s50 + $0x188] sm:$0xff] %v149
          %v151 = vld [vmem:[%s49 + $0x190] sm:$0xff]
          %152 = vst [vmem:[%s50 + $0x190] sm:$0xff] %v151
          %v153 = vld [vmem:[%s49 + $0x198] sm:$0xff]
          %154 = vst [vmem:[%s50 + $0x198] sm:$0xff] %v153
          %v155 = vld [vmem:[%s49 + $0x1a0] sm:$0xff]
          %156 = vst [vmem:[%s50 + $0x1a0] sm:$0xff] %v155
          %v157 = vld [vmem:[%s49 + $0x1a8] sm:$0xff]
          %158 = vst [vmem:[%s50 + $0x1a8] sm:$0xff] %v157
          %v159 = vld [vmem:[%s49 + $0x1b0] sm:$0xff]
          %160 = vst [vmem:[%s50 + $0x1b0] sm:$0xff] %v159
          %v161 = vld [vmem:[%s49 + $0x1b8] sm:$0xff]
          %162 = vst [vmem:[%s50 + $0x1b8] sm:$0xff] %v161
          %v163 = vld [vmem:[%s49 + $0x1c0] sm:$0xff]
          %164 = vst [vmem:[%s50 + $0x1c0] sm:$0xff] %v163
          %v165 = vld [vmem:[%s49 + $0x1c8] sm:$0xff]
          %166 = vst [vmem:[%s50 + $0x1c8] sm:$0xff] %v165
          %v167 = vld [vmem:[%s49 + $0x1d0] sm:$0xff]
          %168 = vst [vmem:[%s50 + $0x1d0] sm:$0xff] %v167
          %v169 = vld [vmem:[%s49 + $0x1d8] sm:$0xff]
          %170 = vst [vmem:[%s50 + $0x1d8] sm:$0xff] %v169
          %v171 = vld [vmem:[%s49 + $0x1e0] sm:$0xff]
          %172 = vst [vmem:[%s50 + $0x1e0] sm:$0xff] %v171
          %v173 = vld [vmem:[%s49 + $0x1e8] sm:$0xff]
          %174 = vst [vmem:[%s50 + $0x1e8] sm:$0xff] %v173
          %v175 = vld [vmem:[%s49 + $0x1f0] sm:$0xff]
          %176 = vst [vmem:[%s50 + $0x1f0] sm:$0xff] %v175
          %v177 = vld [vmem:[%s49 + $0x1f8] sm:$0xff]
          %178 = vst [vmem:[%s50 + $0x1f8] sm:$0xff] %v177
        $region37: #{rnn_model_forward.1} parent=31 // loop_footer
          %s48 = sadd.s32 1, %s44
        $region38: #{rnn_model_forward.1} parent=31 // loop_footer_branch
          %43 = sbr.rel target = $region34
        $region39: #{rnn_model_forward.1} parent=31 // loop_exit
          _
      $region32: #{rnn_model_forward.1} parent=16 // pred_fallthru
        _
      %p179 = pneg %p39
      // Predicated region
      $region40: #{rnn_model_forward.1} parent=16 // pred_check
        _
      $region41: #{rnn_model_forward.1} parent=16 // pred_check_branch
        %181 = sbr.rel (%p39) target = $region43
      $region42: #{rnn_model_forward.1} parent=16 // pred_region
        %s182 = sand.u32 512, 7
      $region43: #{rnn_model_forward.1} parent=16 // pred_fallthru
        _
    $region17: #{rnn_model_forward.1} parent=1 // pred_fallthru
      _
    // Predicated region
    $region18: #{rnn_model_forward.1} parent=1 // pred_check
      %p23 = pneg %p19
    $region19: #{rnn_model_forward.1} parent=1 // pred_check_branch
      %25 = sbr.rel (%p23) target = $region21
    $region20: #{rnn_model_forward.1} parent=1 // pred_region
      %s26 = sshll.u32 1, 512
      %s27 = ssub.s32 %s26, 1
      loop: start=0, step=1, limit=1
      $region22: #{rnn_model_forward.1} parent=20 // loop_pre_header
        _
      $region23: #{rnn_model_forward.1} parent=20 // loop_header
        %s29 = sphi 0, %s33
        %p30 = scmp.ge.s32.totalorder %s29, 1
        %s34 = sphi %s3, %s3
        %s35 = sphi [#allocation3], [#allocation3]
      $region24: #{rnn_model_forward.1} parent=20 // loop_header_branch
        %32 = sbr.rel (%p30) target = $region28
      $region25: #{rnn_model_forward.1} parent=20 // loop_body
        %v36 = vld [vmem:[%s34] sm:%s27]
        %37 = vst [vmem:[%s35] sm:%s27] %v36
      $region26: #{rnn_model_forward.1} parent=20 // loop_footer
        %s33 = sadd.s32 1, %s29
      $region27: #{rnn_model_forward.1} parent=20 // loop_footer_branch
        %28 = sbr.rel target = $region23
      $region28: #{rnn_model_forward.1} parent=20 // loop_exit
        _
    $region21: #{rnn_model_forward.1} parent=1 // pred_fallthru
      _
    // Predicated region
    $region44: #{rnn_model_forward.1} parent=1 // pred_check
      _
    $region45: #{rnn_model_forward.1} parent=1 // pred_check_branch
      %185 = sbr.rel (0) target = $region47
    $region46: #{rnn_model_forward.1} parent=1 // pred_region
      %186 = vsyncadd [#allocation6], 8192
    $region47: #{rnn_model_forward.1} parent=1 // pred_fallthru
      _
    %s187 = scalar_lea.sflag [#allocation6], 1
    %p189 = scmp.lt.u32.totalorder 128, 8
    %p190 = pneg %p189
    // Predicated region
    $region48: #{rnn_model_forward.1} parent=1 // pred_check
      _
    $region49: #{rnn_model_forward.1} parent=1 // pred_check_branch
      %192 = sbr.rel (%p189) target = $region51
    $region50: #{rnn_model_forward.1} parent=1 // pred_region
      %s208 = sand.u32 128, 7
      %p209 = scmp.eq.s32.totalorder %s208, 0
      // Predicated region
      $region63: #{rnn_model_forward.1} parent=50 // pred_check
        %p210 = pneg %p209
      $region64: #{rnn_model_forward.1} parent=50 // pred_check_branch
        %212 = sbr.rel (%p210) target = $region66
      $region65: #{rnn_model_forward.1} parent=50 // pred_region
        loop: start=0, step=1, limit=1
        $region67: #{rnn_model_forward.1} parent=65 // loop_pre_header
          _
        $region68: #{rnn_model_forward.1} parent=65 // loop_header
          %s214 = sphi 0, %s218
          %p215 = scmp.ge.s32.totalorder %s214, 1
          %s219 = sphi %s4, %s4
          %s220 = sphi [#allocation4], [#allocation4]
        $region69: #{rnn_model_forward.1} parent=65 // loop_header_branch
          %217 = sbr.rel (%p215) target = $region73
        $region70: #{rnn_model_forward.1} parent=65 // loop_body
          %v221 = vld [vmem:[%s219] sm:$0xff]
          %222 = vst [vmem:[%s220] sm:$0xff] %v221
          %v223 = vld [vmem:[%s219 + $0x8] sm:$0xff]
          %224 = vst [vmem:[%s220 + $0x8] sm:$0xff] %v223
          %v225 = vld [vmem:[%s219 + $0x10] sm:$0xff]
          %226 = vst [vmem:[%s220 + $0x10] sm:$0xff] %v225
          %v227 = vld [vmem:[%s219 + $0x18] sm:$0xff]
          %228 = vst [vmem:[%s220 + $0x18] sm:$0xff] %v227
          %v229 = vld [vmem:[%s219 + $0x20] sm:$0xff]
          %230 = vst [vmem:[%s220 + $0x20] sm:$0xff] %v229
          %v231 = vld [vmem:[%s219 + $0x28] sm:$0xff]
          %232 = vst [vmem:[%s220 + $0x28] sm:$0xff] %v231
          %v233 = vld [vmem:[%s219 + $0x30] sm:$0xff]
          %234 = vst [vmem:[%s220 + $0x30] sm:$0xff] %v233
          %v235 = vld [vmem:[%s219 + $0x38] sm:$0xff]
          %236 = vst [vmem:[%s220 + $0x38] sm:$0xff] %v235
          %v237 = vld [vmem:[%s219 + $0x40] sm:$0xff]
          %238 = vst [vmem:[%s220 + $0x40] sm:$0xff] %v237
          %v239 = vld [vmem:[%s219 + $0x48] sm:$0xff]
          %240 = vst [vmem:[%s220 + $0x48] sm:$0xff] %v239
          %v241 = vld [vmem:[%s219 + $0x50] sm:$0xff]
          %242 = vst [vmem:[%s220 + $0x50] sm:$0xff] %v241
          %v243 = vld [vmem:[%s219 + $0x58] sm:$0xff]
          %244 = vst [vmem:[%s220 + $0x58] sm:$0xff] %v243
          %v245 = vld [vmem:[%s219 + $0x60] sm:$0xff]
          %246 = vst [vmem:[%s220 + $0x60] sm:$0xff] %v245
          %v247 = vld [vmem:[%s219 + $0x68] sm:$0xff]
          %248 = vst [vmem:[%s220 + $0x68] sm:$0xff] %v247
          %v249 = vld [vmem:[%s219 + $0x70] sm:$0xff]
          %250 = vst [vmem:[%s220 + $0x70] sm:$0xff] %v249
          %v251 = vld [vmem:[%s219 + $0x78] sm:$0xff]
          %252 = vst [vmem:[%s220 + $0x78] sm:$0xff] %v251
        $region71: #{rnn_model_forward.1} parent=65 // loop_footer
          %s218 = sadd.s32 1, %s214
        $region72: #{rnn_model_forward.1} parent=65 // loop_footer_branch
          %213 = sbr.rel target = $region68
        $region73: #{rnn_model_forward.1} parent=65 // loop_exit
          _
      $region66: #{rnn_model_forward.1} parent=50 // pred_fallthru
        _
      %p253 = pneg %p209
      // Predicated region
      $region74: #{rnn_model_forward.1} parent=50 // pred_check
        _
      $region75: #{rnn_model_forward.1} parent=50 // pred_check_branch
        %255 = sbr.rel (%p209) target = $region77
      $region76: #{rnn_model_forward.1} parent=50 // pred_region
        %s256 = sand.u32 128, 7
      $region77: #{rnn_model_forward.1} parent=50 // pred_fallthru
        _
    $region51: #{rnn_model_forward.1} parent=1 // pred_fallthru
      _
    // Predicated region
    $region52: #{rnn_model_forward.1} parent=1 // pred_check
      %p193 = pneg %p189
    $region53: #{rnn_model_forward.1} parent=1 // pred_check_branch
      %195 = sbr.rel (%p193) target = $region55
    $region54: #{rnn_model_forward.1} parent=1 // pred_region
      %s196 = sshll.u32 1, 128
      %s197 = ssub.s32 %s196, 1
      loop: start=0, step=1, limit=1
      $region56: #{rnn_model_forward.1} parent=54 // loop_pre_header
        _
      $region57: #{rnn_model_forward.1} parent=54 // loop_header
        %s199 = sphi 0, %s203
        %p200 = scmp.ge.s32.totalorder %s199, 1
        %s204 = sphi %s4, %s4
        %s205 = sphi [#allocation4], [#allocation4]
      $region58: #{rnn_model_forward.1} parent=54 // loop_header_branch
        %202 = sbr.rel (%p200) target = $region62
      $region59: #{rnn_model_forward.1} parent=54 // loop_body
        %v206 = vld [vmem:[%s204] sm:%s197]
        %207 = vst [vmem:[%s205] sm:%s197] %v206
      $region60: #{rnn_model_forward.1} parent=54 // loop_footer
        %s203 = sadd.s32 1, %s199
      $region61: #{rnn_model_forward.1} parent=54 // loop_footer_branch
        %198 = sbr.rel target = $region57
      $region62: #{rnn_model_forward.1} parent=54 // loop_exit
        _
    $region55: #{rnn_model_forward.1} parent=1 // pred_fallthru
      _
    // Predicated region
    $region78: #{rnn_model_forward.1} parent=1 // pred_check
      _
    $region79: #{rnn_model_forward.1} parent=1 // pred_check_branch
      %259 = sbr.rel (0) target = $region81
    $region80: #{rnn_model_forward.1} parent=1 // pred_region
      %260 = vsyncadd %s187, 2048
    $region81: #{rnn_model_forward.1} parent=1 // pred_fallthru
      _
    %s261 = scalar_lea.sflag [#allocation6], 2
    %p263 = scmp.lt.u32.totalorder 1, 8
    %p264 = pneg %p263
    // Predicated region
    $region82: #{rnn_model_forward.1} parent=1 // pred_check
      _
    $region83: #{rnn_model_forward.1} parent=1 // pred_check_branch
      %266 = sbr.rel (%p263) target = $region85
    $region84: #{rnn_model_forward.1} parent=1 // pred_region
      %s282 = sand.u32 1, 7
      %p283 = scmp.eq.s32.totalorder %s282, 0
      %p284 = pneg %p283
      // Predicated region
      $region97: #{rnn_model_forward.1} parent=84 // pred_check
        _
      $region98: #{rnn_model_forward.1} parent=84 // pred_check_branch
        %286 = sbr.rel (%p283) target = $region100
      $region99: #{rnn_model_forward.1} parent=84 // pred_region
        %s287 = sand.u32 1, 7
        %s288 = ssub.s32 1, %s287
        %s289 = scalar_lea.vmem %s5, %s288
        %s290 = ssub.s32 1, %s287
        %s291 = scalar_lea.vmem [#allocation5], %s290
        %s292 = sshll.u32 1, %s287
        %s293 = ssub.s32 %s292, 1
        loop: start=0, step=1, limit=1
        $region101: #{rnn_model_forward.1} parent=99 // loop_pre_header
          _
        $region102: #{rnn_model_forward.1} parent=99 // loop_header
          %s295 = sphi 0, %s299
          %p296 = scmp.ge.s32.totalorder %s295, 1
          %s300 = sphi %s289, %s289
          %s301 = sphi %s291, %s291
        $region103: #{rnn_model_forward.1} parent=99 // loop_header_branch
          %298 = sbr.rel (%p296) target = $region107
        $region104: #{rnn_model_forward.1} parent=99 // loop_body
          %v302 = vld [vmem:[%s300] sm:%s293]
          %303 = vst [vmem:[%s301] sm:%s293] %v302
        $region105: #{rnn_model_forward.1} parent=99 // loop_footer
          %s299 = sadd.s32 1, %s295
        $region106: #{rnn_model_forward.1} parent=99 // loop_footer_branch
          %294 = sbr.rel target = $region102
        $region107: #{rnn_model_forward.1} parent=99 // loop_exit
          _
      $region100: #{rnn_model_forward.1} parent=84 // pred_fallthru
        _
    $region85: #{rnn_model_forward.1} parent=1 // pred_fallthru
      _
    // Predicated region
    $region86: #{rnn_model_forward.1} parent=1 // pred_check
      %p267 = pneg %p263
    $region87: #{rnn_model_forward.1} parent=1 // pred_check_branch
      %269 = sbr.rel (%p267) target = $region89
    $region88: #{rnn_model_forward.1} parent=1 // pred_region
      %s270 = sshll.u32 1, 1
      %s271 = ssub.s32 %s270, 1
      loop: start=0, step=1, limit=1
      $region90: #{rnn_model_forward.1} parent=88 // loop_pre_header
        _
      $region91: #{rnn_model_forward.1} parent=88 // loop_header
        %s273 = sphi 0, %s277
        %p274 = scmp.ge.s32.totalorder %s273, 1
        %s278 = sphi %s5, %s5
        %s279 = sphi [#allocation5], [#allocation5]
      $region92: #{rnn_model_forward.1} parent=88 // loop_header_branch
        %276 = sbr.rel (%p274) target = $region96
      $region93: #{rnn_model_forward.1} parent=88 // loop_body
        %v280 = vld [vmem:[%s278] sm:%s271]
        %281 = vst [vmem:[%s279] sm:%s271] %v280
      $region94: #{rnn_model_forward.1} parent=88 // loop_footer
        %s277 = sadd.s32 1, %s273
      $region95: #{rnn_model_forward.1} parent=88 // loop_footer_branch
        %272 = sbr.rel target = $region91
      $region96: #{rnn_model_forward.1} parent=88 // loop_exit
        _
    $region89: #{rnn_model_forward.1} parent=1 // pred_fallthru
      _
    // Predicated region
    $region108: #{rnn_model_forward.1} parent=1 // pred_check
      _
    $region109: #{rnn_model_forward.1} parent=1 // pred_check_branch
      %306 = sbr.rel (0) target = $region111
    $region110: #{rnn_model_forward.1} parent=1 // pred_region
      %307 = vsyncadd %s261, 16
    $region111: #{rnn_model_forward.1} parent=1 // pred_fallthru
      _
    %v308 = vld [vmem:[%s0] sm:$0xff]
    %v309 = vld [vmem:[%s0 + $0x8] sm:$0xff]
    %v310 = vld [vmem:[%s0 + $0x10] sm:$0xff]
    %v311 = vld [vmem:[%s0 + $0x18] sm:$0xff]
    %v312 = vld [vmem:[%s0 + $0x20] sm:$0xff]
    %v313 = vld [vmem:[%s0 + $0x28] sm:$0xff]
    %v314 = vld [vmem:[%s0 + $0x30] sm:$0xff]
    %v315 = vld [vmem:[%s0 + $0x38] sm:$0xff]
    %v316 = vld [vmem:[%s0 + $0x40] sm:$0xff]
    %v317 = vld [vmem:[%s0 + $0x48] sm:$0xff]
    %v318 = vld [vmem:[%s0 + $0x50] sm:$0xff]
    %v319 = vld [vmem:[%s0 + $0x58] sm:$0xff]
    %v320 = vld [vmem:[%s0 + $0x60] sm:$0xff]
    %v321 = vld [vmem:[%s0 + $0x68] sm:$0xff]
    %v322 = vld [vmem:[%s0 + $0x70] sm:$0xff]
    %v323 = vld [vmem:[%s0 + $0x78] sm:$0xff]
    %v324 = vld [vmem:[%s0 + $0x80] sm:$0xff]
    %v325 = vld [vmem:[%s0 + $0x88] sm:$0xff]
    %v326 = vld [vmem:[%s0 + $0x90] sm:$0xff]
    %v327 = vld [vmem:[%s0 + $0x98] sm:$0xff]
    %v328 = vld [vmem:[%s0 + $0xa0] sm:$0xff]
    %v329 = vld [vmem:[%s0 + $0xa8] sm:$0xff]
    %v330 = vld [vmem:[%s0 + $0xb0] sm:$0xff]
    %v331 = vld [vmem:[%s0 + $0xb8] sm:$0xff]
    %v332 = vld [vmem:[%s0 + $0xc0] sm:$0xff]
    %v333 = vld [vmem:[%s1] sm:$0xff]
    %v334 = vld [vmem:[%s1 + $0x8] sm:$0xff]
    %v335 = vld [vmem:[%s1 + $0x10] sm:$0xff]
    %v336 = vld [vmem:[%s1 + $0x18] sm:$0xff]
    %v337 = vld [vmem:[%s1 + $0x20] sm:$0xff]
    %v338 = vld [vmem:[%s1 + $0x28] sm:$0xff]
    %v339 = vld [vmem:[%s1 + $0x30] sm:$0xff]
    %v340 = vld [vmem:[%s1 + $0x38] sm:$0xff]
    %v341 = vld [vmem:[%s1 + $0x40] sm:$0xff]
    %v342 = vld [vmem:[%s1 + $0x48] sm:$0xff]
    %v343 = vld [vmem:[%s1 + $0x50] sm:$0xff]
    %v344 = vld [vmem:[%s1 + $0x58] sm:$0xff]
    %v345 = vld [vmem:[%s1 + $0x60] sm:$0xff]
    %v346 = vld [vmem:[%s1 + $0x68] sm:$0xff]
    %v347 = vld [vmem:[%s1 + $0x70] sm:$0xff]
    %v348 = vld [vmem:[%s1 + $0x78] sm:$0xff]
    %v349 = vld [vmem:[%s1 + $0x80] sm:$0xff]
    %v350 = vld [vmem:[%s1 + $0x88] sm:$0xff]
    %v351 = vld [vmem:[%s1 + $0x90] sm:$0xff]
    %v352 = vld [vmem:[%s1 + $0x98] sm:$0xff]
    %v353 = vld [vmem:[%s1 + $0xa0] sm:$0xff]
    %v354 = vld [vmem:[%s1 + $0xa8] sm:$0xff]
    %v355 = vld [vmem:[%s1 + $0xb0] sm:$0xff]
    %v356 = vld [vmem:[%s1 + $0xb8] sm:$0xff]
    %v357 = vld [vmem:[%s1 + $0xc0] sm:$0xff]
    %v358 = vld [vmem:[%s1 + $0xc8] sm:$0xff]
    %v359 = vld [vmem:[%s1 + $0xd0] sm:$0xff]
    %v360 = vld [vmem:[%s1 + $0xd8] sm:$0xff]
    %v361 = vld [vmem:[%s1 + $0xe0] sm:$0xff]
    %v362 = vld [vmem:[%s1 + $0xe8] sm:$0xff]
    %v363 = vld [vmem:[%s1 + $0xf0] sm:$0xff]
    %v364 = vld [vmem:[%s1 + $0xf8] sm:$0xff]
    %v365 = vld [vmem:[%s1 + $0x100] sm:$0xff]
    %v366 = vld [vmem:[%s1 + $0x108] sm:$0xff]
    %v367 = vld [vmem:[%s1 + $0x110] sm:$0xff]
    %v368 = vld [vmem:[%s1 + $0x118] sm:$0xff]
    %v369 = vld [vmem:[%s1 + $0x120] sm:$0xff]
    %v370 = vld [vmem:[%s1 + $0x128] sm:$0xff]
    %v371 = vld [vmem:[%s1 + $0x130] sm:$0xff]
    %v372 = vld [vmem:[%s1 + $0x138] sm:$0xff]
    %v373 = vld [vmem:[%s1 + $0x140] sm:$0xff]
    %v374 = vld [vmem:[%s1 + $0x148] sm:$0xff]
    %v375 = vld [vmem:[%s1 + $0x150] sm:$0xff]
    %v376 = vld [vmem:[%s1 + $0x158] sm:$0xff]
    %v377 = vld [vmem:[%s1 + $0x160] sm:$0xff]
    %v378 = vld [vmem:[%s1 + $0x168] sm:$0xff]
    %v379 = vld [vmem:[%s1 + $0x170] sm:$0xff]
    %v380 = vld [vmem:[%s1 + $0x178] sm:$0xff]
    %v381 = vld [vmem:[%s1 + $0x180] sm:$0xff]
    %v382 = vld [vmem:[%s1 + $0x188] sm:$0xff]
    %v383 = vld [vmem:[%s1 + $0x190] sm:$0xff]
    %v384 = vld [vmem:[%s1 + $0x198] sm:$0xff]
    %v385 = vld [vmem:[%s1 + $0x1a0] sm:$0xff]
    %v386 = vld [vmem:[%s1 + $0x1a8] sm:$0xff]
    %v387 = vld [vmem:[%s1 + $0x1b0] sm:$0xff]
    %v388 = vld [vmem:[%s1 + $0x1b8] sm:$0xff]
    %v389 = vld [vmem:[%s1 + $0x1c0] sm:$0xff]
    %v390 = vld [vmem:[%s1 + $0x1c8] sm:$0xff]
    %v391 = vld [vmem:[%s1 + $0x1d0] sm:$0xff]
    %v392 = vld [vmem:[%s1 + $0x1d8] sm:$0xff]
    %v393 = vld [vmem:[%s1 + $0x1e0] sm:$0xff]
    %v394 = vld [vmem:[%s1 + $0x1e8] sm:$0xff]
    %v395 = vld [vmem:[%s1 + $0x1f0] sm:$0xff]
    %v396 = vld [vmem:[%s1 + $0x1f8] sm:$0xff]
    %v397 = vld [vmem:[%s2] sm:$0xf]
    %v399 = vlaneseq
    %v400 = vshrl.u32 %v399, 7
    %v401 = vsub.s32 0, %v400
    %v402 = vrot.slane %v397, %v401
    %v403 = vlaneseq
    %v404 = vshrl.u32 %v403, 7
    %v405 = vsub.s32 1, %v404
    %v406 = vrot.slane %v397, %v405
    %v407 = vlaneseq
    %v408 = vshrl.u32 %v407, 7
    %v409 = vsub.s32 2, %v408
    %v410 = vrot.slane %v397, %v409
    %v411 = vlaneseq
    %v412 = vshrl.u32 %v411, 7
    %v413 = vsub.s32 3, %v412
    %v414 = vrot.slane %v397, %v413
    %419 = vmatprep.subr.mxu0 %v394
    %420 = vmatpush1.msra.mxu0 %v393
    %421 = vmatprep.subr.mxu0 %v390
    %422 = vmatpush1.msra.mxu0 %v389
    %423 = vmatprep.subr.mxu0 %v386
    %424 = vmatpush1.msra.mxu0 %v385
    %425 = vmatprep.subr.mxu0 %v382
    %426 = vmatpush1.msra.mxu0 %v381
    %427 = vmatprep.subr.mxu0 %v378
    %428 = vmatpush1.msra.mxu0 %v377
    %429 = vmatprep.subr.mxu0 %v374
    %430 = vmatpush1.msra.mxu0 %v373
    %431 = vmatprep.subr.mxu0 %v370
    %432 = vmatpush1.msra.mxu0 %v369
    %433 = vmatprep.subr.mxu0 %v366
    %434 = vmatpush1.msra.mxu0 %v365
    %435 = vmatprep.subr.mxu0 %v362
    %436 = vmatpush1.msra.mxu0 %v361
    %437 = vmatprep.subr.mxu0 %v358
    %438 = vmatpush1.msra.mxu0 %v357
    %439 = vmatprep.subr.mxu0 %v354
    %440 = vmatpush1.msra.mxu0 %v353
    %441 = vmatprep.subr.mxu0 %v350
    %442 = vmatpush1.msra.mxu0 %v349
    %443 = vmatprep.subr.mxu0 %v346
    %444 = vmatpush1.msra.mxu0 %v345
    %445 = vmatprep.subr.mxu0 %v342
    %446 = vmatpush1.msra.mxu0 %v341
    %447 = vmatprep.subr.mxu0 %v338
    %448 = vmatpush1.msra.mxu0 %v337
    %449 = vmatprep.subr.mxu0 %v334
    %450 = vmatpush1.msra.mxu0 %v333
    %451 = vmatprep.subr.mxu0 0.0
    %452 = vmatpush2.msra.mxu0 0.0
    %453 = vmatprep.subr.mxu0 0.0
    %454 = vmatpush2.msra.mxu0 0.0
    %455 = vmatprep.subr.mxu0 0.0
    %456 = vmatpush2.msra.mxu0 0.0
    %457 = vmatprep.subr.mxu0 0.0
    %458 = vmatpush2.msra.mxu0 0.0
    %459 = vmatprep.subr.mxu0 0.0
    %460 = vmatpush2.msra.mxu0 0.0
    %461 = vmatprep.subr.mxu0 0.0
    %462 = vmatpush2.msra.mxu0 0.0
    %463 = vmatprep.subr.mxu0 0.0
    %464 = vmatpush2.msra.mxu0 0.0
    %465 = vmatprep.subr.mxu0 0.0
    %466 = vmatpush2.msra.mxu0 0.0
    %467 = vmatprep.subr.mxu0 0.0
    %468 = vmatpush2.msra.mxu0 0.0
    %469 = vmatprep.subr.mxu0 0.0
    %470 = vmatpush2.msra.mxu0 0.0
    %471 = vmatprep.subr.mxu0 0.0
    %472 = vmatpush2.msra.mxu0 0.0
    %473 = vmatprep.subr.mxu0 0.0
    %474 = vmatpush2.msra.mxu0 0.0
    %475 = vmatprep.subr.mxu0 0.0
    %476 = vmatpush2.msra.mxu0 0.0
    %477 = vmatprep.subr.mxu0 0.0
    %478 = vmatpush2.msra.mxu0 0.0
    %479 = vmatprep.subr.mxu0 0.0
    %480 = vmatpush2.msra.mxu0 0.0
    %481 = vmatprep.subr.mxu0 0.0
    %482 = vmatpush2.msra.mxu0 0.0
    %483 = vmatprep.mubr.f32.mxu0 0.0
    %484 = vmatmul.mubr.f32.gmra.mxu0 %v308
    %v485 = vpop.f32.mrf.mxu0
    %v486 = vadd.f32 %v402, %v485
    %v487 = vpop.f32.mrf.mxu0
    %v488 = vadd.f32 %v406, %v487
    %489 = vmatprep.mubr.f32.mxu0 0.0
    %490 = vmatmul.mubr.f32.gmra.mxu0 %v309
    %v491 = vpop.f32.mrf.mxu0
    %v492 = vadd.f32 %v402, %v491
    %v493 = vpop.f32.mrf.mxu0
    %v494 = vadd.f32 %v406, %v493
    %495 = vmatprep.mubr.f32.mxu0 0.0
    %496 = vmatmul.mubr.f32.gmra.mxu0 %v310
    %v497 = vpop.f32.mrf.mxu0
    %v498 = vadd.f32 %v402, %v497
    %v499 = vpop.f32.mrf.mxu0
    %v500 = vadd.f32 %v406, %v499
    %501 = vmatprep.mubr.f32.mxu0 0.0
    %502 = vmatmul.mubr.f32.gmra.mxu0 %v311
    %v503 = vpop.f32.mrf.mxu0
    %v504 = vadd.f32 %v402, %v503
    %v505 = vpop.f32.mrf.mxu0
    %v506 = vadd.f32 %v406, %v505
    %507 = vmatprep.mubr.f32.mxu0 0.0
    %508 = vmatmul.mubr.f32.gmra.mxu0 %v312
    %v509 = vpop.f32.mrf.mxu0
    %v510 = vadd.f32 %v402, %v509
    %v511 = vpop.f32.mrf.mxu0
    %v512 = vadd.f32 %v406, %v511
    %513 = vmatprep.mubr.f32.mxu0 0.0
    %514 = vmatmul.mubr.f32.gmra.mxu0 %v313
    %v515 = vpop.f32.mrf.mxu0
    %v516 = vadd.f32 %v402, %v515
    %v517 = vpop.f32.mrf.mxu0
    %v518 = vadd.f32 %v406, %v517
    %519 = vmatprep.mubr.f32.mxu0 0.0
    %520 = vmatmul.mubr.f32.gmra.mxu0 %v314
    %v521 = vpop.f32.mrf.mxu0
    %v522 = vadd.f32 %v402, %v521
    %v523 = vpop.f32.mrf.mxu0
    %v524 = vadd.f32 %v406, %v523
    %525 = vmatprep.mubr.f32.mxu0 0.0
    %526 = vmatmul.mubr.f32.gmra.mxu0 %v315
    %v527 = vpop.f32.mrf.mxu0
    %v528 = vadd.f32 %v402, %v527
    %v529 = vpop.f32.mrf.mxu0
    %v530 = vadd.f32 %v406, %v529
    %531 = vmatprep.mubr.f32.mxu0 0.0
    %532 = vmatmul.mubr.f32.gmra.mxu0 %v316
    %v533 = vpop.f32.mrf.mxu0
    %v534 = vadd.f32 %v402, %v533
    %v535 = vpop.f32.mrf.mxu0
    %v536 = vadd.f32 %v406, %v535
    %537 = vmatprep.mubr.f32.mxu0 0.0
    %538 = vmatmul.mubr.f32.gmra.mxu0 %v317
    %v539 = vpop.f32.mrf.mxu0
    %v540 = vadd.f32 %v402, %v539
    %v541 = vpop.f32.mrf.mxu0
    %v542 = vadd.f32 %v406, %v541
    %543 = vmatprep.mubr.f32.mxu0 0.0
    %544 = vmatmul.mubr.f32.gmra.mxu0 %v318
    %v545 = vpop.f32.mrf.mxu0
    %v546 = vadd.f32 %v402, %v545
    %v547 = vpop.f32.mrf.mxu0
    %v548 = vadd.f32 %v406, %v547
    %549 = vmatprep.mubr.f32.mxu0 0.0
    %550 = vmatmul.mubr.f32.gmra.mxu0 %v319
    %v551 = vpop.f32.mrf.mxu0
    %v552 = vadd.f32 %v402, %v551
    %v553 = vpop.f32.mrf.mxu0
    %v554 = vadd.f32 %v406, %v553
    %555 = vmatprep.mubr.f32.mxu0 0.0
    %556 = vmatmul.mubr.f32.gmra.mxu0 %v320
    %v557 = vpop.f32.mrf.mxu0
    %v558 = vadd.f32 %v402, %v557
    %v559 = vpop.f32.mrf.mxu0
    %v560 = vadd.f32 %v406, %v559
    %561 = vmatprep.mubr.f32.mxu0 0.0
    %562 = vmatmul.mubr.f32.gmra.mxu0 %v321
    %v563 = vpop.f32.mrf.mxu0
    %v564 = vadd.f32 %v402, %v563
    %v565 = vpop.f32.mrf.mxu0
    %v566 = vadd.f32 %v406, %v565
    %567 = vmatprep.mubr.f32.mxu0 0.0
    %568 = vmatmul.mubr.f32.gmra.mxu0 %v322
    %v569 = vpop.f32.mrf.mxu0
    %v570 = vadd.f32 %v402, %v569
    %v571 = vpop.f32.mrf.mxu0
    %v572 = vadd.f32 %v406, %v571
    %573 = vmatprep.mubr.f32.mxu0 0.0
    %574 = vmatmul.mubr.f32.gmra.mxu0 %v323
    %v575 = vpop.f32.mrf.mxu0
    %v576 = vadd.f32 %v402, %v575
    %v577 = vpop.f32.mrf.mxu0
    %v578 = vadd.f32 %v406, %v577
    %579 = vmatprep.mubr.f32.mxu0 0.0
    %580 = vmatmul.mubr.f32.gmra.mxu0 %v324
    %v581 = vpop.f32.mrf.mxu0
    %v582 = vadd.f32 %v402, %v581
    %v583 = vpop.f32.mrf.mxu0
    %v584 = vadd.f32 %v406, %v583
    %585 = vmatprep.mubr.f32.mxu0 0.0
    %586 = vmatmul.mubr.f32.gmra.mxu0 %v325
    %v587 = vpop.f32.mrf.mxu0
    %v588 = vadd.f32 %v402, %v587
    %v589 = vpop.f32.mrf.mxu0
    %v590 = vadd.f32 %v406, %v589
    %591 = vmatprep.mubr.f32.mxu0 0.0
    %592 = vmatmul.mubr.f32.gmra.mxu0 %v326
    %v593 = vpop.f32.mrf.mxu0
    %v594 = vadd.f32 %v402, %v593
    %v595 = vpop.f32.mrf.mxu0
    %v596 = vadd.f32 %v406, %v595
    %597 = vmatprep.mubr.f32.mxu0 0.0
    %598 = vmatmul.mubr.f32.gmra.mxu0 %v327
    %v599 = vpop.f32.mrf.mxu0
    %v600 = vadd.f32 %v402, %v599
    %v601 = vpop.f32.mrf.mxu0
    %v602 = vadd.f32 %v406, %v601
    %603 = vmatprep.mubr.f32.mxu0 0.0
    %604 = vmatmul.mubr.f32.gmra.mxu0 %v328
    %v605 = vpop.f32.mrf.mxu0
    %v606 = vadd.f32 %v402, %v605
    %v607 = vpop.f32.mrf.mxu0
    %v608 = vadd.f32 %v406, %v607
    %609 = vmatprep.mubr.f32.mxu0 0.0
    %610 = vmatmul.mubr.f32.gmra.mxu0 %v329
    %v611 = vpop.f32.mrf.mxu0
    %v612 = vadd.f32 %v402, %v611
    %v613 = vpop.f32.mrf.mxu0
    %v614 = vadd.f32 %v406, %v613
    %615 = vmatprep.mubr.f32.mxu0 0.0
    %616 = vmatmul.mubr.f32.gmra.mxu0 %v330
    %v617 = vpop.f32.mrf.mxu0
    %v618 = vadd.f32 %v402, %v617
    %v619 = vpop.f32.mrf.mxu0
    %v620 = vadd.f32 %v406, %v619
    %621 = vmatprep.mubr.f32.mxu0 0.0
    %622 = vmatmul.mubr.f32.gmra.mxu0 %v331
    %v623 = vpop.f32.mrf.mxu0
    %v624 = vadd.f32 %v402, %v623
    %v625 = vpop.f32.mrf.mxu0
    %v626 = vadd.f32 %v406, %v625
    %627 = vmatprep.mubr.f32.mxu0 0.0
    %628 = vmatmul.mubr.f32.gmra.mxu0 %v332
    %v629 = vpop.f32.mrf.mxu0
    %v630 = vadd.f32 %v402, %v629
    %v631 = vpop.f32.mrf.mxu0
    %v632 = vadd.f32 %v406, %v631
    %633 = vdwg.mxu0
    %634 = vmatprep.subr.mxu0 %v396
    %635 = vmatpush1.msra.mxu0 %v395
    %636 = vmatprep.subr.mxu0 %v392
    %637 = vmatpush1.msra.mxu0 %v391
    %638 = vmatprep.subr.mxu0 %v388
    %639 = vmatpush1.msra.mxu0 %v387
    %640 = vmatprep.subr.mxu0 %v384
    %641 = vmatpush1.msra.mxu0 %v383
    %642 = vmatprep.subr.mxu0 %v380
    %643 = vmatpush1.msra.mxu0 %v379
    %644 = vmatprep.subr.mxu0 %v376
    %645 = vmatpush1.msra.mxu0 %v375
    %646 = vmatprep.subr.mxu0 %v372
    %647 = vmatpush1.msra.mxu0 %v371
    %648 = vmatprep.subr.mxu0 %v368
    %649 = vmatpush1.msra.mxu0 %v367
    %650 = vmatprep.subr.mxu0 %v364
    %651 = vmatpush1.msra.mxu0 %v363
    %652 = vmatprep.subr.mxu0 %v360
    %653 = vmatpush1.msra.mxu0 %v359
    %654 = vmatprep.subr.mxu0 %v356
    %655 = vmatpush1.msra.mxu0 %v355
    %656 = vmatprep.subr.mxu0 %v352
    %657 = vmatpush1.msra.mxu0 %v351
    %658 = vmatprep.subr.mxu0 %v348
    %659 = vmatpush1.msra.mxu0 %v347
    %660 = vmatprep.subr.mxu0 %v344
    %661 = vmatpush1.msra.mxu0 %v343
    %662 = vmatprep.subr.mxu0 %v340
    %663 = vmatpush1.msra.mxu0 %v339
    %664 = vmatprep.subr.mxu0 %v336
    %665 = vmatpush1.msra.mxu0 %v335
    %666 = vmatprep.subr.mxu0 0.0
    %667 = vmatpush2.msra.mxu0 0.0
    %668 = vmatprep.subr.mxu0 0.0
    %669 = vmatpush2.msra.mxu0 0.0
    %670 = vmatprep.subr.mxu0 0.0
    %671 = vmatpush2.msra.mxu0 0.0
    %672 = vmatprep.subr.mxu0 0.0
    %673 = vmatpush2.msra.mxu0 0.0
    %674 = vmatprep.subr.mxu0 0.0
    %675 = vmatpush2.msra.mxu0 0.0
    %676 = vmatprep.subr.mxu0 0.0
    %677 = vmatpush2.msra.mxu0 0.0
    %678 = vmatprep.subr.mxu0 0.0
    %679 = vmatpush2.msra.mxu0 0.0
    %680 = vmatprep.subr.mxu0 0.0
    %681 = vmatpush2.msra.mxu0 0.0
    %682 = vmatprep.subr.mxu0 0.0
    %683 = vmatpush2.msra.mxu0 0.0
    %684 = vmatprep.subr.mxu0 0.0
    %685 = vmatpush2.msra.mxu0 0.0
    %686 = vmatprep.subr.mxu0 0.0
    %687 = vmatpush2.msra.mxu0 0.0
    %688 = vmatprep.subr.mxu0 0.0
    %689 = vmatpush2.msra.mxu0 0.0
    %690 = vmatprep.subr.mxu0 0.0
    %691 = vmatpush2.msra.mxu0 0.0
    %692 = vmatprep.subr.mxu0 0.0
    %693 = vmatpush2.msra.mxu0 0.0
    %694 = vmatprep.subr.mxu0 0.0
    %695 = vmatpush2.msra.mxu0 0.0
    %696 = vmatprep.subr.mxu0 0.0
    %697 = vmatpush2.msra.mxu0 0.0
    %698 = vmatprep.mubr.f32.mxu0 0.0
    %699 = vmatmul.mubr.f32.gmra.mxu0 %v308
    %v700 = vpop.f32.mrf.mxu0
    %v701 = vadd.f32 %v410, %v700
    %v702 = vpop.f32.mrf.mxu0
    %v703 = vadd.f32 %v414, %v702
    %704 = vmatprep.mubr.f32.mxu0 0.0
    %705 = vmatmul.mubr.f32.gmra.mxu0 %v309
    %v706 = vpop.f32.mrf.mxu0
    %v707 = vadd.f32 %v410, %v706
    %v708 = vpop.f32.mrf.mxu0
    %v709 = vadd.f32 %v414, %v708
    %710 = vmatprep.mubr.f32.mxu0 0.0
    %711 = vmatmul.mubr.f32.gmra.mxu0 %v310
    %v712 = vpop.f32.mrf.mxu0
    %v713 = vadd.f32 %v410, %v712
    %v714 = vpop.f32.mrf.mxu0
    %v715 = vadd.f32 %v414, %v714
    %716 = vmatprep.mubr.f32.mxu0 0.0
    %717 = vmatmul.mubr.f32.gmra.mxu0 %v311
    %v718 = vpop.f32.mrf.mxu0
    %v719 = vadd.f32 %v410, %v718
    %v720 = vpop.f32.mrf.mxu0
    %v721 = vadd.f32 %v414, %v720
    %722 = vmatprep.mubr.f32.mxu0 0.0
    %723 = vmatmul.mubr.f32.gmra.mxu0 %v312
    %v724 = vpop.f32.mrf.mxu0
    %v725 = vadd.f32 %v410, %v724
    %v726 = vpop.f32.mrf.mxu0
    %v727 = vadd.f32 %v414, %v726
    %728 = vmatprep.mubr.f32.mxu0 0.0
    %729 = vmatmul.mubr.f32.gmra.mxu0 %v313
    %v730 = vpop.f32.mrf.mxu0
    %v731 = vadd.f32 %v410, %v730
    %v732 = vpop.f32.mrf.mxu0
    %v733 = vadd.f32 %v414, %v732
    %734 = vmatprep.mubr.f32.mxu0 0.0
    %735 = vmatmul.mubr.f32.gmra.mxu0 %v314
    %v736 = vpop.f32.mrf.mxu0
    %v737 = vadd.f32 %v410, %v736
    %v738 = vpop.f32.mrf.mxu0
    %v739 = vadd.f32 %v414, %v738
    %740 = vmatprep.mubr.f32.mxu0 0.0
    %741 = vmatmul.mubr.f32.gmra.mxu0 %v315
    %v742 = vpop.f32.mrf.mxu0
    %v743 = vadd.f32 %v410, %v742
    %v744 = vpop.f32.mrf.mxu0
    %v745 = vadd.f32 %v414, %v744
    %746 = vmatprep.mubr.f32.mxu0 0.0
    %747 = vmatmul.mubr.f32.gmra.mxu0 %v316
    %v748 = vpop.f32.mrf.mxu0
    %v749 = vadd.f32 %v410, %v748
    %v750 = vpop.f32.mrf.mxu0
    %v751 = vadd.f32 %v414, %v750
    %752 = vmatprep.mubr.f32.mxu0 0.0
    %753 = vmatmul.mubr.f32.gmra.mxu0 %v317
    %v754 = vpop.f32.mrf.mxu0
    %v755 = vadd.f32 %v410, %v754
    %v756 = vpop.f32.mrf.mxu0
    %v757 = vadd.f32 %v414, %v756
    %758 = vmatprep.mubr.f32.mxu0 0.0
    %759 = vmatmul.mubr.f32.gmra.mxu0 %v318
    %v760 = vpop.f32.mrf.mxu0
    %v761 = vadd.f32 %v410, %v760
    %v762 = vpop.f32.mrf.mxu0
    %v763 = vadd.f32 %v414, %v762
    %764 = vmatprep.mubr.f32.mxu0 0.0
    %765 = vmatmul.mubr.f32.gmra.mxu0 %v319
    %v766 = vpop.f32.mrf.mxu0
    %v767 = vadd.f32 %v410, %v766
    %v768 = vpop.f32.mrf.mxu0
    %v769 = vadd.f32 %v414, %v768
    %770 = vmatprep.mubr.f32.mxu0 0.0
    %771 = vmatmul.mubr.f32.gmra.mxu0 %v320
    %v772 = vpop.f32.mrf.mxu0
    %v773 = vadd.f32 %v410, %v772
    %v774 = vpop.f32.mrf.mxu0
    %v775 = vadd.f32 %v414, %v774
    %776 = vmatprep.mubr.f32.mxu0 0.0
    %777 = vmatmul.mubr.f32.gmra.mxu0 %v321
    %v778 = vpop.f32.mrf.mxu0
    %v779 = vadd.f32 %v410, %v778
    %v780 = vpop.f32.mrf.mxu0
    %v781 = vadd.f32 %v414, %v780
    %782 = vmatprep.mubr.f32.mxu0 0.0
    %783 = vmatmul.mubr.f32.gmra.mxu0 %v322
    %v784 = vpop.f32.mrf.mxu0
    %v785 = vadd.f32 %v410, %v784
    %v786 = vpop.f32.mrf.mxu0
    %v787 = vadd.f32 %v414, %v786
    %788 = vmatprep.mubr.f32.mxu0 0.0
    %789 = vmatmul.mubr.f32.gmra.mxu0 %v323
    %v790 = vpop.f32.mrf.mxu0
    %v791 = vadd.f32 %v410, %v790
    %v792 = vpop.f32.mrf.mxu0
    %v793 = vadd.f32 %v414, %v792
    %794 = vmatprep.mubr.f32.mxu0 0.0
    %795 = vmatmul.mubr.f32.gmra.mxu0 %v324
    %v796 = vpop.f32.mrf.mxu0
    %v797 = vadd.f32 %v410, %v796
    %v798 = vpop.f32.mrf.mxu0
    %v799 = vadd.f32 %v414, %v798
    %800 = vmatprep.mubr.f32.mxu0 0.0
    %801 = vmatmul.mubr.f32.gmra.mxu0 %v325
    %v802 = vpop.f32.mrf.mxu0
    %v803 = vadd.f32 %v410, %v802
    %v804 = vpop.f32.mrf.mxu0
    %v805 = vadd.f32 %v414, %v804
    %806 = vmatprep.mubr.f32.mxu0 0.0
    %807 = vmatmul.mubr.f32.gmra.mxu0 %v326
    %v808 = vpop.f32.mrf.mxu0
    %v809 = vadd.f32 %v410, %v808
    %v810 = vpop.f32.mrf.mxu0
    %v811 = vadd.f32 %v414, %v810
    %812 = vmatprep.mubr.f32.mxu0 0.0
    %813 = vmatmul.mubr.f32.gmra.mxu0 %v327
    %v814 = vpop.f32.mrf.mxu0
    %v815 = vadd.f32 %v410, %v814
    %v816 = vpop.f32.mrf.mxu0
    %v817 = vadd.f32 %v414, %v816
    %818 = vmatprep.mubr.f32.mxu0 0.0
    %819 = vmatmul.mubr.f32.gmra.mxu0 %v328
    %v820 = vpop.f32.mrf.mxu0
    %v821 = vadd.f32 %v410, %v820
    %v822 = vpop.f32.mrf.mxu0
    %v823 = vadd.f32 %v414, %v822
    %824 = vmatprep.mubr.f32.mxu0 0.0
    %825 = vmatmul.mubr.f32.gmra.mxu0 %v329
    %v826 = vpop.f32.mrf.mxu0
    %v827 = vadd.f32 %v410, %v826
    %v828 = vpop.f32.mrf.mxu0
    %v829 = vadd.f32 %v414, %v828
    %830 = vmatprep.mubr.f32.mxu0 0.0
    %831 = vmatmul.mubr.f32.gmra.mxu0 %v330
    %v832 = vpop.f32.mrf.mxu0
    %v833 = vadd.f32 %v410, %v832
    %v834 = vpop.f32.mrf.mxu0
    %v835 = vadd.f32 %v414, %v834
    %836 = vmatprep.mubr.f32.mxu0 0.0
    %837 = vmatmul.mubr.f32.gmra.mxu0 %v331
    %v838 = vpop.f32.mrf.mxu0
    %v839 = vadd.f32 %v410, %v838
    %v840 = vpop.f32.mrf.mxu0
    %v841 = vadd.f32 %v414, %v840
    %842 = vmatprep.mubr.f32.mxu0 0.0
    %843 = vmatmul.mubr.f32.gmra.mxu0 %v332
    %v844 = vpop.f32.mrf.mxu0
    %v845 = vadd.f32 %v410, %v844
    %v846 = vpop.f32.mrf.mxu0
    %v847 = vadd.f32 %v414, %v846
    %848 = vdwg.mxu0
    %849 = vst [vmem:[#allocation2] sm:$0xff] %v486
    %850 = vst [vmem:[#allocation2 + $0x8] sm:$0xff] %v488
    %851 = vst [vmem:[#allocation2 + $0x10] sm:$0xff] %v701
    %852 = vst [vmem:[#allocation2 + $0x18] sm:$0xff] %v703
    %853 = vst [vmem:[#allocation2 + $0x20] sm:$0xff] %v492
    %854 = vst [vmem:[#allocation2 + $0x28] sm:$0xff] %v494
    %855 = vst [vmem:[#allocation2 + $0x30] sm:$0xff] %v707
    %856 = vst [vmem:[#allocation2 + $0x38] sm:$0xff] %v709
    %857 = vst [vmem:[#allocation2 + $0x40] sm:$0xff] %v498
    %858 = vst [vmem:[#allocation2 + $0x48] sm:$0xff] %v500
    %859 = vst [vmem:[#allocation2 + $0x50] sm:$0xff] %v713
    %860 = vst [vmem:[#allocation2 + $0x58] sm:$0xff] %v715
    %861 = vst [vmem:[#allocation2 + $0x60] sm:$0xff] %v504
    %862 = vst [vmem:[#allocation2 + $0x68] sm:$0xff] %v506
    %863 = vst [vmem:[#allocation2 + $0x70] sm:$0xff] %v719
    %864 = vst [vmem:[#allocation2 + $0x78] sm:$0xff] %v721
    %865 = vst [vmem:[#allocation2 + $0x80] sm:$0xff] %v510
    %866 = vst [vmem:[#allocation2 + $0x88] sm:$0xff] %v512
    %867 = vst [vmem:[#allocation2 + $0x90] sm:$0xff] %v725
    %868 = vst [vmem:[#allocation2 + $0x98] sm:$0xff] %v727
    %869 = vst [vmem:[#allocation2 + $0xa0] sm:$0xff] %v516
    %870 = vst [vmem:[#allocation2 + $0xa8] sm:$0xff] %v518
    %871 = vst [vmem:[#allocation2 + $0xb0] sm:$0xff] %v731
    %872 = vst [vmem:[#allocation2 + $0xb8] sm:$0xff] %v733
    %873 = vst [vmem:[#allocation2 + $0xc0] sm:$0xff] %v522
    %874 = vst [vmem:[#allocation2 + $0xc8] sm:$0xff] %v524
    %875 = vst [vmem:[#allocation2 + $0xd0] sm:$0xff] %v737
    %876 = vst [vmem:[#allocation2 + $0xd8] sm:$0xff] %v739
    %877 = vst [vmem:[#allocation2 + $0xe0] sm:$0xff] %v528
    %878 = vst [vmem:[#allocation2 + $0xe8] sm:$0xff] %v530
    %879 = vst [vmem:[#allocation2 + $0xf0] sm:$0xff] %v743
    %880 = vst [vmem:[#allocation2 + $0xf8] sm:$0xff] %v745
    %881 = vst [vmem:[#allocation2 + $0x100] sm:$0xff] %v534
    %882 = vst [vmem:[#allocation2 + $0x108] sm:$0xff] %v536
    %883 = vst [vmem:[#allocation2 + $0x110] sm:$0xff] %v749
    %884 = vst [vmem:[#allocation2 + $0x118] sm:$0xff] %v751
    %885 = vst [vmem:[#allocation2 + $0x120] sm:$0xff] %v540
    %886 = vst [vmem:[#allocation2 + $0x128] sm:$0xff] %v542
    %887 = vst [vmem:[#allocation2 + $0x130] sm:$0xff] %v755
    %888 = vst [vmem:[#allocation2 + $0x138] sm:$0xff] %v757
    %889 = vst [vmem:[#allocation2 + $0x140] sm:$0xff] %v546
    %890 = vst [vmem:[#allocation2 + $0x148] sm:$0xff] %v548
    %891 = vst [vmem:[#allocation2 + $0x150] sm:$0xff] %v761
    %892 = vst [vmem:[#allocation2 + $0x158] sm:$0xff] %v763
    %893 = vst [vmem:[#allocation2 + $0x160] sm:$0xff] %v552
    %894 = vst [vmem:[#allocation2 + $0x168] sm:$0xff] %v554
    %895 = vst [vmem:[#allocation2 + $0x170] sm:$0xff] %v767
    %896 = vst [vmem:[#allocation2 + $0x178] sm:$0xff] %v769
    %897 = vst [vmem:[#allocation2 + $0x180] sm:$0xff] %v558
    %898 = vst [vmem:[#allocation2 + $0x188] sm:$0xff] %v560
    %899 = vst [vmem:[#allocation2 + $0x190] sm:$0xff] %v773
    %900 = vst [vmem:[#allocation2 + $0x198] sm:$0xff] %v775
    %901 = vst [vmem:[#allocation2 + $0x1a0] sm:$0xff] %v564
    %902 = vst [vmem:[#allocation2 + $0x1a8] sm:$0xff] %v566
    %903 = vst [vmem:[#allocation2 + $0x1b0] sm:$0xff] %v779
    %904 = vst [vmem:[#allocation2 + $0x1b8] sm:$0xff] %v781
    %905 = vst [vmem:[#allocation2 + $0x1c0] sm:$0xff] %v570
    %906 = vst [vmem:[#allocation2 + $0x1c8] sm:$0xff] %v572
    %907 = vst [vmem:[#allocation2 + $0x1d0] sm:$0xff] %v785
    %908 = vst [vmem:[#allocation2 + $0x1d8] sm:$0xff] %v787
    %909 = vst [vmem:[#allocation2 + $0x1e0] sm:$0xff] %v576
    %910 = vst [vmem:[#allocation2 + $0x1e8] sm:$0xff] %v578
    %911 = vst [vmem:[#allocation2 + $0x1f0] sm:$0xff] %v791
    %912 = vst [vmem:[#allocation2 + $0x1f8] sm:$0xff] %v793
    %913 = vst [vmem:[#allocation2 + $0x200] sm:$0xff] %v582
    %914 = vst [vmem:[#allocation2 + $0x208] sm:$0xff] %v584
    %915 = vst [vmem:[#allocation2 + $0x210] sm:$0xff] %v797
    %916 = vst [vmem:[#allocation2 + $0x218] sm:$0xff] %v799
    %917 = vst [vmem:[#allocation2 + $0x220] sm:$0xff] %v588
    %918 = vst [vmem:[#allocation2 + $0x228] sm:$0xff] %v590
    %919 = vst [vmem:[#allocation2 + $0x230] sm:$0xff] %v803
    %920 = vst [vmem:[#allocation2 + $0x238] sm:$0xff] %v805
    %921 = vst [vmem:[#allocation2 + $0x240] sm:$0xff] %v594
    %922 = vst [vmem:[#allocation2 + $0x248] sm:$0xff] %v596
    %923 = vst [vmem:[#allocation2 + $0x250] sm:$0xff] %v809
    %924 = vst [vmem:[#allocation2 + $0x258] sm:$0xff] %v811
    %925 = vst [vmem:[#allocation2 + $0x260] sm:$0xff] %v600
    %926 = vst [vmem:[#allocation2 + $0x268] sm:$0xff] %v602
    %927 = vst [vmem:[#allocation2 + $0x270] sm:$0xff] %v815
    %928 = vst [vmem:[#allocation2 + $0x278] sm:$0xff] %v817
    %929 = vst [vmem:[#allocation2 + $0x280] sm:$0xff] %v606
    %930 = vst [vmem:[#allocation2 + $0x288] sm:$0xff] %v608
    %931 = vst [vmem:[#allocation2 + $0x290] sm:$0xff] %v821
    %932 = vst [vmem:[#allocation2 + $0x298] sm:$0xff] %v823
    %933 = vst [vmem:[#allocation2 + $0x2a0] sm:$0xff] %v612
    %934 = vst [vmem:[#allocation2 + $0x2a8] sm:$0xff] %v614
    %935 = vst [vmem:[#allocation2 + $0x2b0] sm:$0xff] %v827
    %936 = vst [vmem:[#allocation2 + $0x2b8] sm:$0xff] %v829
    %937 = vst [vmem:[#allocation2 + $0x2c0] sm:$0xff] %v618
    %938 = vst [vmem:[#allocation2 + $0x2c8] sm:$0xff] %v620
    %939 = vst [vmem:[#allocation2 + $0x2d0] sm:$0xff] %v833
    %940 = vst [vmem:[#allocation2 + $0x2d8] sm:$0xff] %v835
    %941 = vst [vmem:[#allocation2 + $0x2e0] sm:$0xff] %v624
    %942 = vst [vmem:[#allocation2 + $0x2e8] sm:$0xff] %v626
    %943 = vst [vmem:[#allocation2 + $0x2f0] sm:$0xff] %v839
    %944 = vst [vmem:[#allocation2 + $0x2f8] sm:$0xff] %v841
    %945 = vst [vmem:[#allocation2 + $0x300] sm:$0xff] %v630
    %946 = vst [vmem:[#allocation2 + $0x308] sm:$0xff] %v632
    %947 = vst [vmem:[#allocation2 + $0x310] sm:$0xff] %v845
    %948 = vst [vmem:[#allocation2 + $0x318] sm:$0xff] %v847
    %s949 = smul.u32 8, 16
    %s950 = smul.u32 %s949, 4
    %s951 = sshll.u32 %s950, 4
    %952 = dma.done [#allocation6], %s951
    %s953 = smul.u32 0, 4
    %s954 = smul.addr %s953, 8
    %s955 = scalar_lea.vmem [#allocation2], %s954
    %v956 = vld [vmem:[%s955] sm:$0xff]
    %v957 = vld [vmem:[%s955 + $0x8] sm:$0xff]
    %v958 = vld [vmem:[%s955 + $0x10] sm:$0xff]
    %v959 = vld [vmem:[%s955 + $0x18] sm:$0xff]
    %v960 = vld [vmem:[#allocation3] sm:$0xff]
    %v961 = vld [vmem:[#allocation3 + $0x20] sm:$0xff]
    %v962 = vld [vmem:[#allocation3 + $0x40] sm:$0xff]
    %v963 = vld [vmem:[#allocation3 + $0x60] sm:$0xff]
    %v964 = vld [vmem:[#allocation3 + $0x80] sm:$0xff]
    %v965 = vld [vmem:[#allocation3 + $0xa0] sm:$0xff]
    %v966 = vld [vmem:[#allocation3 + $0xc0] sm:$0xff]
    %v967 = vld [vmem:[#allocation3 + $0xe0] sm:$0xff]
    %v968 = vld [vmem:[#allocation3 + $0x100] sm:$0xff]
    %v969 = vld [vmem:[#allocation3 + $0x120] sm:$0xff]
    %v970 = vld [vmem:[#allocation3 + $0x140] sm:$0xff]
    %v971 = vld [vmem:[#allocation3 + $0x160] sm:$0xff]
    %v972 = vld [vmem:[#allocation3 + $0x180] sm:$0xff]
    %v973 = vld [vmem:[#allocation3 + $0x1a0] sm:$0xff]
    %v974 = vld [vmem:[#allocation3 + $0x1c0] sm:$0xff]
    %v975 = vld [vmem:[#allocation3 + $0x1e0] sm:$0xff]
    %976 = vmatprep.subr.mxu0 0.0
    %977 = vmatpush1.msra.mxu0 %v975
    %978 = vmatprep.subr.mxu0 0.0
    %979 = vmatpush1.msra.mxu0 %v974
    %980 = vmatprep.subr.mxu0 0.0
    %981 = vmatpush1.msra.mxu0 %v973
    %982 = vmatprep.subr.mxu0 0.0
    %983 = vmatpush1.msra.mxu0 %v972
    %984 = vmatprep.subr.mxu0 0.0
    %985 = vmatpush1.msra.mxu0 %v971
    %986 = vmatprep.subr.mxu0 0.0
    %987 = vmatpush1.msra.mxu0 %v970
    %988 = vmatprep.subr.mxu0 0.0
    %989 = vmatpush1.msra.mxu0 %v969
    %990 = vmatprep.subr.mxu0 0.0
    %991 = vmatpush1.msra.mxu0 %v968
    %992 = vmatprep.subr.mxu0 0.0
    %993 = vmatpush1.msra.mxu0 %v967
    %994 = vmatprep.subr.mxu0 0.0
    %995 = vmatpush1.msra.mxu0 %v966
    %996 = vmatprep.subr.mxu0 0.0
    %997 = vmatpush1.msra.mxu0 %v965
    %998 = vmatprep.subr.mxu0 0.0
    %999 = vmatpush1.msra.mxu0 %v964
    %1000 = vmatprep.subr.mxu0 0.0
    %1001 = vmatpush1.msra.mxu0 %v963
    %1002 = vmatprep.subr.mxu0 0.0
    %1003 = vmatpush1.msra.mxu0 %v962
    %1004 = vmatprep.subr.mxu0 0.0
    %1005 = vmatpush1.msra.mxu0 %v961
    %1006 = vmatprep.subr.mxu0 0.0
    %1007 = vmatpush1.msra.mxu0 %v960
    %1008 = vmatprep.subr.mxu0 0.0
    %1009 = vmatpush2.msra.mxu0 0.0
    %1010 = vmatprep.subr.mxu0 0.0
    %1011 = vmatpush2.msra.mxu0 0.0
    %1012 = vmatprep.subr.mxu0 0.0
    %1013 = vmatpush2.msra.mxu0 0.0
    %1014 = vmatprep.subr.mxu0 0.0
    %1015 = vmatpush2.msra.mxu0 0.0
    %1016 = vmatprep.subr.mxu0 0.0
    %1017 = vmatpush2.msra.mxu0 0.0
    %1018 = vmatprep.subr.mxu0 0.0
    %1019 = vmatpush2.msra.mxu0 0.0
    %1020 = vmatprep.subr.mxu0 0.0
    %1021 = vmatpush2.msra.mxu0 0.0
    %1022 = vmatprep.subr.mxu0 0.0
    %1023 = vmatpush2.msra.mxu0 0.0
    %1024 = vmatprep.subr.mxu0 0.0
    %1025 = vmatpush2.msra.mxu0 0.0
    %1026 = vmatprep.subr.mxu0 0.0
    %1027 = vmatpush2.msra.mxu0 0.0
    %1028 = vmatprep.subr.mxu0 0.0
    %1029 = vmatpush2.msra.mxu0 0.0
    %1030 = vmatprep.subr.mxu0 0.0
    %1031 = vmatpush2.msra.mxu0 0.0
    %1032 = vmatprep.subr.mxu0 0.0
    %1033 = vmatpush2.msra.mxu0 0.0
    %1034 = vmatprep.subr.mxu0 0.0
    %1035 = vmatpush2.msra.mxu0 0.0
    %1036 = vmatprep.subr.mxu0 0.0
    %1037 = vmatpush2.msra.mxu0 0.0
    %1038 = vmatprep.subr.mxu0 0.0
    %1039 = vmatpush2.msra.mxu0 0.0
    %1040 = vmatprep.mubr.f32.mxu0 0.0
    %1041 = vmatmul.mubr.f32.gmra.mxu0 0.0
    %v1042 = vpop.f32.mrf.mxu0
    %v1043 = vadd.f32 0.0, %v1042
    %v1044 = vpop.f32.mrf.mxu0
    %1045 = vdwg.mxu0
    %v1046 = vadd.f32 %v956, %v1043
    %v1047 = vmul.f32 %v1046, 0.5
    %v1048 = vtanh.pop %v1047
    %v1049 = vmul.f32 %v1048, 0.5
    %v1050 = vadd.f32 %v1049, 0.5
    %v1051 = vld [vmem:[#allocation3 + $0x8] sm:$0xff]
    %v1052 = vld [vmem:[#allocation3 + $0x28] sm:$0xff]
    %v1053 = vld [vmem:[#allocation3 + $0x48] sm:$0xff]
    %v1054 = vld [vmem:[#allocation3 + $0x68] sm:$0xff]
    %v1055 = vld [vmem:[#allocation3 + $0x88] sm:$0xff]
    %v1056 = vld [vmem:[#allocation3 + $0xa8] sm:$0xff]
    %v1057 = vld [vmem:[#allocation3 + $0xc8] sm:$0xff]
    %v1058 = vld [vmem:[#allocation3 + $0xe8] sm:$0xff]
    %v1059 = vld [vmem:[#allocation3 + $0x108] sm:$0xff]
    %v1060 = vld [vmem:[#allocation3 + $0x128] sm:$0xff]
    %v1061 = vld [vmem:[#allocation3 + $0x148] sm:$0xff]
    %v1062 = vld [vmem:[#allocation3 + $0x168] sm:$0xff]
    %v1063 = vld [vmem:[#allocation3 + $0x188] sm:$0xff]
    %v1064 = vld [vmem:[#allocation3 + $0x1a8] sm:$0xff]
    %v1065 = vld [vmem:[#allocation3 + $0x1c8] sm:$0xff]
    %v1066 = vld [vmem:[#allocation3 + $0x1e8] sm:$0xff]
    %1067 = vmatprep.subr.mxu0 0.0
    %1068 = vmatpush1.msra.mxu0 %v1066
    %1069 = vmatprep.subr.mxu0 0.0
    %1070 = vmatpush1.msra.mxu0 %v1065
    %1071 = vmatprep.subr.mxu0 0.0
    %1072 = vmatpush1.msra.mxu0 %v1064
    %1073 = vmatprep.subr.mxu0 0.0
    %1074 = vmatpush1.msra.mxu0 %v1063
    %1075 = vmatprep.subr.mxu0 0.0
    %1076 = vmatpush1.msra.mxu0 %v1062
    %1077 = vmatprep.subr.mxu0 0.0
    %1078 = vmatpush1.msra.mxu0 %v1061
    %1079 = vmatprep.subr.mxu0 0.0
    %1080 = vmatpush1.msra.mxu0 %v1060
    %1081 = vmatprep.subr.mxu0 0.0
    %1082 = vmatpush1.msra.mxu0 %v1059
    %1083 = vmatprep.subr.mxu0 0.0
    %1084 = vmatpush1.msra.mxu0 %v1058
    %1085 = vmatprep.subr.mxu0 0.0
    %1086 = vmatpush1.msra.mxu0 %v1057
    %1087 = vmatprep.subr.mxu0 0.0
    %1088 = vmatpush1.msra.mxu0 %v1056
    %1089 = vmatprep.subr.mxu0 0.0
    %1090 = vmatpush1.msra.mxu0 %v1055
    %1091 = vmatprep.subr.mxu0 0.0
    %1092 = vmatpush1.msra.mxu0 %v1054
    %1093 = vmatprep.subr.mxu0 0.0
    %1094 = vmatpush1.msra.mxu0 %v1053
    %1095 = vmatprep.subr.mxu0 0.0
    %1096 = vmatpush1.msra.mxu0 %v1052
    %1097 = vmatprep.subr.mxu0 0.0
    %1098 = vmatpush1.msra.mxu0 %v1051
    %1099 = vmatprep.subr.mxu0 0.0
    %1100 = vmatpush2.msra.mxu0 0.0
    %1101 = vmatprep.subr.mxu0 0.0
    %1102 = vmatpush2.msra.mxu0 0.0
    %1103 = vmatprep.subr.mxu0 0.0
    %1104 = vmatpush2.msra.mxu0 0.0
    %1105 = vmatprep.subr.mxu0 0.0
    %1106 = vmatpush2.msra.mxu0 0.0
    %1107 = vmatprep.subr.mxu0 0.0
    %1108 = vmatpush2.msra.mxu0 0.0
    %1109 = vmatprep.subr.mxu0 0.0
    %1110 = vmatpush2.msra.mxu0 0.0
    %1111 = vmatprep.subr.mxu0 0.0
    %1112 = vmatpush2.msra.mxu0 0.0
    %1113 = vmatprep.subr.mxu0 0.0
    %1114 = vmatpush2.msra.mxu0 0.0
    %1115 = vmatprep.subr.mxu0 0.0
    %1116 = vmatpush2.msra.mxu0 0.0
    %1117 = vmatprep.subr.mxu0 0.0
    %1118 = vmatpush2.msra.mxu0 0.0
    %1119 = vmatprep.subr.mxu0 0.0
    %1120 = vmatpush2.msra.mxu0 0.0
    %1121 = vmatprep.subr.mxu0 0.0
    %1122 = vmatpush2.msra.mxu0 0.0
    %1123 = vmatprep.subr.mxu0 0.0
    %1124 = vmatpush2.msra.mxu0 0.0
    %1125 = vmatprep.subr.mxu0 0.0
    %1126 = vmatpush2.msra.mxu0 0.0
    %1127 = vmatprep.subr.mxu0 0.0
    %1128 = vmatpush2.msra.mxu0 0.0
    %1129 = vmatprep.subr.mxu0 0.0
    %1130 = vmatpush2.msra.mxu0 0.0
    %1131 = vmatprep.mubr.f32.mxu0 0.0
    %1132 = vmatmul.mubr.f32.gmra.mxu0 0.0
    %v1133 = vpop.f32.mrf.mxu0
    %v1134 = vadd.f32 0.0, %v1133
    %v1135 = vpop.f32.mrf.mxu0
    %1136 = vdwg.mxu0
    %v1137 = vadd.f32 %v957, %v1134
    %v1138 = vmul.f32 %v1137, 0.5
    %v1139 = vtanh.pop %v1138
    %v1140 = vmul.f32 %v1139, 0.5
    %v1141 = vadd.f32 %v1140, 0.5
    %v1142 = vld [vmem:[#allocation3 + $0x10] sm:$0xff]
    %v1143 = vld [vmem:[#allocation3 + $0x30] sm:$0xff]
    %v1144 = vld [vmem:[#allocation3 + $0x50] sm:$0xff]
    %v1145 = vld [vmem:[#allocation3 + $0x70] sm:$0xff]
    %v1146 = vld [vmem:[#allocation3 + $0x90] sm:$0xff]
    %v1147 = vld [vmem:[#allocation3 + $0xb0] sm:$0xff]
    %v1148 = vld [vmem:[#allocation3 + $0xd0] sm:$0xff]
    %v1149 = vld [vmem:[#allocation3 + $0xf0] sm:$0xff]
    %v1150 = vld [vmem:[#allocation3 + $0x110] sm:$0xff]
    %v1151 = vld [vmem:[#allocation3 + $0x130] sm:$0xff]
    %v1152 = vld [vmem:[#allocation3 + $0x150] sm:$0xff]
    %v1153 = vld [vmem:[#allocation3 + $0x170] sm:$0xff]
    %v1154 = vld [vmem:[#allocation3 + $0x190] sm:$0xff]
    %v1155 = vld [vmem:[#allocation3 + $0x1b0] sm:$0xff]
    %v1156 = vld [vmem:[#allocation3 + $0x1d0] sm:$0xff]
    %v1157 = vld [vmem:[#allocation3 + $0x1f0] sm:$0xff]
    %1158 = vmatprep.subr.mxu0 0.0
    %1159 = vmatpush1.msra.mxu0 %v1157
    %1160 = vmatprep.subr.mxu0 0.0
    %1161 = vmatpush1.msra.mxu0 %v1156
    %1162 = vmatprep.subr.mxu0 0.0
    %1163 = vmatpush1.msra.mxu0 %v1155
    %1164 = vmatprep.subr.mxu0 0.0
    %1165 = vmatpush1.msra.mxu0 %v1154
    %1166 = vmatprep.subr.mxu0 0.0
    %1167 = vmatpush1.msra.mxu0 %v1153
    %1168 = vmatprep.subr.mxu0 0.0
    %1169 = vmatpush1.msra.mxu0 %v1152
    %1170 = vmatprep.subr.mxu0 0.0
    %1171 = vmatpush1.msra.mxu0 %v1151
    %1172 = vmatprep.subr.mxu0 0.0
    %1173 = vmatpush1.msra.mxu0 %v1150
    %1174 = vmatprep.subr.mxu0 0.0
    %1175 = vmatpush1.msra.mxu0 %v1149
    %1176 = vmatprep.subr.mxu0 0.0
    %1177 = vmatpush1.msra.mxu0 %v1148
    %1178 = vmatprep.subr.mxu0 0.0
    %1179 = vmatpush1.msra.mxu0 %v1147
    %1180 = vmatprep.subr.mxu0 0.0
    %1181 = vmatpush1.msra.mxu0 %v1146
    %1182 = vmatprep.subr.mxu0 0.0
    %1183 = vmatpush1.msra.mxu0 %v1145
    %1184 = vmatprep.subr.mxu0 0.0
    %1185 = vmatpush1.msra.mxu0 %v1144
    %1186 = vmatprep.subr.mxu0 0.0
    %1187 = vmatpush1.msra.mxu0 %v1143
    %1188 = vmatprep.subr.mxu0 0.0
    %1189 = vmatpush1.msra.mxu0 %v1142
    %1190 = vmatprep.subr.mxu0 0.0
    %1191 = vmatpush2.msra.mxu0 0.0
    %1192 = vmatprep.subr.mxu0 0.0
    %1193 = vmatpush2.msra.mxu0 0.0
    %1194 = vmatprep.subr.mxu0 0.0
    %1195 = vmatpush2.msra.mxu0 0.0
    %1196 = vmatprep.subr.mxu0 0.0
    %1197 = vmatpush2.msra.mxu0 0.0
    %1198 = vmatprep.subr.mxu0 0.0
    %1199 = vmatpush2.msra.mxu0 0.0
    %1200 = vmatprep.subr.mxu0 0.0
    %1201 = vmatpush2.msra.mxu0 0.0
    %1202 = vmatprep.subr.mxu0 0.0
    %1203 = vmatpush2.msra.mxu0 0.0
    %1204 = vmatprep.subr.mxu0 0.0
    %1205 = vmatpush2.msra.mxu0 0.0
    %1206 = vmatprep.subr.mxu0 0.0
    %1207 = vmatpush2.msra.mxu0 0.0
    %1208 = vmatprep.subr.mxu0 0.0
    %1209 = vmatpush2.msra.mxu0 0.0
    %1210 = vmatprep.subr.mxu0 0.0
    %1211 = vmatpush2.msra.mxu0 0.0
    %1212 = vmatprep.subr.mxu0 0.0
    %1213 = vmatpush2.msra.mxu0 0.0
    %1214 = vmatprep.subr.mxu0 0.0
    %1215 = vmatpush2.msra.mxu0 0.0
    %1216 = vmatprep.subr.mxu0 0.0
    %1217 = vmatpush2.msra.mxu0 0.0
    %1218 = vmatprep.subr.mxu0 0.0
    %1219 = vmatpush2.msra.mxu0 0.0
    %1220 = vmatprep.subr.mxu0 0.0
    %1221 = vmatpush2.msra.mxu0 0.0
    %1222 = vmatprep.mubr.f32.mxu0 0.0
    %1223 = vmatmul.mubr.f32.gmra.mxu0 0.0
    %v1224 = vpop.f32.mrf.mxu0
    %v1225 = vadd.f32 0.0, %v1224
    %v1226 = vpop.f32.mrf.mxu0
    %1227 = vdwg.mxu0
    %v1228 = vadd.f32 %v958, %v1225
    %v1229 = vtanh.pop %v1228
    %v1230 = vld [vmem:[#allocation3 + $0x18] sm:$0xff]
    %v1231 = vld [vmem:[#allocation3 + $0x38] sm:$0xff]
    %v1232 = vld [vmem:[#allocation3 + $0x58] sm:$0xff]
    %v1233 = vld [vmem:[#allocation3 + $0x78] sm:$0xff]
    %v1234 = vld [vmem:[#allocation3 + $0x98] sm:$0xff]
    %v1235 = vld [vmem:[#allocation3 + $0xb8] sm:$0xff]
    %v1236 = vld [vmem:[#allocation3 + $0xd8] sm:$0xff]
    %v1237 = vld [vmem:[#allocation3 + $0xf8] sm:$0xff]
    %v1238 = vld [vmem:[#allocation3 + $0x118] sm:$0xff]
    %v1239 = vld [vmem:[#allocation3 + $0x138] sm:$0xff]
    %v1240 = vld [vmem:[#allocation3 + $0x158] sm:$0xff]
    %v1241 = vld [vmem:[#allocation3 + $0x178] sm:$0xff]
    %v1242 = vld [vmem:[#allocation3 + $0x198] sm:$0xff]
    %v1243 = vld [vmem:[#allocation3 + $0x1b8] sm:$0xff]
    %v1244 = vld [vmem:[#allocation3 + $0x1d8] sm:$0xff]
    %v1245 = vld [vmem:[#allocation3 + $0x1f8] sm:$0xff]
    %1246 = vmatprep.subr.mxu0 0.0
    %1247 = vmatpush1.msra.mxu0 %v1245
    %1248 = vmatprep.subr.mxu0 0.0
    %1249 = vmatpush1.msra.mxu0 %v1244
    %1250 = vmatprep.subr.mxu0 0.0
    %1251 = vmatpush1.msra.mxu0 %v1243
    %1252 = vmatprep.subr.mxu0 0.0
    %1253 = vmatpush1.msra.mxu0 %v1242
    %1254 = vmatprep.subr.mxu0 0.0
    %1255 = vmatpush1.msra.mxu0 %v1241
    %1256 = vmatprep.subr.mxu0 0.0
    %1257 = vmatpush1.msra.mxu0 %v1240
    %1258 = vmatprep.subr.mxu0 0.0
    %1259 = vmatpush1.msra.mxu0 %v1239
    %1260 = vmatprep.subr.mxu0 0.0
    %1261 = vmatpush1.msra.mxu0 %v1238
    %1262 = vmatprep.subr.mxu0 0.0
    %1263 = vmatpush1.msra.mxu0 %v1237
    %1264 = vmatprep.subr.mxu0 0.0
    %1265 = vmatpush1.msra.mxu0 %v1236
    %1266 = vmatprep.subr.mxu0 0.0
    %1267 = vmatpush1.msra.mxu0 %v1235
    %1268 = vmatprep.subr.mxu0 0.0
    %1269 = vmatpush1.msra.mxu0 %v1234
    %1270 = vmatprep.subr.mxu0 0.0
    %1271 = vmatpush1.msra.mxu0 %v1233
    %1272 = vmatprep.subr.mxu0 0.0
    %1273 = vmatpush1.msra.mxu0 %v1232
    %1274 = vmatprep.subr.mxu0 0.0
    %1275 = vmatpush1.msra.mxu0 %v1231
    %1276 = vmatprep.subr.mxu0 0.0
    %1277 = vmatpush1.msra.mxu0 %v1230
    %1278 = vmatprep.subr.mxu0 0.0
    %1279 = vmatpush2.msra.mxu0 0.0
    %1280 = vmatprep.subr.mxu0 0.0
    %1281 = vmatpush2.msra.mxu0 0.0
    %1282 = vmatprep.subr.mxu0 0.0
    %1283 = vmatpush2.msra.mxu0 0.0
    %1284 = vmatprep.subr.mxu0 0.0
    %1285 = vmatpush2.msra.mxu0 0.0
    %1286 = vmatprep.subr.mxu0 0.0
    %1287 = vmatpush2.msra.mxu0 0.0
    %1288 = vmatprep.subr.mxu0 0.0
    %1289 = vmatpush2.msra.mxu0 0.0
    %1290 = vmatprep.subr.mxu0 0.0
    %1291 = vmatpush2.msra.mxu0 0.0
    %1292 = vmatprep.subr.mxu0 0.0
    %1293 = vmatpush2.msra.mxu0 0.0
    %1294 = vmatprep.subr.mxu0 0.0
    %1295 = vmatpush2.msra.mxu0 0.0
    %1296 = vmatprep.subr.mxu0 0.0
    %1297 = vmatpush2.msra.mxu0 0.0
    %1298 = vmatprep.subr.mxu0 0.0
    %1299 = vmatpush2.msra.mxu0 0.0
    %1300 = vmatprep.subr.mxu0 0.0
    %1301 = vmatpush2.msra.mxu0 0.0
    %1302 = vmatprep.subr.mxu0 0.0
    %1303 = vmatpush2.msra.mxu0 0.0
    %1304 = vmatprep.subr.mxu0 0.0
    %1305 = vmatpush2.msra.mxu0 0.0
    %1306 = vmatprep.subr.mxu0 0.0
    %1307 = vmatpush2.msra.mxu0 0.0
    %1308 = vmatprep.subr.mxu0 0.0
    %1309 = vmatpush2.msra.mxu0 0.0
    %1310 = vmatprep.mubr.f32.mxu0 0.0
    %1311 = vmatmul.mubr.f32.gmra.mxu0 0.0
    %v1312 = vpop.f32.mrf.mxu0
    %v1313 = vadd.f32 0.0, %v1312
    %v1314 = vpop.f32.mrf.mxu0
    %1315 = vdwg.mxu0
    %v1316 = vadd.f32 %v959, %v1313
    %v1317 = vmul.f32 %v1316, 0.5
    %v1318 = vtanh.pop %v1317
    %v1319 = vmul.f32 %v1318, 0.5
    %v1320 = vadd.f32 %v1319, 0.5
    %v1321 = vmul.f32 %v1141, 0.0
    %v1322 = vmul.f32 %v1050, %v1229
    %v1323 = vadd.f32 %v1321, %v1322
    %v1324 = vtanh.pop %v1323
    %v1325 = vmul.f32 %v1320, %v1324
    %s1326 = smul.u32 1, 4
    %s1327 = smul.addr %s1326, 8
    %s1328 = scalar_lea.vmem [#allocation2], %s1327
    %v1329 = vld [vmem:[%s1328] sm:$0xff]
    %v1330 = vld [vmem:[%s1328 + $0x8] sm:$0xff]
    %v1331 = vld [vmem:[%s1328 + $0x10] sm:$0xff]
    %v1332 = vld [vmem:[%s1328 + $0x18] sm:$0xff]
    %1333 = vmatprep.subr.mxu0 0.0
    %1334 = vmatpush1.msra.mxu0 %v975
    %1335 = vmatprep.subr.mxu0 0.0
    %1336 = vmatpush1.msra.mxu0 %v974
    %1337 = vmatprep.subr.mxu0 0.0
    %1338 = vmatpush1.msra.mxu0 %v973
    %1339 = vmatprep.subr.mxu0 0.0
    %1340 = vmatpush1.msra.mxu0 %v972
    %1341 = vmatprep.subr.mxu0 0.0
    %1342 = vmatpush1.msra.mxu0 %v971
    %1343 = vmatprep.subr.mxu0 0.0
    %1344 = vmatpush1.msra.mxu0 %v970
    %1345 = vmatprep.subr.mxu0 0.0
    %1346 = vmatpush1.msra.mxu0 %v969
    %1347 = vmatprep.subr.mxu0 0.0
    %1348 = vmatpush1.msra.mxu0 %v968
    %1349 = vmatprep.subr.mxu0 0.0
    %1350 = vmatpush1.msra.mxu0 %v967
    %1351 = vmatprep.subr.mxu0 0.0
    %1352 = vmatpush1.msra.mxu0 %v966
    %1353 = vmatprep.subr.mxu0 0.0
    %1354 = vmatpush1.msra.mxu0 %v965
    %1355 = vmatprep.subr.mxu0 0.0
    %1356 = vmatpush1.msra.mxu0 %v964
    %1357 = vmatprep.subr.mxu0 0.0
    %1358 = vmatpush1.msra.mxu0 %v963
    %1359 = vmatprep.subr.mxu0 0.0
    %1360 = vmatpush1.msra.mxu0 %v962
    %1361 = vmatprep.subr.mxu0 0.0
    %1362 = vmatpush1.msra.mxu0 %v961
    %1363 = vmatprep.subr.mxu0 0.0
    %1364 = vmatpush1.msra.mxu0 %v960
    %1365 = vmatprep.subr.mxu0 0.0
    %1366 = vmatpush2.msra.mxu0 0.0
    %1367 = vmatprep.subr.mxu0 0.0
    %1368 = vmatpush2.msra.mxu0 0.0
    %1369 = vmatprep.subr.mxu0 0.0
    %1370 = vmatpush2.msra.mxu0 0.0
    %1371 = vmatprep.subr.mxu0 0.0
    %1372 = vmatpush2.msra.mxu0 0.0
    %1373 = vmatprep.subr.mxu0 0.0
    %1374 = vmatpush2.msra.mxu0 0.0
    %1375 = vmatprep.subr.mxu0 0.0
    %1376 = vmatpush2.msra.mxu0 0.0
    %1377 = vmatprep.subr.mxu0 0.0
    %1378 = vmatpush2.msra.mxu0 0.0
    %1379 = vmatprep.subr.mxu0 0.0
    %1380 = vmatpush2.msra.mxu0 0.0
    %1381 = vmatprep.subr.mxu0 0.0
    %1382 = vmatpush2.msra.mxu0 0.0
    %1383 = vmatprep.subr.mxu0 0.0
    %1384 = vmatpush2.msra.mxu0 0.0
    %1385 = vmatprep.subr.mxu0 0.0
    %1386 = vmatpush2.msra.mxu0 0.0
    %1387 = vmatprep.subr.mxu0 0.0
    %1388 = vmatpush2.msra.mxu0 0.0
    %1389 = vmatprep.subr.mxu0 0.0
    %1390 = vmatpush2.msra.mxu0 0.0
    %1391 = vmatprep.subr.mxu0 0.0
    %1392 = vmatpush2.msra.mxu0 0.0
    %1393 = vmatprep.subr.mxu0 0.0
    %1394 = vmatpush2.msra.mxu0 0.0
    %1395 = vmatprep.subr.mxu0 0.0
    %1396 = vmatpush2.msra.mxu0 0.0
    %1397 = vmatprep.mubr.f32.mxu0 0.0
    %1398 = vmatmul.mubr.f32.gmra.mxu0 %v1325
    %v1399 = vpop.f32.mrf.mxu0
    %v1400 = vadd.f32 0.0, %v1399
    %v1401 = vpop.f32.mrf.mxu0
    %1402 = vdwg.mxu0
    %v1403 = vadd.f32 %v1329, %v1400
    %v1404 = vmul.f32 %v1403, 0.5
    %v1405 = vtanh.pop %v1404
    %v1406 = vmul.f32 %v1405, 0.5
    %v1407 = vadd.f32 %v1406, 0.5
    %1408 = vmatprep.subr.mxu0 0.0
    %1409 = vmatpush1.msra.mxu0 %v1066
    %1410 = vmatprep.subr.mxu0 0.0
    %1411 = vmatpush1.msra.mxu0 %v1065
    %1412 = vmatprep.subr.mxu0 0.0
    %1413 = vmatpush1.msra.mxu0 %v1064
    %1414 = vmatprep.subr.mxu0 0.0
    %1415 = vmatpush1.msra.mxu0 %v1063
    %1416 = vmatprep.subr.mxu0 0.0
    %1417 = vmatpush1.msra.mxu0 %v1062
    %1418 = vmatprep.subr.mxu0 0.0
    %1419 = vmatpush1.msra.mxu0 %v1061
    %1420 = vmatprep.subr.mxu0 0.0
    %1421 = vmatpush1.msra.mxu0 %v1060
    %1422 = vmatprep.subr.mxu0 0.0
    %1423 = vmatpush1.msra.mxu0 %v1059
    %1424 = vmatprep.subr.mxu0 0.0
    %1425 = vmatpush1.msra.mxu0 %v1058
    %1426 = vmatprep.subr.mxu0 0.0
    %1427 = vmatpush1.msra.mxu0 %v1057
    %1428 = vmatprep.subr.mxu0 0.0
    %1429 = vmatpush1.msra.mxu0 %v1056
    %1430 = vmatprep.subr.mxu0 0.0
    %1431 = vmatpush1.msra.mxu0 %v1055
    %1432 = vmatprep.subr.mxu0 0.0
    %1433 = vmatpush1.msra.mxu0 %v1054
    %1434 = vmatprep.subr.mxu0 0.0
    %1435 = vmatpush1.msra.mxu0 %v1053
    %1436 = vmatprep.subr.mxu0 0.0
    %1437 = vmatpush1.msra.mxu0 %v1052
    %1438 = vmatprep.subr.mxu0 0.0
    %1439 = vmatpush1.msra.mxu0 %v1051
    %1440 = vmatprep.subr.mxu0 0.0
    %1441 = vmatpush2.msra.mxu0 0.0
    %1442 = vmatprep.subr.mxu0 0.0
    %1443 = vmatpush2.msra.mxu0 0.0
    %1444 = vmatprep.subr.mxu0 0.0
    %1445 = vmatpush2.msra.mxu0 0.0
    %1446 = vmatprep.subr.mxu0 0.0
    %1447 = vmatpush2.msra.mxu0 0.0
    %1448 = vmatprep.subr.mxu0 0.0
    %1449 = vmatpush2.msra.mxu0 0.0
    %1450 = vmatprep.subr.mxu0 0.0
    %1451 = vmatpush2.msra.mxu0 0.0
    %1452 = vmatprep.subr.mxu0 0.0
    %1453 = vmatpush2.msra.mxu0 0.0
    %1454 = vmatprep.subr.mxu0 0.0
    %1455 = vmatpush2.msra.mxu0 0.0
    %1456 = vmatprep.subr.mxu0 0.0
    %1457 = vmatpush2.msra.mxu0 0.0
    %1458 = vmatprep.subr.mxu0 0.0
    %1459 = vmatpush2.msra.mxu0 0.0
    %1460 = vmatprep.subr.mxu0 0.0
    %1461 = vmatpush2.msra.mxu0 0.0
    %1462 = vmatprep.subr.mxu0 0.0
    %1463 = vmatpush2.msra.mxu0 0.0
    %1464 = vmatprep.subr.mxu0 0.0
    %1465 = vmatpush2.msra.mxu0 0.0
    %1466 = vmatprep.subr.mxu0 0.0
    %1467 = vmatpush2.msra.mxu0 0.0
    %1468 = vmatprep.subr.mxu0 0.0
    %1469 = vmatpush2.msra.mxu0 0.0
    %1470 = vmatprep.subr.mxu0 0.0
    %1471 = vmatpush2.msra.mxu0 0.0
    %1472 = vmatprep.mubr.f32.mxu0 0.0
    %1473 = vmatmul.mubr.f32.gmra.mxu0 %v1325
    %v1474 = vpop.f32.mrf.mxu0
    %v1475 = vadd.f32 0.0, %v1474
    %v1476 = vpop.f32.mrf.mxu0
    %1477 = vdwg.mxu0
    %v1478 = vadd.f32 %v1330, %v1475
    %v1479 = vmul.f32 %v1478, 0.5
    %v1480 = vtanh.pop %v1479
    %v1481 = vmul.f32 %v1480, 0.5
    %v1482 = vadd.f32 %v1481, 0.5
    %1483 = vmatprep.subr.mxu0 0.0
    %1484 = vmatpush1.msra.mxu0 %v1157
    %1485 = vmatprep.subr.mxu0 0.0
    %1486 = vmatpush1.msra.mxu0 %v1156
    %1487 = vmatprep.subr.mxu0 0.0
    %1488 = vmatpush1.msra.mxu0 %v1155
    %1489 = vmatprep.subr.mxu0 0.0
    %1490 = vmatpush1.msra.mxu0 %v1154
    %1491 = vmatprep.subr.mxu0 0.0
    %1492 = vmatpush1.msra.mxu0 %v1153
    %1493 = vmatprep.subr.mxu0 0.0
    %1494 = vmatpush1.msra.mxu0 %v1152
    %1495 = vmatprep.subr.mxu0 0.0
    %1496 = vmatpush1.msra.mxu0 %v1151
    %1497 = vmatprep.subr.mxu0 0.0
    %1498 = vmatpush1.msra.mxu0 %v1150
    %1499 = vmatprep.subr.mxu0 0.0
    %1500 = vmatpush1.msra.mxu0 %v1149
    %1501 = vmatprep.subr.mxu0 0.0
    %1502 = vmatpush1.msra.mxu0 %v1148
    %1503 = vmatprep.subr.mxu0 0.0
    %1504 = vmatpush1.msra.mxu0 %v1147
    %1505 = vmatprep.subr.mxu0 0.0
    %1506 = vmatpush1.msra.mxu0 %v1146
    %1507 = vmatprep.subr.mxu0 0.0
    %1508 = vmatpush1.msra.mxu0 %v1145
    %1509 = vmatprep.subr.mxu0 0.0
    %1510 = vmatpush1.msra.mxu0 %v1144
    %1511 = vmatprep.subr.mxu0 0.0
    %1512 = vmatpush1.msra.mxu0 %v1143
    %1513 = vmatprep.subr.mxu0 0.0
    %1514 = vmatpush1.msra.mxu0 %v1142
    %1515 = vmatprep.subr.mxu0 0.0
    %1516 = vmatpush2.msra.mxu0 0.0
    %1517 = vmatprep.subr.mxu0 0.0
    %1518 = vmatpush2.msra.mxu0 0.0
    %1519 = vmatprep.subr.mxu0 0.0
    %1520 = vmatpush2.msra.mxu0 0.0
    %1521 = vmatprep.subr.mxu0 0.0
    %1522 = vmatpush2.msra.mxu0 0.0
    %1523 = vmatprep.subr.mxu0 0.0
    %1524 = vmatpush2.msra.mxu0 0.0
    %1525 = vmatprep.subr.mxu0 0.0
    %1526 = vmatpush2.msra.mxu0 0.0
    %1527 = vmatprep.subr.mxu0 0.0
    %1528 = vmatpush2.msra.mxu0 0.0
    %1529 = vmatprep.subr.mxu0 0.0
    %1530 = vmatpush2.msra.mxu0 0.0
    %1531 = vmatprep.subr.mxu0 0.0
    %1532 = vmatpush2.msra.mxu0 0.0
    %1533 = vmatprep.subr.mxu0 0.0
    %1534 = vmatpush2.msra.mxu0 0.0
    %1535 = vmatprep.subr.mxu0 0.0
    %1536 = vmatpush2.msra.mxu0 0.0
    %1537 = vmatprep.subr.mxu0 0.0
    %1538 = vmatpush2.msra.mxu0 0.0
    %1539 = vmatprep.subr.mxu0 0.0
    %1540 = vmatpush2.msra.mxu0 0.0
    %1541 = vmatprep.subr.mxu0 0.0
    %1542 = vmatpush2.msra.mxu0 0.0
    %1543 = vmatprep.subr.mxu0 0.0
    %1544 = vmatpush2.msra.mxu0 0.0
    %1545 = vmatprep.subr.mxu0 0.0
    %1546 = vmatpush2.msra.mxu0 0.0
    %1547 = vmatprep.mubr.f32.mxu0 0.0
    %1548 = vmatmul.mubr.f32.gmra.mxu0 %v1325
    %v1549 = vpop.f32.mrf.mxu0
    %v1550 = vadd.f32 0.0, %v1549
    %v1551 = vpop.f32.mrf.mxu0
    %1552 = vdwg.mxu0
    %v1553 = vadd.f32 %v1331, %v1550
    %v1554 = vtanh.pop %v1553
    %1555 = vmatprep.subr.mxu0 0.0
    %1556 = vmatpush1.msra.mxu0 %v1245
    %1557 = vmatprep.subr.mxu0 0.0
    %1558 = vmatpush1.msra.mxu0 %v1244
    %1559 = vmatprep.subr.mxu0 0.0
    %1560 = vmatpush1.msra.mxu0 %v1243
    %1561 = vmatprep.subr.mxu0 0.0
    %1562 = vmatpush1.msra.mxu0 %v1242
    %1563 = vmatprep.subr.mxu0 0.0
    %1564 = vmatpush1.msra.mxu0 %v1241
    %1565 = vmatprep.subr.mxu0 0.0
    %1566 = vmatpush1.msra.mxu0 %v1240
    %1567 = vmatprep.subr.mxu0 0.0
    %1568 = vmatpush1.msra.mxu0 %v1239
    %1569 = vmatprep.subr.mxu0 0.0
    %1570 = vmatpush1.msra.mxu0 %v1238
    %1571 = vmatprep.subr.mxu0 0.0
    %1572 = vmatpush1.msra.mxu0 %v1237
    %1573 = vmatprep.subr.mxu0 0.0
    %1574 = vmatpush1.msra.mxu0 %v1236
    %1575 = vmatprep.subr.mxu0 0.0
    %1576 = vmatpush1.msra.mxu0 %v1235
    %1577 = vmatprep.subr.mxu0 0.0
    %1578 = vmatpush1.msra.mxu0 %v1234
    %1579 = vmatprep.subr.mxu0 0.0
    %1580 = vmatpush1.msra.mxu0 %v1233
    %1581 = vmatprep.subr.mxu0 0.0
    %1582 = vmatpush1.msra.mxu0 %v1232
    %1583 = vmatprep.subr.mxu0 0.0
    %1584 = vmatpush1.msra.mxu0 %v1231
    %1585 = vmatprep.subr.mxu0 0.0
    %1586 = vmatpush1.msra.mxu0 %v1230
    %1587 = vmatprep.subr.mxu0 0.0
    %1588 = vmatpush2.msra.mxu0 0.0
    %1589 = vmatprep.subr.mxu0 0.0
    %1590 = vmatpush2.msra.mxu0 0.0
    %1591 = vmatprep.subr.mxu0 0.0
    %1592 = vmatpush2.msra.mxu0 0.0
    %1593 = vmatprep.subr.mxu0 0.0
    %1594 = vmatpush2.msra.mxu0 0.0
    %1595 = vmatprep.subr.mxu0 0.0
    %1596 = vmatpush2.msra.mxu0 0.0
    %1597 = vmatprep.subr.mxu0 0.0
    %1598 = vmatpush2.msra.mxu0 0.0
    %1599 = vmatprep.subr.mxu0 0.0
    %1600 = vmatpush2.msra.mxu0 0.0
    %1601 = vmatprep.subr.mxu0 0.0
    %1602 = vmatpush2.msra.mxu0 0.0
    %1603 = vmatprep.subr.mxu0 0.0
    %1604 = vmatpush2.msra.mxu0 0.0
    %1605 = vmatprep.subr.mxu0 0.0
    %1606 = vmatpush2.msra.mxu0 0.0
    %1607 = vmatprep.subr.mxu0 0.0
    %1608 = vmatpush2.msra.mxu0 0.0
    %1609 = vmatprep.subr.mxu0 0.0
    %1610 = vmatpush2.msra.mxu0 0.0
    %1611 = vmatprep.subr.mxu0 0.0
    %1612 = vmatpush2.msra.mxu0 0.0
    %1613 = vmatprep.subr.mxu0 0.0
    %1614 = vmatpush2.msra.mxu0 0.0
    %1615 = vmatprep.subr.mxu0 0.0
    %1616 = vmatpush2.msra.mxu0 0.0
    %1617 = vmatprep.subr.mxu0 0.0
    %1618 = vmatpush2.msra.mxu0 0.0
    %1619 = vmatprep.mubr.f32.mxu0 0.0
    %1620 = vmatmul.mubr.f32.gmra.mxu0 %v1325
    %v1621 = vpop.f32.mrf.mxu0
    %v1622 = vadd.f32 0.0, %v1621
    %v1623 = vpop.f32.mrf.mxu0
    %1624 = vdwg.mxu0
    %v1625 = vadd.f32 %v1332, %v1622
    %v1626 = vmul.f32 %v1625, 0.5
    %v1627 = vtanh.pop %v1626
    %v1628 = vmul.f32 %v1627, 0.5
    %v1629 = vadd.f32 %v1628, 0.5
    %v1630 = vmul.f32 %v1482, %v1323
    %v1631 = vmul.f32 %v1407, %v1554
    %v1632 = vadd.f32 %v1630, %v1631
    %v1633 = vtanh.pop %v1632
    %v1634 = vmul.f32 %v1629, %v1633
    %s1635 = smul.u32 2, 4
    %s1636 = smul.addr %s1635, 8
    %s1637 = scalar_lea.vmem [#allocation2], %s1636
    %v1638 = vld [vmem:[%s1637] sm:$0xff]
    %v1639 = vld [vmem:[%s1637 + $0x8] sm:$0xff]
    %v1640 = vld [vmem:[%s1637 + $0x10] sm:$0xff]
    %v1641 = vld [vmem:[%s1637 + $0x18] sm:$0xff]
    %1642 = vmatprep.subr.mxu0 0.0
    %1643 = vmatpush1.msra.mxu0 %v975
    %1644 = vmatprep.subr.mxu0 0.0
    %1645 = vmatpush1.msra.mxu0 %v974
    %1646 = vmatprep.subr.mxu0 0.0
    %1647 = vmatpush1.msra.mxu0 %v973
    %1648 = vmatprep.subr.mxu0 0.0
    %1649 = vmatpush1.msra.mxu0 %v972
    %1650 = vmatprep.subr.mxu0 0.0
    %1651 = vmatpush1.msra.mxu0 %v971
    %1652 = vmatprep.subr.mxu0 0.0
    %1653 = vmatpush1.msra.mxu0 %v970
    %1654 = vmatprep.subr.mxu0 0.0
    %1655 = vmatpush1.msra.mxu0 %v969
    %1656 = vmatprep.subr.mxu0 0.0
    %1657 = vmatpush1.msra.mxu0 %v968
    %1658 = vmatprep.subr.mxu0 0.0
    %1659 = vmatpush1.msra.mxu0 %v967
    %1660 = vmatprep.subr.mxu0 0.0
    %1661 = vmatpush1.msra.mxu0 %v966
    %1662 = vmatprep.subr.mxu0 0.0
    %1663 = vmatpush1.msra.mxu0 %v965
    %1664 = vmatprep.subr.mxu0 0.0
    %1665 = vmatpush1.msra.mxu0 %v964
    %1666 = vmatprep.subr.mxu0 0.0
    %1667 = vmatpush1.msra.mxu0 %v963
    %1668 = vmatprep.subr.mxu0 0.0
    %1669 = vmatpush1.msra.mxu0 %v962
    %1670 = vmatprep.subr.mxu0 0.0
    %1671 = vmatpush1.msra.mxu0 %v961
    %1672 = vmatprep.subr.mxu0 0.0
    %1673 = vmatpush1.msra.mxu0 %v960
    %1674 = vmatprep.subr.mxu0 0.0
    %1675 = vmatpush2.msra.mxu0 0.0
    %1676 = vmatprep.subr.mxu0 0.0
    %1677 = vmatpush2.msra.mxu0 0.0
    %1678 = vmatprep.subr.mxu0 0.0
    %1679 = vmatpush2.msra.mxu0 0.0
    %1680 = vmatprep.subr.mxu0 0.0
    %1681 = vmatpush2.msra.mxu0 0.0
    %1682 = vmatprep.subr.mxu0 0.0
    %1683 = vmatpush2.msra.mxu0 0.0
    %1684 = vmatprep.subr.mxu0 0.0
    %1685 = vmatpush2.msra.mxu0 0.0
    %1686 = vmatprep.subr.mxu0 0.0
    %1687 = vmatpush2.msra.mxu0 0.0
    %1688 = vmatprep.subr.mxu0 0.0
    %1689 = vmatpush2.msra.mxu0 0.0
    %1690 = vmatprep.subr.mxu0 0.0
    %1691 = vmatpush2.msra.mxu0 0.0
    %1692 = vmatprep.subr.mxu0 0.0
    %1693 = vmatpush2.msra.mxu0 0.0
    %1694 = vmatprep.subr.mxu0 0.0
    %1695 = vmatpush2.msra.mxu0 0.0
    %1696 = vmatprep.subr.mxu0 0.0
    %1697 = vmatpush2.msra.mxu0 0.0
    %1698 = vmatprep.subr.mxu0 0.0
    %1699 = vmatpush2.msra.mxu0 0.0
    %1700 = vmatprep.subr.mxu0 0.0
    %1701 = vmatpush2.msra.mxu0 0.0
    %1702 = vmatprep.subr.mxu0 0.0
    %1703 = vmatpush2.msra.mxu0 0.0
    %1704 = vmatprep.subr.mxu0 0.0
    %1705 = vmatpush2.msra.mxu0 0.0
    %1706 = vmatprep.mubr.f32.mxu0 0.0
    %1707 = vmatmul.mubr.f32.gmra.mxu0 %v1634
    %v1708 = vpop.f32.mrf.mxu0
    %v1709 = vadd.f32 0.0, %v1708
    %v1710 = vpop.f32.mrf.mxu0
    %1711 = vdwg.mxu0
    %v1712 = vadd.f32 %v1638, %v1709
    %v1713 = vmul.f32 %v1712, 0.5
    %v1714 = vtanh.pop %v1713
    %v1715 = vmul.f32 %v1714, 0.5
    %v1716 = vadd.f32 %v1715, 0.5
    %1717 = vmatprep.subr.mxu0 0.0
    %1718 = vmatpush1.msra.mxu0 %v1066
    %1719 = vmatprep.subr.mxu0 0.0
    %1720 = vmatpush1.msra.mxu0 %v1065
    %1721 = vmatprep.subr.mxu0 0.0
    %1722 = vmatpush1.msra.mxu0 %v1064
    %1723 = vmatprep.subr.mxu0 0.0
    %1724 = vmatpush1.msra.mxu0 %v1063
    %1725 = vmatprep.subr.mxu0 0.0
    %1726 = vmatpush1.msra.mxu0 %v1062
    %1727 = vmatprep.subr.mxu0 0.0
    %1728 = vmatpush1.msra.mxu0 %v1061
    %1729 = vmatprep.subr.mxu0 0.0
    %1730 = vmatpush1.msra.mxu0 %v1060
    %1731 = vmatprep.subr.mxu0 0.0
    %1732 = vmatpush1.msra.mxu0 %v1059
    %1733 = vmatprep.subr.mxu0 0.0
    %1734 = vmatpush1.msra.mxu0 %v1058
    %1735 = vmatprep.subr.mxu0 0.0
    %1736 = vmatpush1.msra.mxu0 %v1057
    %1737 = vmatprep.subr.mxu0 0.0
    %1738 = vmatpush1.msra.mxu0 %v1056
    %1739 = vmatprep.subr.mxu0 0.0
    %1740 = vmatpush1.msra.mxu0 %v1055
    %1741 = vmatprep.subr.mxu0 0.0
    %1742 = vmatpush1.msra.mxu0 %v1054
    %1743 = vmatprep.subr.mxu0 0.0
    %1744 = vmatpush1.msra.mxu0 %v1053
    %1745 = vmatprep.subr.mxu0 0.0
    %1746 = vmatpush1.msra.mxu0 %v1052
    %1747 = vmatprep.subr.mxu0 0.0
    %1748 = vmatpush1.msra.mxu0 %v1051
    %1749 = vmatprep.subr.mxu0 0.0
    %1750 = vmatpush2.msra.mxu0 0.0
    %1751 = vmatprep.subr.mxu0 0.0
    %1752 = vmatpush2.msra.mxu0 0.0
    %1753 = vmatprep.subr.mxu0 0.0
    %1754 = vmatpush2.msra.mxu0 0.0
    %1755 = vmatprep.subr.mxu0 0.0
    %1756 = vmatpush2.msra.mxu0 0.0
    %1757 = vmatprep.subr.mxu0 0.0
    %1758 = vmatpush2.msra.mxu0 0.0
    %1759 = vmatprep.subr.mxu0 0.0
    %1760 = vmatpush2.msra.mxu0 0.0
    %1761 = vmatprep.subr.mxu0 0.0
    %1762 = vmatpush2.msra.mxu0 0.0
    %1763 = vmatprep.subr.mxu0 0.0
    %1764 = vmatpush2.msra.mxu0 0.0
    %1765 = vmatprep.subr.mxu0 0.0
    %1766 = vmatpush2.msra.mxu0 0.0
    %1767 = vmatprep.subr.mxu0 0.0
    %1768 = vmatpush2.msra.mxu0 0.0
    %1769 = vmatprep.subr.mxu0 0.0
    %1770 = vmatpush2.msra.mxu0 0.0
    %1771 = vmatprep.subr.mxu0 0.0
    %1772 = vmatpush2.msra.mxu0 0.0
    %1773 = vmatprep.subr.mxu0 0.0
    %1774 = vmatpush2.msra.mxu0 0.0
    %1775 = vmatprep.subr.mxu0 0.0
    %1776 = vmatpush2.msra.mxu0 0.0
    %1777 = vmatprep.subr.mxu0 0.0
    %1778 = vmatpush2.msra.mxu0 0.0
    %1779 = vmatprep.subr.mxu0 0.0
    %1780 = vmatpush2.msra.mxu0 0.0
    %1781 = vmatprep.mubr.f32.mxu0 0.0
    %1782 = vmatmul.mubr.f32.gmra.mxu0 %v1634
    %v1783 = vpop.f32.mrf.mxu0
    %v1784 = vadd.f32 0.0, %v1783
    %v1785 = vpop.f32.mrf.mxu0
    %1786 = vdwg.mxu0
    %v1787 = vadd.f32 %v1639, %v1784
    %v1788 = vmul.f32 %v1787, 0.5
    %v1789 = vtanh.pop %v1788
    %v1790 = vmul.f32 %v1789, 0.5
    %v1791 = vadd.f32 %v1790, 0.5
    %1792 = vmatprep.subr.mxu0 0.0
    %1793 = vmatpush1.msra.mxu0 %v1157
    %1794 = vmatprep.subr.mxu0 0.0
    %1795 = vmatpush1.msra.mxu0 %v1156
    %1796 = vmatprep.subr.mxu0 0.0
    %1797 = vmatpush1.msra.mxu0 %v1155
    %1798 = vmatprep.subr.mxu0 0.0
    %1799 = vmatpush1.msra.mxu0 %v1154
    %1800 = vmatprep.subr.mxu0 0.0
    %1801 = vmatpush1.msra.mxu0 %v1153
    %1802 = vmatprep.subr.mxu0 0.0
    %1803 = vmatpush1.msra.mxu0 %v1152
    %1804 = vmatprep.subr.mxu0 0.0
    %1805 = vmatpush1.msra.mxu0 %v1151
    %1806 = vmatprep.subr.mxu0 0.0
    %1807 = vmatpush1.msra.mxu0 %v1150
    %1808 = vmatprep.subr.mxu0 0.0
    %1809 = vmatpush1.msra.mxu0 %v1149
    %1810 = vmatprep.subr.mxu0 0.0
    %1811 = vmatpush1.msra.mxu0 %v1148
    %1812 = vmatprep.subr.mxu0 0.0
    %1813 = vmatpush1.msra.mxu0 %v1147
    %1814 = vmatprep.subr.mxu0 0.0
    %1815 = vmatpush1.msra.mxu0 %v1146
    %1816 = vmatprep.subr.mxu0 0.0
    %1817 = vmatpush1.msra.mxu0 %v1145
    %1818 = vmatprep.subr.mxu0 0.0
    %1819 = vmatpush1.msra.mxu0 %v1144
    %1820 = vmatprep.subr.mxu0 0.0
    %1821 = vmatpush1.msra.mxu0 %v1143
    %1822 = vmatprep.subr.mxu0 0.0
    %1823 = vmatpush1.msra.mxu0 %v1142
    %1824 = vmatprep.subr.mxu0 0.0
    %1825 = vmatpush2.msra.mxu0 0.0
    %1826 = vmatprep.subr.mxu0 0.0
    %1827 = vmatpush2.msra.mxu0 0.0
    %1828 = vmatprep.subr.mxu0 0.0
    %1829 = vmatpush2.msra.mxu0 0.0
    %1830 = vmatprep.subr.mxu0 0.0
    %1831 = vmatpush2.msra.mxu0 0.0
    %1832 = vmatprep.subr.mxu0 0.0
    %1833 = vmatpush2.msra.mxu0 0.0
    %1834 = vmatprep.subr.mxu0 0.0
    %1835 = vmatpush2.msra.mxu0 0.0
    %1836 = vmatprep.subr.mxu0 0.0
    %1837 = vmatpush2.msra.mxu0 0.0
    %1838 = vmatprep.subr.mxu0 0.0
    %1839 = vmatpush2.msra.mxu0 0.0
    %1840 = vmatprep.subr.mxu0 0.0
    %1841 = vmatpush2.msra.mxu0 0.0
    %1842 = vmatprep.subr.mxu0 0.0
    %1843 = vmatpush2.msra.mxu0 0.0
    %1844 = vmatprep.subr.mxu0 0.0
    %1845 = vmatpush2.msra.mxu0 0.0
    %1846 = vmatprep.subr.mxu0 0.0
    %1847 = vmatpush2.msra.mxu0 0.0
    %1848 = vmatprep.subr.mxu0 0.0
    %1849 = vmatpush2.msra.mxu0 0.0
    %1850 = vmatprep.subr.mxu0 0.0
    %1851 = vmatpush2.msra.mxu0 0.0
    %1852 = vmatprep.subr.mxu0 0.0
    %1853 = vmatpush2.msra.mxu0 0.0
    %1854 = vmatprep.subr.mxu0 0.0
    %1855 = vmatpush2.msra.mxu0 0.0
    %1856 = vmatprep.mubr.f32.mxu0 0.0
    %1857 = vmatmul.mubr.f32.gmra.mxu0 %v1634
    %v1858 = vpop.f32.mrf.mxu0
    %v1859 = vadd.f32 0.0, %v1858
    %v1860 = vpop.f32.mrf.mxu0
    %1861 = vdwg.mxu0
    %v1862 = vadd.f32 %v1640, %v1859
    %v1863 = vtanh.pop %v1862
    %1864 = vmatprep.subr.mxu0 0.0
    %1865 = vmatpush1.msra.mxu0 %v1245
    %1866 = vmatprep.subr.mxu0 0.0
    %1867 = vmatpush1.msra.mxu0 %v1244
    %1868 = vmatprep.subr.mxu0 0.0
    %1869 = vmatpush1.msra.mxu0 %v1243
    %1870 = vmatprep.subr.mxu0 0.0
    %1871 = vmatpush1.msra.mxu0 %v1242
    %1872 = vmatprep.subr.mxu0 0.0
    %1873 = vmatpush1.msra.mxu0 %v1241
    %1874 = vmatprep.subr.mxu0 0.0
    %1875 = vmatpush1.msra.mxu0 %v1240
    %1876 = vmatprep.subr.mxu0 0.0
    %1877 = vmatpush1.msra.mxu0 %v1239
    %1878 = vmatprep.subr.mxu0 0.0
    %1879 = vmatpush1.msra.mxu0 %v1238
    %1880 = vmatprep.subr.mxu0 0.0
    %1881 = vmatpush1.msra.mxu0 %v1237
    %1882 = vmatprep.subr.mxu0 0.0
    %1883 = vmatpush1.msra.mxu0 %v1236
    %1884 = vmatprep.subr.mxu0 0.0
    %1885 = vmatpush1.msra.mxu0 %v1235
    %1886 = vmatprep.subr.mxu0 0.0
    %1887 = vmatpush1.msra.mxu0 %v1234
    %1888 = vmatprep.subr.mxu0 0.0
    %1889 = vmatpush1.msra.mxu0 %v1233
    %1890 = vmatprep.subr.mxu0 0.0
    %1891 = vmatpush1.msra.mxu0 %v1232
    %1892 = vmatprep.subr.mxu0 0.0
    %1893 = vmatpush1.msra.mxu0 %v1231
    %1894 = vmatprep.subr.mxu0 0.0
    %1895 = vmatpush1.msra.mxu0 %v1230
    %1896 = vmatprep.subr.mxu0 0.0
    %1897 = vmatpush2.msra.mxu0 0.0
    %1898 = vmatprep.subr.mxu0 0.0
    %1899 = vmatpush2.msra.mxu0 0.0
    %1900 = vmatprep.subr.mxu0 0.0
    %1901 = vmatpush2.msra.mxu0 0.0
    %1902 = vmatprep.subr.mxu0 0.0
    %1903 = vmatpush2.msra.mxu0 0.0
    %1904 = vmatprep.subr.mxu0 0.0
    %1905 = vmatpush2.msra.mxu0 0.0
    %1906 = vmatprep.subr.mxu0 0.0
    %1907 = vmatpush2.msra.mxu0 0.0
    %1908 = vmatprep.subr.mxu0 0.0
    %1909 = vmatpush2.msra.mxu0 0.0
    %1910 = vmatprep.subr.mxu0 0.0
    %1911 = vmatpush2.msra.mxu0 0.0
    %1912 = vmatprep.subr.mxu0 0.0
    %1913 = vmatpush2.msra.mxu0 0.0
    %1914 = vmatprep.subr.mxu0 0.0
    %1915 = vmatpush2.msra.mxu0 0.0
    %1916 = vmatprep.subr.mxu0 0.0
    %1917 = vmatpush2.msra.mxu0 0.0
    %1918 = vmatprep.subr.mxu0 0.0
    %1919 = vmatpush2.msra.mxu0 0.0
    %1920 = vmatprep.subr.mxu0 0.0
    %1921 = vmatpush2.msra.mxu0 0.0
    %1922 = vmatprep.subr.mxu0 0.0
    %1923 = vmatpush2.msra.mxu0 0.0
    %1924 = vmatprep.subr.mxu0 0.0
    %1925 = vmatpush2.msra.mxu0 0.0
    %1926 = vmatprep.subr.mxu0 0.0
    %1927 = vmatpush2.msra.mxu0 0.0
    %1928 = vmatprep.mubr.f32.mxu0 0.0
    %1929 = vmatmul.mubr.f32.gmra.mxu0 %v1634
    %v1930 = vpop.f32.mrf.mxu0
    %v1931 = vadd.f32 0.0, %v1930
    %v1932 = vpop.f32.mrf.mxu0
    %1933 = vdwg.mxu0
    %v1934 = vadd.f32 %v1641, %v1931
    %v1935 = vmul.f32 %v1934, 0.5
    %v1936 = vtanh.pop %v1935
    %v1937 = vmul.f32 %v1936, 0.5
    %v1938 = vadd.f32 %v1937, 0.5
    %v1939 = vmul.f32 %v1791, %v1632
    %v1940 = vmul.f32 %v1716, %v1863
    %v1941 = vadd.f32 %v1939, %v1940
    %v1942 = vtanh.pop %v1941
    %v1943 = vmul.f32 %v1938, %v1942
    %s1944 = smul.u32 3, 4
    %s1945 = smul.addr %s1944, 8
    %s1946 = scalar_lea.vmem [#allocation2], %s1945
    %v1947 = vld [vmem:[%s1946] sm:$0xff]
    %v1948 = vld [vmem:[%s1946 + $0x8] sm:$0xff]
    %v1949 = vld [vmem:[%s1946 + $0x10] sm:$0xff]
    %v1950 = vld [vmem:[%s1946 + $0x18] sm:$0xff]
    %1951 = vmatprep.subr.mxu0 0.0
    %1952 = vmatpush1.msra.mxu0 %v975
    %1953 = vmatprep.subr.mxu0 0.0
    %1954 = vmatpush1.msra.mxu0 %v974
    %1955 = vmatprep.subr.mxu0 0.0
    %1956 = vmatpush1.msra.mxu0 %v973
    %1957 = vmatprep.subr.mxu0 0.0
    %1958 = vmatpush1.msra.mxu0 %v972
    %1959 = vmatprep.subr.mxu0 0.0
    %1960 = vmatpush1.msra.mxu0 %v971
    %1961 = vmatprep.subr.mxu0 0.0
    %1962 = vmatpush1.msra.mxu0 %v970
    %1963 = vmatprep.subr.mxu0 0.0
    %1964 = vmatpush1.msra.mxu0 %v969
    %1965 = vmatprep.subr.mxu0 0.0
    %1966 = vmatpush1.msra.mxu0 %v968
    %1967 = vmatprep.subr.mxu0 0.0
    %1968 = vmatpush1.msra.mxu0 %v967
    %1969 = vmatprep.subr.mxu0 0.0
    %1970 = vmatpush1.msra.mxu0 %v966
    %1971 = vmatprep.subr.mxu0 0.0
    %1972 = vmatpush1.msra.mxu0 %v965
    %1973 = vmatprep.subr.mxu0 0.0
    %1974 = vmatpush1.msra.mxu0 %v964
    %1975 = vmatprep.subr.mxu0 0.0
    %1976 = vmatpush1.msra.mxu0 %v963
    %1977 = vmatprep.subr.mxu0 0.0
    %1978 = vmatpush1.msra.mxu0 %v962
    %1979 = vmatprep.subr.mxu0 0.0
    %1980 = vmatpush1.msra.mxu0 %v961
    %1981 = vmatprep.subr.mxu0 0.0
    %1982 = vmatpush1.msra.mxu0 %v960
    %1983 = vmatprep.subr.mxu0 0.0
    %1984 = vmatpush2.msra.mxu0 0.0
    %1985 = vmatprep.subr.mxu0 0.0
    %1986 = vmatpush2.msra.mxu0 0.0
    %1987 = vmatprep.subr.mxu0 0.0
    %1988 = vmatpush2.msra.mxu0 0.0
    %1989 = vmatprep.subr.mxu0 0.0
    %1990 = vmatpush2.msra.mxu0 0.0
    %1991 = vmatprep.subr.mxu0 0.0
    %1992 = vmatpush2.msra.mxu0 0.0
    %1993 = vmatprep.subr.mxu0 0.0
    %1994 = vmatpush2.msra.mxu0 0.0
    %1995 = vmatprep.subr.mxu0 0.0
    %1996 = vmatpush2.msra.mxu0 0.0
    %1997 = vmatprep.subr.mxu0 0.0
    %1998 = vmatpush2.msra.mxu0 0.0
    %1999 = vmatprep.subr.mxu0 0.0
    %2000 = vmatpush2.msra.mxu0 0.0
    %2001 = vmatprep.subr.mxu0 0.0
    %2002 = vmatpush2.msra.mxu0 0.0
    %2003 = vmatprep.subr.mxu0 0.0
    %2004 = vmatpush2.msra.mxu0 0.0
    %2005 = vmatprep.subr.mxu0 0.0
    %2006 = vmatpush2.msra.mxu0 0.0
    %2007 = vmatprep.subr.mxu0 0.0
    %2008 = vmatpush2.msra.mxu0 0.0
    %2009 = vmatprep.subr.mxu0 0.0
    %2010 = vmatpush2.msra.mxu0 0.0
    %2011 = vmatprep.subr.mxu0 0.0
    %2012 = vmatpush2.msra.mxu0 0.0
    %2013 = vmatprep.subr.mxu0 0.0
    %2014 = vmatpush2.msra.mxu0 0.0
    %2015 = vmatprep.mubr.f32.mxu0 0.0
    %2016 = vmatmul.mubr.f32.gmra.mxu0 %v1943
    %v2017 = vpop.f32.mrf.mxu0
    %v2018 = vadd.f32 0.0, %v2017
    %v2019 = vpop.f32.mrf.mxu0
    %2020 = vdwg.mxu0
    %v2021 = vadd.f32 %v1947, %v2018
    %v2022 = vmul.f32 %v2021, 0.5
    %v2023 = vtanh.pop %v2022
    %v2024 = vmul.f32 %v2023, 0.5
    %v2025 = vadd.f32 %v2024, 0.5
    %2026 = vmatprep.subr.mxu0 0.0
    %2027 = vmatpush1.msra.mxu0 %v1066
    %2028 = vmatprep.subr.mxu0 0.0
    %2029 = vmatpush1.msra.mxu0 %v1065
    %2030 = vmatprep.subr.mxu0 0.0
    %2031 = vmatpush1.msra.mxu0 %v1064
    %2032 = vmatprep.subr.mxu0 0.0
    %2033 = vmatpush1.msra.mxu0 %v1063
    %2034 = vmatprep.subr.mxu0 0.0
    %2035 = vmatpush1.msra.mxu0 %v1062
    %2036 = vmatprep.subr.mxu0 0.0
    %2037 = vmatpush1.msra.mxu0 %v1061
    %2038 = vmatprep.subr.mxu0 0.0
    %2039 = vmatpush1.msra.mxu0 %v1060
    %2040 = vmatprep.subr.mxu0 0.0
    %2041 = vmatpush1.msra.mxu0 %v1059
    %2042 = vmatprep.subr.mxu0 0.0
    %2043 = vmatpush1.msra.mxu0 %v1058
    %2044 = vmatprep.subr.mxu0 0.0
    %2045 = vmatpush1.msra.mxu0 %v1057
    %2046 = vmatprep.subr.mxu0 0.0
    %2047 = vmatpush1.msra.mxu0 %v1056
    %2048 = vmatprep.subr.mxu0 0.0
    %2049 = vmatpush1.msra.mxu0 %v1055
    %2050 = vmatprep.subr.mxu0 0.0
    %2051 = vmatpush1.msra.mxu0 %v1054
    %2052 = vmatprep.subr.mxu0 0.0
    %2053 = vmatpush1.msra.mxu0 %v1053
    %2054 = vmatprep.subr.mxu0 0.0
    %2055 = vmatpush1.msra.mxu0 %v1052
    %2056 = vmatprep.subr.mxu0 0.0
    %2057 = vmatpush1.msra.mxu0 %v1051
    %2058 = vmatprep.subr.mxu0 0.0
    %2059 = vmatpush2.msra.mxu0 0.0
    %2060 = vmatprep.subr.mxu0 0.0
    %2061 = vmatpush2.msra.mxu0 0.0
    %2062 = vmatprep.subr.mxu0 0.0
    %2063 = vmatpush2.msra.mxu0 0.0
    %2064 = vmatprep.subr.mxu0 0.0
    %2065 = vmatpush2.msra.mxu0 0.0
    %2066 = vmatprep.subr.mxu0 0.0
    %2067 = vmatpush2.msra.mxu0 0.0
    %2068 = vmatprep.subr.mxu0 0.0
    %2069 = vmatpush2.msra.mxu0 0.0
    %2070 = vmatprep.subr.mxu0 0.0
    %2071 = vmatpush2.msra.mxu0 0.0
    %2072 = vmatprep.subr.mxu0 0.0
    %2073 = vmatpush2.msra.mxu0 0.0
    %2074 = vmatprep.subr.mxu0 0.0
    %2075 = vmatpush2.msra.mxu0 0.0
    %2076 = vmatprep.subr.mxu0 0.0
    %2077 = vmatpush2.msra.mxu0 0.0
    %2078 = vmatprep.subr.mxu0 0.0
    %2079 = vmatpush2.msra.mxu0 0.0
    %2080 = vmatprep.subr.mxu0 0.0
    %2081 = vmatpush2.msra.mxu0 0.0
    %2082 = vmatprep.subr.mxu0 0.0
    %2083 = vmatpush2.msra.mxu0 0.0
    %2084 = vmatprep.subr.mxu0 0.0
    %2085 = vmatpush2.msra.mxu0 0.0
    %2086 = vmatprep.subr.mxu0 0.0
    %2087 = vmatpush2.msra.mxu0 0.0
    %2088 = vmatprep.subr.mxu0 0.0
    %2089 = vmatpush2.msra.mxu0 0.0
    %2090 = vmatprep.mubr.f32.mxu0 0.0
    %2091 = vmatmul.mubr.f32.gmra.mxu0 %v1943
    %v2092 = vpop.f32.mrf.mxu0
    %v2093 = vadd.f32 0.0, %v2092
    %v2094 = vpop.f32.mrf.mxu0
    %2095 = vdwg.mxu0
    %v2096 = vadd.f32 %v1948, %v2093
    %v2097 = vmul.f32 %v2096, 0.5
    %v2098 = vtanh.pop %v2097
    %v2099 = vmul.f32 %v2098, 0.5
    %v2100 = vadd.f32 %v2099, 0.5
    %2101 = vmatprep.subr.mxu0 0.0
    %2102 = vmatpush1.msra.mxu0 %v1157
    %2103 = vmatprep.subr.mxu0 0.0
    %2104 = vmatpush1.msra.mxu0 %v1156
    %2105 = vmatprep.subr.mxu0 0.0
    %2106 = vmatpush1.msra.mxu0 %v1155
    %2107 = vmatprep.subr.mxu0 0.0
    %2108 = vmatpush1.msra.mxu0 %v1154
    %2109 = vmatprep.subr.mxu0 0.0
    %2110 = vmatpush1.msra.mxu0 %v1153
    %2111 = vmatprep.subr.mxu0 0.0
    %2112 = vmatpush1.msra.mxu0 %v1152
    %2113 = vmatprep.subr.mxu0 0.0
    %2114 = vmatpush1.msra.mxu0 %v1151
    %2115 = vmatprep.subr.mxu0 0.0
    %2116 = vmatpush1.msra.mxu0 %v1150
    %2117 = vmatprep.subr.mxu0 0.0
    %2118 = vmatpush1.msra.mxu0 %v1149
    %2119 = vmatprep.subr.mxu0 0.0
    %2120 = vmatpush1.msra.mxu0 %v1148
    %2121 = vmatprep.subr.mxu0 0.0
    %2122 = vmatpush1.msra.mxu0 %v1147
    %2123 = vmatprep.subr.mxu0 0.0
    %2124 = vmatpush1.msra.mxu0 %v1146
    %2125 = vmatprep.subr.mxu0 0.0
    %2126 = vmatpush1.msra.mxu0 %v1145
    %2127 = vmatprep.subr.mxu0 0.0
    %2128 = vmatpush1.msra.mxu0 %v1144
    %2129 = vmatprep.subr.mxu0 0.0
    %2130 = vmatpush1.msra.mxu0 %v1143
    %2131 = vmatprep.subr.mxu0 0.0
    %2132 = vmatpush1.msra.mxu0 %v1142
    %2133 = vmatprep.subr.mxu0 0.0
    %2134 = vmatpush2.msra.mxu0 0.0
    %2135 = vmatprep.subr.mxu0 0.0
    %2136 = vmatpush2.msra.mxu0 0.0
    %2137 = vmatprep.subr.mxu0 0.0
    %2138 = vmatpush2.msra.mxu0 0.0
    %2139 = vmatprep.subr.mxu0 0.0
    %2140 = vmatpush2.msra.mxu0 0.0
    %2141 = vmatprep.subr.mxu0 0.0
    %2142 = vmatpush2.msra.mxu0 0.0
    %2143 = vmatprep.subr.mxu0 0.0
    %2144 = vmatpush2.msra.mxu0 0.0
    %2145 = vmatprep.subr.mxu0 0.0
    %2146 = vmatpush2.msra.mxu0 0.0
    %2147 = vmatprep.subr.mxu0 0.0
    %2148 = vmatpush2.msra.mxu0 0.0
    %2149 = vmatprep.subr.mxu0 0.0
    %2150 = vmatpush2.msra.mxu0 0.0
    %2151 = vmatprep.subr.mxu0 0.0
    %2152 = vmatpush2.msra.mxu0 0.0
    %2153 = vmatprep.subr.mxu0 0.0
    %2154 = vmatpush2.msra.mxu0 0.0
    %2155 = vmatprep.subr.mxu0 0.0
    %2156 = vmatpush2.msra.mxu0 0.0
    %2157 = vmatprep.subr.mxu0 0.0
    %2158 = vmatpush2.msra.mxu0 0.0
    %2159 = vmatprep.subr.mxu0 0.0
    %2160 = vmatpush2.msra.mxu0 0.0
    %2161 = vmatprep.subr.mxu0 0.0
    %2162 = vmatpush2.msra.mxu0 0.0
    %2163 = vmatprep.subr.mxu0 0.0
    %2164 = vmatpush2.msra.mxu0 0.0
    %2165 = vmatprep.mubr.f32.mxu0 0.0
    %2166 = vmatmul.mubr.f32.gmra.mxu0 %v1943
    %v2167 = vpop.f32.mrf.mxu0
    %v2168 = vadd.f32 0.0, %v2167
    %v2169 = vpop.f32.mrf.mxu0
    %2170 = vdwg.mxu0
    %v2171 = vadd.f32 %v1949, %v2168
    %v2172 = vtanh.pop %v2171
    %2173 = vmatprep.subr.mxu0 0.0
    %2174 = vmatpush1.msra.mxu0 %v1245
    %2175 = vmatprep.subr.mxu0 0.0
    %2176 = vmatpush1.msra.mxu0 %v1244
    %2177 = vmatprep.subr.mxu0 0.0
    %2178 = vmatpush1.msra.mxu0 %v1243
    %2179 = vmatprep.subr.mxu0 0.0
    %2180 = vmatpush1.msra.mxu0 %v1242
    %2181 = vmatprep.subr.mxu0 0.0
    %2182 = vmatpush1.msra.mxu0 %v1241
    %2183 = vmatprep.subr.mxu0 0.0
    %2184 = vmatpush1.msra.mxu0 %v1240
    %2185 = vmatprep.subr.mxu0 0.0
    %2186 = vmatpush1.msra.mxu0 %v1239
    %2187 = vmatprep.subr.mxu0 0.0
    %2188 = vmatpush1.msra.mxu0 %v1238
    %2189 = vmatprep.subr.mxu0 0.0
    %2190 = vmatpush1.msra.mxu0 %v1237
    %2191 = vmatprep.subr.mxu0 0.0
    %2192 = vmatpush1.msra.mxu0 %v1236
    %2193 = vmatprep.subr.mxu0 0.0
    %2194 = vmatpush1.msra.mxu0 %v1235
    %2195 = vmatprep.subr.mxu0 0.0
    %2196 = vmatpush1.msra.mxu0 %v1234
    %2197 = vmatprep.subr.mxu0 0.0
    %2198 = vmatpush1.msra.mxu0 %v1233
    %2199 = vmatprep.subr.mxu0 0.0
    %2200 = vmatpush1.msra.mxu0 %v1232
    %2201 = vmatprep.subr.mxu0 0.0
    %2202 = vmatpush1.msra.mxu0 %v1231
    %2203 = vmatprep.subr.mxu0 0.0
    %2204 = vmatpush1.msra.mxu0 %v1230
    %2205 = vmatprep.subr.mxu0 0.0
    %2206 = vmatpush2.msra.mxu0 0.0
    %2207 = vmatprep.subr.mxu0 0.0
    %2208 = vmatpush2.msra.mxu0 0.0
    %2209 = vmatprep.subr.mxu0 0.0
    %2210 = vmatpush2.msra.mxu0 0.0
    %2211 = vmatprep.subr.mxu0 0.0
    %2212 = vmatpush2.msra.mxu0 0.0
    %2213 = vmatprep.subr.mxu0 0.0
    %2214 = vmatpush2.msra.mxu0 0.0
    %2215 = vmatprep.subr.mxu0 0.0
    %2216 = vmatpush2.msra.mxu0 0.0
    %2217 = vmatprep.subr.mxu0 0.0
    %2218 = vmatpush2.msra.mxu0 0.0
    %2219 = vmatprep.subr.mxu0 0.0
    %2220 = vmatpush2.msra.mxu0 0.0
    %2221 = vmatprep.subr.mxu0 0.0
    %2222 = vmatpush2.msra.mxu0 0.0
    %2223 = vmatprep.subr.mxu0 0.0
    %2224 = vmatpush2.msra.mxu0 0.0
    %2225 = vmatprep.subr.mxu0 0.0
    %2226 = vmatpush2.msra.mxu0 0.0
    %2227 = vmatprep.subr.mxu0 0.0
    %2228 = vmatpush2.msra.mxu0 0.0
    %2229 = vmatprep.subr.mxu0 0.0
    %2230 = vmatpush2.msra.mxu0 0.0
    %2231 = vmatprep.subr.mxu0 0.0
    %2232 = vmatpush2.msra.mxu0 0.0
    %2233 = vmatprep.subr.mxu0 0.0
    %2234 = vmatpush2.msra.mxu0 0.0
    %2235 = vmatprep.subr.mxu0 0.0
    %2236 = vmatpush2.msra.mxu0 0.0
    %2237 = vmatprep.mubr.f32.mxu0 0.0
    %2238 = vmatmul.mubr.f32.gmra.mxu0 %v1943
    %v2239 = vpop.f32.mrf.mxu0
    %v2240 = vadd.f32 0.0, %v2239
    %v2241 = vpop.f32.mrf.mxu0
    %2242 = vdwg.mxu0
    %v2243 = vadd.f32 %v1950, %v2240
    %v2244 = vmul.f32 %v2243, 0.5
    %v2245 = vtanh.pop %v2244
    %v2246 = vmul.f32 %v2245, 0.5
    %v2247 = vadd.f32 %v2246, 0.5
    %v2248 = vmul.f32 %v2100, %v1941
    %v2249 = vmul.f32 %v2025, %v2172
    %v2250 = vadd.f32 %v2248, %v2249
    %v2251 = vtanh.pop %v2250
    %v2252 = vmul.f32 %v2247, %v2251
    %s2253 = smul.u32 4, 4
    %s2254 = smul.addr %s2253, 8
    %s2255 = scalar_lea.vmem [#allocation2], %s2254
    %v2256 = vld [vmem:[%s2255] sm:$0xff]
    %v2257 = vld [vmem:[%s2255 + $0x8] sm:$0xff]
    %v2258 = vld [vmem:[%s2255 + $0x10] sm:$0xff]
    %v2259 = vld [vmem:[%s2255 + $0x18] sm:$0xff]
    %2260 = vmatprep.subr.mxu0 0.0
    %2261 = vmatpush1.msra.mxu0 %v975
    %2262 = vmatprep.subr.mxu0 0.0
    %2263 = vmatpush1.msra.mxu0 %v974
    %2264 = vmatprep.subr.mxu0 0.0
    %2265 = vmatpush1.msra.mxu0 %v973
    %2266 = vmatprep.subr.mxu0 0.0
    %2267 = vmatpush1.msra.mxu0 %v972
    %2268 = vmatprep.subr.mxu0 0.0
    %2269 = vmatpush1.msra.mxu0 %v971
    %2270 = vmatprep.subr.mxu0 0.0
    %2271 = vmatpush1.msra.mxu0 %v970
    %2272 = vmatprep.subr.mxu0 0.0
    %2273 = vmatpush1.msra.mxu0 %v969
    %2274 = vmatprep.subr.mxu0 0.0
    %2275 = vmatpush1.msra.mxu0 %v968
    %2276 = vmatprep.subr.mxu0 0.0
    %2277 = vmatpush1.msra.mxu0 %v967
    %2278 = vmatprep.subr.mxu0 0.0
    %2279 = vmatpush1.msra.mxu0 %v966
    %2280 = vmatprep.subr.mxu0 0.0
    %2281 = vmatpush1.msra.mxu0 %v965
    %2282 = vmatprep.subr.mxu0 0.0
    %2283 = vmatpush1.msra.mxu0 %v964
    %2284 = vmatprep.subr.mxu0 0.0
    %2285 = vmatpush1.msra.mxu0 %v963
    %2286 = vmatprep.subr.mxu0 0.0
    %2287 = vmatpush1.msra.mxu0 %v962
    %2288 = vmatprep.subr.mxu0 0.0
    %2289 = vmatpush1.msra.mxu0 %v961
    %2290 = vmatprep.subr.mxu0 0.0
    %2291 = vmatpush1.msra.mxu0 %v960
    %2292 = vmatprep.subr.mxu0 0.0
    %2293 = vmatpush2.msra.mxu0 0.0
    %2294 = vmatprep.subr.mxu0 0.0
    %2295 = vmatpush2.msra.mxu0 0.0
    %2296 = vmatprep.subr.mxu0 0.0
    %2297 = vmatpush2.msra.mxu0 0.0
    %2298 = vmatprep.subr.mxu0 0.0
    %2299 = vmatpush2.msra.mxu0 0.0
    %2300 = vmatprep.subr.mxu0 0.0
    %2301 = vmatpush2.msra.mxu0 0.0
    %2302 = vmatprep.subr.mxu0 0.0
    %2303 = vmatpush2.msra.mxu0 0.0
    %2304 = vmatprep.subr.mxu0 0.0
    %2305 = vmatpush2.msra.mxu0 0.0
    %2306 = vmatprep.subr.mxu0 0.0
    %2307 = vmatpush2.msra.mxu0 0.0
    %2308 = vmatprep.subr.mxu0 0.0
    %2309 = vmatpush2.msra.mxu0 0.0
    %2310 = vmatprep.subr.mxu0 0.0
    %2311 = vmatpush2.msra.mxu0 0.0
    %2312 = vmatprep.subr.mxu0 0.0
    %2313 = vmatpush2.msra.mxu0 0.0
    %2314 = vmatprep.subr.mxu0 0.0
    %2315 = vmatpush2.msra.mxu0 0.0
    %2316 = vmatprep.subr.mxu0 0.0
    %2317 = vmatpush2.msra.mxu0 0.0
    %2318 = vmatprep.subr.mxu0 0.0
    %2319 = vmatpush2.msra.mxu0 0.0
    %2320 = vmatprep.subr.mxu0 0.0
    %2321 = vmatpush2.msra.mxu0 0.0
    %2322 = vmatprep.subr.mxu0 0.0
    %2323 = vmatpush2.msra.mxu0 0.0
    %2324 = vmatprep.mubr.f32.mxu0 0.0
    %2325 = vmatmul.mubr.f32.gmra.mxu0 %v2252
    %v2326 = vpop.f32.mrf.mxu0
    %v2327 = vadd.f32 0.0, %v2326
    %v2328 = vpop.f32.mrf.mxu0
    %2329 = vdwg.mxu0
    %v2330 = vadd.f32 %v2256, %v2327
    %v2331 = vmul.f32 %v2330, 0.5
    %v2332 = vtanh.pop %v2331
    %v2333 = vmul.f32 %v2332, 0.5
    %v2334 = vadd.f32 %v2333, 0.5
    %2335 = vmatprep.subr.mxu0 0.0
    %2336 = vmatpush1.msra.mxu0 %v1066
    %2337 = vmatprep.subr.mxu0 0.0
    %2338 = vmatpush1.msra.mxu0 %v1065
    %2339 = vmatprep.subr.mxu0 0.0
    %2340 = vmatpush1.msra.mxu0 %v1064
    %2341 = vmatprep.subr.mxu0 0.0
    %2342 = vmatpush1.msra.mxu0 %v1063
    %2343 = vmatprep.subr.mxu0 0.0
    %2344 = vmatpush1.msra.mxu0 %v1062
    %2345 = vmatprep.subr.mxu0 0.0
    %2346 = vmatpush1.msra.mxu0 %v1061
    %2347 = vmatprep.subr.mxu0 0.0
    %2348 = vmatpush1.msra.mxu0 %v1060
    %2349 = vmatprep.subr.mxu0 0.0
    %2350 = vmatpush1.msra.mxu0 %v1059
    %2351 = vmatprep.subr.mxu0 0.0
    %2352 = vmatpush1.msra.mxu0 %v1058
    %2353 = vmatprep.subr.mxu0 0.0
    %2354 = vmatpush1.msra.mxu0 %v1057
    %2355 = vmatprep.subr.mxu0 0.0
    %2356 = vmatpush1.msra.mxu0 %v1056
    %2357 = vmatprep.subr.mxu0 0.0
    %2358 = vmatpush1.msra.mxu0 %v1055
    %2359 = vmatprep.subr.mxu0 0.0
    %2360 = vmatpush1.msra.mxu0 %v1054
    %2361 = vmatprep.subr.mxu0 0.0
    %2362 = vmatpush1.msra.mxu0 %v1053
    %2363 = vmatprep.subr.mxu0 0.0
    %2364 = vmatpush1.msra.mxu0 %v1052
    %2365 = vmatprep.subr.mxu0 0.0
    %2366 = vmatpush1.msra.mxu0 %v1051
    %2367 = vmatprep.subr.mxu0 0.0
    %2368 = vmatpush2.msra.mxu0 0.0
    %2369 = vmatprep.subr.mxu0 0.0
    %2370 = vmatpush2.msra.mxu0 0.0
    %2371 = vmatprep.subr.mxu0 0.0
    %2372 = vmatpush2.msra.mxu0 0.0
    %2373 = vmatprep.subr.mxu0 0.0
    %2374 = vmatpush2.msra.mxu0 0.0
    %2375 = vmatprep.subr.mxu0 0.0
    %2376 = vmatpush2.msra.mxu0 0.0
    %2377 = vmatprep.subr.mxu0 0.0
    %2378 = vmatpush2.msra.mxu0 0.0
    %2379 = vmatprep.subr.mxu0 0.0
    %2380 = vmatpush2.msra.mxu0 0.0
    %2381 = vmatprep.subr.mxu0 0.0
    %2382 = vmatpush2.msra.mxu0 0.0
    %2383 = vmatprep.subr.mxu0 0.0
    %2384 = vmatpush2.msra.mxu0 0.0
    %2385 = vmatprep.subr.mxu0 0.0
    %2386 = vmatpush2.msra.mxu0 0.0
    %2387 = vmatprep.subr.mxu0 0.0
    %2388 = vmatpush2.msra.mxu0 0.0
    %2389 = vmatprep.subr.mxu0 0.0
    %2390 = vmatpush2.msra.mxu0 0.0
    %2391 = vmatprep.subr.mxu0 0.0
    %2392 = vmatpush2.msra.mxu0 0.0
    %2393 = vmatprep.subr.mxu0 0.0
    %2394 = vmatpush2.msra.mxu0 0.0
    %2395 = vmatprep.subr.mxu0 0.0
    %2396 = vmatpush2.msra.mxu0 0.0
    %2397 = vmatprep.subr.mxu0 0.0
    %2398 = vmatpush2.msra.mxu0 0.0
    %2399 = vmatprep.mubr.f32.mxu0 0.0
    %2400 = vmatmul.mubr.f32.gmra.mxu0 %v2252
    %v2401 = vpop.f32.mrf.mxu0
    %v2402 = vadd.f32 0.0, %v2401
    %v2403 = vpop.f32.mrf.mxu0
    %2404 = vdwg.mxu0
    %v2405 = vadd.f32 %v2257, %v2402
    %v2406 = vmul.f32 %v2405, 0.5
    %v2407 = vtanh.pop %v2406
    %v2408 = vmul.f32 %v2407, 0.5
    %v2409 = vadd.f32 %v2408, 0.5
    %2410 = vmatprep.subr.mxu0 0.0
    %2411 = vmatpush1.msra.mxu0 %v1157
    %2412 = vmatprep.subr.mxu0 0.0
    %2413 = vmatpush1.msra.mxu0 %v1156
    %2414 = vmatprep.subr.mxu0 0.0
    %2415 = vmatpush1.msra.mxu0 %v1155
    %2416 = vmatprep.subr.mxu0 0.0
    %2417 = vmatpush1.msra.mxu0 %v1154
    %2418 = vmatprep.subr.mxu0 0.0
    %2419 = vmatpush1.msra.mxu0 %v1153
    %2420 = vmatprep.subr.mxu0 0.0
    %2421 = vmatpush1.msra.mxu0 %v1152
    %2422 = vmatprep.subr.mxu0 0.0
    %2423 = vmatpush1.msra.mxu0 %v1151
    %2424 = vmatprep.subr.mxu0 0.0
    %2425 = vmatpush1.msra.mxu0 %v1150
    %2426 = vmatprep.subr.mxu0 0.0
    %2427 = vmatpush1.msra.mxu0 %v1149
    %2428 = vmatprep.subr.mxu0 0.0
    %2429 = vmatpush1.msra.mxu0 %v1148
    %2430 = vmatprep.subr.mxu0 0.0
    %2431 = vmatpush1.msra.mxu0 %v1147
    %2432 = vmatprep.subr.mxu0 0.0
    %2433 = vmatpush1.msra.mxu0 %v1146
    %2434 = vmatprep.subr.mxu0 0.0
    %2435 = vmatpush1.msra.mxu0 %v1145
    %2436 = vmatprep.subr.mxu0 0.0
    %2437 = vmatpush1.msra.mxu0 %v1144
    %2438 = vmatprep.subr.mxu0 0.0
    %2439 = vmatpush1.msra.mxu0 %v1143
    %2440 = vmatprep.subr.mxu0 0.0
    %2441 = vmatpush1.msra.mxu0 %v1142
    %2442 = vmatprep.subr.mxu0 0.0
    %2443 = vmatpush2.msra.mxu0 0.0
    %2444 = vmatprep.subr.mxu0 0.0
    %2445 = vmatpush2.msra.mxu0 0.0
    %2446 = vmatprep.subr.mxu0 0.0
    %2447 = vmatpush2.msra.mxu0 0.0
    %2448 = vmatprep.subr.mxu0 0.0
    %2449 = vmatpush2.msra.mxu0 0.0
    %2450 = vmatprep.subr.mxu0 0.0
    %2451 = vmatpush2.msra.mxu0 0.0
    %2452 = vmatprep.subr.mxu0 0.0
    %2453 = vmatpush2.msra.mxu0 0.0
    %2454 = vmatprep.subr.mxu0 0.0
    %2455 = vmatpush2.msra.mxu0 0.0
    %2456 = vmatprep.subr.mxu0 0.0
    %2457 = vmatpush2.msra.mxu0 0.0
    %2458 = vmatprep.subr.mxu0 0.0
    %2459 = vmatpush2.msra.mxu0 0.0
    %2460 = vmatprep.subr.mxu0 0.0
    %2461 = vmatpush2.msra.mxu0 0.0
    %2462 = vmatprep.subr.mxu0 0.0
    %2463 = vmatpush2.msra.mxu0 0.0
    %2464 = vmatprep.subr.mxu0 0.0
    %2465 = vmatpush2.msra.mxu0 0.0
    %2466 = vmatprep.subr.mxu0 0.0
    %2467 = vmatpush2.msra.mxu0 0.0
    %2468 = vmatprep.subr.mxu0 0.0
    %2469 = vmatpush2.msra.mxu0 0.0
    %2470 = vmatprep.subr.mxu0 0.0
    %2471 = vmatpush2.msra.mxu0 0.0
    %2472 = vmatprep.subr.mxu0 0.0
    %2473 = vmatpush2.msra.mxu0 0.0
    %2474 = vmatprep.mubr.f32.mxu0 0.0
    %2475 = vmatmul.mubr.f32.gmra.mxu0 %v2252
    %v2476 = vpop.f32.mrf.mxu0
    %v2477 = vadd.f32 0.0, %v2476
    %v2478 = vpop.f32.mrf.mxu0
    %2479 = vdwg.mxu0
    %v2480 = vadd.f32 %v2258, %v2477
    %v2481 = vtanh.pop %v2480
    %2482 = vmatprep.subr.mxu0 0.0
    %2483 = vmatpush1.msra.mxu0 %v1245
    %2484 = vmatprep.subr.mxu0 0.0
    %2485 = vmatpush1.msra.mxu0 %v1244
    %2486 = vmatprep.subr.mxu0 0.0
    %2487 = vmatpush1.msra.mxu0 %v1243
    %2488 = vmatprep.subr.mxu0 0.0
    %2489 = vmatpush1.msra.mxu0 %v1242
    %2490 = vmatprep.subr.mxu0 0.0
    %2491 = vmatpush1.msra.mxu0 %v1241
    %2492 = vmatprep.subr.mxu0 0.0
    %2493 = vmatpush1.msra.mxu0 %v1240
    %2494 = vmatprep.subr.mxu0 0.0
    %2495 = vmatpush1.msra.mxu0 %v1239
    %2496 = vmatprep.subr.mxu0 0.0
    %2497 = vmatpush1.msra.mxu0 %v1238
    %2498 = vmatprep.subr.mxu0 0.0
    %2499 = vmatpush1.msra.mxu0 %v1237
    %2500 = vmatprep.subr.mxu0 0.0
    %2501 = vmatpush1.msra.mxu0 %v1236
    %2502 = vmatprep.subr.mxu0 0.0
    %2503 = vmatpush1.msra.mxu0 %v1235
    %2504 = vmatprep.subr.mxu0 0.0
    %2505 = vmatpush1.msra.mxu0 %v1234
    %2506 = vmatprep.subr.mxu0 0.0
    %2507 = vmatpush1.msra.mxu0 %v1233
    %2508 = vmatprep.subr.mxu0 0.0
    %2509 = vmatpush1.msra.mxu0 %v1232
    %2510 = vmatprep.subr.mxu0 0.0
    %2511 = vmatpush1.msra.mxu0 %v1231
    %2512 = vmatprep.subr.mxu0 0.0
    %2513 = vmatpush1.msra.mxu0 %v1230
    %2514 = vmatprep.subr.mxu0 0.0
    %2515 = vmatpush2.msra.mxu0 0.0
    %2516 = vmatprep.subr.mxu0 0.0
    %2517 = vmatpush2.msra.mxu0 0.0
    %2518 = vmatprep.subr.mxu0 0.0
    %2519 = vmatpush2.msra.mxu0 0.0
    %2520 = vmatprep.subr.mxu0 0.0
    %2521 = vmatpush2.msra.mxu0 0.0
    %2522 = vmatprep.subr.mxu0 0.0
    %2523 = vmatpush2.msra.mxu0 0.0
    %2524 = vmatprep.subr.mxu0 0.0
    %2525 = vmatpush2.msra.mxu0 0.0
    %2526 = vmatprep.subr.mxu0 0.0
    %2527 = vmatpush2.msra.mxu0 0.0
    %2528 = vmatprep.subr.mxu0 0.0
    %2529 = vmatpush2.msra.mxu0 0.0
    %2530 = vmatprep.subr.mxu0 0.0
    %2531 = vmatpush2.msra.mxu0 0.0
    %2532 = vmatprep.subr.mxu0 0.0
    %2533 = vmatpush2.msra.mxu0 0.0
    %2534 = vmatprep.subr.mxu0 0.0
    %2535 = vmatpush2.msra.mxu0 0.0
    %2536 = vmatprep.subr.mxu0 0.0
    %2537 = vmatpush2.msra.mxu0 0.0
    %2538 = vmatprep.subr.mxu0 0.0
    %2539 = vmatpush2.msra.mxu0 0.0
    %2540 = vmatprep.subr.mxu0 0.0
    %2541 = vmatpush2.msra.mxu0 0.0
    %2542 = vmatprep.subr.mxu0 0.0
    %2543 = vmatpush2.msra.mxu0 0.0
    %2544 = vmatprep.subr.mxu0 0.0
    %2545 = vmatpush2.msra.mxu0 0.0
    %2546 = vmatprep.mubr.f32.mxu0 0.0
    %2547 = vmatmul.mubr.f32.gmra.mxu0 %v2252
    %v2548 = vpop.f32.mrf.mxu0
    %v2549 = vadd.f32 0.0, %v2548
    %v2550 = vpop.f32.mrf.mxu0
    %2551 = vdwg.mxu0
    %v2552 = vadd.f32 %v2259, %v2549
    %v2553 = vmul.f32 %v2552, 0.5
    %v2554 = vtanh.pop %v2553
    %v2555 = vmul.f32 %v2554, 0.5
    %v2556 = vadd.f32 %v2555, 0.5
    %v2557 = vmul.f32 %v2409, %v2250
    %v2558 = vmul.f32 %v2334, %v2481
    %v2559 = vadd.f32 %v2557, %v2558
    %v2560 = vtanh.pop %v2559
    %v2561 = vmul.f32 %v2556, %v2560
    %s2562 = smul.u32 5, 4
    %s2563 = smul.addr %s2562, 8
    %s2564 = scalar_lea.vmem [#allocation2], %s2563
    %v2565 = vld [vmem:[%s2564] sm:$0xff]
    %v2566 = vld [vmem:[%s2564 + $0x8] sm:$0xff]
    %v2567 = vld [vmem:[%s2564 + $0x10] sm:$0xff]
    %v2568 = vld [vmem:[%s2564 + $0x18] sm:$0xff]
    %2569 = vmatprep.subr.mxu0 0.0
    %2570 = vmatpush1.msra.mxu0 %v975
    %2571 = vmatprep.subr.mxu0 0.0
    %2572 = vmatpush1.msra.mxu0 %v974
    %2573 = vmatprep.subr.mxu0 0.0
    %2574 = vmatpush1.msra.mxu0 %v973
    %2575 = vmatprep.subr.mxu0 0.0
    %2576 = vmatpush1.msra.mxu0 %v972
    %2577 = vmatprep.subr.mxu0 0.0
    %2578 = vmatpush1.msra.mxu0 %v971
    %2579 = vmatprep.subr.mxu0 0.0
    %2580 = vmatpush1.msra.mxu0 %v970
    %2581 = vmatprep.subr.mxu0 0.0
    %2582 = vmatpush1.msra.mxu0 %v969
    %2583 = vmatprep.subr.mxu0 0.0
    %2584 = vmatpush1.msra.mxu0 %v968
    %2585 = vmatprep.subr.mxu0 0.0
    %2586 = vmatpush1.msra.mxu0 %v967
    %2587 = vmatprep.subr.mxu0 0.0
    %2588 = vmatpush1.msra.mxu0 %v966
    %2589 = vmatprep.subr.mxu0 0.0
    %2590 = vmatpush1.msra.mxu0 %v965
    %2591 = vmatprep.subr.mxu0 0.0
    %2592 = vmatpush1.msra.mxu0 %v964
    %2593 = vmatprep.subr.mxu0 0.0
    %2594 = vmatpush1.msra.mxu0 %v963
    %2595 = vmatprep.subr.mxu0 0.0
    %2596 = vmatpush1.msra.mxu0 %v962
    %2597 = vmatprep.subr.mxu0 0.0
    %2598 = vmatpush1.msra.mxu0 %v961
    %2599 = vmatprep.subr.mxu0 0.0
    %2600 = vmatpush1.msra.mxu0 %v960
    %2601 = vmatprep.subr.mxu0 0.0
    %2602 = vmatpush2.msra.mxu0 0.0
    %2603 = vmatprep.subr.mxu0 0.0
    %2604 = vmatpush2.msra.mxu0 0.0
    %2605 = vmatprep.subr.mxu0 0.0
    %2606 = vmatpush2.msra.mxu0 0.0
    %2607 = vmatprep.subr.mxu0 0.0
    %2608 = vmatpush2.msra.mxu0 0.0
    %2609 = vmatprep.subr.mxu0 0.0
    %2610 = vmatpush2.msra.mxu0 0.0
    %2611 = vmatprep.subr.mxu0 0.0
    %2612 = vmatpush2.msra.mxu0 0.0
    %2613 = vmatprep.subr.mxu0 0.0
    %2614 = vmatpush2.msra.mxu0 0.0
    %2615 = vmatprep.subr.mxu0 0.0
    %2616 = vmatpush2.msra.mxu0 0.0
    %2617 = vmatprep.subr.mxu0 0.0
    %2618 = vmatpush2.msra.mxu0 0.0
    %2619 = vmatprep.subr.mxu0 0.0
    %2620 = vmatpush2.msra.mxu0 0.0
    %2621 = vmatprep.subr.mxu0 0.0
    %2622 = vmatpush2.msra.mxu0 0.0
    %2623 = vmatprep.subr.mxu0 0.0
    %2624 = vmatpush2.msra.mxu0 0.0
    %2625 = vmatprep.subr.mxu0 0.0
    %2626 = vmatpush2.msra.mxu0 0.0
    %2627 = vmatprep.subr.mxu0 0.0
    %2628 = vmatpush2.msra.mxu0 0.0
    %2629 = vmatprep.subr.mxu0 0.0
    %2630 = vmatpush2.msra.mxu0 0.0
    %2631 = vmatprep.subr.mxu0 0.0
    %2632 = vmatpush2.msra.mxu0 0.0
    %2633 = vmatprep.mubr.f32.mxu0 0.0
    %2634 = vmatmul.mubr.f32.gmra.mxu0 %v2561
    %v2635 = vpop.f32.mrf.mxu0
    %v2636 = vadd.f32 0.0, %v2635
    %v2637 = vpop.f32.mrf.mxu0
    %2638 = vdwg.mxu0
    %v2639 = vadd.f32 %v2565, %v2636
    %v2640 = vmul.f32 %v2639, 0.5
    %v2641 = vtanh.pop %v2640
    %v2642 = vmul.f32 %v2641, 0.5
    %v2643 = vadd.f32 %v2642, 0.5
    %2644 = vmatprep.subr.mxu0 0.0
    %2645 = vmatpush1.msra.mxu0 %v1066
    %2646 = vmatprep.subr.mxu0 0.0
    %2647 = vmatpush1.msra.mxu0 %v1065
    %2648 = vmatprep.subr.mxu0 0.0
    %2649 = vmatpush1.msra.mxu0 %v1064
    %2650 = vmatprep.subr.mxu0 0.0
    %2651 = vmatpush1.msra.mxu0 %v1063
    %2652 = vmatprep.subr.mxu0 0.0
    %2653 = vmatpush1.msra.mxu0 %v1062
    %2654 = vmatprep.subr.mxu0 0.0
    %2655 = vmatpush1.msra.mxu0 %v1061
    %2656 = vmatprep.subr.mxu0 0.0
    %2657 = vmatpush1.msra.mxu0 %v1060
    %2658 = vmatprep.subr.mxu0 0.0
    %2659 = vmatpush1.msra.mxu0 %v1059
    %2660 = vmatprep.subr.mxu0 0.0
    %2661 = vmatpush1.msra.mxu0 %v1058
    %2662 = vmatprep.subr.mxu0 0.0
    %2663 = vmatpush1.msra.mxu0 %v1057
    %2664 = vmatprep.subr.mxu0 0.0
    %2665 = vmatpush1.msra.mxu0 %v1056
    %2666 = vmatprep.subr.mxu0 0.0
    %2667 = vmatpush1.msra.mxu0 %v1055
    %2668 = vmatprep.subr.mxu0 0.0
    %2669 = vmatpush1.msra.mxu0 %v1054
    %2670 = vmatprep.subr.mxu0 0.0
    %2671 = vmatpush1.msra.mxu0 %v1053
    %2672 = vmatprep.subr.mxu0 0.0
    %2673 = vmatpush1.msra.mxu0 %v1052
    %2674 = vmatprep.subr.mxu0 0.0
    %2675 = vmatpush1.msra.mxu0 %v1051
    %2676 = vmatprep.subr.mxu0 0.0
    %2677 = vmatpush2.msra.mxu0 0.0
    %2678 = vmatprep.subr.mxu0 0.0
    %2679 = vmatpush2.msra.mxu0 0.0
    %2680 = vmatprep.subr.mxu0 0.0
    %2681 = vmatpush2.msra.mxu0 0.0
    %2682 = vmatprep.subr.mxu0 0.0
    %2683 = vmatpush2.msra.mxu0 0.0
    %2684 = vmatprep.subr.mxu0 0.0
    %2685 = vmatpush2.msra.mxu0 0.0
    %2686 = vmatprep.subr.mxu0 0.0
    %2687 = vmatpush2.msra.mxu0 0.0
    %2688 = vmatprep.subr.mxu0 0.0
    %2689 = vmatpush2.msra.mxu0 0.0
    %2690 = vmatprep.subr.mxu0 0.0
    %2691 = vmatpush2.msra.mxu0 0.0
    %2692 = vmatprep.subr.mxu0 0.0
    %2693 = vmatpush2.msra.mxu0 0.0
    %2694 = vmatprep.subr.mxu0 0.0
    %2695 = vmatpush2.msra.mxu0 0.0
    %2696 = vmatprep.subr.mxu0 0.0
    %2697 = vmatpush2.msra.mxu0 0.0
    %2698 = vmatprep.subr.mxu0 0.0
    %2699 = vmatpush2.msra.mxu0 0.0
    %2700 = vmatprep.subr.mxu0 0.0
    %2701 = vmatpush2.msra.mxu0 0.0
    %2702 = vmatprep.subr.mxu0 0.0
    %2703 = vmatpush2.msra.mxu0 0.0
    %2704 = vmatprep.subr.mxu0 0.0
    %2705 = vmatpush2.msra.mxu0 0.0
    %2706 = vmatprep.subr.mxu0 0.0
    %2707 = vmatpush2.msra.mxu0 0.0
    %2708 = vmatprep.mubr.f32.mxu0 0.0
    %2709 = vmatmul.mubr.f32.gmra.mxu0 %v2561
    %v2710 = vpop.f32.mrf.mxu0
    %v2711 = vadd.f32 0.0, %v2710
    %v2712 = vpop.f32.mrf.mxu0
    %2713 = vdwg.mxu0
    %v2714 = vadd.f32 %v2566, %v2711
    %v2715 = vmul.f32 %v2714, 0.5
    %v2716 = vtanh.pop %v2715
    %v2717 = vmul.f32 %v2716, 0.5
    %v2718 = vadd.f32 %v2717, 0.5
    %2719 = vmatprep.subr.mxu0 0.0
    %2720 = vmatpush1.msra.mxu0 %v1157
    %2721 = vmatprep.subr.mxu0 0.0
    %2722 = vmatpush1.msra.mxu0 %v1156
    %2723 = vmatprep.subr.mxu0 0.0
    %2724 = vmatpush1.msra.mxu0 %v1155
    %2725 = vmatprep.subr.mxu0 0.0
    %2726 = vmatpush1.msra.mxu0 %v1154
    %2727 = vmatprep.subr.mxu0 0.0
    %2728 = vmatpush1.msra.mxu0 %v1153
    %2729 = vmatprep.subr.mxu0 0.0
    %2730 = vmatpush1.msra.mxu0 %v1152
    %2731 = vmatprep.subr.mxu0 0.0
    %2732 = vmatpush1.msra.mxu0 %v1151
    %2733 = vmatprep.subr.mxu0 0.0
    %2734 = vmatpush1.msra.mxu0 %v1150
    %2735 = vmatprep.subr.mxu0 0.0
    %2736 = vmatpush1.msra.mxu0 %v1149
    %2737 = vmatprep.subr.mxu0 0.0
    %2738 = vmatpush1.msra.mxu0 %v1148
    %2739 = vmatprep.subr.mxu0 0.0
    %2740 = vmatpush1.msra.mxu0 %v1147
    %2741 = vmatprep.subr.mxu0 0.0
    %2742 = vmatpush1.msra.mxu0 %v1146
    %2743 = vmatprep.subr.mxu0 0.0
    %2744 = vmatpush1.msra.mxu0 %v1145
    %2745 = vmatprep.subr.mxu0 0.0
    %2746 = vmatpush1.msra.mxu0 %v1144
    %2747 = vmatprep.subr.mxu0 0.0
    %2748 = vmatpush1.msra.mxu0 %v1143
    %2749 = vmatprep.subr.mxu0 0.0
    %2750 = vmatpush1.msra.mxu0 %v1142
    %2751 = vmatprep.subr.mxu0 0.0
    %2752 = vmatpush2.msra.mxu0 0.0
    %2753 = vmatprep.subr.mxu0 0.0
    %2754 = vmatpush2.msra.mxu0 0.0
    %2755 = vmatprep.subr.mxu0 0.0
    %2756 = vmatpush2.msra.mxu0 0.0
    %2757 = vmatprep.subr.mxu0 0.0
    %2758 = vmatpush2.msra.mxu0 0.0
    %2759 = vmatprep.subr.mxu0 0.0
    %2760 = vmatpush2.msra.mxu0 0.0
    %2761 = vmatprep.subr.mxu0 0.0
    %2762 = vmatpush2.msra.mxu0 0.0
    %2763 = vmatprep.subr.mxu0 0.0
    %2764 = vmatpush2.msra.mxu0 0.0
    %2765 = vmatprep.subr.mxu0 0.0
    %2766 = vmatpush2.msra.mxu0 0.0
    %2767 = vmatprep.subr.mxu0 0.0
    %2768 = vmatpush2.msra.mxu0 0.0
    %2769 = vmatprep.subr.mxu0 0.0
    %2770 = vmatpush2.msra.mxu0 0.0
    %2771 = vmatprep.subr.mxu0 0.0
    %2772 = vmatpush2.msra.mxu0 0.0
    %2773 = vmatprep.subr.mxu0 0.0
    %2774 = vmatpush2.msra.mxu0 0.0
    %2775 = vmatprep.subr.mxu0 0.0
    %2776 = vmatpush2.msra.mxu0 0.0
    %2777 = vmatprep.subr.mxu0 0.0
    %2778 = vmatpush2.msra.mxu0 0.0
    %2779 = vmatprep.subr.mxu0 0.0
    %2780 = vmatpush2.msra.mxu0 0.0
    %2781 = vmatprep.subr.mxu0 0.0
    %2782 = vmatpush2.msra.mxu0 0.0
    %2783 = vmatprep.mubr.f32.mxu0 0.0
    %2784 = vmatmul.mubr.f32.gmra.mxu0 %v2561
    %v2785 = vpop.f32.mrf.mxu0
    %v2786 = vadd.f32 0.0, %v2785
    %v2787 = vpop.f32.mrf.mxu0
    %2788 = vdwg.mxu0
    %v2789 = vadd.f32 %v2567, %v2786
    %v2790 = vtanh.pop %v2789
    %2791 = vmatprep.subr.mxu0 0.0
    %2792 = vmatpush1.msra.mxu0 %v1245
    %2793 = vmatprep.subr.mxu0 0.0
    %2794 = vmatpush1.msra.mxu0 %v1244
    %2795 = vmatprep.subr.mxu0 0.0
    %2796 = vmatpush1.msra.mxu0 %v1243
    %2797 = vmatprep.subr.mxu0 0.0
    %2798 = vmatpush1.msra.mxu0 %v1242
    %2799 = vmatprep.subr.mxu0 0.0
    %2800 = vmatpush1.msra.mxu0 %v1241
    %2801 = vmatprep.subr.mxu0 0.0
    %2802 = vmatpush1.msra.mxu0 %v1240
    %2803 = vmatprep.subr.mxu0 0.0
    %2804 = vmatpush1.msra.mxu0 %v1239
    %2805 = vmatprep.subr.mxu0 0.0
    %2806 = vmatpush1.msra.mxu0 %v1238
    %2807 = vmatprep.subr.mxu0 0.0
    %2808 = vmatpush1.msra.mxu0 %v1237
    %2809 = vmatprep.subr.mxu0 0.0
    %2810 = vmatpush1.msra.mxu0 %v1236
    %2811 = vmatprep.subr.mxu0 0.0
    %2812 = vmatpush1.msra.mxu0 %v1235
    %2813 = vmatprep.subr.mxu0 0.0
    %2814 = vmatpush1.msra.mxu0 %v1234
    %2815 = vmatprep.subr.mxu0 0.0
    %2816 = vmatpush1.msra.mxu0 %v1233
    %2817 = vmatprep.subr.mxu0 0.0
    %2818 = vmatpush1.msra.mxu0 %v1232
    %2819 = vmatprep.subr.mxu0 0.0
    %2820 = vmatpush1.msra.mxu0 %v1231
    %2821 = vmatprep.subr.mxu0 0.0
    %2822 = vmatpush1.msra.mxu0 %v1230
    %2823 = vmatprep.subr.mxu0 0.0
    %2824 = vmatpush2.msra.mxu0 0.0
    %2825 = vmatprep.subr.mxu0 0.0
    %2826 = vmatpush2.msra.mxu0 0.0
    %2827 = vmatprep.subr.mxu0 0.0
    %2828 = vmatpush2.msra.mxu0 0.0
    %2829 = vmatprep.subr.mxu0 0.0
    %2830 = vmatpush2.msra.mxu0 0.0
    %2831 = vmatprep.subr.mxu0 0.0
    %2832 = vmatpush2.msra.mxu0 0.0
    %2833 = vmatprep.subr.mxu0 0.0
    %2834 = vmatpush2.msra.mxu0 0.0
    %2835 = vmatprep.subr.mxu0 0.0
    %2836 = vmatpush2.msra.mxu0 0.0
    %2837 = vmatprep.subr.mxu0 0.0
    %2838 = vmatpush2.msra.mxu0 0.0
    %2839 = vmatprep.subr.mxu0 0.0
    %2840 = vmatpush2.msra.mxu0 0.0
    %2841 = vmatprep.subr.mxu0 0.0
    %2842 = vmatpush2.msra.mxu0 0.0
    %2843 = vmatprep.subr.mxu0 0.0
    %2844 = vmatpush2.msra.mxu0 0.0
    %2845 = vmatprep.subr.mxu0 0.0
    %2846 = vmatpush2.msra.mxu0 0.0
    %2847 = vmatprep.subr.mxu0 0.0
    %2848 = vmatpush2.msra.mxu0 0.0
    %2849 = vmatprep.subr.mxu0 0.0
    %2850 = vmatpush2.msra.mxu0 0.0
    %2851 = vmatprep.subr.mxu0 0.0
    %2852 = vmatpush2.msra.mxu0 0.0
    %2853 = vmatprep.subr.mxu0 0.0
    %2854 = vmatpush2.msra.mxu0 0.0
    %2855 = vmatprep.mubr.f32.mxu0 0.0
    %2856 = vmatmul.mubr.f32.gmra.mxu0 %v2561
    %v2857 = vpop.f32.mrf.mxu0
    %v2858 = vadd.f32 0.0, %v2857
    %v2859 = vpop.f32.mrf.mxu0
    %2860 = vdwg.mxu0
    %v2861 = vadd.f32 %v2568, %v2858
    %v2862 = vmul.f32 %v2861, 0.5
    %v2863 = vtanh.pop %v2862
    %v2864 = vmul.f32 %v2863, 0.5
    %v2865 = vadd.f32 %v2864, 0.5
    %v2866 = vmul.f32 %v2718, %v2559
    %v2867 = vmul.f32 %v2643, %v2790
    %v2868 = vadd.f32 %v2866, %v2867
    %v2869 = vtanh.pop %v2868
    %v2870 = vmul.f32 %v2865, %v2869
    %s2871 = smul.u32 6, 4
    %s2872 = smul.addr %s2871, 8
    %s2873 = scalar_lea.vmem [#allocation2], %s2872
    %v2874 = vld [vmem:[%s2873] sm:$0xff]
    %v2875 = vld [vmem:[%s2873 + $0x8] sm:$0xff]
    %v2876 = vld [vmem:[%s2873 + $0x10] sm:$0xff]
    %v2877 = vld [vmem:[%s2873 + $0x18] sm:$0xff]
    %2878 = vmatprep.subr.mxu0 0.0
    %2879 = vmatpush1.msra.mxu0 %v975
    %2880 = vmatprep.subr.mxu0 0.0
    %2881 = vmatpush1.msra.mxu0 %v974
    %2882 = vmatprep.subr.mxu0 0.0
    %2883 = vmatpush1.msra.mxu0 %v973
    %2884 = vmatprep.subr.mxu0 0.0
    %2885 = vmatpush1.msra.mxu0 %v972
    %2886 = vmatprep.subr.mxu0 0.0
    %2887 = vmatpush1.msra.mxu0 %v971
    %2888 = vmatprep.subr.mxu0 0.0
    %2889 = vmatpush1.msra.mxu0 %v970
    %2890 = vmatprep.subr.mxu0 0.0
    %2891 = vmatpush1.msra.mxu0 %v969
    %2892 = vmatprep.subr.mxu0 0.0
    %2893 = vmatpush1.msra.mxu0 %v968
    %2894 = vmatprep.subr.mxu0 0.0
    %2895 = vmatpush1.msra.mxu0 %v967
    %2896 = vmatprep.subr.mxu0 0.0
    %2897 = vmatpush1.msra.mxu0 %v966
    %2898 = vmatprep.subr.mxu0 0.0
    %2899 = vmatpush1.msra.mxu0 %v965
    %2900 = vmatprep.subr.mxu0 0.0
    %2901 = vmatpush1.msra.mxu0 %v964
    %2902 = vmatprep.subr.mxu0 0.0
    %2903 = vmatpush1.msra.mxu0 %v963
    %2904 = vmatprep.subr.mxu0 0.0
    %2905 = vmatpush1.msra.mxu0 %v962
    %2906 = vmatprep.subr.mxu0 0.0
    %2907 = vmatpush1.msra.mxu0 %v961
    %2908 = vmatprep.subr.mxu0 0.0
    %2909 = vmatpush1.msra.mxu0 %v960
    %2910 = vmatprep.subr.mxu0 0.0
    %2911 = vmatpush2.msra.mxu0 0.0
    %2912 = vmatprep.subr.mxu0 0.0
    %2913 = vmatpush2.msra.mxu0 0.0
    %2914 = vmatprep.subr.mxu0 0.0
    %2915 = vmatpush2.msra.mxu0 0.0
    %2916 = vmatprep.subr.mxu0 0.0
    %2917 = vmatpush2.msra.mxu0 0.0
    %2918 = vmatprep.subr.mxu0 0.0
    %2919 = vmatpush2.msra.mxu0 0.0
    %2920 = vmatprep.subr.mxu0 0.0
    %2921 = vmatpush2.msra.mxu0 0.0
    %2922 = vmatprep.subr.mxu0 0.0
    %2923 = vmatpush2.msra.mxu0 0.0
    %2924 = vmatprep.subr.mxu0 0.0
    %2925 = vmatpush2.msra.mxu0 0.0
    %2926 = vmatprep.subr.mxu0 0.0
    %2927 = vmatpush2.msra.mxu0 0.0
    %2928 = vmatprep.subr.mxu0 0.0
    %2929 = vmatpush2.msra.mxu0 0.0
    %2930 = vmatprep.subr.mxu0 0.0
    %2931 = vmatpush2.msra.mxu0 0.0
    %2932 = vmatprep.subr.mxu0 0.0
    %2933 = vmatpush2.msra.mxu0 0.0
    %2934 = vmatprep.subr.mxu0 0.0
    %2935 = vmatpush2.msra.mxu0 0.0
    %2936 = vmatprep.subr.mxu0 0.0
    %2937 = vmatpush2.msra.mxu0 0.0
    %2938 = vmatprep.subr.mxu0 0.0
    %2939 = vmatpush2.msra.mxu0 0.0
    %2940 = vmatprep.subr.mxu0 0.0
    %2941 = vmatpush2.msra.mxu0 0.0
    %2942 = vmatprep.mubr.f32.mxu0 0.0
    %2943 = vmatmul.mubr.f32.gmra.mxu0 %v2870
    %v2944 = vpop.f32.mrf.mxu0
    %v2945 = vadd.f32 0.0, %v2944
    %v2946 = vpop.f32.mrf.mxu0
    %2947 = vdwg.mxu0
    %v2948 = vadd.f32 %v2874, %v2945
    %v2949 = vmul.f32 %v2948, 0.5
    %v2950 = vtanh.pop %v2949
    %v2951 = vmul.f32 %v2950, 0.5
    %v2952 = vadd.f32 %v2951, 0.5
    %2953 = vmatprep.subr.mxu0 0.0
    %2954 = vmatpush1.msra.mxu0 %v1066
    %2955 = vmatprep.subr.mxu0 0.0
    %2956 = vmatpush1.msra.mxu0 %v1065
    %2957 = vmatprep.subr.mxu0 0.0
    %2958 = vmatpush1.msra.mxu0 %v1064
    %2959 = vmatprep.subr.mxu0 0.0
    %2960 = vmatpush1.msra.mxu0 %v1063
    %2961 = vmatprep.subr.mxu0 0.0
    %2962 = vmatpush1.msra.mxu0 %v1062
    %2963 = vmatprep.subr.mxu0 0.0
    %2964 = vmatpush1.msra.mxu0 %v1061
    %2965 = vmatprep.subr.mxu0 0.0
    %2966 = vmatpush1.msra.mxu0 %v1060
    %2967 = vmatprep.subr.mxu0 0.0
    %2968 = vmatpush1.msra.mxu0 %v1059
    %2969 = vmatprep.subr.mxu0 0.0
    %2970 = vmatpush1.msra.mxu0 %v1058
    %2971 = vmatprep.subr.mxu0 0.0
    %2972 = vmatpush1.msra.mxu0 %v1057
    %2973 = vmatprep.subr.mxu0 0.0
    %2974 = vmatpush1.msra.mxu0 %v1056
    %2975 = vmatprep.subr.mxu0 0.0
    %2976 = vmatpush1.msra.mxu0 %v1055
    %2977 = vmatprep.subr.mxu0 0.0
    %2978 = vmatpush1.msra.mxu0 %v1054
    %2979 = vmatprep.subr.mxu0 0.0
    %2980 = vmatpush1.msra.mxu0 %v1053
    %2981 = vmatprep.subr.mxu0 0.0
    %2982 = vmatpush1.msra.mxu0 %v1052
    %2983 = vmatprep.subr.mxu0 0.0
    %2984 = vmatpush1.msra.mxu0 %v1051
    %2985 = vmatprep.subr.mxu0 0.0
    %2986 = vmatpush2.msra.mxu0 0.0
    %2987 = vmatprep.subr.mxu0 0.0
    %2988 = vmatpush2.msra.mxu0 0.0
    %2989 = vmatprep.subr.mxu0 0.0
    %2990 = vmatpush2.msra.mxu0 0.0
    %2991 = vmatprep.subr.mxu0 0.0
    %2992 = vmatpush2.msra.mxu0 0.0
    %2993 = vmatprep.subr.mxu0 0.0
    %2994 = vmatpush2.msra.mxu0 0.0
    %2995 = vmatprep.subr.mxu0 0.0
    %2996 = vmatpush2.msra.mxu0 0.0
    %2997 = vmatprep.subr.mxu0 0.0
    %2998 = vmatpush2.msra.mxu0 0.0
    %2999 = vmatprep.subr.mxu0 0.0
    %3000 = vmatpush2.msra.mxu0 0.0
    %3001 = vmatprep.subr.mxu0 0.0
    %3002 = vmatpush2.msra.mxu0 0.0
    %3003 = vmatprep.subr.mxu0 0.0
    %3004 = vmatpush2.msra.mxu0 0.0
    %3005 = vmatprep.subr.mxu0 0.0
    %3006 = vmatpush2.msra.mxu0 0.0
    %3007 = vmatprep.subr.mxu0 0.0
    %3008 = vmatpush2.msra.mxu0 0.0
    %3009 = vmatprep.subr.mxu0 0.0
    %3010 = vmatpush2.msra.mxu0 0.0
    %3011 = vmatprep.subr.mxu0 0.0
    %3012 = vmatpush2.msra.mxu0 0.0
    %3013 = vmatprep.subr.mxu0 0.0
    %3014 = vmatpush2.msra.mxu0 0.0
    %3015 = vmatprep.subr.mxu0 0.0
    %3016 = vmatpush2.msra.mxu0 0.0
    %3017 = vmatprep.mubr.f32.mxu0 0.0
    %3018 = vmatmul.mubr.f32.gmra.mxu0 %v2870
    %v3019 = vpop.f32.mrf.mxu0
    %v3020 = vadd.f32 0.0, %v3019
    %v3021 = vpop.f32.mrf.mxu0
    %3022 = vdwg.mxu0
    %v3023 = vadd.f32 %v2875, %v3020
    %v3024 = vmul.f32 %v3023, 0.5
    %v3025 = vtanh.pop %v3024
    %v3026 = vmul.f32 %v3025, 0.5
    %v3027 = vadd.f32 %v3026, 0.5
    %3028 = vmatprep.subr.mxu0 0.0
    %3029 = vmatpush1.msra.mxu0 %v1157
    %3030 = vmatprep.subr.mxu0 0.0
    %3031 = vmatpush1.msra.mxu0 %v1156
    %3032 = vmatprep.subr.mxu0 0.0
    %3033 = vmatpush1.msra.mxu0 %v1155
    %3034 = vmatprep.subr.mxu0 0.0
    %3035 = vmatpush1.msra.mxu0 %v1154
    %3036 = vmatprep.subr.mxu0 0.0
    %3037 = vmatpush1.msra.mxu0 %v1153
    %3038 = vmatprep.subr.mxu0 0.0
    %3039 = vmatpush1.msra.mxu0 %v1152
    %3040 = vmatprep.subr.mxu0 0.0
    %3041 = vmatpush1.msra.mxu0 %v1151
    %3042 = vmatprep.subr.mxu0 0.0
    %3043 = vmatpush1.msra.mxu0 %v1150
    %3044 = vmatprep.subr.mxu0 0.0
    %3045 = vmatpush1.msra.mxu0 %v1149
    %3046 = vmatprep.subr.mxu0 0.0
    %3047 = vmatpush1.msra.mxu0 %v1148
    %3048 = vmatprep.subr.mxu0 0.0
    %3049 = vmatpush1.msra.mxu0 %v1147
    %3050 = vmatprep.subr.mxu0 0.0
    %3051 = vmatpush1.msra.mxu0 %v1146
    %3052 = vmatprep.subr.mxu0 0.0
    %3053 = vmatpush1.msra.mxu0 %v1145
    %3054 = vmatprep.subr.mxu0 0.0
    %3055 = vmatpush1.msra.mxu0 %v1144
    %3056 = vmatprep.subr.mxu0 0.0
    %3057 = vmatpush1.msra.mxu0 %v1143
    %3058 = vmatprep.subr.mxu0 0.0
    %3059 = vmatpush1.msra.mxu0 %v1142
    %3060 = vmatprep.subr.mxu0 0.0
    %3061 = vmatpush2.msra.mxu0 0.0
    %3062 = vmatprep.subr.mxu0 0.0
    %3063 = vmatpush2.msra.mxu0 0.0
    %3064 = vmatprep.subr.mxu0 0.0
    %3065 = vmatpush2.msra.mxu0 0.0
    %3066 = vmatprep.subr.mxu0 0.0
    %3067 = vmatpush2.msra.mxu0 0.0
    %3068 = vmatprep.subr.mxu0 0.0
    %3069 = vmatpush2.msra.mxu0 0.0
    %3070 = vmatprep.subr.mxu0 0.0
    %3071 = vmatpush2.msra.mxu0 0.0
    %3072 = vmatprep.subr.mxu0 0.0
    %3073 = vmatpush2.msra.mxu0 0.0
    %3074 = vmatprep.subr.mxu0 0.0
    %3075 = vmatpush2.msra.mxu0 0.0
    %3076 = vmatprep.subr.mxu0 0.0
    %3077 = vmatpush2.msra.mxu0 0.0
    %3078 = vmatprep.subr.mxu0 0.0
    %3079 = vmatpush2.msra.mxu0 0.0
    %3080 = vmatprep.subr.mxu0 0.0
    %3081 = vmatpush2.msra.mxu0 0.0
    %3082 = vmatprep.subr.mxu0 0.0
    %3083 = vmatpush2.msra.mxu0 0.0
    %3084 = vmatprep.subr.mxu0 0.0
    %3085 = vmatpush2.msra.mxu0 0.0
    %3086 = vmatprep.subr.mxu0 0.0
    %3087 = vmatpush2.msra.mxu0 0.0
    %3088 = vmatprep.subr.mxu0 0.0
    %3089 = vmatpush2.msra.mxu0 0.0
    %3090 = vmatprep.subr.mxu0 0.0
    %3091 = vmatpush2.msra.mxu0 0.0
    %3092 = vmatprep.mubr.f32.mxu0 0.0
    %3093 = vmatmul.mubr.f32.gmra.mxu0 %v2870
    %v3094 = vpop.f32.mrf.mxu0
    %v3095 = vadd.f32 0.0, %v3094
    %v3096 = vpop.f32.mrf.mxu0
    %3097 = vdwg.mxu0
    %v3098 = vadd.f32 %v2876, %v3095
    %v3099 = vtanh.pop %v3098
    %3100 = vmatprep.subr.mxu0 0.0
    %3101 = vmatpush1.msra.mxu0 %v1245
    %3102 = vmatprep.subr.mxu0 0.0
    %3103 = vmatpush1.msra.mxu0 %v1244
    %3104 = vmatprep.subr.mxu0 0.0
    %3105 = vmatpush1.msra.mxu0 %v1243
    %3106 = vmatprep.subr.mxu0 0.0
    %3107 = vmatpush1.msra.mxu0 %v1242
    %3108 = vmatprep.subr.mxu0 0.0
    %3109 = vmatpush1.msra.mxu0 %v1241
    %3110 = vmatprep.subr.mxu0 0.0
    %3111 = vmatpush1.msra.mxu0 %v1240
    %3112 = vmatprep.subr.mxu0 0.0
    %3113 = vmatpush1.msra.mxu0 %v1239
    %3114 = vmatprep.subr.mxu0 0.0
    %3115 = vmatpush1.msra.mxu0 %v1238
    %3116 = vmatprep.subr.mxu0 0.0
    %3117 = vmatpush1.msra.mxu0 %v1237
    %3118 = vmatprep.subr.mxu0 0.0
    %3119 = vmatpush1.msra.mxu0 %v1236
    %3120 = vmatprep.subr.mxu0 0.0
    %3121 = vmatpush1.msra.mxu0 %v1235
    %3122 = vmatprep.subr.mxu0 0.0
    %3123 = vmatpush1.msra.mxu0 %v1234
    %3124 = vmatprep.subr.mxu0 0.0
    %3125 = vmatpush1.msra.mxu0 %v1233
    %3126 = vmatprep.subr.mxu0 0.0
    %3127 = vmatpush1.msra.mxu0 %v1232
    %3128 = vmatprep.subr.mxu0 0.0
    %3129 = vmatpush1.msra.mxu0 %v1231
    %3130 = vmatprep.subr.mxu0 0.0
    %3131 = vmatpush1.msra.mxu0 %v1230
    %3132 = vmatprep.subr.mxu0 0.0
    %3133 = vmatpush2.msra.mxu0 0.0
    %3134 = vmatprep.subr.mxu0 0.0
    %3135 = vmatpush2.msra.mxu0 0.0
    %3136 = vmatprep.subr.mxu0 0.0
    %3137 = vmatpush2.msra.mxu0 0.0
    %3138 = vmatprep.subr.mxu0 0.0
    %3139 = vmatpush2.msra.mxu0 0.0
    %3140 = vmatprep.subr.mxu0 0.0
    %3141 = vmatpush2.msra.mxu0 0.0
    %3142 = vmatprep.subr.mxu0 0.0
    %3143 = vmatpush2.msra.mxu0 0.0
    %3144 = vmatprep.subr.mxu0 0.0
    %3145 = vmatpush2.msra.mxu0 0.0
    %3146 = vmatprep.subr.mxu0 0.0
    %3147 = vmatpush2.msra.mxu0 0.0
    %3148 = vmatprep.subr.mxu0 0.0
    %3149 = vmatpush2.msra.mxu0 0.0
    %3150 = vmatprep.subr.mxu0 0.0
    %3151 = vmatpush2.msra.mxu0 0.0
    %3152 = vmatprep.subr.mxu0 0.0
    %3153 = vmatpush2.msra.mxu0 0.0
    %3154 = vmatprep.subr.mxu0 0.0
    %3155 = vmatpush2.msra.mxu0 0.0
    %3156 = vmatprep.subr.mxu0 0.0
    %3157 = vmatpush2.msra.mxu0 0.0
    %3158 = vmatprep.subr.mxu0 0.0
    %3159 = vmatpush2.msra.mxu0 0.0
    %3160 = vmatprep.subr.mxu0 0.0
    %3161 = vmatpush2.msra.mxu0 0.0
    %3162 = vmatprep.subr.mxu0 0.0
    %3163 = vmatpush2.msra.mxu0 0.0
    %3164 = vmatprep.mubr.f32.mxu0 0.0
    %3165 = vmatmul.mubr.f32.gmra.mxu0 %v2870
    %v3166 = vpop.f32.mrf.mxu0
    %v3167 = vadd.f32 0.0, %v3166
    %v3168 = vpop.f32.mrf.mxu0
    %3169 = vdwg.mxu0
    %v3170 = vadd.f32 %v2877, %v3167
    %v3171 = vmul.f32 %v3170, 0.5
    %v3172 = vtanh.pop %v3171
    %v3173 = vmul.f32 %v3172, 0.5
    %v3174 = vadd.f32 %v3173, 0.5
    %v3175 = vmul.f32 %v3027, %v2868
    %v3176 = vmul.f32 %v2952, %v3099
    %v3177 = vadd.f32 %v3175, %v3176
    %v3178 = vtanh.pop %v3177
    %v3179 = vmul.f32 %v3174, %v3178
    %s3180 = smul.u32 7, 4
    %s3181 = smul.addr %s3180, 8
    %s3182 = scalar_lea.vmem [#allocation2], %s3181
    %v3183 = vld [vmem:[%s3182] sm:$0xff]
    %v3184 = vld [vmem:[%s3182 + $0x8] sm:$0xff]
    %v3185 = vld [vmem:[%s3182 + $0x10] sm:$0xff]
    %v3186 = vld [vmem:[%s3182 + $0x18] sm:$0xff]
    %3187 = vmatprep.subr.mxu0 0.0
    %3188 = vmatpush1.msra.mxu0 %v975
    %3189 = vmatprep.subr.mxu0 0.0
    %3190 = vmatpush1.msra.mxu0 %v974
    %3191 = vmatprep.subr.mxu0 0.0
    %3192 = vmatpush1.msra.mxu0 %v973
    %3193 = vmatprep.subr.mxu0 0.0
    %3194 = vmatpush1.msra.mxu0 %v972
    %3195 = vmatprep.subr.mxu0 0.0
    %3196 = vmatpush1.msra.mxu0 %v971
    %3197 = vmatprep.subr.mxu0 0.0
    %3198 = vmatpush1.msra.mxu0 %v970
    %3199 = vmatprep.subr.mxu0 0.0
    %3200 = vmatpush1.msra.mxu0 %v969
    %3201 = vmatprep.subr.mxu0 0.0
    %3202 = vmatpush1.msra.mxu0 %v968
    %3203 = vmatprep.subr.mxu0 0.0
    %3204 = vmatpush1.msra.mxu0 %v967
    %3205 = vmatprep.subr.mxu0 0.0
    %3206 = vmatpush1.msra.mxu0 %v966
    %3207 = vmatprep.subr.mxu0 0.0
    %3208 = vmatpush1.msra.mxu0 %v965
    %3209 = vmatprep.subr.mxu0 0.0
    %3210 = vmatpush1.msra.mxu0 %v964
    %3211 = vmatprep.subr.mxu0 0.0
    %3212 = vmatpush1.msra.mxu0 %v963
    %3213 = vmatprep.subr.mxu0 0.0
    %3214 = vmatpush1.msra.mxu0 %v962
    %3215 = vmatprep.subr.mxu0 0.0
    %3216 = vmatpush1.msra.mxu0 %v961
    %3217 = vmatprep.subr.mxu0 0.0
    %3218 = vmatpush1.msra.mxu0 %v960
    %3219 = vmatprep.subr.mxu0 0.0
    %3220 = vmatpush2.msra.mxu0 0.0
    %3221 = vmatprep.subr.mxu0 0.0
    %3222 = vmatpush2.msra.mxu0 0.0
    %3223 = vmatprep.subr.mxu0 0.0
    %3224 = vmatpush2.msra.mxu0 0.0
    %3225 = vmatprep.subr.mxu0 0.0
    %3226 = vmatpush2.msra.mxu0 0.0
    %3227 = vmatprep.subr.mxu0 0.0
    %3228 = vmatpush2.msra.mxu0 0.0
    %3229 = vmatprep.subr.mxu0 0.0
    %3230 = vmatpush2.msra.mxu0 0.0
    %3231 = vmatprep.subr.mxu0 0.0
    %3232 = vmatpush2.msra.mxu0 0.0
    %3233 = vmatprep.subr.mxu0 0.0
    %3234 = vmatpush2.msra.mxu0 0.0
    %3235 = vmatprep.subr.mxu0 0.0
    %3236 = vmatpush2.msra.mxu0 0.0
    %3237 = vmatprep.subr.mxu0 0.0
    %3238 = vmatpush2.msra.mxu0 0.0
    %3239 = vmatprep.subr.mxu0 0.0
    %3240 = vmatpush2.msra.mxu0 0.0
    %3241 = vmatprep.subr.mxu0 0.0
    %3242 = vmatpush2.msra.mxu0 0.0
    %3243 = vmatprep.subr.mxu0 0.0
    %3244 = vmatpush2.msra.mxu0 0.0
    %3245 = vmatprep.subr.mxu0 0.0
    %3246 = vmatpush2.msra.mxu0 0.0
    %3247 = vmatprep.subr.mxu0 0.0
    %3248 = vmatpush2.msra.mxu0 0.0
    %3249 = vmatprep.subr.mxu0 0.0
    %3250 = vmatpush2.msra.mxu0 0.0
    %3251 = vmatprep.mubr.f32.mxu0 0.0
    %3252 = vmatmul.mubr.f32.gmra.mxu0 %v3179
    %v3253 = vpop.f32.mrf.mxu0
    %v3254 = vadd.f32 0.0, %v3253
    %v3255 = vpop.f32.mrf.mxu0
    %3256 = vdwg.mxu0
    %v3257 = vadd.f32 %v3183, %v3254
    %v3258 = vmul.f32 %v3257, 0.5
    %v3259 = vtanh.pop %v3258
    %v3260 = vmul.f32 %v3259, 0.5
    %v3261 = vadd.f32 %v3260, 0.5
    %3262 = vmatprep.subr.mxu0 0.0
    %3263 = vmatpush1.msra.mxu0 %v1066
    %3264 = vmatprep.subr.mxu0 0.0
    %3265 = vmatpush1.msra.mxu0 %v1065
    %3266 = vmatprep.subr.mxu0 0.0
    %3267 = vmatpush1.msra.mxu0 %v1064
    %3268 = vmatprep.subr.mxu0 0.0
    %3269 = vmatpush1.msra.mxu0 %v1063
    %3270 = vmatprep.subr.mxu0 0.0
    %3271 = vmatpush1.msra.mxu0 %v1062
    %3272 = vmatprep.subr.mxu0 0.0
    %3273 = vmatpush1.msra.mxu0 %v1061
    %3274 = vmatprep.subr.mxu0 0.0
    %3275 = vmatpush1.msra.mxu0 %v1060
    %3276 = vmatprep.subr.mxu0 0.0
    %3277 = vmatpush1.msra.mxu0 %v1059
    %3278 = vmatprep.subr.mxu0 0.0
    %3279 = vmatpush1.msra.mxu0 %v1058
    %3280 = vmatprep.subr.mxu0 0.0
    %3281 = vmatpush1.msra.mxu0 %v1057
    %3282 = vmatprep.subr.mxu0 0.0
    %3283 = vmatpush1.msra.mxu0 %v1056
    %3284 = vmatprep.subr.mxu0 0.0
    %3285 = vmatpush1.msra.mxu0 %v1055
    %3286 = vmatprep.subr.mxu0 0.0
    %3287 = vmatpush1.msra.mxu0 %v1054
    %3288 = vmatprep.subr.mxu0 0.0
    %3289 = vmatpush1.msra.mxu0 %v1053
    %3290 = vmatprep.subr.mxu0 0.0
    %3291 = vmatpush1.msra.mxu0 %v1052
    %3292 = vmatprep.subr.mxu0 0.0
    %3293 = vmatpush1.msra.mxu0 %v1051
    %3294 = vmatprep.subr.mxu0 0.0
    %3295 = vmatpush2.msra.mxu0 0.0
    %3296 = vmatprep.subr.mxu0 0.0
    %3297 = vmatpush2.msra.mxu0 0.0
    %3298 = vmatprep.subr.mxu0 0.0
    %3299 = vmatpush2.msra.mxu0 0.0
    %3300 = vmatprep.subr.mxu0 0.0
    %3301 = vmatpush2.msra.mxu0 0.0
    %3302 = vmatprep.subr.mxu0 0.0
    %3303 = vmatpush2.msra.mxu0 0.0
    %3304 = vmatprep.subr.mxu0 0.0
    %3305 = vmatpush2.msra.mxu0 0.0
    %3306 = vmatprep.subr.mxu0 0.0
    %3307 = vmatpush2.msra.mxu0 0.0
    %3308 = vmatprep.subr.mxu0 0.0
    %3309 = vmatpush2.msra.mxu0 0.0
    %3310 = vmatprep.subr.mxu0 0.0
    %3311 = vmatpush2.msra.mxu0 0.0
    %3312 = vmatprep.subr.mxu0 0.0
    %3313 = vmatpush2.msra.mxu0 0.0
    %3314 = vmatprep.subr.mxu0 0.0
    %3315 = vmatpush2.msra.mxu0 0.0
    %3316 = vmatprep.subr.mxu0 0.0
    %3317 = vmatpush2.msra.mxu0 0.0
    %3318 = vmatprep.subr.mxu0 0.0
    %3319 = vmatpush2.msra.mxu0 0.0
    %3320 = vmatprep.subr.mxu0 0.0
    %3321 = vmatpush2.msra.mxu0 0.0
    %3322 = vmatprep.subr.mxu0 0.0
    %3323 = vmatpush2.msra.mxu0 0.0
    %3324 = vmatprep.subr.mxu0 0.0
    %3325 = vmatpush2.msra.mxu0 0.0
    %3326 = vmatprep.mubr.f32.mxu0 0.0
    %3327 = vmatmul.mubr.f32.gmra.mxu0 %v3179
    %v3328 = vpop.f32.mrf.mxu0
    %v3329 = vadd.f32 0.0, %v3328
    %v3330 = vpop.f32.mrf.mxu0
    %3331 = vdwg.mxu0
    %v3332 = vadd.f32 %v3184, %v3329
    %v3333 = vmul.f32 %v3332, 0.5
    %v3334 = vtanh.pop %v3333
    %v3335 = vmul.f32 %v3334, 0.5
    %v3336 = vadd.f32 %v3335, 0.5
    %3337 = vmatprep.subr.mxu0 0.0
    %3338 = vmatpush1.msra.mxu0 %v1157
    %3339 = vmatprep.subr.mxu0 0.0
    %3340 = vmatpush1.msra.mxu0 %v1156
    %3341 = vmatprep.subr.mxu0 0.0
    %3342 = vmatpush1.msra.mxu0 %v1155
    %3343 = vmatprep.subr.mxu0 0.0
    %3344 = vmatpush1.msra.mxu0 %v1154
    %3345 = vmatprep.subr.mxu0 0.0
    %3346 = vmatpush1.msra.mxu0 %v1153
    %3347 = vmatprep.subr.mxu0 0.0
    %3348 = vmatpush1.msra.mxu0 %v1152
    %3349 = vmatprep.subr.mxu0 0.0
    %3350 = vmatpush1.msra.mxu0 %v1151
    %3351 = vmatprep.subr.mxu0 0.0
    %3352 = vmatpush1.msra.mxu0 %v1150
    %3353 = vmatprep.subr.mxu0 0.0
    %3354 = vmatpush1.msra.mxu0 %v1149
    %3355 = vmatprep.subr.mxu0 0.0
    %3356 = vmatpush1.msra.mxu0 %v1148
    %3357 = vmatprep.subr.mxu0 0.0
    %3358 = vmatpush1.msra.mxu0 %v1147
    %3359 = vmatprep.subr.mxu0 0.0
    %3360 = vmatpush1.msra.mxu0 %v1146
    %3361 = vmatprep.subr.mxu0 0.0
    %3362 = vmatpush1.msra.mxu0 %v1145
    %3363 = vmatprep.subr.mxu0 0.0
    %3364 = vmatpush1.msra.mxu0 %v1144
    %3365 = vmatprep.subr.mxu0 0.0
    %3366 = vmatpush1.msra.mxu0 %v1143
    %3367 = vmatprep.subr.mxu0 0.0
    %3368 = vmatpush1.msra.mxu0 %v1142
    %3369 = vmatprep.subr.mxu0 0.0
    %3370 = vmatpush2.msra.mxu0 0.0
    %3371 = vmatprep.subr.mxu0 0.0
    %3372 = vmatpush2.msra.mxu0 0.0
    %3373 = vmatprep.subr.mxu0 0.0
    %3374 = vmatpush2.msra.mxu0 0.0
    %3375 = vmatprep.subr.mxu0 0.0
    %3376 = vmatpush2.msra.mxu0 0.0
    %3377 = vmatprep.subr.mxu0 0.0
    %3378 = vmatpush2.msra.mxu0 0.0
    %3379 = vmatprep.subr.mxu0 0.0
    %3380 = vmatpush2.msra.mxu0 0.0
    %3381 = vmatprep.subr.mxu0 0.0
    %3382 = vmatpush2.msra.mxu0 0.0
    %3383 = vmatprep.subr.mxu0 0.0
    %3384 = vmatpush2.msra.mxu0 0.0
    %3385 = vmatprep.subr.mxu0 0.0
    %3386 = vmatpush2.msra.mxu0 0.0
    %3387 = vmatprep.subr.mxu0 0.0
    %3388 = vmatpush2.msra.mxu0 0.0
    %3389 = vmatprep.subr.mxu0 0.0
    %3390 = vmatpush2.msra.mxu0 0.0
    %3391 = vmatprep.subr.mxu0 0.0
    %3392 = vmatpush2.msra.mxu0 0.0
    %3393 = vmatprep.subr.mxu0 0.0
    %3394 = vmatpush2.msra.mxu0 0.0
    %3395 = vmatprep.subr.mxu0 0.0
    %3396 = vmatpush2.msra.mxu0 0.0
    %3397 = vmatprep.subr.mxu0 0.0
    %3398 = vmatpush2.msra.mxu0 0.0
    %3399 = vmatprep.subr.mxu0 0.0
    %3400 = vmatpush2.msra.mxu0 0.0
    %3401 = vmatprep.mubr.f32.mxu0 0.0
    %3402 = vmatmul.mubr.f32.gmra.mxu0 %v3179
    %v3403 = vpop.f32.mrf.mxu0
    %v3404 = vadd.f32 0.0, %v3403
    %v3405 = vpop.f32.mrf.mxu0
    %3406 = vdwg.mxu0
    %v3407 = vadd.f32 %v3185, %v3404
    %v3408 = vtanh.pop %v3407
    %3409 = vmatprep.subr.mxu0 0.0
    %3410 = vmatpush1.msra.mxu0 %v1245
    %3411 = vmatprep.subr.mxu0 0.0
    %3412 = vmatpush1.msra.mxu0 %v1244
    %3413 = vmatprep.subr.mxu0 0.0
    %3414 = vmatpush1.msra.mxu0 %v1243
    %3415 = vmatprep.subr.mxu0 0.0
    %3416 = vmatpush1.msra.mxu0 %v1242
    %3417 = vmatprep.subr.mxu0 0.0
    %3418 = vmatpush1.msra.mxu0 %v1241
    %3419 = vmatprep.subr.mxu0 0.0
    %3420 = vmatpush1.msra.mxu0 %v1240
    %3421 = vmatprep.subr.mxu0 0.0
    %3422 = vmatpush1.msra.mxu0 %v1239
    %3423 = vmatprep.subr.mxu0 0.0
    %3424 = vmatpush1.msra.mxu0 %v1238
    %3425 = vmatprep.subr.mxu0 0.0
    %3426 = vmatpush1.msra.mxu0 %v1237
    %3427 = vmatprep.subr.mxu0 0.0
    %3428 = vmatpush1.msra.mxu0 %v1236
    %3429 = vmatprep.subr.mxu0 0.0
    %3430 = vmatpush1.msra.mxu0 %v1235
    %3431 = vmatprep.subr.mxu0 0.0
    %3432 = vmatpush1.msra.mxu0 %v1234
    %3433 = vmatprep.subr.mxu0 0.0
    %3434 = vmatpush1.msra.mxu0 %v1233
    %3435 = vmatprep.subr.mxu0 0.0
    %3436 = vmatpush1.msra.mxu0 %v1232
    %3437 = vmatprep.subr.mxu0 0.0
    %3438 = vmatpush1.msra.mxu0 %v1231
    %3439 = vmatprep.subr.mxu0 0.0
    %3440 = vmatpush1.msra.mxu0 %v1230
    %3441 = vmatprep.subr.mxu0 0.0
    %3442 = vmatpush2.msra.mxu0 0.0
    %3443 = vmatprep.subr.mxu0 0.0
    %3444 = vmatpush2.msra.mxu0 0.0
    %3445 = vmatprep.subr.mxu0 0.0
    %3446 = vmatpush2.msra.mxu0 0.0
    %3447 = vmatprep.subr.mxu0 0.0
    %3448 = vmatpush2.msra.mxu0 0.0
    %3449 = vmatprep.subr.mxu0 0.0
    %3450 = vmatpush2.msra.mxu0 0.0
    %3451 = vmatprep.subr.mxu0 0.0
    %3452 = vmatpush2.msra.mxu0 0.0
    %3453 = vmatprep.subr.mxu0 0.0
    %3454 = vmatpush2.msra.mxu0 0.0
    %3455 = vmatprep.subr.mxu0 0.0
    %3456 = vmatpush2.msra.mxu0 0.0
    %3457 = vmatprep.subr.mxu0 0.0
    %3458 = vmatpush2.msra.mxu0 0.0
    %3459 = vmatprep.subr.mxu0 0.0
    %3460 = vmatpush2.msra.mxu0 0.0
    %3461 = vmatprep.subr.mxu0 0.0
    %3462 = vmatpush2.msra.mxu0 0.0
    %3463 = vmatprep.subr.mxu0 0.0
    %3464 = vmatpush2.msra.mxu0 0.0
    %3465 = vmatprep.subr.mxu0 0.0
    %3466 = vmatpush2.msra.mxu0 0.0
    %3467 = vmatprep.subr.mxu0 0.0
    %3468 = vmatpush2.msra.mxu0 0.0
    %3469 = vmatprep.subr.mxu0 0.0
    %3470 = vmatpush2.msra.mxu0 0.0
    %3471 = vmatprep.subr.mxu0 0.0
    %3472 = vmatpush2.msra.mxu0 0.0
    %3473 = vmatprep.mubr.f32.mxu0 0.0
    %3474 = vmatmul.mubr.f32.gmra.mxu0 %v3179
    %v3475 = vpop.f32.mrf.mxu0
    %v3476 = vadd.f32 0.0, %v3475
    %v3477 = vpop.f32.mrf.mxu0
    %3478 = vdwg.mxu0
    %v3479 = vadd.f32 %v3186, %v3476
    %v3480 = vmul.f32 %v3479, 0.5
    %v3481 = vtanh.pop %v3480
    %v3482 = vmul.f32 %v3481, 0.5
    %v3483 = vadd.f32 %v3482, 0.5
    %v3484 = vmul.f32 %v3336, %v3177
    %v3485 = vmul.f32 %v3261, %v3408
    %v3486 = vadd.f32 %v3484, %v3485
    %v3487 = vtanh.pop %v3486
    %v3488 = vmul.f32 %v3483, %v3487
    %s3489 = smul.u32 8, 4
    %s3490 = smul.addr %s3489, 8
    %s3491 = scalar_lea.vmem [#allocation2], %s3490
    %v3492 = vld [vmem:[%s3491] sm:$0xff]
    %v3493 = vld [vmem:[%s3491 + $0x8] sm:$0xff]
    %v3494 = vld [vmem:[%s3491 + $0x10] sm:$0xff]
    %v3495 = vld [vmem:[%s3491 + $0x18] sm:$0xff]
    %3496 = vmatprep.subr.mxu0 0.0
    %3497 = vmatpush1.msra.mxu0 %v975
    %3498 = vmatprep.subr.mxu0 0.0
    %3499 = vmatpush1.msra.mxu0 %v974
    %3500 = vmatprep.subr.mxu0 0.0
    %3501 = vmatpush1.msra.mxu0 %v973
    %3502 = vmatprep.subr.mxu0 0.0
    %3503 = vmatpush1.msra.mxu0 %v972
    %3504 = vmatprep.subr.mxu0 0.0
    %3505 = vmatpush1.msra.mxu0 %v971
    %3506 = vmatprep.subr.mxu0 0.0
    %3507 = vmatpush1.msra.mxu0 %v970
    %3508 = vmatprep.subr.mxu0 0.0
    %3509 = vmatpush1.msra.mxu0 %v969
    %3510 = vmatprep.subr.mxu0 0.0
    %3511 = vmatpush1.msra.mxu0 %v968
    %3512 = vmatprep.subr.mxu0 0.0
    %3513 = vmatpush1.msra.mxu0 %v967
    %3514 = vmatprep.subr.mxu0 0.0
    %3515 = vmatpush1.msra.mxu0 %v966
    %3516 = vmatprep.subr.mxu0 0.0
    %3517 = vmatpush1.msra.mxu0 %v965
    %3518 = vmatprep.subr.mxu0 0.0
    %3519 = vmatpush1.msra.mxu0 %v964
    %3520 = vmatprep.subr.mxu0 0.0
    %3521 = vmatpush1.msra.mxu0 %v963
    %3522 = vmatprep.subr.mxu0 0.0
    %3523 = vmatpush1.msra.mxu0 %v962
    %3524 = vmatprep.subr.mxu0 0.0
    %3525 = vmatpush1.msra.mxu0 %v961
    %3526 = vmatprep.subr.mxu0 0.0
    %3527 = vmatpush1.msra.mxu0 %v960
    %3528 = vmatprep.subr.mxu0 0.0
    %3529 = vmatpush2.msra.mxu0 0.0
    %3530 = vmatprep.subr.mxu0 0.0
    %3531 = vmatpush2.msra.mxu0 0.0
    %3532 = vmatprep.subr.mxu0 0.0
    %3533 = vmatpush2.msra.mxu0 0.0
    %3534 = vmatprep.subr.mxu0 0.0
    %3535 = vmatpush2.msra.mxu0 0.0
    %3536 = vmatprep.subr.mxu0 0.0
    %3537 = vmatpush2.msra.mxu0 0.0
    %3538 = vmatprep.subr.mxu0 0.0
    %3539 = vmatpush2.msra.mxu0 0.0
    %3540 = vmatprep.subr.mxu0 0.0
    %3541 = vmatpush2.msra.mxu0 0.0
    %3542 = vmatprep.subr.mxu0 0.0
    %3543 = vmatpush2.msra.mxu0 0.0
    %3544 = vmatprep.subr.mxu0 0.0
    %3545 = vmatpush2.msra.mxu0 0.0
    %3546 = vmatprep.subr.mxu0 0.0
    %3547 = vmatpush2.msra.mxu0 0.0
    %3548 = vmatprep.subr.mxu0 0.0
    %3549 = vmatpush2.msra.mxu0 0.0
    %3550 = vmatprep.subr.mxu0 0.0
    %3551 = vmatpush2.msra.mxu0 0.0
    %3552 = vmatprep.subr.mxu0 0.0
    %3553 = vmatpush2.msra.mxu0 0.0
    %3554 = vmatprep.subr.mxu0 0.0
    %3555 = vmatpush2.msra.mxu0 0.0
    %3556 = vmatprep.subr.mxu0 0.0
    %3557 = vmatpush2.msra.mxu0 0.0
    %3558 = vmatprep.subr.mxu0 0.0
    %3559 = vmatpush2.msra.mxu0 0.0
    %3560 = vmatprep.mubr.f32.mxu0 0.0
    %3561 = vmatmul.mubr.f32.gmra.mxu0 %v3488
    %v3562 = vpop.f32.mrf.mxu0
    %v3563 = vadd.f32 0.0, %v3562
    %v3564 = vpop.f32.mrf.mxu0
    %3565 = vdwg.mxu0
    %v3566 = vadd.f32 %v3492, %v3563
    %v3567 = vmul.f32 %v3566, 0.5
    %v3568 = vtanh.pop %v3567
    %v3569 = vmul.f32 %v3568, 0.5
    %v3570 = vadd.f32 %v3569, 0.5
    %3571 = vmatprep.subr.mxu0 0.0
    %3572 = vmatpush1.msra.mxu0 %v1066
    %3573 = vmatprep.subr.mxu0 0.0
    %3574 = vmatpush1.msra.mxu0 %v1065
    %3575 = vmatprep.subr.mxu0 0.0
    %3576 = vmatpush1.msra.mxu0 %v1064
    %3577 = vmatprep.subr.mxu0 0.0
    %3578 = vmatpush1.msra.mxu0 %v1063
    %3579 = vmatprep.subr.mxu0 0.0
    %3580 = vmatpush1.msra.mxu0 %v1062
    %3581 = vmatprep.subr.mxu0 0.0
    %3582 = vmatpush1.msra.mxu0 %v1061
    %3583 = vmatprep.subr.mxu0 0.0
    %3584 = vmatpush1.msra.mxu0 %v1060
    %3585 = vmatprep.subr.mxu0 0.0
    %3586 = vmatpush1.msra.mxu0 %v1059
    %3587 = vmatprep.subr.mxu0 0.0
    %3588 = vmatpush1.msra.mxu0 %v1058
    %3589 = vmatprep.subr.mxu0 0.0
    %3590 = vmatpush1.msra.mxu0 %v1057
    %3591 = vmatprep.subr.mxu0 0.0
    %3592 = vmatpush1.msra.mxu0 %v1056
    %3593 = vmatprep.subr.mxu0 0.0
    %3594 = vmatpush1.msra.mxu0 %v1055
    %3595 = vmatprep.subr.mxu0 0.0
    %3596 = vmatpush1.msra.mxu0 %v1054
    %3597 = vmatprep.subr.mxu0 0.0
    %3598 = vmatpush1.msra.mxu0 %v1053
    %3599 = vmatprep.subr.mxu0 0.0
    %3600 = vmatpush1.msra.mxu0 %v1052
    %3601 = vmatprep.subr.mxu0 0.0
    %3602 = vmatpush1.msra.mxu0 %v1051
    %3603 = vmatprep.subr.mxu0 0.0
    %3604 = vmatpush2.msra.mxu0 0.0
    %3605 = vmatprep.subr.mxu0 0.0
    %3606 = vmatpush2.msra.mxu0 0.0
    %3607 = vmatprep.subr.mxu0 0.0
    %3608 = vmatpush2.msra.mxu0 0.0
    %3609 = vmatprep.subr.mxu0 0.0
    %3610 = vmatpush2.msra.mxu0 0.0
    %3611 = vmatprep.subr.mxu0 0.0
    %3612 = vmatpush2.msra.mxu0 0.0
    %3613 = vmatprep.subr.mxu0 0.0
    %3614 = vmatpush2.msra.mxu0 0.0
    %3615 = vmatprep.subr.mxu0 0.0
    %3616 = vmatpush2.msra.mxu0 0.0
    %3617 = vmatprep.subr.mxu0 0.0
    %3618 = vmatpush2.msra.mxu0 0.0
    %3619 = vmatprep.subr.mxu0 0.0
    %3620 = vmatpush2.msra.mxu0 0.0
    %3621 = vmatprep.subr.mxu0 0.0
    %3622 = vmatpush2.msra.mxu0 0.0
    %3623 = vmatprep.subr.mxu0 0.0
    %3624 = vmatpush2.msra.mxu0 0.0
    %3625 = vmatprep.subr.mxu0 0.0
    %3626 = vmatpush2.msra.mxu0 0.0
    %3627 = vmatprep.subr.mxu0 0.0
    %3628 = vmatpush2.msra.mxu0 0.0
    %3629 = vmatprep.subr.mxu0 0.0
    %3630 = vmatpush2.msra.mxu0 0.0
    %3631 = vmatprep.subr.mxu0 0.0
    %3632 = vmatpush2.msra.mxu0 0.0
    %3633 = vmatprep.subr.mxu0 0.0
    %3634 = vmatpush2.msra.mxu0 0.0
    %3635 = vmatprep.mubr.f32.mxu0 0.0
    %3636 = vmatmul.mubr.f32.gmra.mxu0 %v3488
    %v3637 = vpop.f32.mrf.mxu0
    %v3638 = vadd.f32 0.0, %v3637
    %v3639 = vpop.f32.mrf.mxu0
    %3640 = vdwg.mxu0
    %v3641 = vadd.f32 %v3493, %v3638
    %v3642 = vmul.f32 %v3641, 0.5
    %v3643 = vtanh.pop %v3642
    %v3644 = vmul.f32 %v3643, 0.5
    %v3645 = vadd.f32 %v3644, 0.5
    %3646 = vmatprep.subr.mxu0 0.0
    %3647 = vmatpush1.msra.mxu0 %v1157
    %3648 = vmatprep.subr.mxu0 0.0
    %3649 = vmatpush1.msra.mxu0 %v1156
    %3650 = vmatprep.subr.mxu0 0.0
    %3651 = vmatpush1.msra.mxu0 %v1155
    %3652 = vmatprep.subr.mxu0 0.0
    %3653 = vmatpush1.msra.mxu0 %v1154
    %3654 = vmatprep.subr.mxu0 0.0
    %3655 = vmatpush1.msra.mxu0 %v1153
    %3656 = vmatprep.subr.mxu0 0.0
    %3657 = vmatpush1.msra.mxu0 %v1152
    %3658 = vmatprep.subr.mxu0 0.0
    %3659 = vmatpush1.msra.mxu0 %v1151
    %3660 = vmatprep.subr.mxu0 0.0
    %3661 = vmatpush1.msra.mxu0 %v1150
    %3662 = vmatprep.subr.mxu0 0.0
    %3663 = vmatpush1.msra.mxu0 %v1149
    %3664 = vmatprep.subr.mxu0 0.0
    %3665 = vmatpush1.msra.mxu0 %v1148
    %3666 = vmatprep.subr.mxu0 0.0
    %3667 = vmatpush1.msra.mxu0 %v1147
    %3668 = vmatprep.subr.mxu0 0.0
    %3669 = vmatpush1.msra.mxu0 %v1146
    %3670 = vmatprep.subr.mxu0 0.0
    %3671 = vmatpush1.msra.mxu0 %v1145
    %3672 = vmatprep.subr.mxu0 0.0
    %3673 = vmatpush1.msra.mxu0 %v1144
    %3674 = vmatprep.subr.mxu0 0.0
    %3675 = vmatpush1.msra.mxu0 %v1143
    %3676 = vmatprep.subr.mxu0 0.0
    %3677 = vmatpush1.msra.mxu0 %v1142
    %3678 = vmatprep.subr.mxu0 0.0
    %3679 = vmatpush2.msra.mxu0 0.0
    %3680 = vmatprep.subr.mxu0 0.0
    %3681 = vmatpush2.msra.mxu0 0.0
    %3682 = vmatprep.subr.mxu0 0.0
    %3683 = vmatpush2.msra.mxu0 0.0
    %3684 = vmatprep.subr.mxu0 0.0
    %3685 = vmatpush2.msra.mxu0 0.0
    %3686 = vmatprep.subr.mxu0 0.0
    %3687 = vmatpush2.msra.mxu0 0.0
    %3688 = vmatprep.subr.mxu0 0.0
    %3689 = vmatpush2.msra.mxu0 0.0
    %3690 = vmatprep.subr.mxu0 0.0
    %3691 = vmatpush2.msra.mxu0 0.0
    %3692 = vmatprep.subr.mxu0 0.0
    %3693 = vmatpush2.msra.mxu0 0.0
    %3694 = vmatprep.subr.mxu0 0.0
    %3695 = vmatpush2.msra.mxu0 0.0
    %3696 = vmatprep.subr.mxu0 0.0
    %3697 = vmatpush2.msra.mxu0 0.0
    %3698 = vmatprep.subr.mxu0 0.0
    %3699 = vmatpush2.msra.mxu0 0.0
    %3700 = vmatprep.subr.mxu0 0.0
    %3701 = vmatpush2.msra.mxu0 0.0
    %3702 = vmatprep.subr.mxu0 0.0
    %3703 = vmatpush2.msra.mxu0 0.0
    %3704 = vmatprep.subr.mxu0 0.0
    %3705 = vmatpush2.msra.mxu0 0.0
    %3706 = vmatprep.subr.mxu0 0.0
    %3707 = vmatpush2.msra.mxu0 0.0
    %3708 = vmatprep.subr.mxu0 0.0
    %3709 = vmatpush2.msra.mxu0 0.0
    %3710 = vmatprep.mubr.f32.mxu0 0.0
    %3711 = vmatmul.mubr.f32.gmra.mxu0 %v3488
    %v3712 = vpop.f32.mrf.mxu0
    %v3713 = vadd.f32 0.0, %v3712
    %v3714 = vpop.f32.mrf.mxu0
    %3715 = vdwg.mxu0
    %v3716 = vadd.f32 %v3494, %v3713
    %v3717 = vtanh.pop %v3716
    %3718 = vmatprep.subr.mxu0 0.0
    %3719 = vmatpush1.msra.mxu0 %v1245
    %3720 = vmatprep.subr.mxu0 0.0
    %3721 = vmatpush1.msra.mxu0 %v1244
    %3722 = vmatprep.subr.mxu0 0.0
    %3723 = vmatpush1.msra.mxu0 %v1243
    %3724 = vmatprep.subr.mxu0 0.0
    %3725 = vmatpush1.msra.mxu0 %v1242
    %3726 = vmatprep.subr.mxu0 0.0
    %3727 = vmatpush1.msra.mxu0 %v1241
    %3728 = vmatprep.subr.mxu0 0.0
    %3729 = vmatpush1.msra.mxu0 %v1240
    %3730 = vmatprep.subr.mxu0 0.0
    %3731 = vmatpush1.msra.mxu0 %v1239
    %3732 = vmatprep.subr.mxu0 0.0
    %3733 = vmatpush1.msra.mxu0 %v1238
    %3734 = vmatprep.subr.mxu0 0.0
    %3735 = vmatpush1.msra.mxu0 %v1237
    %3736 = vmatprep.subr.mxu0 0.0
    %3737 = vmatpush1.msra.mxu0 %v1236
    %3738 = vmatprep.subr.mxu0 0.0
    %3739 = vmatpush1.msra.mxu0 %v1235
    %3740 = vmatprep.subr.mxu0 0.0
    %3741 = vmatpush1.msra.mxu0 %v1234
    %3742 = vmatprep.subr.mxu0 0.0
    %3743 = vmatpush1.msra.mxu0 %v1233
    %3744 = vmatprep.subr.mxu0 0.0
    %3745 = vmatpush1.msra.mxu0 %v1232
    %3746 = vmatprep.subr.mxu0 0.0
    %3747 = vmatpush1.msra.mxu0 %v1231
    %3748 = vmatprep.subr.mxu0 0.0
    %3749 = vmatpush1.msra.mxu0 %v1230
    %3750 = vmatprep.subr.mxu0 0.0
    %3751 = vmatpush2.msra.mxu0 0.0
    %3752 = vmatprep.subr.mxu0 0.0
    %3753 = vmatpush2.msra.mxu0 0.0
    %3754 = vmatprep.subr.mxu0 0.0
    %3755 = vmatpush2.msra.mxu0 0.0
    %3756 = vmatprep.subr.mxu0 0.0
    %3757 = vmatpush2.msra.mxu0 0.0
    %3758 = vmatprep.subr.mxu0 0.0
    %3759 = vmatpush2.msra.mxu0 0.0
    %3760 = vmatprep.subr.mxu0 0.0
    %3761 = vmatpush2.msra.mxu0 0.0
    %3762 = vmatprep.subr.mxu0 0.0
    %3763 = vmatpush2.msra.mxu0 0.0
    %3764 = vmatprep.subr.mxu0 0.0
    %3765 = vmatpush2.msra.mxu0 0.0
    %3766 = vmatprep.subr.mxu0 0.0
    %3767 = vmatpush2.msra.mxu0 0.0
    %3768 = vmatprep.subr.mxu0 0.0
    %3769 = vmatpush2.msra.mxu0 0.0
    %3770 = vmatprep.subr.mxu0 0.0
    %3771 = vmatpush2.msra.mxu0 0.0
    %3772 = vmatprep.subr.mxu0 0.0
    %3773 = vmatpush2.msra.mxu0 0.0
    %3774 = vmatprep.subr.mxu0 0.0
    %3775 = vmatpush2.msra.mxu0 0.0
    %3776 = vmatprep.subr.mxu0 0.0
    %3777 = vmatpush2.msra.mxu0 0.0
    %3778 = vmatprep.subr.mxu0 0.0
    %3779 = vmatpush2.msra.mxu0 0.0
    %3780 = vmatprep.subr.mxu0 0.0
    %3781 = vmatpush2.msra.mxu0 0.0
    %3782 = vmatprep.mubr.f32.mxu0 0.0
    %3783 = vmatmul.mubr.f32.gmra.mxu0 %v3488
    %v3784 = vpop.f32.mrf.mxu0
    %v3785 = vadd.f32 0.0, %v3784
    %v3786 = vpop.f32.mrf.mxu0
    %3787 = vdwg.mxu0
    %v3788 = vadd.f32 %v3495, %v3785
    %v3789 = vmul.f32 %v3788, 0.5
    %v3790 = vtanh.pop %v3789
    %v3791 = vmul.f32 %v3790, 0.5
    %v3792 = vadd.f32 %v3791, 0.5
    %v3793 = vmul.f32 %v3645, %v3486
    %v3794 = vmul.f32 %v3570, %v3717
    %v3795 = vadd.f32 %v3793, %v3794
    %v3796 = vtanh.pop %v3795
    %v3797 = vmul.f32 %v3792, %v3796
    %s3798 = smul.u32 9, 4
    %s3799 = smul.addr %s3798, 8
    %s3800 = scalar_lea.vmem [#allocation2], %s3799
    %v3801 = vld [vmem:[%s3800] sm:$0xff]
    %v3802 = vld [vmem:[%s3800 + $0x8] sm:$0xff]
    %v3803 = vld [vmem:[%s3800 + $0x10] sm:$0xff]
    %v3804 = vld [vmem:[%s3800 + $0x18] sm:$0xff]
    %3805 = vmatprep.subr.mxu0 0.0
    %3806 = vmatpush1.msra.mxu0 %v975
    %3807 = vmatprep.subr.mxu0 0.0
    %3808 = vmatpush1.msra.mxu0 %v974
    %3809 = vmatprep.subr.mxu0 0.0
    %3810 = vmatpush1.msra.mxu0 %v973
    %3811 = vmatprep.subr.mxu0 0.0
    %3812 = vmatpush1.msra.mxu0 %v972
    %3813 = vmatprep.subr.mxu0 0.0
    %3814 = vmatpush1.msra.mxu0 %v971
    %3815 = vmatprep.subr.mxu0 0.0
    %3816 = vmatpush1.msra.mxu0 %v970
    %3817 = vmatprep.subr.mxu0 0.0
    %3818 = vmatpush1.msra.mxu0 %v969
    %3819 = vmatprep.subr.mxu0 0.0
    %3820 = vmatpush1.msra.mxu0 %v968
    %3821 = vmatprep.subr.mxu0 0.0
    %3822 = vmatpush1.msra.mxu0 %v967
    %3823 = vmatprep.subr.mxu0 0.0
    %3824 = vmatpush1.msra.mxu0 %v966
    %3825 = vmatprep.subr.mxu0 0.0
    %3826 = vmatpush1.msra.mxu0 %v965
    %3827 = vmatprep.subr.mxu0 0.0
    %3828 = vmatpush1.msra.mxu0 %v964
    %3829 = vmatprep.subr.mxu0 0.0
    %3830 = vmatpush1.msra.mxu0 %v963
    %3831 = vmatprep.subr.mxu0 0.0
    %3832 = vmatpush1.msra.mxu0 %v962
    %3833 = vmatprep.subr.mxu0 0.0
    %3834 = vmatpush1.msra.mxu0 %v961
    %3835 = vmatprep.subr.mxu0 0.0
    %3836 = vmatpush1.msra.mxu0 %v960
    %3837 = vmatprep.subr.mxu0 0.0
    %3838 = vmatpush2.msra.mxu0 0.0
    %3839 = vmatprep.subr.mxu0 0.0
    %3840 = vmatpush2.msra.mxu0 0.0
    %3841 = vmatprep.subr.mxu0 0.0
    %3842 = vmatpush2.msra.mxu0 0.0
    %3843 = vmatprep.subr.mxu0 0.0
    %3844 = vmatpush2.msra.mxu0 0.0
    %3845 = vmatprep.subr.mxu0 0.0
    %3846 = vmatpush2.msra.mxu0 0.0
    %3847 = vmatprep.subr.mxu0 0.0
    %3848 = vmatpush2.msra.mxu0 0.0
    %3849 = vmatprep.subr.mxu0 0.0
    %3850 = vmatpush2.msra.mxu0 0.0
    %3851 = vmatprep.subr.mxu0 0.0
    %3852 = vmatpush2.msra.mxu0 0.0
    %3853 = vmatprep.subr.mxu0 0.0
    %3854 = vmatpush2.msra.mxu0 0.0
    %3855 = vmatprep.subr.mxu0 0.0
    %3856 = vmatpush2.msra.mxu0 0.0
    %3857 = vmatprep.subr.mxu0 0.0
    %3858 = vmatpush2.msra.mxu0 0.0
    %3859 = vmatprep.subr.mxu0 0.0
    %3860 = vmatpush2.msra.mxu0 0.0
    %3861 = vmatprep.subr.mxu0 0.0
    %3862 = vmatpush2.msra.mxu0 0.0
    %3863 = vmatprep.subr.mxu0 0.0
    %3864 = vmatpush2.msra.mxu0 0.0
    %3865 = vmatprep.subr.mxu0 0.0
    %3866 = vmatpush2.msra.mxu0 0.0
    %3867 = vmatprep.subr.mxu0 0.0
    %3868 = vmatpush2.msra.mxu0 0.0
    %3869 = vmatprep.mubr.f32.mxu0 0.0
    %3870 = vmatmul.mubr.f32.gmra.mxu0 %v3797
    %v3871 = vpop.f32.mrf.mxu0
    %v3872 = vadd.f32 0.0, %v3871
    %v3873 = vpop.f32.mrf.mxu0
    %3874 = vdwg.mxu0
    %v3875 = vadd.f32 %v3801, %v3872
    %v3876 = vmul.f32 %v3875, 0.5
    %v3877 = vtanh.pop %v3876
    %v3878 = vmul.f32 %v3877, 0.5
    %v3879 = vadd.f32 %v3878, 0.5
    %3880 = vmatprep.subr.mxu0 0.0
    %3881 = vmatpush1.msra.mxu0 %v1066
    %3882 = vmatprep.subr.mxu0 0.0
    %3883 = vmatpush1.msra.mxu0 %v1065
    %3884 = vmatprep.subr.mxu0 0.0
    %3885 = vmatpush1.msra.mxu0 %v1064
    %3886 = vmatprep.subr.mxu0 0.0
    %3887 = vmatpush1.msra.mxu0 %v1063
    %3888 = vmatprep.subr.mxu0 0.0
    %3889 = vmatpush1.msra.mxu0 %v1062
    %3890 = vmatprep.subr.mxu0 0.0
    %3891 = vmatpush1.msra.mxu0 %v1061
    %3892 = vmatprep.subr.mxu0 0.0
    %3893 = vmatpush1.msra.mxu0 %v1060
    %3894 = vmatprep.subr.mxu0 0.0
    %3895 = vmatpush1.msra.mxu0 %v1059
    %3896 = vmatprep.subr.mxu0 0.0
    %3897 = vmatpush1.msra.mxu0 %v1058
    %3898 = vmatprep.subr.mxu0 0.0
    %3899 = vmatpush1.msra.mxu0 %v1057
    %3900 = vmatprep.subr.mxu0 0.0
    %3901 = vmatpush1.msra.mxu0 %v1056
    %3902 = vmatprep.subr.mxu0 0.0
    %3903 = vmatpush1.msra.mxu0 %v1055
    %3904 = vmatprep.subr.mxu0 0.0
    %3905 = vmatpush1.msra.mxu0 %v1054
    %3906 = vmatprep.subr.mxu0 0.0
    %3907 = vmatpush1.msra.mxu0 %v1053
    %3908 = vmatprep.subr.mxu0 0.0
    %3909 = vmatpush1.msra.mxu0 %v1052
    %3910 = vmatprep.subr.mxu0 0.0
    %3911 = vmatpush1.msra.mxu0 %v1051
    %3912 = vmatprep.subr.mxu0 0.0
    %3913 = vmatpush2.msra.mxu0 0.0
    %3914 = vmatprep.subr.mxu0 0.0
    %3915 = vmatpush2.msra.mxu0 0.0
    %3916 = vmatprep.subr.mxu0 0.0
    %3917 = vmatpush2.msra.mxu0 0.0
    %3918 = vmatprep.subr.mxu0 0.0
    %3919 = vmatpush2.msra.mxu0 0.0
    %3920 = vmatprep.subr.mxu0 0.0
    %3921 = vmatpush2.msra.mxu0 0.0
    %3922 = vmatprep.subr.mxu0 0.0
    %3923 = vmatpush2.msra.mxu0 0.0
    %3924 = vmatprep.subr.mxu0 0.0
    %3925 = vmatpush2.msra.mxu0 0.0
    %3926 = vmatprep.subr.mxu0 0.0
    %3927 = vmatpush2.msra.mxu0 0.0
    %3928 = vmatprep.subr.mxu0 0.0
    %3929 = vmatpush2.msra.mxu0 0.0
    %3930 = vmatprep.subr.mxu0 0.0
    %3931 = vmatpush2.msra.mxu0 0.0
    %3932 = vmatprep.subr.mxu0 0.0
    %3933 = vmatpush2.msra.mxu0 0.0
    %3934 = vmatprep.subr.mxu0 0.0
    %3935 = vmatpush2.msra.mxu0 0.0
    %3936 = vmatprep.subr.mxu0 0.0
    %3937 = vmatpush2.msra.mxu0 0.0
    %3938 = vmatprep.subr.mxu0 0.0
    %3939 = vmatpush2.msra.mxu0 0.0
    %3940 = vmatprep.subr.mxu0 0.0
    %3941 = vmatpush2.msra.mxu0 0.0
    %3942 = vmatprep.subr.mxu0 0.0
    %3943 = vmatpush2.msra.mxu0 0.0
    %3944 = vmatprep.mubr.f32.mxu0 0.0
    %3945 = vmatmul.mubr.f32.gmra.mxu0 %v3797
    %v3946 = vpop.f32.mrf.mxu0
    %v3947 = vadd.f32 0.0, %v3946
    %v3948 = vpop.f32.mrf.mxu0
    %3949 = vdwg.mxu0
    %v3950 = vadd.f32 %v3802, %v3947
    %v3951 = vmul.f32 %v3950, 0.5
    %v3952 = vtanh.pop %v3951
    %v3953 = vmul.f32 %v3952, 0.5
    %v3954 = vadd.f32 %v3953, 0.5
    %3955 = vmatprep.subr.mxu0 0.0
    %3956 = vmatpush1.msra.mxu0 %v1157
    %3957 = vmatprep.subr.mxu0 0.0
    %3958 = vmatpush1.msra.mxu0 %v1156
    %3959 = vmatprep.subr.mxu0 0.0
    %3960 = vmatpush1.msra.mxu0 %v1155
    %3961 = vmatprep.subr.mxu0 0.0
    %3962 = vmatpush1.msra.mxu0 %v1154
    %3963 = vmatprep.subr.mxu0 0.0
    %3964 = vmatpush1.msra.mxu0 %v1153
    %3965 = vmatprep.subr.mxu0 0.0
    %3966 = vmatpush1.msra.mxu0 %v1152
    %3967 = vmatprep.subr.mxu0 0.0
    %3968 = vmatpush1.msra.mxu0 %v1151
    %3969 = vmatprep.subr.mxu0 0.0
    %3970 = vmatpush1.msra.mxu0 %v1150
    %3971 = vmatprep.subr.mxu0 0.0
    %3972 = vmatpush1.msra.mxu0 %v1149
    %3973 = vmatprep.subr.mxu0 0.0
    %3974 = vmatpush1.msra.mxu0 %v1148
    %3975 = vmatprep.subr.mxu0 0.0
    %3976 = vmatpush1.msra.mxu0 %v1147
    %3977 = vmatprep.subr.mxu0 0.0
    %3978 = vmatpush1.msra.mxu0 %v1146
    %3979 = vmatprep.subr.mxu0 0.0
    %3980 = vmatpush1.msra.mxu0 %v1145
    %3981 = vmatprep.subr.mxu0 0.0
    %3982 = vmatpush1.msra.mxu0 %v1144
    %3983 = vmatprep.subr.mxu0 0.0
    %3984 = vmatpush1.msra.mxu0 %v1143
    %3985 = vmatprep.subr.mxu0 0.0
    %3986 = vmatpush1.msra.mxu0 %v1142
    %3987 = vmatprep.subr.mxu0 0.0
    %3988 = vmatpush2.msra.mxu0 0.0
    %3989 = vmatprep.subr.mxu0 0.0
    %3990 = vmatpush2.msra.mxu0 0.0
    %3991 = vmatprep.subr.mxu0 0.0
    %3992 = vmatpush2.msra.mxu0 0.0
    %3993 = vmatprep.subr.mxu0 0.0
    %3994 = vmatpush2.msra.mxu0 0.0
    %3995 = vmatprep.subr.mxu0 0.0
    %3996 = vmatpush2.msra.mxu0 0.0
    %3997 = vmatprep.subr.mxu0 0.0
    %3998 = vmatpush2.msra.mxu0 0.0
    %3999 = vmatprep.subr.mxu0 0.0
    %4000 = vmatpush2.msra.mxu0 0.0
    %4001 = vmatprep.subr.mxu0 0.0
    %4002 = vmatpush2.msra.mxu0 0.0
    %4003 = vmatprep.subr.mxu0 0.0
    %4004 = vmatpush2.msra.mxu0 0.0
    %4005 = vmatprep.subr.mxu0 0.0
    %4006 = vmatpush2.msra.mxu0 0.0
    %4007 = vmatprep.subr.mxu0 0.0
    %4008 = vmatpush2.msra.mxu0 0.0
    %4009 = vmatprep.subr.mxu0 0.0
    %4010 = vmatpush2.msra.mxu0 0.0
    %4011 = vmatprep.subr.mxu0 0.0
    %4012 = vmatpush2.msra.mxu0 0.0
    %4013 = vmatprep.subr.mxu0 0.0
    %4014 = vmatpush2.msra.mxu0 0.0
    %4015 = vmatprep.subr.mxu0 0.0
    %4016 = vmatpush2.msra.mxu0 0.0
    %4017 = vmatprep.subr.mxu0 0.0
    %4018 = vmatpush2.msra.mxu0 0.0
    %4019 = vmatprep.mubr.f32.mxu0 0.0
    %4020 = vmatmul.mubr.f32.gmra.mxu0 %v3797
    %v4021 = vpop.f32.mrf.mxu0
    %v4022 = vadd.f32 0.0, %v4021
    %v4023 = vpop.f32.mrf.mxu0
    %4024 = vdwg.mxu0
    %v4025 = vadd.f32 %v3803, %v4022
    %v4026 = vtanh.pop %v4025
    %4027 = vmatprep.subr.mxu0 0.0
    %4028 = vmatpush1.msra.mxu0 %v1245
    %4029 = vmatprep.subr.mxu0 0.0
    %4030 = vmatpush1.msra.mxu0 %v1244
    %4031 = vmatprep.subr.mxu0 0.0
    %4032 = vmatpush1.msra.mxu0 %v1243
    %4033 = vmatprep.subr.mxu0 0.0
    %4034 = vmatpush1.msra.mxu0 %v1242
    %4035 = vmatprep.subr.mxu0 0.0
    %4036 = vmatpush1.msra.mxu0 %v1241
    %4037 = vmatprep.subr.mxu0 0.0
    %4038 = vmatpush1.msra.mxu0 %v1240
    %4039 = vmatprep.subr.mxu0 0.0
    %4040 = vmatpush1.msra.mxu0 %v1239
    %4041 = vmatprep.subr.mxu0 0.0
    %4042 = vmatpush1.msra.mxu0 %v1238
    %4043 = vmatprep.subr.mxu0 0.0
    %4044 = vmatpush1.msra.mxu0 %v1237
    %4045 = vmatprep.subr.mxu0 0.0
    %4046 = vmatpush1.msra.mxu0 %v1236
    %4047 = vmatprep.subr.mxu0 0.0
    %4048 = vmatpush1.msra.mxu0 %v1235
    %4049 = vmatprep.subr.mxu0 0.0
    %4050 = vmatpush1.msra.mxu0 %v1234
    %4051 = vmatprep.subr.mxu0 0.0
    %4052 = vmatpush1.msra.mxu0 %v1233
    %4053 = vmatprep.subr.mxu0 0.0
    %4054 = vmatpush1.msra.mxu0 %v1232
    %4055 = vmatprep.subr.mxu0 0.0
    %4056 = vmatpush1.msra.mxu0 %v1231
    %4057 = vmatprep.subr.mxu0 0.0
    %4058 = vmatpush1.msra.mxu0 %v1230
    %4059 = vmatprep.subr.mxu0 0.0
    %4060 = vmatpush2.msra.mxu0 0.0
    %4061 = vmatprep.subr.mxu0 0.0
    %4062 = vmatpush2.msra.mxu0 0.0
    %4063 = vmatprep.subr.mxu0 0.0
    %4064 = vmatpush2.msra.mxu0 0.0
    %4065 = vmatprep.subr.mxu0 0.0
    %4066 = vmatpush2.msra.mxu0 0.0
    %4067 = vmatprep.subr.mxu0 0.0
    %4068 = vmatpush2.msra.mxu0 0.0
    %4069 = vmatprep.subr.mxu0 0.0
    %4070 = vmatpush2.msra.mxu0 0.0
    %4071 = vmatprep.subr.mxu0 0.0
    %4072 = vmatpush2.msra.mxu0 0.0
    %4073 = vmatprep.subr.mxu0 0.0
    %4074 = vmatpush2.msra.mxu0 0.0
    %4075 = vmatprep.subr.mxu0 0.0
    %4076 = vmatpush2.msra.mxu0 0.0
    %4077 = vmatprep.subr.mxu0 0.0
    %4078 = vmatpush2.msra.mxu0 0.0
    %4079 = vmatprep.subr.mxu0 0.0
    %4080 = vmatpush2.msra.mxu0 0.0
    %4081 = vmatprep.subr.mxu0 0.0
    %4082 = vmatpush2.msra.mxu0 0.0
    %4083 = vmatprep.subr.mxu0 0.0
    %4084 = vmatpush2.msra.mxu0 0.0
    %4085 = vmatprep.subr.mxu0 0.0
    %4086 = vmatpush2.msra.mxu0 0.0
    %4087 = vmatprep.subr.mxu0 0.0
    %4088 = vmatpush2.msra.mxu0 0.0
    %4089 = vmatprep.subr.mxu0 0.0
    %4090 = vmatpush2.msra.mxu0 0.0
    %4091 = vmatprep.mubr.f32.mxu0 0.0
    %4092 = vmatmul.mubr.f32.gmra.mxu0 %v3797
    %v4093 = vpop.f32.mrf.mxu0
    %v4094 = vadd.f32 0.0, %v4093
    %v4095 = vpop.f32.mrf.mxu0
    %4096 = vdwg.mxu0
    %v4097 = vadd.f32 %v3804, %v4094
    %v4098 = vmul.f32 %v4097, 0.5
    %v4099 = vtanh.pop %v4098
    %v4100 = vmul.f32 %v4099, 0.5
    %v4101 = vadd.f32 %v4100, 0.5
    %v4102 = vmul.f32 %v3954, %v3795
    %v4103 = vmul.f32 %v3879, %v4026
    %v4104 = vadd.f32 %v4102, %v4103
    %v4105 = vtanh.pop %v4104
    %v4106 = vmul.f32 %v4101, %v4105
    %s4107 = smul.u32 10, 4
    %s4108 = smul.addr %s4107, 8
    %s4109 = scalar_lea.vmem [#allocation2], %s4108
    %v4110 = vld [vmem:[%s4109] sm:$0xff]
    %v4111 = vld [vmem:[%s4109 + $0x8] sm:$0xff]
    %v4112 = vld [vmem:[%s4109 + $0x10] sm:$0xff]
    %v4113 = vld [vmem:[%s4109 + $0x18] sm:$0xff]
    %4114 = vmatprep.subr.mxu0 0.0
    %4115 = vmatpush1.msra.mxu0 %v975
    %4116 = vmatprep.subr.mxu0 0.0
    %4117 = vmatpush1.msra.mxu0 %v974
    %4118 = vmatprep.subr.mxu0 0.0
    %4119 = vmatpush1.msra.mxu0 %v973
    %4120 = vmatprep.subr.mxu0 0.0
    %4121 = vmatpush1.msra.mxu0 %v972
    %4122 = vmatprep.subr.mxu0 0.0
    %4123 = vmatpush1.msra.mxu0 %v971
    %4124 = vmatprep.subr.mxu0 0.0
    %4125 = vmatpush1.msra.mxu0 %v970
    %4126 = vmatprep.subr.mxu0 0.0
    %4127 = vmatpush1.msra.mxu0 %v969
    %4128 = vmatprep.subr.mxu0 0.0
    %4129 = vmatpush1.msra.mxu0 %v968
    %4130 = vmatprep.subr.mxu0 0.0
    %4131 = vmatpush1.msra.mxu0 %v967
    %4132 = vmatprep.subr.mxu0 0.0
    %4133 = vmatpush1.msra.mxu0 %v966
    %4134 = vmatprep.subr.mxu0 0.0
    %4135 = vmatpush1.msra.mxu0 %v965
    %4136 = vmatprep.subr.mxu0 0.0
    %4137 = vmatpush1.msra.mxu0 %v964
    %4138 = vmatprep.subr.mxu0 0.0
    %4139 = vmatpush1.msra.mxu0 %v963
    %4140 = vmatprep.subr.mxu0 0.0
    %4141 = vmatpush1.msra.mxu0 %v962
    %4142 = vmatprep.subr.mxu0 0.0
    %4143 = vmatpush1.msra.mxu0 %v961
    %4144 = vmatprep.subr.mxu0 0.0
    %4145 = vmatpush1.msra.mxu0 %v960
    %4146 = vmatprep.subr.mxu0 0.0
    %4147 = vmatpush2.msra.mxu0 0.0
    %4148 = vmatprep.subr.mxu0 0.0
    %4149 = vmatpush2.msra.mxu0 0.0
    %4150 = vmatprep.subr.mxu0 0.0
    %4151 = vmatpush2.msra.mxu0 0.0
    %4152 = vmatprep.subr.mxu0 0.0
    %4153 = vmatpush2.msra.mxu0 0.0
    %4154 = vmatprep.subr.mxu0 0.0
    %4155 = vmatpush2.msra.mxu0 0.0
    %4156 = vmatprep.subr.mxu0 0.0
    %4157 = vmatpush2.msra.mxu0 0.0
    %4158 = vmatprep.subr.mxu0 0.0
    %4159 = vmatpush2.msra.mxu0 0.0
    %4160 = vmatprep.subr.mxu0 0.0
    %4161 = vmatpush2.msra.mxu0 0.0
    %4162 = vmatprep.subr.mxu0 0.0
    %4163 = vmatpush2.msra.mxu0 0.0
    %4164 = vmatprep.subr.mxu0 0.0
    %4165 = vmatpush2.msra.mxu0 0.0
    %4166 = vmatprep.subr.mxu0 0.0
    %4167 = vmatpush2.msra.mxu0 0.0
    %4168 = vmatprep.subr.mxu0 0.0
    %4169 = vmatpush2.msra.mxu0 0.0
    %4170 = vmatprep.subr.mxu0 0.0
    %4171 = vmatpush2.msra.mxu0 0.0
    %4172 = vmatprep.subr.mxu0 0.0
    %4173 = vmatpush2.msra.mxu0 0.0
    %4174 = vmatprep.subr.mxu0 0.0
    %4175 = vmatpush2.msra.mxu0 0.0
    %4176 = vmatprep.subr.mxu0 0.0
    %4177 = vmatpush2.msra.mxu0 0.0
    %4178 = vmatprep.mubr.f32.mxu0 0.0
    %4179 = vmatmul.mubr.f32.gmra.mxu0 %v4106
    %v4180 = vpop.f32.mrf.mxu0
    %v4181 = vadd.f32 0.0, %v4180
    %v4182 = vpop.f32.mrf.mxu0
    %4183 = vdwg.mxu0
    %v4184 = vadd.f32 %v4110, %v4181
    %v4185 = vmul.f32 %v4184, 0.5
    %v4186 = vtanh.pop %v4185
    %v4187 = vmul.f32 %v4186, 0.5
    %v4188 = vadd.f32 %v4187, 0.5
    %4189 = vmatprep.subr.mxu0 0.0
    %4190 = vmatpush1.msra.mxu0 %v1066
    %4191 = vmatprep.subr.mxu0 0.0
    %4192 = vmatpush1.msra.mxu0 %v1065
    %4193 = vmatprep.subr.mxu0 0.0
    %4194 = vmatpush1.msra.mxu0 %v1064
    %4195 = vmatprep.subr.mxu0 0.0
    %4196 = vmatpush1.msra.mxu0 %v1063
    %4197 = vmatprep.subr.mxu0 0.0
    %4198 = vmatpush1.msra.mxu0 %v1062
    %4199 = vmatprep.subr.mxu0 0.0
    %4200 = vmatpush1.msra.mxu0 %v1061
    %4201 = vmatprep.subr.mxu0 0.0
    %4202 = vmatpush1.msra.mxu0 %v1060
    %4203 = vmatprep.subr.mxu0 0.0
    %4204 = vmatpush1.msra.mxu0 %v1059
    %4205 = vmatprep.subr.mxu0 0.0
    %4206 = vmatpush1.msra.mxu0 %v1058
    %4207 = vmatprep.subr.mxu0 0.0
    %4208 = vmatpush1.msra.mxu0 %v1057
    %4209 = vmatprep.subr.mxu0 0.0
    %4210 = vmatpush1.msra.mxu0 %v1056
    %4211 = vmatprep.subr.mxu0 0.0
    %4212 = vmatpush1.msra.mxu0 %v1055
    %4213 = vmatprep.subr.mxu0 0.0
    %4214 = vmatpush1.msra.mxu0 %v1054
    %4215 = vmatprep.subr.mxu0 0.0
    %4216 = vmatpush1.msra.mxu0 %v1053
    %4217 = vmatprep.subr.mxu0 0.0
    %4218 = vmatpush1.msra.mxu0 %v1052
    %4219 = vmatprep.subr.mxu0 0.0
    %4220 = vmatpush1.msra.mxu0 %v1051
    %4221 = vmatprep.subr.mxu0 0.0
    %4222 = vmatpush2.msra.mxu0 0.0
    %4223 = vmatprep.subr.mxu0 0.0
    %4224 = vmatpush2.msra.mxu0 0.0
    %4225 = vmatprep.subr.mxu0 0.0
    %4226 = vmatpush2.msra.mxu0 0.0
    %4227 = vmatprep.subr.mxu0 0.0
    %4228 = vmatpush2.msra.mxu0 0.0
    %4229 = vmatprep.subr.mxu0 0.0
    %4230 = vmatpush2.msra.mxu0 0.0
    %4231 = vmatprep.subr.mxu0 0.0
    %4232 = vmatpush2.msra.mxu0 0.0
    %4233 = vmatprep.subr.mxu0 0.0
    %4234 = vmatpush2.msra.mxu0 0.0
    %4235 = vmatprep.subr.mxu0 0.0
    %4236 = vmatpush2.msra.mxu0 0.0
    %4237 = vmatprep.subr.mxu0 0.0
    %4238 = vmatpush2.msra.mxu0 0.0
    %4239 = vmatprep.subr.mxu0 0.0
    %4240 = vmatpush2.msra.mxu0 0.0
    %4241 = vmatprep.subr.mxu0 0.0
    %4242 = vmatpush2.msra.mxu0 0.0
    %4243 = vmatprep.subr.mxu0 0.0
    %4244 = vmatpush2.msra.mxu0 0.0
    %4245 = vmatprep.subr.mxu0 0.0
    %4246 = vmatpush2.msra.mxu0 0.0
    %4247 = vmatprep.subr.mxu0 0.0
    %4248 = vmatpush2.msra.mxu0 0.0
    %4249 = vmatprep.subr.mxu0 0.0
    %4250 = vmatpush2.msra.mxu0 0.0
    %4251 = vmatprep.subr.mxu0 0.0
    %4252 = vmatpush2.msra.mxu0 0.0
    %4253 = vmatprep.mubr.f32.mxu0 0.0
    %4254 = vmatmul.mubr.f32.gmra.mxu0 %v4106
    %v4255 = vpop.f32.mrf.mxu0
    %v4256 = vadd.f32 0.0, %v4255
    %v4257 = vpop.f32.mrf.mxu0
    %4258 = vdwg.mxu0
    %v4259 = vadd.f32 %v4111, %v4256
    %v4260 = vmul.f32 %v4259, 0.5
    %v4261 = vtanh.pop %v4260
    %v4262 = vmul.f32 %v4261, 0.5
    %v4263 = vadd.f32 %v4262, 0.5
    %4264 = vmatprep.subr.mxu0 0.0
    %4265 = vmatpush1.msra.mxu0 %v1157
    %4266 = vmatprep.subr.mxu0 0.0
    %4267 = vmatpush1.msra.mxu0 %v1156
    %4268 = vmatprep.subr.mxu0 0.0
    %4269 = vmatpush1.msra.mxu0 %v1155
    %4270 = vmatprep.subr.mxu0 0.0
    %4271 = vmatpush1.msra.mxu0 %v1154
    %4272 = vmatprep.subr.mxu0 0.0
    %4273 = vmatpush1.msra.mxu0 %v1153
    %4274 = vmatprep.subr.mxu0 0.0
    %4275 = vmatpush1.msra.mxu0 %v1152
    %4276 = vmatprep.subr.mxu0 0.0
    %4277 = vmatpush1.msra.mxu0 %v1151
    %4278 = vmatprep.subr.mxu0 0.0
    %4279 = vmatpush1.msra.mxu0 %v1150
    %4280 = vmatprep.subr.mxu0 0.0
    %4281 = vmatpush1.msra.mxu0 %v1149
    %4282 = vmatprep.subr.mxu0 0.0
    %4283 = vmatpush1.msra.mxu0 %v1148
    %4284 = vmatprep.subr.mxu0 0.0
    %4285 = vmatpush1.msra.mxu0 %v1147
    %4286 = vmatprep.subr.mxu0 0.0
    %4287 = vmatpush1.msra.mxu0 %v1146
    %4288 = vmatprep.subr.mxu0 0.0
    %4289 = vmatpush1.msra.mxu0 %v1145
    %4290 = vmatprep.subr.mxu0 0.0
    %4291 = vmatpush1.msra.mxu0 %v1144
    %4292 = vmatprep.subr.mxu0 0.0
    %4293 = vmatpush1.msra.mxu0 %v1143
    %4294 = vmatprep.subr.mxu0 0.0
    %4295 = vmatpush1.msra.mxu0 %v1142
    %4296 = vmatprep.subr.mxu0 0.0
    %4297 = vmatpush2.msra.mxu0 0.0
    %4298 = vmatprep.subr.mxu0 0.0
    %4299 = vmatpush2.msra.mxu0 0.0
    %4300 = vmatprep.subr.mxu0 0.0
    %4301 = vmatpush2.msra.mxu0 0.0
    %4302 = vmatprep.subr.mxu0 0.0
    %4303 = vmatpush2.msra.mxu0 0.0
    %4304 = vmatprep.subr.mxu0 0.0
    %4305 = vmatpush2.msra.mxu0 0.0
    %4306 = vmatprep.subr.mxu0 0.0
    %4307 = vmatpush2.msra.mxu0 0.0
    %4308 = vmatprep.subr.mxu0 0.0
    %4309 = vmatpush2.msra.mxu0 0.0
    %4310 = vmatprep.subr.mxu0 0.0
    %4311 = vmatpush2.msra.mxu0 0.0
    %4312 = vmatprep.subr.mxu0 0.0
    %4313 = vmatpush2.msra.mxu0 0.0
    %4314 = vmatprep.subr.mxu0 0.0
    %4315 = vmatpush2.msra.mxu0 0.0
    %4316 = vmatprep.subr.mxu0 0.0
    %4317 = vmatpush2.msra.mxu0 0.0
    %4318 = vmatprep.subr.mxu0 0.0
    %4319 = vmatpush2.msra.mxu0 0.0
    %4320 = vmatprep.subr.mxu0 0.0
    %4321 = vmatpush2.msra.mxu0 0.0
    %4322 = vmatprep.subr.mxu0 0.0
    %4323 = vmatpush2.msra.mxu0 0.0
    %4324 = vmatprep.subr.mxu0 0.0
    %4325 = vmatpush2.msra.mxu0 0.0
    %4326 = vmatprep.subr.mxu0 0.0
    %4327 = vmatpush2.msra.mxu0 0.0
    %4328 = vmatprep.mubr.f32.mxu0 0.0
    %4329 = vmatmul.mubr.f32.gmra.mxu0 %v4106
    %v4330 = vpop.f32.mrf.mxu0
    %v4331 = vadd.f32 0.0, %v4330
    %v4332 = vpop.f32.mrf.mxu0
    %4333 = vdwg.mxu0
    %v4334 = vadd.f32 %v4112, %v4331
    %v4335 = vtanh.pop %v4334
    %4336 = vmatprep.subr.mxu0 0.0
    %4337 = vmatpush1.msra.mxu0 %v1245
    %4338 = vmatprep.subr.mxu0 0.0
    %4339 = vmatpush1.msra.mxu0 %v1244
    %4340 = vmatprep.subr.mxu0 0.0
    %4341 = vmatpush1.msra.mxu0 %v1243
    %4342 = vmatprep.subr.mxu0 0.0
    %4343 = vmatpush1.msra.mxu0 %v1242
    %4344 = vmatprep.subr.mxu0 0.0
    %4345 = vmatpush1.msra.mxu0 %v1241
    %4346 = vmatprep.subr.mxu0 0.0
    %4347 = vmatpush1.msra.mxu0 %v1240
    %4348 = vmatprep.subr.mxu0 0.0
    %4349 = vmatpush1.msra.mxu0 %v1239
    %4350 = vmatprep.subr.mxu0 0.0
    %4351 = vmatpush1.msra.mxu0 %v1238
    %4352 = vmatprep.subr.mxu0 0.0
    %4353 = vmatpush1.msra.mxu0 %v1237
    %4354 = vmatprep.subr.mxu0 0.0
    %4355 = vmatpush1.msra.mxu0 %v1236
    %4356 = vmatprep.subr.mxu0 0.0
    %4357 = vmatpush1.msra.mxu0 %v1235
    %4358 = vmatprep.subr.mxu0 0.0
    %4359 = vmatpush1.msra.mxu0 %v1234
    %4360 = vmatprep.subr.mxu0 0.0
    %4361 = vmatpush1.msra.mxu0 %v1233
    %4362 = vmatprep.subr.mxu0 0.0
    %4363 = vmatpush1.msra.mxu0 %v1232
    %4364 = vmatprep.subr.mxu0 0.0
    %4365 = vmatpush1.msra.mxu0 %v1231
    %4366 = vmatprep.subr.mxu0 0.0
    %4367 = vmatpush1.msra.mxu0 %v1230
    %4368 = vmatprep.subr.mxu0 0.0
    %4369 = vmatpush2.msra.mxu0 0.0
    %4370 = vmatprep.subr.mxu0 0.0
    %4371 = vmatpush2.msra.mxu0 0.0
    %4372 = vmatprep.subr.mxu0 0.0
    %4373 = vmatpush2.msra.mxu0 0.0
    %4374 = vmatprep.subr.mxu0 0.0
    %4375 = vmatpush2.msra.mxu0 0.0
    %4376 = vmatprep.subr.mxu0 0.0
    %4377 = vmatpush2.msra.mxu0 0.0
    %4378 = vmatprep.subr.mxu0 0.0
    %4379 = vmatpush2.msra.mxu0 0.0
    %4380 = vmatprep.subr.mxu0 0.0
    %4381 = vmatpush2.msra.mxu0 0.0
    %4382 = vmatprep.subr.mxu0 0.0
    %4383 = vmatpush2.msra.mxu0 0.0
    %4384 = vmatprep.subr.mxu0 0.0
    %4385 = vmatpush2.msra.mxu0 0.0
    %4386 = vmatprep.subr.mxu0 0.0
    %4387 = vmatpush2.msra.mxu0 0.0
    %4388 = vmatprep.subr.mxu0 0.0
    %4389 = vmatpush2.msra.mxu0 0.0
    %4390 = vmatprep.subr.mxu0 0.0
    %4391 = vmatpush2.msra.mxu0 0.0
    %4392 = vmatprep.subr.mxu0 0.0
    %4393 = vmatpush2.msra.mxu0 0.0
    %4394 = vmatprep.subr.mxu0 0.0
    %4395 = vmatpush2.msra.mxu0 0.0
    %4396 = vmatprep.subr.mxu0 0.0
    %4397 = vmatpush2.msra.mxu0 0.0
    %4398 = vmatprep.subr.mxu0 0.0
    %4399 = vmatpush2.msra.mxu0 0.0
    %4400 = vmatprep.mubr.f32.mxu0 0.0
    %4401 = vmatmul.mubr.f32.gmra.mxu0 %v4106
    %v4402 = vpop.f32.mrf.mxu0
    %v4403 = vadd.f32 0.0, %v4402
    %v4404 = vpop.f32.mrf.mxu0
    %4405 = vdwg.mxu0
    %v4406 = vadd.f32 %v4113, %v4403
    %v4407 = vmul.f32 %v4406, 0.5
    %v4408 = vtanh.pop %v4407
    %v4409 = vmul.f32 %v4408, 0.5
    %v4410 = vadd.f32 %v4409, 0.5
    %v4411 = vmul.f32 %v4263, %v4104
    %v4412 = vmul.f32 %v4188, %v4335
    %v4413 = vadd.f32 %v4411, %v4412
    %v4414 = vtanh.pop %v4413
    %v4415 = vmul.f32 %v4410, %v4414
    %s4416 = smul.u32 11, 4
    %s4417 = smul.addr %s4416, 8
    %s4418 = scalar_lea.vmem [#allocation2], %s4417
    %v4419 = vld [vmem:[%s4418] sm:$0xff]
    %v4420 = vld [vmem:[%s4418 + $0x8] sm:$0xff]
    %v4421 = vld [vmem:[%s4418 + $0x10] sm:$0xff]
    %v4422 = vld [vmem:[%s4418 + $0x18] sm:$0xff]
    %4423 = vmatprep.subr.mxu0 0.0
    %4424 = vmatpush1.msra.mxu0 %v975
    %4425 = vmatprep.subr.mxu0 0.0
    %4426 = vmatpush1.msra.mxu0 %v974
    %4427 = vmatprep.subr.mxu0 0.0
    %4428 = vmatpush1.msra.mxu0 %v973
    %4429 = vmatprep.subr.mxu0 0.0
    %4430 = vmatpush1.msra.mxu0 %v972
    %4431 = vmatprep.subr.mxu0 0.0
    %4432 = vmatpush1.msra.mxu0 %v971
    %4433 = vmatprep.subr.mxu0 0.0
    %4434 = vmatpush1.msra.mxu0 %v970
    %4435 = vmatprep.subr.mxu0 0.0
    %4436 = vmatpush1.msra.mxu0 %v969
    %4437 = vmatprep.subr.mxu0 0.0
    %4438 = vmatpush1.msra.mxu0 %v968
    %4439 = vmatprep.subr.mxu0 0.0
    %4440 = vmatpush1.msra.mxu0 %v967
    %4441 = vmatprep.subr.mxu0 0.0
    %4442 = vmatpush1.msra.mxu0 %v966
    %4443 = vmatprep.subr.mxu0 0.0
    %4444 = vmatpush1.msra.mxu0 %v965
    %4445 = vmatprep.subr.mxu0 0.0
    %4446 = vmatpush1.msra.mxu0 %v964
    %4447 = vmatprep.subr.mxu0 0.0
    %4448 = vmatpush1.msra.mxu0 %v963
    %4449 = vmatprep.subr.mxu0 0.0
    %4450 = vmatpush1.msra.mxu0 %v962
    %4451 = vmatprep.subr.mxu0 0.0
    %4452 = vmatpush1.msra.mxu0 %v961
    %4453 = vmatprep.subr.mxu0 0.0
    %4454 = vmatpush1.msra.mxu0 %v960
    %4455 = vmatprep.subr.mxu0 0.0
    %4456 = vmatpush2.msra.mxu0 0.0
    %4457 = vmatprep.subr.mxu0 0.0
    %4458 = vmatpush2.msra.mxu0 0.0
    %4459 = vmatprep.subr.mxu0 0.0
    %4460 = vmatpush2.msra.mxu0 0.0
    %4461 = vmatprep.subr.mxu0 0.0
    %4462 = vmatpush2.msra.mxu0 0.0
    %4463 = vmatprep.subr.mxu0 0.0
    %4464 = vmatpush2.msra.mxu0 0.0
    %4465 = vmatprep.subr.mxu0 0.0
    %4466 = vmatpush2.msra.mxu0 0.0
    %4467 = vmatprep.subr.mxu0 0.0
    %4468 = vmatpush2.msra.mxu0 0.0
    %4469 = vmatprep.subr.mxu0 0.0
    %4470 = vmatpush2.msra.mxu0 0.0
    %4471 = vmatprep.subr.mxu0 0.0
    %4472 = vmatpush2.msra.mxu0 0.0
    %4473 = vmatprep.subr.mxu0 0.0
    %4474 = vmatpush2.msra.mxu0 0.0
    %4475 = vmatprep.subr.mxu0 0.0
    %4476 = vmatpush2.msra.mxu0 0.0
    %4477 = vmatprep.subr.mxu0 0.0
    %4478 = vmatpush2.msra.mxu0 0.0
    %4479 = vmatprep.subr.mxu0 0.0
    %4480 = vmatpush2.msra.mxu0 0.0
    %4481 = vmatprep.subr.mxu0 0.0
    %4482 = vmatpush2.msra.mxu0 0.0
    %4483 = vmatprep.subr.mxu0 0.0
    %4484 = vmatpush2.msra.mxu0 0.0
    %4485 = vmatprep.subr.mxu0 0.0
    %4486 = vmatpush2.msra.mxu0 0.0
    %4487 = vmatprep.mubr.f32.mxu0 0.0
    %4488 = vmatmul.mubr.f32.gmra.mxu0 %v4415
    %v4489 = vpop.f32.mrf.mxu0
    %v4490 = vadd.f32 0.0, %v4489
    %v4491 = vpop.f32.mrf.mxu0
    %4492 = vdwg.mxu0
    %v4493 = vadd.f32 %v4419, %v4490
    %v4494 = vmul.f32 %v4493, 0.5
    %v4495 = vtanh.pop %v4494
    %v4496 = vmul.f32 %v4495, 0.5
    %v4497 = vadd.f32 %v4496, 0.5
    %4498 = vmatprep.subr.mxu0 0.0
    %4499 = vmatpush1.msra.mxu0 %v1066
    %4500 = vmatprep.subr.mxu0 0.0
    %4501 = vmatpush1.msra.mxu0 %v1065
    %4502 = vmatprep.subr.mxu0 0.0
    %4503 = vmatpush1.msra.mxu0 %v1064
    %4504 = vmatprep.subr.mxu0 0.0
    %4505 = vmatpush1.msra.mxu0 %v1063
    %4506 = vmatprep.subr.mxu0 0.0
    %4507 = vmatpush1.msra.mxu0 %v1062
    %4508 = vmatprep.subr.mxu0 0.0
    %4509 = vmatpush1.msra.mxu0 %v1061
    %4510 = vmatprep.subr.mxu0 0.0
    %4511 = vmatpush1.msra.mxu0 %v1060
    %4512 = vmatprep.subr.mxu0 0.0
    %4513 = vmatpush1.msra.mxu0 %v1059
    %4514 = vmatprep.subr.mxu0 0.0
    %4515 = vmatpush1.msra.mxu0 %v1058
    %4516 = vmatprep.subr.mxu0 0.0
    %4517 = vmatpush1.msra.mxu0 %v1057
    %4518 = vmatprep.subr.mxu0 0.0
    %4519 = vmatpush1.msra.mxu0 %v1056
    %4520 = vmatprep.subr.mxu0 0.0
    %4521 = vmatpush1.msra.mxu0 %v1055
    %4522 = vmatprep.subr.mxu0 0.0
    %4523 = vmatpush1.msra.mxu0 %v1054
    %4524 = vmatprep.subr.mxu0 0.0
    %4525 = vmatpush1.msra.mxu0 %v1053
    %4526 = vmatprep.subr.mxu0 0.0
    %4527 = vmatpush1.msra.mxu0 %v1052
    %4528 = vmatprep.subr.mxu0 0.0
    %4529 = vmatpush1.msra.mxu0 %v1051
    %4530 = vmatprep.subr.mxu0 0.0
    %4531 = vmatpush2.msra.mxu0 0.0
    %4532 = vmatprep.subr.mxu0 0.0
    %4533 = vmatpush2.msra.mxu0 0.0
    %4534 = vmatprep.subr.mxu0 0.0
    %4535 = vmatpush2.msra.mxu0 0.0
    %4536 = vmatprep.subr.mxu0 0.0
    %4537 = vmatpush2.msra.mxu0 0.0
    %4538 = vmatprep.subr.mxu0 0.0
    %4539 = vmatpush2.msra.mxu0 0.0
    %4540 = vmatprep.subr.mxu0 0.0
    %4541 = vmatpush2.msra.mxu0 0.0
    %4542 = vmatprep.subr.mxu0 0.0
    %4543 = vmatpush2.msra.mxu0 0.0
    %4544 = vmatprep.subr.mxu0 0.0
    %4545 = vmatpush2.msra.mxu0 0.0
    %4546 = vmatprep.subr.mxu0 0.0
    %4547 = vmatpush2.msra.mxu0 0.0
    %4548 = vmatprep.subr.mxu0 0.0
    %4549 = vmatpush2.msra.mxu0 0.0
    %4550 = vmatprep.subr.mxu0 0.0
    %4551 = vmatpush2.msra.mxu0 0.0
    %4552 = vmatprep.subr.mxu0 0.0
    %4553 = vmatpush2.msra.mxu0 0.0
    %4554 = vmatprep.subr.mxu0 0.0
    %4555 = vmatpush2.msra.mxu0 0.0
    %4556 = vmatprep.subr.mxu0 0.0
    %4557 = vmatpush2.msra.mxu0 0.0
    %4558 = vmatprep.subr.mxu0 0.0
    %4559 = vmatpush2.msra.mxu0 0.0
    %4560 = vmatprep.subr.mxu0 0.0
    %4561 = vmatpush2.msra.mxu0 0.0
    %4562 = vmatprep.mubr.f32.mxu0 0.0
    %4563 = vmatmul.mubr.f32.gmra.mxu0 %v4415
    %v4564 = vpop.f32.mrf.mxu0
    %v4565 = vadd.f32 0.0, %v4564
    %v4566 = vpop.f32.mrf.mxu0
    %4567 = vdwg.mxu0
    %v4568 = vadd.f32 %v4420, %v4565
    %v4569 = vmul.f32 %v4568, 0.5
    %v4570 = vtanh.pop %v4569
    %v4571 = vmul.f32 %v4570, 0.5
    %v4572 = vadd.f32 %v4571, 0.5
    %4573 = vmatprep.subr.mxu0 0.0
    %4574 = vmatpush1.msra.mxu0 %v1157
    %4575 = vmatprep.subr.mxu0 0.0
    %4576 = vmatpush1.msra.mxu0 %v1156
    %4577 = vmatprep.subr.mxu0 0.0
    %4578 = vmatpush1.msra.mxu0 %v1155
    %4579 = vmatprep.subr.mxu0 0.0
    %4580 = vmatpush1.msra.mxu0 %v1154
    %4581 = vmatprep.subr.mxu0 0.0
    %4582 = vmatpush1.msra.mxu0 %v1153
    %4583 = vmatprep.subr.mxu0 0.0
    %4584 = vmatpush1.msra.mxu0 %v1152
    %4585 = vmatprep.subr.mxu0 0.0
    %4586 = vmatpush1.msra.mxu0 %v1151
    %4587 = vmatprep.subr.mxu0 0.0
    %4588 = vmatpush1.msra.mxu0 %v1150
    %4589 = vmatprep.subr.mxu0 0.0
    %4590 = vmatpush1.msra.mxu0 %v1149
    %4591 = vmatprep.subr.mxu0 0.0
    %4592 = vmatpush1.msra.mxu0 %v1148
    %4593 = vmatprep.subr.mxu0 0.0
    %4594 = vmatpush1.msra.mxu0 %v1147
    %4595 = vmatprep.subr.mxu0 0.0
    %4596 = vmatpush1.msra.mxu0 %v1146
    %4597 = vmatprep.subr.mxu0 0.0
    %4598 = vmatpush1.msra.mxu0 %v1145
    %4599 = vmatprep.subr.mxu0 0.0
    %4600 = vmatpush1.msra.mxu0 %v1144
    %4601 = vmatprep.subr.mxu0 0.0
    %4602 = vmatpush1.msra.mxu0 %v1143
    %4603 = vmatprep.subr.mxu0 0.0
    %4604 = vmatpush1.msra.mxu0 %v1142
    %4605 = vmatprep.subr.mxu0 0.0
    %4606 = vmatpush2.msra.mxu0 0.0
    %4607 = vmatprep.subr.mxu0 0.0
    %4608 = vmatpush2.msra.mxu0 0.0
    %4609 = vmatprep.subr.mxu0 0.0
    %4610 = vmatpush2.msra.mxu0 0.0
    %4611 = vmatprep.subr.mxu0 0.0
    %4612 = vmatpush2.msra.mxu0 0.0
    %4613 = vmatprep.subr.mxu0 0.0
    %4614 = vmatpush2.msra.mxu0 0.0
    %4615 = vmatprep.subr.mxu0 0.0
    %4616 = vmatpush2.msra.mxu0 0.0
    %4617 = vmatprep.subr.mxu0 0.0
    %4618 = vmatpush2.msra.mxu0 0.0
    %4619 = vmatprep.subr.mxu0 0.0
    %4620 = vmatpush2.msra.mxu0 0.0
    %4621 = vmatprep.subr.mxu0 0.0
    %4622 = vmatpush2.msra.mxu0 0.0
    %4623 = vmatprep.subr.mxu0 0.0
    %4624 = vmatpush2.msra.mxu0 0.0
    %4625 = vmatprep.subr.mxu0 0.0
    %4626 = vmatpush2.msra.mxu0 0.0
    %4627 = vmatprep.subr.mxu0 0.0
    %4628 = vmatpush2.msra.mxu0 0.0
    %4629 = vmatprep.subr.mxu0 0.0
    %4630 = vmatpush2.msra.mxu0 0.0
    %4631 = vmatprep.subr.mxu0 0.0
    %4632 = vmatpush2.msra.mxu0 0.0
    %4633 = vmatprep.subr.mxu0 0.0
    %4634 = vmatpush2.msra.mxu0 0.0
    %4635 = vmatprep.subr.mxu0 0.0
    %4636 = vmatpush2.msra.mxu0 0.0
    %4637 = vmatprep.mubr.f32.mxu0 0.0
    %4638 = vmatmul.mubr.f32.gmra.mxu0 %v4415
    %v4639 = vpop.f32.mrf.mxu0
    %v4640 = vadd.f32 0.0, %v4639
    %v4641 = vpop.f32.mrf.mxu0
    %4642 = vdwg.mxu0
    %v4643 = vadd.f32 %v4421, %v4640
    %v4644 = vtanh.pop %v4643
    %4645 = vmatprep.subr.mxu0 0.0
    %4646 = vmatpush1.msra.mxu0 %v1245
    %4647 = vmatprep.subr.mxu0 0.0
    %4648 = vmatpush1.msra.mxu0 %v1244
    %4649 = vmatprep.subr.mxu0 0.0
    %4650 = vmatpush1.msra.mxu0 %v1243
    %4651 = vmatprep.subr.mxu0 0.0
    %4652 = vmatpush1.msra.mxu0 %v1242
    %4653 = vmatprep.subr.mxu0 0.0
    %4654 = vmatpush1.msra.mxu0 %v1241
    %4655 = vmatprep.subr.mxu0 0.0
    %4656 = vmatpush1.msra.mxu0 %v1240
    %4657 = vmatprep.subr.mxu0 0.0
    %4658 = vmatpush1.msra.mxu0 %v1239
    %4659 = vmatprep.subr.mxu0 0.0
    %4660 = vmatpush1.msra.mxu0 %v1238
    %4661 = vmatprep.subr.mxu0 0.0
    %4662 = vmatpush1.msra.mxu0 %v1237
    %4663 = vmatprep.subr.mxu0 0.0
    %4664 = vmatpush1.msra.mxu0 %v1236
    %4665 = vmatprep.subr.mxu0 0.0
    %4666 = vmatpush1.msra.mxu0 %v1235
    %4667 = vmatprep.subr.mxu0 0.0
    %4668 = vmatpush1.msra.mxu0 %v1234
    %4669 = vmatprep.subr.mxu0 0.0
    %4670 = vmatpush1.msra.mxu0 %v1233
    %4671 = vmatprep.subr.mxu0 0.0
    %4672 = vmatpush1.msra.mxu0 %v1232
    %4673 = vmatprep.subr.mxu0 0.0
    %4674 = vmatpush1.msra.mxu0 %v1231
    %4675 = vmatprep.subr.mxu0 0.0
    %4676 = vmatpush1.msra.mxu0 %v1230
    %4677 = vmatprep.subr.mxu0 0.0
    %4678 = vmatpush2.msra.mxu0 0.0
    %4679 = vmatprep.subr.mxu0 0.0
    %4680 = vmatpush2.msra.mxu0 0.0
    %4681 = vmatprep.subr.mxu0 0.0
    %4682 = vmatpush2.msra.mxu0 0.0
    %4683 = vmatprep.subr.mxu0 0.0
    %4684 = vmatpush2.msra.mxu0 0.0
    %4685 = vmatprep.subr.mxu0 0.0
    %4686 = vmatpush2.msra.mxu0 0.0
    %4687 = vmatprep.subr.mxu0 0.0
    %4688 = vmatpush2.msra.mxu0 0.0
    %4689 = vmatprep.subr.mxu0 0.0
    %4690 = vmatpush2.msra.mxu0 0.0
    %4691 = vmatprep.subr.mxu0 0.0
    %4692 = vmatpush2.msra.mxu0 0.0
    %4693 = vmatprep.subr.mxu0 0.0
    %4694 = vmatpush2.msra.mxu0 0.0
    %4695 = vmatprep.subr.mxu0 0.0
    %4696 = vmatpush2.msra.mxu0 0.0
    %4697 = vmatprep.subr.mxu0 0.0
    %4698 = vmatpush2.msra.mxu0 0.0
    %4699 = vmatprep.subr.mxu0 0.0
    %4700 = vmatpush2.msra.mxu0 0.0
    %4701 = vmatprep.subr.mxu0 0.0
    %4702 = vmatpush2.msra.mxu0 0.0
    %4703 = vmatprep.subr.mxu0 0.0
    %4704 = vmatpush2.msra.mxu0 0.0
    %4705 = vmatprep.subr.mxu0 0.0
    %4706 = vmatpush2.msra.mxu0 0.0
    %4707 = vmatprep.subr.mxu0 0.0
    %4708 = vmatpush2.msra.mxu0 0.0
    %4709 = vmatprep.mubr.f32.mxu0 0.0
    %4710 = vmatmul.mubr.f32.gmra.mxu0 %v4415
    %v4711 = vpop.f32.mrf.mxu0
    %v4712 = vadd.f32 0.0, %v4711
    %v4713 = vpop.f32.mrf.mxu0
    %4714 = vdwg.mxu0
    %v4715 = vadd.f32 %v4422, %v4712
    %v4716 = vmul.f32 %v4715, 0.5
    %v4717 = vtanh.pop %v4716
    %v4718 = vmul.f32 %v4717, 0.5
    %v4719 = vadd.f32 %v4718, 0.5
    %v4720 = vmul.f32 %v4572, %v4413
    %v4721 = vmul.f32 %v4497, %v4644
    %v4722 = vadd.f32 %v4720, %v4721
    %v4723 = vtanh.pop %v4722
    %v4724 = vmul.f32 %v4719, %v4723
    %s4725 = smul.u32 12, 4
    %s4726 = smul.addr %s4725, 8
    %s4727 = scalar_lea.vmem [#allocation2], %s4726
    %v4728 = vld [vmem:[%s4727] sm:$0xff]
    %v4729 = vld [vmem:[%s4727 + $0x8] sm:$0xff]
    %v4730 = vld [vmem:[%s4727 + $0x10] sm:$0xff]
    %v4731 = vld [vmem:[%s4727 + $0x18] sm:$0xff]
    %4732 = vmatprep.subr.mxu0 0.0
    %4733 = vmatpush1.msra.mxu0 %v975
    %4734 = vmatprep.subr.mxu0 0.0
    %4735 = vmatpush1.msra.mxu0 %v974
    %4736 = vmatprep.subr.mxu0 0.0
    %4737 = vmatpush1.msra.mxu0 %v973
    %4738 = vmatprep.subr.mxu0 0.0
    %4739 = vmatpush1.msra.mxu0 %v972
    %4740 = vmatprep.subr.mxu0 0.0
    %4741 = vmatpush1.msra.mxu0 %v971
    %4742 = vmatprep.subr.mxu0 0.0
    %4743 = vmatpush1.msra.mxu0 %v970
    %4744 = vmatprep.subr.mxu0 0.0
    %4745 = vmatpush1.msra.mxu0 %v969
    %4746 = vmatprep.subr.mxu0 0.0
    %4747 = vmatpush1.msra.mxu0 %v968
    %4748 = vmatprep.subr.mxu0 0.0
    %4749 = vmatpush1.msra.mxu0 %v967
    %4750 = vmatprep.subr.mxu0 0.0
    %4751 = vmatpush1.msra.mxu0 %v966
    %4752 = vmatprep.subr.mxu0 0.0
    %4753 = vmatpush1.msra.mxu0 %v965
    %4754 = vmatprep.subr.mxu0 0.0
    %4755 = vmatpush1.msra.mxu0 %v964
    %4756 = vmatprep.subr.mxu0 0.0
    %4757 = vmatpush1.msra.mxu0 %v963
    %4758 = vmatprep.subr.mxu0 0.0
    %4759 = vmatpush1.msra.mxu0 %v962
    %4760 = vmatprep.subr.mxu0 0.0
    %4761 = vmatpush1.msra.mxu0 %v961
    %4762 = vmatprep.subr.mxu0 0.0
    %4763 = vmatpush1.msra.mxu0 %v960
    %4764 = vmatprep.subr.mxu0 0.0
    %4765 = vmatpush2.msra.mxu0 0.0
    %4766 = vmatprep.subr.mxu0 0.0
    %4767 = vmatpush2.msra.mxu0 0.0
    %4768 = vmatprep.subr.mxu0 0.0
    %4769 = vmatpush2.msra.mxu0 0.0
    %4770 = vmatprep.subr.mxu0 0.0
    %4771 = vmatpush2.msra.mxu0 0.0
    %4772 = vmatprep.subr.mxu0 0.0
    %4773 = vmatpush2.msra.mxu0 0.0
    %4774 = vmatprep.subr.mxu0 0.0
    %4775 = vmatpush2.msra.mxu0 0.0
    %4776 = vmatprep.subr.mxu0 0.0
    %4777 = vmatpush2.msra.mxu0 0.0
    %4778 = vmatprep.subr.mxu0 0.0
    %4779 = vmatpush2.msra.mxu0 0.0
    %4780 = vmatprep.subr.mxu0 0.0
    %4781 = vmatpush2.msra.mxu0 0.0
    %4782 = vmatprep.subr.mxu0 0.0
    %4783 = vmatpush2.msra.mxu0 0.0
    %4784 = vmatprep.subr.mxu0 0.0
    %4785 = vmatpush2.msra.mxu0 0.0
    %4786 = vmatprep.subr.mxu0 0.0
    %4787 = vmatpush2.msra.mxu0 0.0
    %4788 = vmatprep.subr.mxu0 0.0
    %4789 = vmatpush2.msra.mxu0 0.0
    %4790 = vmatprep.subr.mxu0 0.0
    %4791 = vmatpush2.msra.mxu0 0.0
    %4792 = vmatprep.subr.mxu0 0.0
    %4793 = vmatpush2.msra.mxu0 0.0
    %4794 = vmatprep.subr.mxu0 0.0
    %4795 = vmatpush2.msra.mxu0 0.0
    %4796 = vmatprep.mubr.f32.mxu0 0.0
    %4797 = vmatmul.mubr.f32.gmra.mxu0 %v4724
    %v4798 = vpop.f32.mrf.mxu0
    %v4799 = vadd.f32 0.0, %v4798
    %v4800 = vpop.f32.mrf.mxu0
    %4801 = vdwg.mxu0
    %v4802 = vadd.f32 %v4728, %v4799
    %v4803 = vmul.f32 %v4802, 0.5
    %v4804 = vtanh.pop %v4803
    %v4805 = vmul.f32 %v4804, 0.5
    %v4806 = vadd.f32 %v4805, 0.5
    %4807 = vmatprep.subr.mxu0 0.0
    %4808 = vmatpush1.msra.mxu0 %v1066
    %4809 = vmatprep.subr.mxu0 0.0
    %4810 = vmatpush1.msra.mxu0 %v1065
    %4811 = vmatprep.subr.mxu0 0.0
    %4812 = vmatpush1.msra.mxu0 %v1064
    %4813 = vmatprep.subr.mxu0 0.0
    %4814 = vmatpush1.msra.mxu0 %v1063
    %4815 = vmatprep.subr.mxu0 0.0
    %4816 = vmatpush1.msra.mxu0 %v1062
    %4817 = vmatprep.subr.mxu0 0.0
    %4818 = vmatpush1.msra.mxu0 %v1061
    %4819 = vmatprep.subr.mxu0 0.0
    %4820 = vmatpush1.msra.mxu0 %v1060
    %4821 = vmatprep.subr.mxu0 0.0
    %4822 = vmatpush1.msra.mxu0 %v1059
    %4823 = vmatprep.subr.mxu0 0.0
    %4824 = vmatpush1.msra.mxu0 %v1058
    %4825 = vmatprep.subr.mxu0 0.0
    %4826 = vmatpush1.msra.mxu0 %v1057
    %4827 = vmatprep.subr.mxu0 0.0
    %4828 = vmatpush1.msra.mxu0 %v1056
    %4829 = vmatprep.subr.mxu0 0.0
    %4830 = vmatpush1.msra.mxu0 %v1055
    %4831 = vmatprep.subr.mxu0 0.0
    %4832 = vmatpush1.msra.mxu0 %v1054
    %4833 = vmatprep.subr.mxu0 0.0
    %4834 = vmatpush1.msra.mxu0 %v1053
    %4835 = vmatprep.subr.mxu0 0.0
    %4836 = vmatpush1.msra.mxu0 %v1052
    %4837 = vmatprep.subr.mxu0 0.0
    %4838 = vmatpush1.msra.mxu0 %v1051
    %4839 = vmatprep.subr.mxu0 0.0
    %4840 = vmatpush2.msra.mxu0 0.0
    %4841 = vmatprep.subr.mxu0 0.0
    %4842 = vmatpush2.msra.mxu0 0.0
    %4843 = vmatprep.subr.mxu0 0.0
    %4844 = vmatpush2.msra.mxu0 0.0
    %4845 = vmatprep.subr.mxu0 0.0
    %4846 = vmatpush2.msra.mxu0 0.0
    %4847 = vmatprep.subr.mxu0 0.0
    %4848 = vmatpush2.msra.mxu0 0.0
    %4849 = vmatprep.subr.mxu0 0.0
    %4850 = vmatpush2.msra.mxu0 0.0
    %4851 = vmatprep.subr.mxu0 0.0
    %4852 = vmatpush2.msra.mxu0 0.0
    %4853 = vmatprep.subr.mxu0 0.0
    %4854 = vmatpush2.msra.mxu0 0.0
    %4855 = vmatprep.subr.mxu0 0.0
    %4856 = vmatpush2.msra.mxu0 0.0
    %4857 = vmatprep.subr.mxu0 0.0
    %4858 = vmatpush2.msra.mxu0 0.0
    %4859 = vmatprep.subr.mxu0 0.0
    %4860 = vmatpush2.msra.mxu0 0.0
    %4861 = vmatprep.subr.mxu0 0.0
    %4862 = vmatpush2.msra.mxu0 0.0
    %4863 = vmatprep.subr.mxu0 0.0
    %4864 = vmatpush2.msra.mxu0 0.0
    %4865 = vmatprep.subr.mxu0 0.0
    %4866 = vmatpush2.msra.mxu0 0.0
    %4867 = vmatprep.subr.mxu0 0.0
    %4868 = vmatpush2.msra.mxu0 0.0
    %4869 = vmatprep.subr.mxu0 0.0
    %4870 = vmatpush2.msra.mxu0 0.0
    %4871 = vmatprep.mubr.f32.mxu0 0.0
    %4872 = vmatmul.mubr.f32.gmra.mxu0 %v4724
    %v4873 = vpop.f32.mrf.mxu0
    %v4874 = vadd.f32 0.0, %v4873
    %v4875 = vpop.f32.mrf.mxu0
    %4876 = vdwg.mxu0
    %v4877 = vadd.f32 %v4729, %v4874
    %v4878 = vmul.f32 %v4877, 0.5
    %v4879 = vtanh.pop %v4878
    %v4880 = vmul.f32 %v4879, 0.5
    %v4881 = vadd.f32 %v4880, 0.5
    %4882 = vmatprep.subr.mxu0 0.0
    %4883 = vmatpush1.msra.mxu0 %v1157
    %4884 = vmatprep.subr.mxu0 0.0
    %4885 = vmatpush1.msra.mxu0 %v1156
    %4886 = vmatprep.subr.mxu0 0.0
    %4887 = vmatpush1.msra.mxu0 %v1155
    %4888 = vmatprep.subr.mxu0 0.0
    %4889 = vmatpush1.msra.mxu0 %v1154
    %4890 = vmatprep.subr.mxu0 0.0
    %4891 = vmatpush1.msra.mxu0 %v1153
    %4892 = vmatprep.subr.mxu0 0.0
    %4893 = vmatpush1.msra.mxu0 %v1152
    %4894 = vmatprep.subr.mxu0 0.0
    %4895 = vmatpush1.msra.mxu0 %v1151
    %4896 = vmatprep.subr.mxu0 0.0
    %4897 = vmatpush1.msra.mxu0 %v1150
    %4898 = vmatprep.subr.mxu0 0.0
    %4899 = vmatpush1.msra.mxu0 %v1149
    %4900 = vmatprep.subr.mxu0 0.0
    %4901 = vmatpush1.msra.mxu0 %v1148
    %4902 = vmatprep.subr.mxu0 0.0
    %4903 = vmatpush1.msra.mxu0 %v1147
    %4904 = vmatprep.subr.mxu0 0.0
    %4905 = vmatpush1.msra.mxu0 %v1146
    %4906 = vmatprep.subr.mxu0 0.0
    %4907 = vmatpush1.msra.mxu0 %v1145
    %4908 = vmatprep.subr.mxu0 0.0
    %4909 = vmatpush1.msra.mxu0 %v1144
    %4910 = vmatprep.subr.mxu0 0.0
    %4911 = vmatpush1.msra.mxu0 %v1143
    %4912 = vmatprep.subr.mxu0 0.0
    %4913 = vmatpush1.msra.mxu0 %v1142
    %4914 = vmatprep.subr.mxu0 0.0
    %4915 = vmatpush2.msra.mxu0 0.0
    %4916 = vmatprep.subr.mxu0 0.0
    %4917 = vmatpush2.msra.mxu0 0.0
    %4918 = vmatprep.subr.mxu0 0.0
    %4919 = vmatpush2.msra.mxu0 0.0
    %4920 = vmatprep.subr.mxu0 0.0
    %4921 = vmatpush2.msra.mxu0 0.0
    %4922 = vmatprep.subr.mxu0 0.0
    %4923 = vmatpush2.msra.mxu0 0.0
    %4924 = vmatprep.subr.mxu0 0.0
    %4925 = vmatpush2.msra.mxu0 0.0
    %4926 = vmatprep.subr.mxu0 0.0
    %4927 = vmatpush2.msra.mxu0 0.0
    %4928 = vmatprep.subr.mxu0 0.0
    %4929 = vmatpush2.msra.mxu0 0.0
    %4930 = vmatprep.subr.mxu0 0.0
    %4931 = vmatpush2.msra.mxu0 0.0
    %4932 = vmatprep.subr.mxu0 0.0
    %4933 = vmatpush2.msra.mxu0 0.0
    %4934 = vmatprep.subr.mxu0 0.0
    %4935 = vmatpush2.msra.mxu0 0.0
    %4936 = vmatprep.subr.mxu0 0.0
    %4937 = vmatpush2.msra.mxu0 0.0
    %4938 = vmatprep.subr.mxu0 0.0
    %4939 = vmatpush2.msra.mxu0 0.0
    %4940 = vmatprep.subr.mxu0 0.0
    %4941 = vmatpush2.msra.mxu0 0.0
    %4942 = vmatprep.subr.mxu0 0.0
    %4943 = vmatpush2.msra.mxu0 0.0
    %4944 = vmatprep.subr.mxu0 0.0
    %4945 = vmatpush2.msra.mxu0 0.0
    %4946 = vmatprep.mubr.f32.mxu0 0.0
    %4947 = vmatmul.mubr.f32.gmra.mxu0 %v4724
    %v4948 = vpop.f32.mrf.mxu0
    %v4949 = vadd.f32 0.0, %v4948
    %v4950 = vpop.f32.mrf.mxu0
    %4951 = vdwg.mxu0
    %v4952 = vadd.f32 %v4730, %v4949
    %v4953 = vtanh.pop %v4952
    %4954 = vmatprep.subr.mxu0 0.0
    %4955 = vmatpush1.msra.mxu0 %v1245
    %4956 = vmatprep.subr.mxu0 0.0
    %4957 = vmatpush1.msra.mxu0 %v1244
    %4958 = vmatprep.subr.mxu0 0.0
    %4959 = vmatpush1.msra.mxu0 %v1243
    %4960 = vmatprep.subr.mxu0 0.0
    %4961 = vmatpush1.msra.mxu0 %v1242
    %4962 = vmatprep.subr.mxu0 0.0
    %4963 = vmatpush1.msra.mxu0 %v1241
    %4964 = vmatprep.subr.mxu0 0.0
    %4965 = vmatpush1.msra.mxu0 %v1240
    %4966 = vmatprep.subr.mxu0 0.0
    %4967 = vmatpush1.msra.mxu0 %v1239
    %4968 = vmatprep.subr.mxu0 0.0
    %4969 = vmatpush1.msra.mxu0 %v1238
    %4970 = vmatprep.subr.mxu0 0.0
    %4971 = vmatpush1.msra.mxu0 %v1237
    %4972 = vmatprep.subr.mxu0 0.0
    %4973 = vmatpush1.msra.mxu0 %v1236
    %4974 = vmatprep.subr.mxu0 0.0
    %4975 = vmatpush1.msra.mxu0 %v1235
    %4976 = vmatprep.subr.mxu0 0.0
    %4977 = vmatpush1.msra.mxu0 %v1234
    %4978 = vmatprep.subr.mxu0 0.0
    %4979 = vmatpush1.msra.mxu0 %v1233
    %4980 = vmatprep.subr.mxu0 0.0
    %4981 = vmatpush1.msra.mxu0 %v1232
    %4982 = vmatprep.subr.mxu0 0.0
    %4983 = vmatpush1.msra.mxu0 %v1231
    %4984 = vmatprep.subr.mxu0 0.0
    %4985 = vmatpush1.msra.mxu0 %v1230
    %4986 = vmatprep.subr.mxu0 0.0
    %4987 = vmatpush2.msra.mxu0 0.0
    %4988 = vmatprep.subr.mxu0 0.0
    %4989 = vmatpush2.msra.mxu0 0.0
    %4990 = vmatprep.subr.mxu0 0.0
    %4991 = vmatpush2.msra.mxu0 0.0
    %4992 = vmatprep.subr.mxu0 0.0
    %4993 = vmatpush2.msra.mxu0 0.0
    %4994 = vmatprep.subr.mxu0 0.0
    %4995 = vmatpush2.msra.mxu0 0.0
    %4996 = vmatprep.subr.mxu0 0.0
    %4997 = vmatpush2.msra.mxu0 0.0
    %4998 = vmatprep.subr.mxu0 0.0
    %4999 = vmatpush2.msra.mxu0 0.0
    %5000 = vmatprep.subr.mxu0 0.0
    %5001 = vmatpush2.msra.mxu0 0.0
    %5002 = vmatprep.subr.mxu0 0.0
    %5003 = vmatpush2.msra.mxu0 0.0
    %5004 = vmatprep.subr.mxu0 0.0
    %5005 = vmatpush2.msra.mxu0 0.0
    %5006 = vmatprep.subr.mxu0 0.0
    %5007 = vmatpush2.msra.mxu0 0.0
    %5008 = vmatprep.subr.mxu0 0.0
    %5009 = vmatpush2.msra.mxu0 0.0
    %5010 = vmatprep.subr.mxu0 0.0
    %5011 = vmatpush2.msra.mxu0 0.0
    %5012 = vmatprep.subr.mxu0 0.0
    %5013 = vmatpush2.msra.mxu0 0.0
    %5014 = vmatprep.subr.mxu0 0.0
    %5015 = vmatpush2.msra.mxu0 0.0
    %5016 = vmatprep.subr.mxu0 0.0
    %5017 = vmatpush2.msra.mxu0 0.0
    %5018 = vmatprep.mubr.f32.mxu0 0.0
    %5019 = vmatmul.mubr.f32.gmra.mxu0 %v4724
    %v5020 = vpop.f32.mrf.mxu0
    %v5021 = vadd.f32 0.0, %v5020
    %v5022 = vpop.f32.mrf.mxu0
    %5023 = vdwg.mxu0
    %v5024 = vadd.f32 %v4731, %v5021
    %v5025 = vmul.f32 %v5024, 0.5
    %v5026 = vtanh.pop %v5025
    %v5027 = vmul.f32 %v5026, 0.5
    %v5028 = vadd.f32 %v5027, 0.5
    %v5029 = vmul.f32 %v4881, %v4722
    %v5030 = vmul.f32 %v4806, %v4953
    %v5031 = vadd.f32 %v5029, %v5030
    %v5032 = vtanh.pop %v5031
    %v5033 = vmul.f32 %v5028, %v5032
    %s5034 = smul.u32 13, 4
    %s5035 = smul.addr %s5034, 8
    %s5036 = scalar_lea.vmem [#allocation2], %s5035
    %v5037 = vld [vmem:[%s5036] sm:$0xff]
    %v5038 = vld [vmem:[%s5036 + $0x8] sm:$0xff]
    %v5039 = vld [vmem:[%s5036 + $0x10] sm:$0xff]
    %v5040 = vld [vmem:[%s5036 + $0x18] sm:$0xff]
    %5041 = vmatprep.subr.mxu0 0.0
    %5042 = vmatpush1.msra.mxu0 %v975
    %5043 = vmatprep.subr.mxu0 0.0
    %5044 = vmatpush1.msra.mxu0 %v974
    %5045 = vmatprep.subr.mxu0 0.0
    %5046 = vmatpush1.msra.mxu0 %v973
    %5047 = vmatprep.subr.mxu0 0.0
    %5048 = vmatpush1.msra.mxu0 %v972
    %5049 = vmatprep.subr.mxu0 0.0
    %5050 = vmatpush1.msra.mxu0 %v971
    %5051 = vmatprep.subr.mxu0 0.0
    %5052 = vmatpush1.msra.mxu0 %v970
    %5053 = vmatprep.subr.mxu0 0.0
    %5054 = vmatpush1.msra.mxu0 %v969
    %5055 = vmatprep.subr.mxu0 0.0
    %5056 = vmatpush1.msra.mxu0 %v968
    %5057 = vmatprep.subr.mxu0 0.0
    %5058 = vmatpush1.msra.mxu0 %v967
    %5059 = vmatprep.subr.mxu0 0.0
    %5060 = vmatpush1.msra.mxu0 %v966
    %5061 = vmatprep.subr.mxu0 0.0
    %5062 = vmatpush1.msra.mxu0 %v965
    %5063 = vmatprep.subr.mxu0 0.0
    %5064 = vmatpush1.msra.mxu0 %v964
    %5065 = vmatprep.subr.mxu0 0.0
    %5066 = vmatpush1.msra.mxu0 %v963
    %5067 = vmatprep.subr.mxu0 0.0
    %5068 = vmatpush1.msra.mxu0 %v962
    %5069 = vmatprep.subr.mxu0 0.0
    %5070 = vmatpush1.msra.mxu0 %v961
    %5071 = vmatprep.subr.mxu0 0.0
    %5072 = vmatpush1.msra.mxu0 %v960
    %5073 = vmatprep.subr.mxu0 0.0
    %5074 = vmatpush2.msra.mxu0 0.0
    %5075 = vmatprep.subr.mxu0 0.0
    %5076 = vmatpush2.msra.mxu0 0.0
    %5077 = vmatprep.subr.mxu0 0.0
    %5078 = vmatpush2.msra.mxu0 0.0
    %5079 = vmatprep.subr.mxu0 0.0
    %5080 = vmatpush2.msra.mxu0 0.0
    %5081 = vmatprep.subr.mxu0 0.0
    %5082 = vmatpush2.msra.mxu0 0.0
    %5083 = vmatprep.subr.mxu0 0.0
    %5084 = vmatpush2.msra.mxu0 0.0
    %5085 = vmatprep.subr.mxu0 0.0
    %5086 = vmatpush2.msra.mxu0 0.0
    %5087 = vmatprep.subr.mxu0 0.0
    %5088 = vmatpush2.msra.mxu0 0.0
    %5089 = vmatprep.subr.mxu0 0.0
    %5090 = vmatpush2.msra.mxu0 0.0
    %5091 = vmatprep.subr.mxu0 0.0
    %5092 = vmatpush2.msra.mxu0 0.0
    %5093 = vmatprep.subr.mxu0 0.0
    %5094 = vmatpush2.msra.mxu0 0.0
    %5095 = vmatprep.subr.mxu0 0.0
    %5096 = vmatpush2.msra.mxu0 0.0
    %5097 = vmatprep.subr.mxu0 0.0
    %5098 = vmatpush2.msra.mxu0 0.0
    %5099 = vmatprep.subr.mxu0 0.0
    %5100 = vmatpush2.msra.mxu0 0.0
    %5101 = vmatprep.subr.mxu0 0.0
    %5102 = vmatpush2.msra.mxu0 0.0
    %5103 = vmatprep.subr.mxu0 0.0
    %5104 = vmatpush2.msra.mxu0 0.0
    %5105 = vmatprep.mubr.f32.mxu0 0.0
    %5106 = vmatmul.mubr.f32.gmra.mxu0 %v5033
    %v5107 = vpop.f32.mrf.mxu0
    %v5108 = vadd.f32 0.0, %v5107
    %v5109 = vpop.f32.mrf.mxu0
    %5110 = vdwg.mxu0
    %v5111 = vadd.f32 %v5037, %v5108
    %v5112 = vmul.f32 %v5111, 0.5
    %v5113 = vtanh.pop %v5112
    %v5114 = vmul.f32 %v5113, 0.5
    %v5115 = vadd.f32 %v5114, 0.5
    %5116 = vmatprep.subr.mxu0 0.0
    %5117 = vmatpush1.msra.mxu0 %v1066
    %5118 = vmatprep.subr.mxu0 0.0
    %5119 = vmatpush1.msra.mxu0 %v1065
    %5120 = vmatprep.subr.mxu0 0.0
    %5121 = vmatpush1.msra.mxu0 %v1064
    %5122 = vmatprep.subr.mxu0 0.0
    %5123 = vmatpush1.msra.mxu0 %v1063
    %5124 = vmatprep.subr.mxu0 0.0
    %5125 = vmatpush1.msra.mxu0 %v1062
    %5126 = vmatprep.subr.mxu0 0.0
    %5127 = vmatpush1.msra.mxu0 %v1061
    %5128 = vmatprep.subr.mxu0 0.0
    %5129 = vmatpush1.msra.mxu0 %v1060
    %5130 = vmatprep.subr.mxu0 0.0
    %5131 = vmatpush1.msra.mxu0 %v1059
    %5132 = vmatprep.subr.mxu0 0.0
    %5133 = vmatpush1.msra.mxu0 %v1058
    %5134 = vmatprep.subr.mxu0 0.0
    %5135 = vmatpush1.msra.mxu0 %v1057
    %5136 = vmatprep.subr.mxu0 0.0
    %5137 = vmatpush1.msra.mxu0 %v1056
    %5138 = vmatprep.subr.mxu0 0.0
    %5139 = vmatpush1.msra.mxu0 %v1055
    %5140 = vmatprep.subr.mxu0 0.0
    %5141 = vmatpush1.msra.mxu0 %v1054
    %5142 = vmatprep.subr.mxu0 0.0
    %5143 = vmatpush1.msra.mxu0 %v1053
    %5144 = vmatprep.subr.mxu0 0.0
    %5145 = vmatpush1.msra.mxu0 %v1052
    %5146 = vmatprep.subr.mxu0 0.0
    %5147 = vmatpush1.msra.mxu0 %v1051
    %5148 = vmatprep.subr.mxu0 0.0
    %5149 = vmatpush2.msra.mxu0 0.0
    %5150 = vmatprep.subr.mxu0 0.0
    %5151 = vmatpush2.msra.mxu0 0.0
    %5152 = vmatprep.subr.mxu0 0.0
    %5153 = vmatpush2.msra.mxu0 0.0
    %5154 = vmatprep.subr.mxu0 0.0
    %5155 = vmatpush2.msra.mxu0 0.0
    %5156 = vmatprep.subr.mxu0 0.0
    %5157 = vmatpush2.msra.mxu0 0.0
    %5158 = vmatprep.subr.mxu0 0.0
    %5159 = vmatpush2.msra.mxu0 0.0
    %5160 = vmatprep.subr.mxu0 0.0
    %5161 = vmatpush2.msra.mxu0 0.0
    %5162 = vmatprep.subr.mxu0 0.0
    %5163 = vmatpush2.msra.mxu0 0.0
    %5164 = vmatprep.subr.mxu0 0.0
    %5165 = vmatpush2.msra.mxu0 0.0
    %5166 = vmatprep.subr.mxu0 0.0
    %5167 = vmatpush2.msra.mxu0 0.0
    %5168 = vmatprep.subr.mxu0 0.0
    %5169 = vmatpush2.msra.mxu0 0.0
    %5170 = vmatprep.subr.mxu0 0.0
    %5171 = vmatpush2.msra.mxu0 0.0
    %5172 = vmatprep.subr.mxu0 0.0
    %5173 = vmatpush2.msra.mxu0 0.0
    %5174 = vmatprep.subr.mxu0 0.0
    %5175 = vmatpush2.msra.mxu0 0.0
    %5176 = vmatprep.subr.mxu0 0.0
    %5177 = vmatpush2.msra.mxu0 0.0
    %5178 = vmatprep.subr.mxu0 0.0
    %5179 = vmatpush2.msra.mxu0 0.0
    %5180 = vmatprep.mubr.f32.mxu0 0.0
    %5181 = vmatmul.mubr.f32.gmra.mxu0 %v5033
    %v5182 = vpop.f32.mrf.mxu0
    %v5183 = vadd.f32 0.0, %v5182
    %v5184 = vpop.f32.mrf.mxu0
    %5185 = vdwg.mxu0
    %v5186 = vadd.f32 %v5038, %v5183
    %v5187 = vmul.f32 %v5186, 0.5
    %v5188 = vtanh.pop %v5187
    %v5189 = vmul.f32 %v5188, 0.5
    %v5190 = vadd.f32 %v5189, 0.5
    %5191 = vmatprep.subr.mxu0 0.0
    %5192 = vmatpush1.msra.mxu0 %v1157
    %5193 = vmatprep.subr.mxu0 0.0
    %5194 = vmatpush1.msra.mxu0 %v1156
    %5195 = vmatprep.subr.mxu0 0.0
    %5196 = vmatpush1.msra.mxu0 %v1155
    %5197 = vmatprep.subr.mxu0 0.0
    %5198 = vmatpush1.msra.mxu0 %v1154
    %5199 = vmatprep.subr.mxu0 0.0
    %5200 = vmatpush1.msra.mxu0 %v1153
    %5201 = vmatprep.subr.mxu0 0.0
    %5202 = vmatpush1.msra.mxu0 %v1152
    %5203 = vmatprep.subr.mxu0 0.0
    %5204 = vmatpush1.msra.mxu0 %v1151
    %5205 = vmatprep.subr.mxu0 0.0
    %5206 = vmatpush1.msra.mxu0 %v1150
    %5207 = vmatprep.subr.mxu0 0.0
    %5208 = vmatpush1.msra.mxu0 %v1149
    %5209 = vmatprep.subr.mxu0 0.0
    %5210 = vmatpush1.msra.mxu0 %v1148
    %5211 = vmatprep.subr.mxu0 0.0
    %5212 = vmatpush1.msra.mxu0 %v1147
    %5213 = vmatprep.subr.mxu0 0.0
    %5214 = vmatpush1.msra.mxu0 %v1146
    %5215 = vmatprep.subr.mxu0 0.0
    %5216 = vmatpush1.msra.mxu0 %v1145
    %5217 = vmatprep.subr.mxu0 0.0
    %5218 = vmatpush1.msra.mxu0 %v1144
    %5219 = vmatprep.subr.mxu0 0.0
    %5220 = vmatpush1.msra.mxu0 %v1143
    %5221 = vmatprep.subr.mxu0 0.0
    %5222 = vmatpush1.msra.mxu0 %v1142
    %5223 = vmatprep.subr.mxu0 0.0
    %5224 = vmatpush2.msra.mxu0 0.0
    %5225 = vmatprep.subr.mxu0 0.0
    %5226 = vmatpush2.msra.mxu0 0.0
    %5227 = vmatprep.subr.mxu0 0.0
    %5228 = vmatpush2.msra.mxu0 0.0
    %5229 = vmatprep.subr.mxu0 0.0
    %5230 = vmatpush2.msra.mxu0 0.0
    %5231 = vmatprep.subr.mxu0 0.0
    %5232 = vmatpush2.msra.mxu0 0.0
    %5233 = vmatprep.subr.mxu0 0.0
    %5234 = vmatpush2.msra.mxu0 0.0
    %5235 = vmatprep.subr.mxu0 0.0
    %5236 = vmatpush2.msra.mxu0 0.0
    %5237 = vmatprep.subr.mxu0 0.0
    %5238 = vmatpush2.msra.mxu0 0.0
    %5239 = vmatprep.subr.mxu0 0.0
    %5240 = vmatpush2.msra.mxu0 0.0
    %5241 = vmatprep.subr.mxu0 0.0
    %5242 = vmatpush2.msra.mxu0 0.0
    %5243 = vmatprep.subr.mxu0 0.0
    %5244 = vmatpush2.msra.mxu0 0.0
    %5245 = vmatprep.subr.mxu0 0.0
    %5246 = vmatpush2.msra.mxu0 0.0
    %5247 = vmatprep.subr.mxu0 0.0
    %5248 = vmatpush2.msra.mxu0 0.0
    %5249 = vmatprep.subr.mxu0 0.0
    %5250 = vmatpush2.msra.mxu0 0.0
    %5251 = vmatprep.subr.mxu0 0.0
    %5252 = vmatpush2.msra.mxu0 0.0
    %5253 = vmatprep.subr.mxu0 0.0
    %5254 = vmatpush2.msra.mxu0 0.0
    %5255 = vmatprep.mubr.f32.mxu0 0.0
    %5256 = vmatmul.mubr.f32.gmra.mxu0 %v5033
    %v5257 = vpop.f32.mrf.mxu0
    %v5258 = vadd.f32 0.0, %v5257
    %v5259 = vpop.f32.mrf.mxu0
    %5260 = vdwg.mxu0
    %v5261 = vadd.f32 %v5039, %v5258
    %v5262 = vtanh.pop %v5261
    %5263 = vmatprep.subr.mxu0 0.0
    %5264 = vmatpush1.msra.mxu0 %v1245
    %5265 = vmatprep.subr.mxu0 0.0
    %5266 = vmatpush1.msra.mxu0 %v1244
    %5267 = vmatprep.subr.mxu0 0.0
    %5268 = vmatpush1.msra.mxu0 %v1243
    %5269 = vmatprep.subr.mxu0 0.0
    %5270 = vmatpush1.msra.mxu0 %v1242
    %5271 = vmatprep.subr.mxu0 0.0
    %5272 = vmatpush1.msra.mxu0 %v1241
    %5273 = vmatprep.subr.mxu0 0.0
    %5274 = vmatpush1.msra.mxu0 %v1240
    %5275 = vmatprep.subr.mxu0 0.0
    %5276 = vmatpush1.msra.mxu0 %v1239
    %5277 = vmatprep.subr.mxu0 0.0
    %5278 = vmatpush1.msra.mxu0 %v1238
    %5279 = vmatprep.subr.mxu0 0.0
    %5280 = vmatpush1.msra.mxu0 %v1237
    %5281 = vmatprep.subr.mxu0 0.0
    %5282 = vmatpush1.msra.mxu0 %v1236
    %5283 = vmatprep.subr.mxu0 0.0
    %5284 = vmatpush1.msra.mxu0 %v1235
    %5285 = vmatprep.subr.mxu0 0.0
    %5286 = vmatpush1.msra.mxu0 %v1234
    %5287 = vmatprep.subr.mxu0 0.0
    %5288 = vmatpush1.msra.mxu0 %v1233
    %5289 = vmatprep.subr.mxu0 0.0
    %5290 = vmatpush1.msra.mxu0 %v1232
    %5291 = vmatprep.subr.mxu0 0.0
    %5292 = vmatpush1.msra.mxu0 %v1231
    %5293 = vmatprep.subr.mxu0 0.0
    %5294 = vmatpush1.msra.mxu0 %v1230
    %5295 = vmatprep.subr.mxu0 0.0
    %5296 = vmatpush2.msra.mxu0 0.0
    %5297 = vmatprep.subr.mxu0 0.0
    %5298 = vmatpush2.msra.mxu0 0.0
    %5299 = vmatprep.subr.mxu0 0.0
    %5300 = vmatpush2.msra.mxu0 0.0
    %5301 = vmatprep.subr.mxu0 0.0
    %5302 = vmatpush2.msra.mxu0 0.0
    %5303 = vmatprep.subr.mxu0 0.0
    %5304 = vmatpush2.msra.mxu0 0.0
    %5305 = vmatprep.subr.mxu0 0.0
    %5306 = vmatpush2.msra.mxu0 0.0
    %5307 = vmatprep.subr.mxu0 0.0
    %5308 = vmatpush2.msra.mxu0 0.0
    %5309 = vmatprep.subr.mxu0 0.0
    %5310 = vmatpush2.msra.mxu0 0.0
    %5311 = vmatprep.subr.mxu0 0.0
    %5312 = vmatpush2.msra.mxu0 0.0
    %5313 = vmatprep.subr.mxu0 0.0
    %5314 = vmatpush2.msra.mxu0 0.0
    %5315 = vmatprep.subr.mxu0 0.0
    %5316 = vmatpush2.msra.mxu0 0.0
    %5317 = vmatprep.subr.mxu0 0.0
    %5318 = vmatpush2.msra.mxu0 0.0
    %5319 = vmatprep.subr.mxu0 0.0
    %5320 = vmatpush2.msra.mxu0 0.0
    %5321 = vmatprep.subr.mxu0 0.0
    %5322 = vmatpush2.msra.mxu0 0.0
    %5323 = vmatprep.subr.mxu0 0.0
    %5324 = vmatpush2.msra.mxu0 0.0
    %5325 = vmatprep.subr.mxu0 0.0
    %5326 = vmatpush2.msra.mxu0 0.0
    %5327 = vmatprep.mubr.f32.mxu0 0.0
    %5328 = vmatmul.mubr.f32.gmra.mxu0 %v5033
    %v5329 = vpop.f32.mrf.mxu0
    %v5330 = vadd.f32 0.0, %v5329
    %v5331 = vpop.f32.mrf.mxu0
    %5332 = vdwg.mxu0
    %v5333 = vadd.f32 %v5040, %v5330
    %v5334 = vmul.f32 %v5333, 0.5
    %v5335 = vtanh.pop %v5334
    %v5336 = vmul.f32 %v5335, 0.5
    %v5337 = vadd.f32 %v5336, 0.5
    %v5338 = vmul.f32 %v5190, %v5031
    %v5339 = vmul.f32 %v5115, %v5262
    %v5340 = vadd.f32 %v5338, %v5339
    %v5341 = vtanh.pop %v5340
    %v5342 = vmul.f32 %v5337, %v5341
    %s5343 = smul.u32 14, 4
    %s5344 = smul.addr %s5343, 8
    %s5345 = scalar_lea.vmem [#allocation2], %s5344
    %v5346 = vld [vmem:[%s5345] sm:$0xff]
    %v5347 = vld [vmem:[%s5345 + $0x8] sm:$0xff]
    %v5348 = vld [vmem:[%s5345 + $0x10] sm:$0xff]
    %v5349 = vld [vmem:[%s5345 + $0x18] sm:$0xff]
    %5350 = vmatprep.subr.mxu0 0.0
    %5351 = vmatpush1.msra.mxu0 %v975
    %5352 = vmatprep.subr.mxu0 0.0
    %5353 = vmatpush1.msra.mxu0 %v974
    %5354 = vmatprep.subr.mxu0 0.0
    %5355 = vmatpush1.msra.mxu0 %v973
    %5356 = vmatprep.subr.mxu0 0.0
    %5357 = vmatpush1.msra.mxu0 %v972
    %5358 = vmatprep.subr.mxu0 0.0
    %5359 = vmatpush1.msra.mxu0 %v971
    %5360 = vmatprep.subr.mxu0 0.0
    %5361 = vmatpush1.msra.mxu0 %v970
    %5362 = vmatprep.subr.mxu0 0.0
    %5363 = vmatpush1.msra.mxu0 %v969
    %5364 = vmatprep.subr.mxu0 0.0
    %5365 = vmatpush1.msra.mxu0 %v968
    %5366 = vmatprep.subr.mxu0 0.0
    %5367 = vmatpush1.msra.mxu0 %v967
    %5368 = vmatprep.subr.mxu0 0.0
    %5369 = vmatpush1.msra.mxu0 %v966
    %5370 = vmatprep.subr.mxu0 0.0
    %5371 = vmatpush1.msra.mxu0 %v965
    %5372 = vmatprep.subr.mxu0 0.0
    %5373 = vmatpush1.msra.mxu0 %v964
    %5374 = vmatprep.subr.mxu0 0.0
    %5375 = vmatpush1.msra.mxu0 %v963
    %5376 = vmatprep.subr.mxu0 0.0
    %5377 = vmatpush1.msra.mxu0 %v962
    %5378 = vmatprep.subr.mxu0 0.0
    %5379 = vmatpush1.msra.mxu0 %v961
    %5380 = vmatprep.subr.mxu0 0.0
    %5381 = vmatpush1.msra.mxu0 %v960
    %5382 = vmatprep.subr.mxu0 0.0
    %5383 = vmatpush2.msra.mxu0 0.0
    %5384 = vmatprep.subr.mxu0 0.0
    %5385 = vmatpush2.msra.mxu0 0.0
    %5386 = vmatprep.subr.mxu0 0.0
    %5387 = vmatpush2.msra.mxu0 0.0
    %5388 = vmatprep.subr.mxu0 0.0
    %5389 = vmatpush2.msra.mxu0 0.0
    %5390 = vmatprep.subr.mxu0 0.0
    %5391 = vmatpush2.msra.mxu0 0.0
    %5392 = vmatprep.subr.mxu0 0.0
    %5393 = vmatpush2.msra.mxu0 0.0
    %5394 = vmatprep.subr.mxu0 0.0
    %5395 = vmatpush2.msra.mxu0 0.0
    %5396 = vmatprep.subr.mxu0 0.0
    %5397 = vmatpush2.msra.mxu0 0.0
    %5398 = vmatprep.subr.mxu0 0.0
    %5399 = vmatpush2.msra.mxu0 0.0
    %5400 = vmatprep.subr.mxu0 0.0
    %5401 = vmatpush2.msra.mxu0 0.0
    %5402 = vmatprep.subr.mxu0 0.0
    %5403 = vmatpush2.msra.mxu0 0.0
    %5404 = vmatprep.subr.mxu0 0.0
    %5405 = vmatpush2.msra.mxu0 0.0
    %5406 = vmatprep.subr.mxu0 0.0
    %5407 = vmatpush2.msra.mxu0 0.0
    %5408 = vmatprep.subr.mxu0 0.0
    %5409 = vmatpush2.msra.mxu0 0.0
    %5410 = vmatprep.subr.mxu0 0.0
    %5411 = vmatpush2.msra.mxu0 0.0
    %5412 = vmatprep.subr.mxu0 0.0
    %5413 = vmatpush2.msra.mxu0 0.0
    %5414 = vmatprep.mubr.f32.mxu0 0.0
    %5415 = vmatmul.mubr.f32.gmra.mxu0 %v5342
    %v5416 = vpop.f32.mrf.mxu0
    %v5417 = vadd.f32 0.0, %v5416
    %v5418 = vpop.f32.mrf.mxu0
    %5419 = vdwg.mxu0
    %v5420 = vadd.f32 %v5346, %v5417
    %v5421 = vmul.f32 %v5420, 0.5
    %v5422 = vtanh.pop %v5421
    %v5423 = vmul.f32 %v5422, 0.5
    %v5424 = vadd.f32 %v5423, 0.5
    %5425 = vmatprep.subr.mxu0 0.0
    %5426 = vmatpush1.msra.mxu0 %v1066
    %5427 = vmatprep.subr.mxu0 0.0
    %5428 = vmatpush1.msra.mxu0 %v1065
    %5429 = vmatprep.subr.mxu0 0.0
    %5430 = vmatpush1.msra.mxu0 %v1064
    %5431 = vmatprep.subr.mxu0 0.0
    %5432 = vmatpush1.msra.mxu0 %v1063
    %5433 = vmatprep.subr.mxu0 0.0
    %5434 = vmatpush1.msra.mxu0 %v1062
    %5435 = vmatprep.subr.mxu0 0.0
    %5436 = vmatpush1.msra.mxu0 %v1061
    %5437 = vmatprep.subr.mxu0 0.0
    %5438 = vmatpush1.msra.mxu0 %v1060
    %5439 = vmatprep.subr.mxu0 0.0
    %5440 = vmatpush1.msra.mxu0 %v1059
    %5441 = vmatprep.subr.mxu0 0.0
    %5442 = vmatpush1.msra.mxu0 %v1058
    %5443 = vmatprep.subr.mxu0 0.0
    %5444 = vmatpush1.msra.mxu0 %v1057
    %5445 = vmatprep.subr.mxu0 0.0
    %5446 = vmatpush1.msra.mxu0 %v1056
    %5447 = vmatprep.subr.mxu0 0.0
    %5448 = vmatpush1.msra.mxu0 %v1055
    %5449 = vmatprep.subr.mxu0 0.0
    %5450 = vmatpush1.msra.mxu0 %v1054
    %5451 = vmatprep.subr.mxu0 0.0
    %5452 = vmatpush1.msra.mxu0 %v1053
    %5453 = vmatprep.subr.mxu0 0.0
    %5454 = vmatpush1.msra.mxu0 %v1052
    %5455 = vmatprep.subr.mxu0 0.0
    %5456 = vmatpush1.msra.mxu0 %v1051
    %5457 = vmatprep.subr.mxu0 0.0
    %5458 = vmatpush2.msra.mxu0 0.0
    %5459 = vmatprep.subr.mxu0 0.0
    %5460 = vmatpush2.msra.mxu0 0.0
    %5461 = vmatprep.subr.mxu0 0.0
    %5462 = vmatpush2.msra.mxu0 0.0
    %5463 = vmatprep.subr.mxu0 0.0
    %5464 = vmatpush2.msra.mxu0 0.0
    %5465 = vmatprep.subr.mxu0 0.0
    %5466 = vmatpush2.msra.mxu0 0.0
    %5467 = vmatprep.subr.mxu0 0.0
    %5468 = vmatpush2.msra.mxu0 0.0
    %5469 = vmatprep.subr.mxu0 0.0
    %5470 = vmatpush2.msra.mxu0 0.0
    %5471 = vmatprep.subr.mxu0 0.0
    %5472 = vmatpush2.msra.mxu0 0.0
    %5473 = vmatprep.subr.mxu0 0.0
    %5474 = vmatpush2.msra.mxu0 0.0
    %5475 = vmatprep.subr.mxu0 0.0
    %5476 = vmatpush2.msra.mxu0 0.0
    %5477 = vmatprep.subr.mxu0 0.0
    %5478 = vmatpush2.msra.mxu0 0.0
    %5479 = vmatprep.subr.mxu0 0.0
    %5480 = vmatpush2.msra.mxu0 0.0
    %5481 = vmatprep.subr.mxu0 0.0
    %5482 = vmatpush2.msra.mxu0 0.0
    %5483 = vmatprep.subr.mxu0 0.0
    %5484 = vmatpush2.msra.mxu0 0.0
    %5485 = vmatprep.subr.mxu0 0.0
    %5486 = vmatpush2.msra.mxu0 0.0
    %5487 = vmatprep.subr.mxu0 0.0
    %5488 = vmatpush2.msra.mxu0 0.0
    %5489 = vmatprep.mubr.f32.mxu0 0.0
    %5490 = vmatmul.mubr.f32.gmra.mxu0 %v5342
    %v5491 = vpop.f32.mrf.mxu0
    %v5492 = vadd.f32 0.0, %v5491
    %v5493 = vpop.f32.mrf.mxu0
    %5494 = vdwg.mxu0
    %v5495 = vadd.f32 %v5347, %v5492
    %v5496 = vmul.f32 %v5495, 0.5
    %v5497 = vtanh.pop %v5496
    %v5498 = vmul.f32 %v5497, 0.5
    %v5499 = vadd.f32 %v5498, 0.5
    %5500 = vmatprep.subr.mxu0 0.0
    %5501 = vmatpush1.msra.mxu0 %v1157
    %5502 = vmatprep.subr.mxu0 0.0
    %5503 = vmatpush1.msra.mxu0 %v1156
    %5504 = vmatprep.subr.mxu0 0.0
    %5505 = vmatpush1.msra.mxu0 %v1155
    %5506 = vmatprep.subr.mxu0 0.0
    %5507 = vmatpush1.msra.mxu0 %v1154
    %5508 = vmatprep.subr.mxu0 0.0
    %5509 = vmatpush1.msra.mxu0 %v1153
    %5510 = vmatprep.subr.mxu0 0.0
    %5511 = vmatpush1.msra.mxu0 %v1152
    %5512 = vmatprep.subr.mxu0 0.0
    %5513 = vmatpush1.msra.mxu0 %v1151
    %5514 = vmatprep.subr.mxu0 0.0
    %5515 = vmatpush1.msra.mxu0 %v1150
    %5516 = vmatprep.subr.mxu0 0.0
    %5517 = vmatpush1.msra.mxu0 %v1149
    %5518 = vmatprep.subr.mxu0 0.0
    %5519 = vmatpush1.msra.mxu0 %v1148
    %5520 = vmatprep.subr.mxu0 0.0
    %5521 = vmatpush1.msra.mxu0 %v1147
    %5522 = vmatprep.subr.mxu0 0.0
    %5523 = vmatpush1.msra.mxu0 %v1146
    %5524 = vmatprep.subr.mxu0 0.0
    %5525 = vmatpush1.msra.mxu0 %v1145
    %5526 = vmatprep.subr.mxu0 0.0
    %5527 = vmatpush1.msra.mxu0 %v1144
    %5528 = vmatprep.subr.mxu0 0.0
    %5529 = vmatpush1.msra.mxu0 %v1143
    %5530 = vmatprep.subr.mxu0 0.0
    %5531 = vmatpush1.msra.mxu0 %v1142
    %5532 = vmatprep.subr.mxu0 0.0
    %5533 = vmatpush2.msra.mxu0 0.0
    %5534 = vmatprep.subr.mxu0 0.0
    %5535 = vmatpush2.msra.mxu0 0.0
    %5536 = vmatprep.subr.mxu0 0.0
    %5537 = vmatpush2.msra.mxu0 0.0
    %5538 = vmatprep.subr.mxu0 0.0
    %5539 = vmatpush2.msra.mxu0 0.0
    %5540 = vmatprep.subr.mxu0 0.0
    %5541 = vmatpush2.msra.mxu0 0.0
    %5542 = vmatprep.subr.mxu0 0.0
    %5543 = vmatpush2.msra.mxu0 0.0
    %5544 = vmatprep.subr.mxu0 0.0
    %5545 = vmatpush2.msra.mxu0 0.0
    %5546 = vmatprep.subr.mxu0 0.0
    %5547 = vmatpush2.msra.mxu0 0.0
    %5548 = vmatprep.subr.mxu0 0.0
    %5549 = vmatpush2.msra.mxu0 0.0
    %5550 = vmatprep.subr.mxu0 0.0
    %5551 = vmatpush2.msra.mxu0 0.0
    %5552 = vmatprep.subr.mxu0 0.0
    %5553 = vmatpush2.msra.mxu0 0.0
    %5554 = vmatprep.subr.mxu0 0.0
    %5555 = vmatpush2.msra.mxu0 0.0
    %5556 = vmatprep.subr.mxu0 0.0
    %5557 = vmatpush2.msra.mxu0 0.0
    %5558 = vmatprep.subr.mxu0 0.0
    %5559 = vmatpush2.msra.mxu0 0.0
    %5560 = vmatprep.subr.mxu0 0.0
    %5561 = vmatpush2.msra.mxu0 0.0
    %5562 = vmatprep.subr.mxu0 0.0
    %5563 = vmatpush2.msra.mxu0 0.0
    %5564 = vmatprep.mubr.f32.mxu0 0.0
    %5565 = vmatmul.mubr.f32.gmra.mxu0 %v5342
    %v5566 = vpop.f32.mrf.mxu0
    %v5567 = vadd.f32 0.0, %v5566
    %v5568 = vpop.f32.mrf.mxu0
    %5569 = vdwg.mxu0
    %v5570 = vadd.f32 %v5348, %v5567
    %v5571 = vtanh.pop %v5570
    %5572 = vmatprep.subr.mxu0 0.0
    %5573 = vmatpush1.msra.mxu0 %v1245
    %5574 = vmatprep.subr.mxu0 0.0
    %5575 = vmatpush1.msra.mxu0 %v1244
    %5576 = vmatprep.subr.mxu0 0.0
    %5577 = vmatpush1.msra.mxu0 %v1243
    %5578 = vmatprep.subr.mxu0 0.0
    %5579 = vmatpush1.msra.mxu0 %v1242
    %5580 = vmatprep.subr.mxu0 0.0
    %5581 = vmatpush1.msra.mxu0 %v1241
    %5582 = vmatprep.subr.mxu0 0.0
    %5583 = vmatpush1.msra.mxu0 %v1240
    %5584 = vmatprep.subr.mxu0 0.0
    %5585 = vmatpush1.msra.mxu0 %v1239
    %5586 = vmatprep.subr.mxu0 0.0
    %5587 = vmatpush1.msra.mxu0 %v1238
    %5588 = vmatprep.subr.mxu0 0.0
    %5589 = vmatpush1.msra.mxu0 %v1237
    %5590 = vmatprep.subr.mxu0 0.0
    %5591 = vmatpush1.msra.mxu0 %v1236
    %5592 = vmatprep.subr.mxu0 0.0
    %5593 = vmatpush1.msra.mxu0 %v1235
    %5594 = vmatprep.subr.mxu0 0.0
    %5595 = vmatpush1.msra.mxu0 %v1234
    %5596 = vmatprep.subr.mxu0 0.0
    %5597 = vmatpush1.msra.mxu0 %v1233
    %5598 = vmatprep.subr.mxu0 0.0
    %5599 = vmatpush1.msra.mxu0 %v1232
    %5600 = vmatprep.subr.mxu0 0.0
    %5601 = vmatpush1.msra.mxu0 %v1231
    %5602 = vmatprep.subr.mxu0 0.0
    %5603 = vmatpush1.msra.mxu0 %v1230
    %5604 = vmatprep.subr.mxu0 0.0
    %5605 = vmatpush2.msra.mxu0 0.0
    %5606 = vmatprep.subr.mxu0 0.0
    %5607 = vmatpush2.msra.mxu0 0.0
    %5608 = vmatprep.subr.mxu0 0.0
    %5609 = vmatpush2.msra.mxu0 0.0
    %5610 = vmatprep.subr.mxu0 0.0
    %5611 = vmatpush2.msra.mxu0 0.0
    %5612 = vmatprep.subr.mxu0 0.0
    %5613 = vmatpush2.msra.mxu0 0.0
    %5614 = vmatprep.subr.mxu0 0.0
    %5615 = vmatpush2.msra.mxu0 0.0
    %5616 = vmatprep.subr.mxu0 0.0
    %5617 = vmatpush2.msra.mxu0 0.0
    %5618 = vmatprep.subr.mxu0 0.0
    %5619 = vmatpush2.msra.mxu0 0.0
    %5620 = vmatprep.subr.mxu0 0.0
    %5621 = vmatpush2.msra.mxu0 0.0
    %5622 = vmatprep.subr.mxu0 0.0
    %5623 = vmatpush2.msra.mxu0 0.0
    %5624 = vmatprep.subr.mxu0 0.0
    %5625 = vmatpush2.msra.mxu0 0.0
    %5626 = vmatprep.subr.mxu0 0.0
    %5627 = vmatpush2.msra.mxu0 0.0
    %5628 = vmatprep.subr.mxu0 0.0
    %5629 = vmatpush2.msra.mxu0 0.0
    %5630 = vmatprep.subr.mxu0 0.0
    %5631 = vmatpush2.msra.mxu0 0.0
    %5632 = vmatprep.subr.mxu0 0.0
    %5633 = vmatpush2.msra.mxu0 0.0
    %5634 = vmatprep.subr.mxu0 0.0
    %5635 = vmatpush2.msra.mxu0 0.0
    %5636 = vmatprep.mubr.f32.mxu0 0.0
    %5637 = vmatmul.mubr.f32.gmra.mxu0 %v5342
    %v5638 = vpop.f32.mrf.mxu0
    %v5639 = vadd.f32 0.0, %v5638
    %v5640 = vpop.f32.mrf.mxu0
    %5641 = vdwg.mxu0
    %v5642 = vadd.f32 %v5349, %v5639
    %v5643 = vmul.f32 %v5642, 0.5
    %v5644 = vtanh.pop %v5643
    %v5645 = vmul.f32 %v5644, 0.5
    %v5646 = vadd.f32 %v5645, 0.5
    %v5647 = vmul.f32 %v5499, %v5340
    %v5648 = vmul.f32 %v5424, %v5571
    %v5649 = vadd.f32 %v5647, %v5648
    %v5650 = vtanh.pop %v5649
    %v5651 = vmul.f32 %v5646, %v5650
    %s5652 = smul.u32 15, 4
    %s5653 = smul.addr %s5652, 8
    %s5654 = scalar_lea.vmem [#allocation2], %s5653
    %v5655 = vld [vmem:[%s5654] sm:$0xff]
    %v5656 = vld [vmem:[%s5654 + $0x8] sm:$0xff]
    %v5657 = vld [vmem:[%s5654 + $0x10] sm:$0xff]
    %v5658 = vld [vmem:[%s5654 + $0x18] sm:$0xff]
    %5659 = vmatprep.subr.mxu0 0.0
    %5660 = vmatpush1.msra.mxu0 %v975
    %5661 = vmatprep.subr.mxu0 0.0
    %5662 = vmatpush1.msra.mxu0 %v974
    %5663 = vmatprep.subr.mxu0 0.0
    %5664 = vmatpush1.msra.mxu0 %v973
    %5665 = vmatprep.subr.mxu0 0.0
    %5666 = vmatpush1.msra.mxu0 %v972
    %5667 = vmatprep.subr.mxu0 0.0
    %5668 = vmatpush1.msra.mxu0 %v971
    %5669 = vmatprep.subr.mxu0 0.0
    %5670 = vmatpush1.msra.mxu0 %v970
    %5671 = vmatprep.subr.mxu0 0.0
    %5672 = vmatpush1.msra.mxu0 %v969
    %5673 = vmatprep.subr.mxu0 0.0
    %5674 = vmatpush1.msra.mxu0 %v968
    %5675 = vmatprep.subr.mxu0 0.0
    %5676 = vmatpush1.msra.mxu0 %v967
    %5677 = vmatprep.subr.mxu0 0.0
    %5678 = vmatpush1.msra.mxu0 %v966
    %5679 = vmatprep.subr.mxu0 0.0
    %5680 = vmatpush1.msra.mxu0 %v965
    %5681 = vmatprep.subr.mxu0 0.0
    %5682 = vmatpush1.msra.mxu0 %v964
    %5683 = vmatprep.subr.mxu0 0.0
    %5684 = vmatpush1.msra.mxu0 %v963
    %5685 = vmatprep.subr.mxu0 0.0
    %5686 = vmatpush1.msra.mxu0 %v962
    %5687 = vmatprep.subr.mxu0 0.0
    %5688 = vmatpush1.msra.mxu0 %v961
    %5689 = vmatprep.subr.mxu0 0.0
    %5690 = vmatpush1.msra.mxu0 %v960
    %5691 = vmatprep.subr.mxu0 0.0
    %5692 = vmatpush2.msra.mxu0 0.0
    %5693 = vmatprep.subr.mxu0 0.0
    %5694 = vmatpush2.msra.mxu0 0.0
    %5695 = vmatprep.subr.mxu0 0.0
    %5696 = vmatpush2.msra.mxu0 0.0
    %5697 = vmatprep.subr.mxu0 0.0
    %5698 = vmatpush2.msra.mxu0 0.0
    %5699 = vmatprep.subr.mxu0 0.0
    %5700 = vmatpush2.msra.mxu0 0.0
    %5701 = vmatprep.subr.mxu0 0.0
    %5702 = vmatpush2.msra.mxu0 0.0
    %5703 = vmatprep.subr.mxu0 0.0
    %5704 = vmatpush2.msra.mxu0 0.0
    %5705 = vmatprep.subr.mxu0 0.0
    %5706 = vmatpush2.msra.mxu0 0.0
    %5707 = vmatprep.subr.mxu0 0.0
    %5708 = vmatpush2.msra.mxu0 0.0
    %5709 = vmatprep.subr.mxu0 0.0
    %5710 = vmatpush2.msra.mxu0 0.0
    %5711 = vmatprep.subr.mxu0 0.0
    %5712 = vmatpush2.msra.mxu0 0.0
    %5713 = vmatprep.subr.mxu0 0.0
    %5714 = vmatpush2.msra.mxu0 0.0
    %5715 = vmatprep.subr.mxu0 0.0
    %5716 = vmatpush2.msra.mxu0 0.0
    %5717 = vmatprep.subr.mxu0 0.0
    %5718 = vmatpush2.msra.mxu0 0.0
    %5719 = vmatprep.subr.mxu0 0.0
    %5720 = vmatpush2.msra.mxu0 0.0
    %5721 = vmatprep.subr.mxu0 0.0
    %5722 = vmatpush2.msra.mxu0 0.0
    %5723 = vmatprep.mubr.f32.mxu0 0.0
    %5724 = vmatmul.mubr.f32.gmra.mxu0 %v5651
    %v5725 = vpop.f32.mrf.mxu0
    %v5726 = vadd.f32 0.0, %v5725
    %v5727 = vpop.f32.mrf.mxu0
    %5728 = vdwg.mxu0
    %v5729 = vadd.f32 %v5655, %v5726
    %v5730 = vmul.f32 %v5729, 0.5
    %v5731 = vtanh.pop %v5730
    %v5732 = vmul.f32 %v5731, 0.5
    %v5733 = vadd.f32 %v5732, 0.5
    %5734 = vmatprep.subr.mxu0 0.0
    %5735 = vmatpush1.msra.mxu0 %v1066
    %5736 = vmatprep.subr.mxu0 0.0
    %5737 = vmatpush1.msra.mxu0 %v1065
    %5738 = vmatprep.subr.mxu0 0.0
    %5739 = vmatpush1.msra.mxu0 %v1064
    %5740 = vmatprep.subr.mxu0 0.0
    %5741 = vmatpush1.msra.mxu0 %v1063
    %5742 = vmatprep.subr.mxu0 0.0
    %5743 = vmatpush1.msra.mxu0 %v1062
    %5744 = vmatprep.subr.mxu0 0.0
    %5745 = vmatpush1.msra.mxu0 %v1061
    %5746 = vmatprep.subr.mxu0 0.0
    %5747 = vmatpush1.msra.mxu0 %v1060
    %5748 = vmatprep.subr.mxu0 0.0
    %5749 = vmatpush1.msra.mxu0 %v1059
    %5750 = vmatprep.subr.mxu0 0.0
    %5751 = vmatpush1.msra.mxu0 %v1058
    %5752 = vmatprep.subr.mxu0 0.0
    %5753 = vmatpush1.msra.mxu0 %v1057
    %5754 = vmatprep.subr.mxu0 0.0
    %5755 = vmatpush1.msra.mxu0 %v1056
    %5756 = vmatprep.subr.mxu0 0.0
    %5757 = vmatpush1.msra.mxu0 %v1055
    %5758 = vmatprep.subr.mxu0 0.0
    %5759 = vmatpush1.msra.mxu0 %v1054
    %5760 = vmatprep.subr.mxu0 0.0
    %5761 = vmatpush1.msra.mxu0 %v1053
    %5762 = vmatprep.subr.mxu0 0.0
    %5763 = vmatpush1.msra.mxu0 %v1052
    %5764 = vmatprep.subr.mxu0 0.0
    %5765 = vmatpush1.msra.mxu0 %v1051
    %5766 = vmatprep.subr.mxu0 0.0
    %5767 = vmatpush2.msra.mxu0 0.0
    %5768 = vmatprep.subr.mxu0 0.0
    %5769 = vmatpush2.msra.mxu0 0.0
    %5770 = vmatprep.subr.mxu0 0.0
    %5771 = vmatpush2.msra.mxu0 0.0
    %5772 = vmatprep.subr.mxu0 0.0
    %5773 = vmatpush2.msra.mxu0 0.0
    %5774 = vmatprep.subr.mxu0 0.0
    %5775 = vmatpush2.msra.mxu0 0.0
    %5776 = vmatprep.subr.mxu0 0.0
    %5777 = vmatpush2.msra.mxu0 0.0
    %5778 = vmatprep.subr.mxu0 0.0
    %5779 = vmatpush2.msra.mxu0 0.0
    %5780 = vmatprep.subr.mxu0 0.0
    %5781 = vmatpush2.msra.mxu0 0.0
    %5782 = vmatprep.subr.mxu0 0.0
    %5783 = vmatpush2.msra.mxu0 0.0
    %5784 = vmatprep.subr.mxu0 0.0
    %5785 = vmatpush2.msra.mxu0 0.0
    %5786 = vmatprep.subr.mxu0 0.0
    %5787 = vmatpush2.msra.mxu0 0.0
    %5788 = vmatprep.subr.mxu0 0.0
    %5789 = vmatpush2.msra.mxu0 0.0
    %5790 = vmatprep.subr.mxu0 0.0
    %5791 = vmatpush2.msra.mxu0 0.0
    %5792 = vmatprep.subr.mxu0 0.0
    %5793 = vmatpush2.msra.mxu0 0.0
    %5794 = vmatprep.subr.mxu0 0.0
    %5795 = vmatpush2.msra.mxu0 0.0
    %5796 = vmatprep.subr.mxu0 0.0
    %5797 = vmatpush2.msra.mxu0 0.0
    %5798 = vmatprep.mubr.f32.mxu0 0.0
    %5799 = vmatmul.mubr.f32.gmra.mxu0 %v5651
    %v5800 = vpop.f32.mrf.mxu0
    %v5801 = vadd.f32 0.0, %v5800
    %v5802 = vpop.f32.mrf.mxu0
    %5803 = vdwg.mxu0
    %v5804 = vadd.f32 %v5656, %v5801
    %v5805 = vmul.f32 %v5804, 0.5
    %v5806 = vtanh.pop %v5805
    %v5807 = vmul.f32 %v5806, 0.5
    %v5808 = vadd.f32 %v5807, 0.5
    %5809 = vmatprep.subr.mxu0 0.0
    %5810 = vmatpush1.msra.mxu0 %v1157
    %5811 = vmatprep.subr.mxu0 0.0
    %5812 = vmatpush1.msra.mxu0 %v1156
    %5813 = vmatprep.subr.mxu0 0.0
    %5814 = vmatpush1.msra.mxu0 %v1155
    %5815 = vmatprep.subr.mxu0 0.0
    %5816 = vmatpush1.msra.mxu0 %v1154
    %5817 = vmatprep.subr.mxu0 0.0
    %5818 = vmatpush1.msra.mxu0 %v1153
    %5819 = vmatprep.subr.mxu0 0.0
    %5820 = vmatpush1.msra.mxu0 %v1152
    %5821 = vmatprep.subr.mxu0 0.0
    %5822 = vmatpush1.msra.mxu0 %v1151
    %5823 = vmatprep.subr.mxu0 0.0
    %5824 = vmatpush1.msra.mxu0 %v1150
    %5825 = vmatprep.subr.mxu0 0.0
    %5826 = vmatpush1.msra.mxu0 %v1149
    %5827 = vmatprep.subr.mxu0 0.0
    %5828 = vmatpush1.msra.mxu0 %v1148
    %5829 = vmatprep.subr.mxu0 0.0
    %5830 = vmatpush1.msra.mxu0 %v1147
    %5831 = vmatprep.subr.mxu0 0.0
    %5832 = vmatpush1.msra.mxu0 %v1146
    %5833 = vmatprep.subr.mxu0 0.0
    %5834 = vmatpush1.msra.mxu0 %v1145
    %5835 = vmatprep.subr.mxu0 0.0
    %5836 = vmatpush1.msra.mxu0 %v1144
    %5837 = vmatprep.subr.mxu0 0.0
    %5838 = vmatpush1.msra.mxu0 %v1143
    %5839 = vmatprep.subr.mxu0 0.0
    %5840 = vmatpush1.msra.mxu0 %v1142
    %5841 = vmatprep.subr.mxu0 0.0
    %5842 = vmatpush2.msra.mxu0 0.0
    %5843 = vmatprep.subr.mxu0 0.0
    %5844 = vmatpush2.msra.mxu0 0.0
    %5845 = vmatprep.subr.mxu0 0.0
    %5846 = vmatpush2.msra.mxu0 0.0
    %5847 = vmatprep.subr.mxu0 0.0
    %5848 = vmatpush2.msra.mxu0 0.0
    %5849 = vmatprep.subr.mxu0 0.0
    %5850 = vmatpush2.msra.mxu0 0.0
    %5851 = vmatprep.subr.mxu0 0.0
    %5852 = vmatpush2.msra.mxu0 0.0
    %5853 = vmatprep.subr.mxu0 0.0
    %5854 = vmatpush2.msra.mxu0 0.0
    %5855 = vmatprep.subr.mxu0 0.0
    %5856 = vmatpush2.msra.mxu0 0.0
    %5857 = vmatprep.subr.mxu0 0.0
    %5858 = vmatpush2.msra.mxu0 0.0
    %5859 = vmatprep.subr.mxu0 0.0
    %5860 = vmatpush2.msra.mxu0 0.0
    %5861 = vmatprep.subr.mxu0 0.0
    %5862 = vmatpush2.msra.mxu0 0.0
    %5863 = vmatprep.subr.mxu0 0.0
    %5864 = vmatpush2.msra.mxu0 0.0
    %5865 = vmatprep.subr.mxu0 0.0
    %5866 = vmatpush2.msra.mxu0 0.0
    %5867 = vmatprep.subr.mxu0 0.0
    %5868 = vmatpush2.msra.mxu0 0.0
    %5869 = vmatprep.subr.mxu0 0.0
    %5870 = vmatpush2.msra.mxu0 0.0
    %5871 = vmatprep.subr.mxu0 0.0
    %5872 = vmatpush2.msra.mxu0 0.0
    %5873 = vmatprep.mubr.f32.mxu0 0.0
    %5874 = vmatmul.mubr.f32.gmra.mxu0 %v5651
    %v5875 = vpop.f32.mrf.mxu0
    %v5876 = vadd.f32 0.0, %v5875
    %v5877 = vpop.f32.mrf.mxu0
    %5878 = vdwg.mxu0
    %v5879 = vadd.f32 %v5657, %v5876
    %v5880 = vtanh.pop %v5879
    %5881 = vmatprep.subr.mxu0 0.0
    %5882 = vmatpush1.msra.mxu0 %v1245
    %5883 = vmatprep.subr.mxu0 0.0
    %5884 = vmatpush1.msra.mxu0 %v1244
    %5885 = vmatprep.subr.mxu0 0.0
    %5886 = vmatpush1.msra.mxu0 %v1243
    %5887 = vmatprep.subr.mxu0 0.0
    %5888 = vmatpush1.msra.mxu0 %v1242
    %5889 = vmatprep.subr.mxu0 0.0
    %5890 = vmatpush1.msra.mxu0 %v1241
    %5891 = vmatprep.subr.mxu0 0.0
    %5892 = vmatpush1.msra.mxu0 %v1240
    %5893 = vmatprep.subr.mxu0 0.0
    %5894 = vmatpush1.msra.mxu0 %v1239
    %5895 = vmatprep.subr.mxu0 0.0
    %5896 = vmatpush1.msra.mxu0 %v1238
    %5897 = vmatprep.subr.mxu0 0.0
    %5898 = vmatpush1.msra.mxu0 %v1237
    %5899 = vmatprep.subr.mxu0 0.0
    %5900 = vmatpush1.msra.mxu0 %v1236
    %5901 = vmatprep.subr.mxu0 0.0
    %5902 = vmatpush1.msra.mxu0 %v1235
    %5903 = vmatprep.subr.mxu0 0.0
    %5904 = vmatpush1.msra.mxu0 %v1234
    %5905 = vmatprep.subr.mxu0 0.0
    %5906 = vmatpush1.msra.mxu0 %v1233
    %5907 = vmatprep.subr.mxu0 0.0
    %5908 = vmatpush1.msra.mxu0 %v1232
    %5909 = vmatprep.subr.mxu0 0.0
    %5910 = vmatpush1.msra.mxu0 %v1231
    %5911 = vmatprep.subr.mxu0 0.0
    %5912 = vmatpush1.msra.mxu0 %v1230
    %5913 = vmatprep.subr.mxu0 0.0
    %5914 = vmatpush2.msra.mxu0 0.0
    %5915 = vmatprep.subr.mxu0 0.0
    %5916 = vmatpush2.msra.mxu0 0.0
    %5917 = vmatprep.subr.mxu0 0.0
    %5918 = vmatpush2.msra.mxu0 0.0
    %5919 = vmatprep.subr.mxu0 0.0
    %5920 = vmatpush2.msra.mxu0 0.0
    %5921 = vmatprep.subr.mxu0 0.0
    %5922 = vmatpush2.msra.mxu0 0.0
    %5923 = vmatprep.subr.mxu0 0.0
    %5924 = vmatpush2.msra.mxu0 0.0
    %5925 = vmatprep.subr.mxu0 0.0
    %5926 = vmatpush2.msra.mxu0 0.0
    %5927 = vmatprep.subr.mxu0 0.0
    %5928 = vmatpush2.msra.mxu0 0.0
    %5929 = vmatprep.subr.mxu0 0.0
    %5930 = vmatpush2.msra.mxu0 0.0
    %5931 = vmatprep.subr.mxu0 0.0
    %5932 = vmatpush2.msra.mxu0 0.0
    %5933 = vmatprep.subr.mxu0 0.0
    %5934 = vmatpush2.msra.mxu0 0.0
    %5935 = vmatprep.subr.mxu0 0.0
    %5936 = vmatpush2.msra.mxu0 0.0
    %5937 = vmatprep.subr.mxu0 0.0
    %5938 = vmatpush2.msra.mxu0 0.0
    %5939 = vmatprep.subr.mxu0 0.0
    %5940 = vmatpush2.msra.mxu0 0.0
    %5941 = vmatprep.subr.mxu0 0.0
    %5942 = vmatpush2.msra.mxu0 0.0
    %5943 = vmatprep.subr.mxu0 0.0
    %5944 = vmatpush2.msra.mxu0 0.0
    %5945 = vmatprep.mubr.f32.mxu0 0.0
    %5946 = vmatmul.mubr.f32.gmra.mxu0 %v5651
    %v5947 = vpop.f32.mrf.mxu0
    %v5948 = vadd.f32 0.0, %v5947
    %v5949 = vpop.f32.mrf.mxu0
    %5950 = vdwg.mxu0
    %v5951 = vadd.f32 %v5658, %v5948
    %v5952 = vmul.f32 %v5951, 0.5
    %v5953 = vtanh.pop %v5952
    %v5954 = vmul.f32 %v5953, 0.5
    %v5955 = vadd.f32 %v5954, 0.5
    %v5956 = vmul.f32 %v5808, %v5649
    %v5957 = vmul.f32 %v5733, %v5880
    %v5958 = vadd.f32 %v5956, %v5957
    %v5959 = vtanh.pop %v5958
    %v5960 = vmul.f32 %v5955, %v5959
    %s5961 = smul.u32 16, 4
    %s5962 = smul.addr %s5961, 8
    %s5963 = scalar_lea.vmem [#allocation2], %s5962
    %v5964 = vld [vmem:[%s5963] sm:$0xff]
    %v5965 = vld [vmem:[%s5963 + $0x8] sm:$0xff]
    %v5966 = vld [vmem:[%s5963 + $0x10] sm:$0xff]
    %v5967 = vld [vmem:[%s5963 + $0x18] sm:$0xff]
    %5968 = vmatprep.subr.mxu0 0.0
    %5969 = vmatpush1.msra.mxu0 %v975
    %5970 = vmatprep.subr.mxu0 0.0
    %5971 = vmatpush1.msra.mxu0 %v974
    %5972 = vmatprep.subr.mxu0 0.0
    %5973 = vmatpush1.msra.mxu0 %v973
    %5974 = vmatprep.subr.mxu0 0.0
    %5975 = vmatpush1.msra.mxu0 %v972
    %5976 = vmatprep.subr.mxu0 0.0
    %5977 = vmatpush1.msra.mxu0 %v971
    %5978 = vmatprep.subr.mxu0 0.0
    %5979 = vmatpush1.msra.mxu0 %v970
    %5980 = vmatprep.subr.mxu0 0.0
    %5981 = vmatpush1.msra.mxu0 %v969
    %5982 = vmatprep.subr.mxu0 0.0
    %5983 = vmatpush1.msra.mxu0 %v968
    %5984 = vmatprep.subr.mxu0 0.0
    %5985 = vmatpush1.msra.mxu0 %v967
    %5986 = vmatprep.subr.mxu0 0.0
    %5987 = vmatpush1.msra.mxu0 %v966
    %5988 = vmatprep.subr.mxu0 0.0
    %5989 = vmatpush1.msra.mxu0 %v965
    %5990 = vmatprep.subr.mxu0 0.0
    %5991 = vmatpush1.msra.mxu0 %v964
    %5992 = vmatprep.subr.mxu0 0.0
    %5993 = vmatpush1.msra.mxu0 %v963
    %5994 = vmatprep.subr.mxu0 0.0
    %5995 = vmatpush1.msra.mxu0 %v962
    %5996 = vmatprep.subr.mxu0 0.0
    %5997 = vmatpush1.msra.mxu0 %v961
    %5998 = vmatprep.subr.mxu0 0.0
    %5999 = vmatpush1.msra.mxu0 %v960
    %6000 = vmatprep.subr.mxu0 0.0
    %6001 = vmatpush2.msra.mxu0 0.0
    %6002 = vmatprep.subr.mxu0 0.0
    %6003 = vmatpush2.msra.mxu0 0.0
    %6004 = vmatprep.subr.mxu0 0.0
    %6005 = vmatpush2.msra.mxu0 0.0
    %6006 = vmatprep.subr.mxu0 0.0
    %6007 = vmatpush2.msra.mxu0 0.0
    %6008 = vmatprep.subr.mxu0 0.0
    %6009 = vmatpush2.msra.mxu0 0.0
    %6010 = vmatprep.subr.mxu0 0.0
    %6011 = vmatpush2.msra.mxu0 0.0
    %6012 = vmatprep.subr.mxu0 0.0
    %6013 = vmatpush2.msra.mxu0 0.0
    %6014 = vmatprep.subr.mxu0 0.0
    %6015 = vmatpush2.msra.mxu0 0.0
    %6016 = vmatprep.subr.mxu0 0.0
    %6017 = vmatpush2.msra.mxu0 0.0
    %6018 = vmatprep.subr.mxu0 0.0
    %6019 = vmatpush2.msra.mxu0 0.0
    %6020 = vmatprep.subr.mxu0 0.0
    %6021 = vmatpush2.msra.mxu0 0.0
    %6022 = vmatprep.subr.mxu0 0.0
    %6023 = vmatpush2.msra.mxu0 0.0
    %6024 = vmatprep.subr.mxu0 0.0
    %6025 = vmatpush2.msra.mxu0 0.0
    %6026 = vmatprep.subr.mxu0 0.0
    %6027 = vmatpush2.msra.mxu0 0.0
    %6028 = vmatprep.subr.mxu0 0.0
    %6029 = vmatpush2.msra.mxu0 0.0
    %6030 = vmatprep.subr.mxu0 0.0
    %6031 = vmatpush2.msra.mxu0 0.0
    %6032 = vmatprep.mubr.f32.mxu0 0.0
    %6033 = vmatmul.mubr.f32.gmra.mxu0 %v5960
    %v6034 = vpop.f32.mrf.mxu0
    %v6035 = vadd.f32 0.0, %v6034
    %v6036 = vpop.f32.mrf.mxu0
    %6037 = vdwg.mxu0
    %v6038 = vadd.f32 %v5964, %v6035
    %v6039 = vmul.f32 %v6038, 0.5
    %v6040 = vtanh.pop %v6039
    %v6041 = vmul.f32 %v6040, 0.5
    %v6042 = vadd.f32 %v6041, 0.5
    %6043 = vmatprep.subr.mxu0 0.0
    %6044 = vmatpush1.msra.mxu0 %v1066
    %6045 = vmatprep.subr.mxu0 0.0
    %6046 = vmatpush1.msra.mxu0 %v1065
    %6047 = vmatprep.subr.mxu0 0.0
    %6048 = vmatpush1.msra.mxu0 %v1064
    %6049 = vmatprep.subr.mxu0 0.0
    %6050 = vmatpush1.msra.mxu0 %v1063
    %6051 = vmatprep.subr.mxu0 0.0
    %6052 = vmatpush1.msra.mxu0 %v1062
    %6053 = vmatprep.subr.mxu0 0.0
    %6054 = vmatpush1.msra.mxu0 %v1061
    %6055 = vmatprep.subr.mxu0 0.0
    %6056 = vmatpush1.msra.mxu0 %v1060
    %6057 = vmatprep.subr.mxu0 0.0
    %6058 = vmatpush1.msra.mxu0 %v1059
    %6059 = vmatprep.subr.mxu0 0.0
    %6060 = vmatpush1.msra.mxu0 %v1058
    %6061 = vmatprep.subr.mxu0 0.0
    %6062 = vmatpush1.msra.mxu0 %v1057
    %6063 = vmatprep.subr.mxu0 0.0
    %6064 = vmatpush1.msra.mxu0 %v1056
    %6065 = vmatprep.subr.mxu0 0.0
    %6066 = vmatpush1.msra.mxu0 %v1055
    %6067 = vmatprep.subr.mxu0 0.0
    %6068 = vmatpush1.msra.mxu0 %v1054
    %6069 = vmatprep.subr.mxu0 0.0
    %6070 = vmatpush1.msra.mxu0 %v1053
    %6071 = vmatprep.subr.mxu0 0.0
    %6072 = vmatpush1.msra.mxu0 %v1052
    %6073 = vmatprep.subr.mxu0 0.0
    %6074 = vmatpush1.msra.mxu0 %v1051
    %6075 = vmatprep.subr.mxu0 0.0
    %6076 = vmatpush2.msra.mxu0 0.0
    %6077 = vmatprep.subr.mxu0 0.0
    %6078 = vmatpush2.msra.mxu0 0.0
    %6079 = vmatprep.subr.mxu0 0.0
    %6080 = vmatpush2.msra.mxu0 0.0
    %6081 = vmatprep.subr.mxu0 0.0
    %6082 = vmatpush2.msra.mxu0 0.0
    %6083 = vmatprep.subr.mxu0 0.0
    %6084 = vmatpush2.msra.mxu0 0.0
    %6085 = vmatprep.subr.mxu0 0.0
    %6086 = vmatpush2.msra.mxu0 0.0
    %6087 = vmatprep.subr.mxu0 0.0
    %6088 = vmatpush2.msra.mxu0 0.0
    %6089 = vmatprep.subr.mxu0 0.0
    %6090 = vmatpush2.msra.mxu0 0.0
    %6091 = vmatprep.subr.mxu0 0.0
    %6092 = vmatpush2.msra.mxu0 0.0
    %6093 = vmatprep.subr.mxu0 0.0
    %6094 = vmatpush2.msra.mxu0 0.0
    %6095 = vmatprep.subr.mxu0 0.0
    %6096 = vmatpush2.msra.mxu0 0.0
    %6097 = vmatprep.subr.mxu0 0.0
    %6098 = vmatpush2.msra.mxu0 0.0
    %6099 = vmatprep.subr.mxu0 0.0
    %6100 = vmatpush2.msra.mxu0 0.0
    %6101 = vmatprep.subr.mxu0 0.0
    %6102 = vmatpush2.msra.mxu0 0.0
    %6103 = vmatprep.subr.mxu0 0.0
    %6104 = vmatpush2.msra.mxu0 0.0
    %6105 = vmatprep.subr.mxu0 0.0
    %6106 = vmatpush2.msra.mxu0 0.0
    %6107 = vmatprep.mubr.f32.mxu0 0.0
    %6108 = vmatmul.mubr.f32.gmra.mxu0 %v5960
    %v6109 = vpop.f32.mrf.mxu0
    %v6110 = vadd.f32 0.0, %v6109
    %v6111 = vpop.f32.mrf.mxu0
    %6112 = vdwg.mxu0
    %v6113 = vadd.f32 %v5965, %v6110
    %v6114 = vmul.f32 %v6113, 0.5
    %v6115 = vtanh.pop %v6114
    %v6116 = vmul.f32 %v6115, 0.5
    %v6117 = vadd.f32 %v6116, 0.5
    %6118 = vmatprep.subr.mxu0 0.0
    %6119 = vmatpush1.msra.mxu0 %v1157
    %6120 = vmatprep.subr.mxu0 0.0
    %6121 = vmatpush1.msra.mxu0 %v1156
    %6122 = vmatprep.subr.mxu0 0.0
    %6123 = vmatpush1.msra.mxu0 %v1155
    %6124 = vmatprep.subr.mxu0 0.0
    %6125 = vmatpush1.msra.mxu0 %v1154
    %6126 = vmatprep.subr.mxu0 0.0
    %6127 = vmatpush1.msra.mxu0 %v1153
    %6128 = vmatprep.subr.mxu0 0.0
    %6129 = vmatpush1.msra.mxu0 %v1152
    %6130 = vmatprep.subr.mxu0 0.0
    %6131 = vmatpush1.msra.mxu0 %v1151
    %6132 = vmatprep.subr.mxu0 0.0
    %6133 = vmatpush1.msra.mxu0 %v1150
    %6134 = vmatprep.subr.mxu0 0.0
    %6135 = vmatpush1.msra.mxu0 %v1149
    %6136 = vmatprep.subr.mxu0 0.0
    %6137 = vmatpush1.msra.mxu0 %v1148
    %6138 = vmatprep.subr.mxu0 0.0
    %6139 = vmatpush1.msra.mxu0 %v1147
    %6140 = vmatprep.subr.mxu0 0.0
    %6141 = vmatpush1.msra.mxu0 %v1146
    %6142 = vmatprep.subr.mxu0 0.0
    %6143 = vmatpush1.msra.mxu0 %v1145
    %6144 = vmatprep.subr.mxu0 0.0
    %6145 = vmatpush1.msra.mxu0 %v1144
    %6146 = vmatprep.subr.mxu0 0.0
    %6147 = vmatpush1.msra.mxu0 %v1143
    %6148 = vmatprep.subr.mxu0 0.0
    %6149 = vmatpush1.msra.mxu0 %v1142
    %6150 = vmatprep.subr.mxu0 0.0
    %6151 = vmatpush2.msra.mxu0 0.0
    %6152 = vmatprep.subr.mxu0 0.0
    %6153 = vmatpush2.msra.mxu0 0.0
    %6154 = vmatprep.subr.mxu0 0.0
    %6155 = vmatpush2.msra.mxu0 0.0
    %6156 = vmatprep.subr.mxu0 0.0
    %6157 = vmatpush2.msra.mxu0 0.0
    %6158 = vmatprep.subr.mxu0 0.0
    %6159 = vmatpush2.msra.mxu0 0.0
    %6160 = vmatprep.subr.mxu0 0.0
    %6161 = vmatpush2.msra.mxu0 0.0
    %6162 = vmatprep.subr.mxu0 0.0
    %6163 = vmatpush2.msra.mxu0 0.0
    %6164 = vmatprep.subr.mxu0 0.0
    %6165 = vmatpush2.msra.mxu0 0.0
    %6166 = vmatprep.subr.mxu0 0.0
    %6167 = vmatpush2.msra.mxu0 0.0
    %6168 = vmatprep.subr.mxu0 0.0
    %6169 = vmatpush2.msra.mxu0 0.0
    %6170 = vmatprep.subr.mxu0 0.0
    %6171 = vmatpush2.msra.mxu0 0.0
    %6172 = vmatprep.subr.mxu0 0.0
    %6173 = vmatpush2.msra.mxu0 0.0
    %6174 = vmatprep.subr.mxu0 0.0
    %6175 = vmatpush2.msra.mxu0 0.0
    %6176 = vmatprep.subr.mxu0 0.0
    %6177 = vmatpush2.msra.mxu0 0.0
    %6178 = vmatprep.subr.mxu0 0.0
    %6179 = vmatpush2.msra.mxu0 0.0
    %6180 = vmatprep.subr.mxu0 0.0
    %6181 = vmatpush2.msra.mxu0 0.0
    %6182 = vmatprep.mubr.f32.mxu0 0.0
    %6183 = vmatmul.mubr.f32.gmra.mxu0 %v5960
    %v6184 = vpop.f32.mrf.mxu0
    %v6185 = vadd.f32 0.0, %v6184
    %v6186 = vpop.f32.mrf.mxu0
    %6187 = vdwg.mxu0
    %v6188 = vadd.f32 %v5966, %v6185
    %v6189 = vtanh.pop %v6188
    %6190 = vmatprep.subr.mxu0 0.0
    %6191 = vmatpush1.msra.mxu0 %v1245
    %6192 = vmatprep.subr.mxu0 0.0
    %6193 = vmatpush1.msra.mxu0 %v1244
    %6194 = vmatprep.subr.mxu0 0.0
    %6195 = vmatpush1.msra.mxu0 %v1243
    %6196 = vmatprep.subr.mxu0 0.0
    %6197 = vmatpush1.msra.mxu0 %v1242
    %6198 = vmatprep.subr.mxu0 0.0
    %6199 = vmatpush1.msra.mxu0 %v1241
    %6200 = vmatprep.subr.mxu0 0.0
    %6201 = vmatpush1.msra.mxu0 %v1240
    %6202 = vmatprep.subr.mxu0 0.0
    %6203 = vmatpush1.msra.mxu0 %v1239
    %6204 = vmatprep.subr.mxu0 0.0
    %6205 = vmatpush1.msra.mxu0 %v1238
    %6206 = vmatprep.subr.mxu0 0.0
    %6207 = vmatpush1.msra.mxu0 %v1237
    %6208 = vmatprep.subr.mxu0 0.0
    %6209 = vmatpush1.msra.mxu0 %v1236
    %6210 = vmatprep.subr.mxu0 0.0
    %6211 = vmatpush1.msra.mxu0 %v1235
    %6212 = vmatprep.subr.mxu0 0.0
    %6213 = vmatpush1.msra.mxu0 %v1234
    %6214 = vmatprep.subr.mxu0 0.0
    %6215 = vmatpush1.msra.mxu0 %v1233
    %6216 = vmatprep.subr.mxu0 0.0
    %6217 = vmatpush1.msra.mxu0 %v1232
    %6218 = vmatprep.subr.mxu0 0.0
    %6219 = vmatpush1.msra.mxu0 %v1231
    %6220 = vmatprep.subr.mxu0 0.0
    %6221 = vmatpush1.msra.mxu0 %v1230
    %6222 = vmatprep.subr.mxu0 0.0
    %6223 = vmatpush2.msra.mxu0 0.0
    %6224 = vmatprep.subr.mxu0 0.0
    %6225 = vmatpush2.msra.mxu0 0.0
    %6226 = vmatprep.subr.mxu0 0.0
    %6227 = vmatpush2.msra.mxu0 0.0
    %6228 = vmatprep.subr.mxu0 0.0
    %6229 = vmatpush2.msra.mxu0 0.0
    %6230 = vmatprep.subr.mxu0 0.0
    %6231 = vmatpush2.msra.mxu0 0.0
    %6232 = vmatprep.subr.mxu0 0.0
    %6233 = vmatpush2.msra.mxu0 0.0
    %6234 = vmatprep.subr.mxu0 0.0
    %6235 = vmatpush2.msra.mxu0 0.0
    %6236 = vmatprep.subr.mxu0 0.0
    %6237 = vmatpush2.msra.mxu0 0.0
    %6238 = vmatprep.subr.mxu0 0.0
    %6239 = vmatpush2.msra.mxu0 0.0
    %6240 = vmatprep.subr.mxu0 0.0
    %6241 = vmatpush2.msra.mxu0 0.0
    %6242 = vmatprep.subr.mxu0 0.0
    %6243 = vmatpush2.msra.mxu0 0.0
    %6244 = vmatprep.subr.mxu0 0.0
    %6245 = vmatpush2.msra.mxu0 0.0
    %6246 = vmatprep.subr.mxu0 0.0
    %6247 = vmatpush2.msra.mxu0 0.0
    %6248 = vmatprep.subr.mxu0 0.0
    %6249 = vmatpush2.msra.mxu0 0.0
    %6250 = vmatprep.subr.mxu0 0.0
    %6251 = vmatpush2.msra.mxu0 0.0
    %6252 = vmatprep.subr.mxu0 0.0
    %6253 = vmatpush2.msra.mxu0 0.0
    %6254 = vmatprep.mubr.f32.mxu0 0.0
    %6255 = vmatmul.mubr.f32.gmra.mxu0 %v5960
    %v6256 = vpop.f32.mrf.mxu0
    %v6257 = vadd.f32 0.0, %v6256
    %v6258 = vpop.f32.mrf.mxu0
    %6259 = vdwg.mxu0
    %v6260 = vadd.f32 %v5967, %v6257
    %v6261 = vmul.f32 %v6260, 0.5
    %v6262 = vtanh.pop %v6261
    %v6263 = vmul.f32 %v6262, 0.5
    %v6264 = vadd.f32 %v6263, 0.5
    %v6265 = vmul.f32 %v6117, %v5958
    %v6266 = vmul.f32 %v6042, %v6189
    %v6267 = vadd.f32 %v6265, %v6266
    %v6268 = vtanh.pop %v6267
    %v6269 = vmul.f32 %v6264, %v6268
    %s6270 = smul.u32 17, 4
    %s6271 = smul.addr %s6270, 8
    %s6272 = scalar_lea.vmem [#allocation2], %s6271
    %v6273 = vld [vmem:[%s6272] sm:$0xff]
    %v6274 = vld [vmem:[%s6272 + $0x8] sm:$0xff]
    %v6275 = vld [vmem:[%s6272 + $0x10] sm:$0xff]
    %v6276 = vld [vmem:[%s6272 + $0x18] sm:$0xff]
    %6277 = vmatprep.subr.mxu0 0.0
    %6278 = vmatpush1.msra.mxu0 %v975
    %6279 = vmatprep.subr.mxu0 0.0
    %6280 = vmatpush1.msra.mxu0 %v974
    %6281 = vmatprep.subr.mxu0 0.0
    %6282 = vmatpush1.msra.mxu0 %v973
    %6283 = vmatprep.subr.mxu0 0.0
    %6284 = vmatpush1.msra.mxu0 %v972
    %6285 = vmatprep.subr.mxu0 0.0
    %6286 = vmatpush1.msra.mxu0 %v971
    %6287 = vmatprep.subr.mxu0 0.0
    %6288 = vmatpush1.msra.mxu0 %v970
    %6289 = vmatprep.subr.mxu0 0.0
    %6290 = vmatpush1.msra.mxu0 %v969
    %6291 = vmatprep.subr.mxu0 0.0
    %6292 = vmatpush1.msra.mxu0 %v968
    %6293 = vmatprep.subr.mxu0 0.0
    %6294 = vmatpush1.msra.mxu0 %v967
    %6295 = vmatprep.subr.mxu0 0.0
    %6296 = vmatpush1.msra.mxu0 %v966
    %6297 = vmatprep.subr.mxu0 0.0
    %6298 = vmatpush1.msra.mxu0 %v965
    %6299 = vmatprep.subr.mxu0 0.0
    %6300 = vmatpush1.msra.mxu0 %v964
    %6301 = vmatprep.subr.mxu0 0.0
    %6302 = vmatpush1.msra.mxu0 %v963
    %6303 = vmatprep.subr.mxu0 0.0
    %6304 = vmatpush1.msra.mxu0 %v962
    %6305 = vmatprep.subr.mxu0 0.0
    %6306 = vmatpush1.msra.mxu0 %v961
    %6307 = vmatprep.subr.mxu0 0.0
    %6308 = vmatpush1.msra.mxu0 %v960
    %6309 = vmatprep.subr.mxu0 0.0
    %6310 = vmatpush2.msra.mxu0 0.0
    %6311 = vmatprep.subr.mxu0 0.0
    %6312 = vmatpush2.msra.mxu0 0.0
    %6313 = vmatprep.subr.mxu0 0.0
    %6314 = vmatpush2.msra.mxu0 0.0
    %6315 = vmatprep.subr.mxu0 0.0
    %6316 = vmatpush2.msra.mxu0 0.0
    %6317 = vmatprep.subr.mxu0 0.0
    %6318 = vmatpush2.msra.mxu0 0.0
    %6319 = vmatprep.subr.mxu0 0.0
    %6320 = vmatpush2.msra.mxu0 0.0
    %6321 = vmatprep.subr.mxu0 0.0
    %6322 = vmatpush2.msra.mxu0 0.0
    %6323 = vmatprep.subr.mxu0 0.0
    %6324 = vmatpush2.msra.mxu0 0.0
    %6325 = vmatprep.subr.mxu0 0.0
    %6326 = vmatpush2.msra.mxu0 0.0
    %6327 = vmatprep.subr.mxu0 0.0
    %6328 = vmatpush2.msra.mxu0 0.0
    %6329 = vmatprep.subr.mxu0 0.0
    %6330 = vmatpush2.msra.mxu0 0.0
    %6331 = vmatprep.subr.mxu0 0.0
    %6332 = vmatpush2.msra.mxu0 0.0
    %6333 = vmatprep.subr.mxu0 0.0
    %6334 = vmatpush2.msra.mxu0 0.0
    %6335 = vmatprep.subr.mxu0 0.0
    %6336 = vmatpush2.msra.mxu0 0.0
    %6337 = vmatprep.subr.mxu0 0.0
    %6338 = vmatpush2.msra.mxu0 0.0
    %6339 = vmatprep.subr.mxu0 0.0
    %6340 = vmatpush2.msra.mxu0 0.0
    %6341 = vmatprep.mubr.f32.mxu0 0.0
    %6342 = vmatmul.mubr.f32.gmra.mxu0 %v6269
    %v6343 = vpop.f32.mrf.mxu0
    %v6344 = vadd.f32 0.0, %v6343
    %v6345 = vpop.f32.mrf.mxu0
    %6346 = vdwg.mxu0
    %v6347 = vadd.f32 %v6273, %v6344
    %v6348 = vmul.f32 %v6347, 0.5
    %v6349 = vtanh.pop %v6348
    %v6350 = vmul.f32 %v6349, 0.5
    %v6351 = vadd.f32 %v6350, 0.5
    %6352 = vmatprep.subr.mxu0 0.0
    %6353 = vmatpush1.msra.mxu0 %v1066
    %6354 = vmatprep.subr.mxu0 0.0
    %6355 = vmatpush1.msra.mxu0 %v1065
    %6356 = vmatprep.subr.mxu0 0.0
    %6357 = vmatpush1.msra.mxu0 %v1064
    %6358 = vmatprep.subr.mxu0 0.0
    %6359 = vmatpush1.msra.mxu0 %v1063
    %6360 = vmatprep.subr.mxu0 0.0
    %6361 = vmatpush1.msra.mxu0 %v1062
    %6362 = vmatprep.subr.mxu0 0.0
    %6363 = vmatpush1.msra.mxu0 %v1061
    %6364 = vmatprep.subr.mxu0 0.0
    %6365 = vmatpush1.msra.mxu0 %v1060
    %6366 = vmatprep.subr.mxu0 0.0
    %6367 = vmatpush1.msra.mxu0 %v1059
    %6368 = vmatprep.subr.mxu0 0.0
    %6369 = vmatpush1.msra.mxu0 %v1058
    %6370 = vmatprep.subr.mxu0 0.0
    %6371 = vmatpush1.msra.mxu0 %v1057
    %6372 = vmatprep.subr.mxu0 0.0
    %6373 = vmatpush1.msra.mxu0 %v1056
    %6374 = vmatprep.subr.mxu0 0.0
    %6375 = vmatpush1.msra.mxu0 %v1055
    %6376 = vmatprep.subr.mxu0 0.0
    %6377 = vmatpush1.msra.mxu0 %v1054
    %6378 = vmatprep.subr.mxu0 0.0
    %6379 = vmatpush1.msra.mxu0 %v1053
    %6380 = vmatprep.subr.mxu0 0.0
    %6381 = vmatpush1.msra.mxu0 %v1052
    %6382 = vmatprep.subr.mxu0 0.0
    %6383 = vmatpush1.msra.mxu0 %v1051
    %6384 = vmatprep.subr.mxu0 0.0
    %6385 = vmatpush2.msra.mxu0 0.0
    %6386 = vmatprep.subr.mxu0 0.0
    %6387 = vmatpush2.msra.mxu0 0.0
    %6388 = vmatprep.subr.mxu0 0.0
    %6389 = vmatpush2.msra.mxu0 0.0
    %6390 = vmatprep.subr.mxu0 0.0
    %6391 = vmatpush2.msra.mxu0 0.0
    %6392 = vmatprep.subr.mxu0 0.0
    %6393 = vmatpush2.msra.mxu0 0.0
    %6394 = vmatprep.subr.mxu0 0.0
    %6395 = vmatpush2.msra.mxu0 0.0
    %6396 = vmatprep.subr.mxu0 0.0
    %6397 = vmatpush2.msra.mxu0 0.0
    %6398 = vmatprep.subr.mxu0 0.0
    %6399 = vmatpush2.msra.mxu0 0.0
    %6400 = vmatprep.subr.mxu0 0.0
    %6401 = vmatpush2.msra.mxu0 0.0
    %6402 = vmatprep.subr.mxu0 0.0
    %6403 = vmatpush2.msra.mxu0 0.0
    %6404 = vmatprep.subr.mxu0 0.0
    %6405 = vmatpush2.msra.mxu0 0.0
    %6406 = vmatprep.subr.mxu0 0.0
    %6407 = vmatpush2.msra.mxu0 0.0
    %6408 = vmatprep.subr.mxu0 0.0
    %6409 = vmatpush2.msra.mxu0 0.0
    %6410 = vmatprep.subr.mxu0 0.0
    %6411 = vmatpush2.msra.mxu0 0.0
    %6412 = vmatprep.subr.mxu0 0.0
    %6413 = vmatpush2.msra.mxu0 0.0
    %6414 = vmatprep.subr.mxu0 0.0
    %6415 = vmatpush2.msra.mxu0 0.0
    %6416 = vmatprep.mubr.f32.mxu0 0.0
    %6417 = vmatmul.mubr.f32.gmra.mxu0 %v6269
    %v6418 = vpop.f32.mrf.mxu0
    %v6419 = vadd.f32 0.0, %v6418
    %v6420 = vpop.f32.mrf.mxu0
    %6421 = vdwg.mxu0
    %v6422 = vadd.f32 %v6274, %v6419
    %v6423 = vmul.f32 %v6422, 0.5
    %v6424 = vtanh.pop %v6423
    %v6425 = vmul.f32 %v6424, 0.5
    %v6426 = vadd.f32 %v6425, 0.5
    %6427 = vmatprep.subr.mxu0 0.0
    %6428 = vmatpush1.msra.mxu0 %v1157
    %6429 = vmatprep.subr.mxu0 0.0
    %6430 = vmatpush1.msra.mxu0 %v1156
    %6431 = vmatprep.subr.mxu0 0.0
    %6432 = vmatpush1.msra.mxu0 %v1155
    %6433 = vmatprep.subr.mxu0 0.0
    %6434 = vmatpush1.msra.mxu0 %v1154
    %6435 = vmatprep.subr.mxu0 0.0
    %6436 = vmatpush1.msra.mxu0 %v1153
    %6437 = vmatprep.subr.mxu0 0.0
    %6438 = vmatpush1.msra.mxu0 %v1152
    %6439 = vmatprep.subr.mxu0 0.0
    %6440 = vmatpush1.msra.mxu0 %v1151
    %6441 = vmatprep.subr.mxu0 0.0
    %6442 = vmatpush1.msra.mxu0 %v1150
    %6443 = vmatprep.subr.mxu0 0.0
    %6444 = vmatpush1.msra.mxu0 %v1149
    %6445 = vmatprep.subr.mxu0 0.0
    %6446 = vmatpush1.msra.mxu0 %v1148
    %6447 = vmatprep.subr.mxu0 0.0
    %6448 = vmatpush1.msra.mxu0 %v1147
    %6449 = vmatprep.subr.mxu0 0.0
    %6450 = vmatpush1.msra.mxu0 %v1146
    %6451 = vmatprep.subr.mxu0 0.0
    %6452 = vmatpush1.msra.mxu0 %v1145
    %6453 = vmatprep.subr.mxu0 0.0
    %6454 = vmatpush1.msra.mxu0 %v1144
    %6455 = vmatprep.subr.mxu0 0.0
    %6456 = vmatpush1.msra.mxu0 %v1143
    %6457 = vmatprep.subr.mxu0 0.0
    %6458 = vmatpush1.msra.mxu0 %v1142
    %6459 = vmatprep.subr.mxu0 0.0
    %6460 = vmatpush2.msra.mxu0 0.0
    %6461 = vmatprep.subr.mxu0 0.0
    %6462 = vmatpush2.msra.mxu0 0.0
    %6463 = vmatprep.subr.mxu0 0.0
    %6464 = vmatpush2.msra.mxu0 0.0
    %6465 = vmatprep.subr.mxu0 0.0
    %6466 = vmatpush2.msra.mxu0 0.0
    %6467 = vmatprep.subr.mxu0 0.0
    %6468 = vmatpush2.msra.mxu0 0.0
    %6469 = vmatprep.subr.mxu0 0.0
    %6470 = vmatpush2.msra.mxu0 0.0
    %6471 = vmatprep.subr.mxu0 0.0
    %6472 = vmatpush2.msra.mxu0 0.0
    %6473 = vmatprep.subr.mxu0 0.0
    %6474 = vmatpush2.msra.mxu0 0.0
    %6475 = vmatprep.subr.mxu0 0.0
    %6476 = vmatpush2.msra.mxu0 0.0
    %6477 = vmatprep.subr.mxu0 0.0
    %6478 = vmatpush2.msra.mxu0 0.0
    %6479 = vmatprep.subr.mxu0 0.0
    %6480 = vmatpush2.msra.mxu0 0.0
    %6481 = vmatprep.subr.mxu0 0.0
    %6482 = vmatpush2.msra.mxu0 0.0
    %6483 = vmatprep.subr.mxu0 0.0
    %6484 = vmatpush2.msra.mxu0 0.0
    %6485 = vmatprep.subr.mxu0 0.0
    %6486 = vmatpush2.msra.mxu0 0.0
    %6487 = vmatprep.subr.mxu0 0.0
    %6488 = vmatpush2.msra.mxu0 0.0
    %6489 = vmatprep.subr.mxu0 0.0
    %6490 = vmatpush2.msra.mxu0 0.0
    %6491 = vmatprep.mubr.f32.mxu0 0.0
    %6492 = vmatmul.mubr.f32.gmra.mxu0 %v6269
    %v6493 = vpop.f32.mrf.mxu0
    %v6494 = vadd.f32 0.0, %v6493
    %v6495 = vpop.f32.mrf.mxu0
    %6496 = vdwg.mxu0
    %v6497 = vadd.f32 %v6275, %v6494
    %v6498 = vtanh.pop %v6497
    %6499 = vmatprep.subr.mxu0 0.0
    %6500 = vmatpush1.msra.mxu0 %v1245
    %6501 = vmatprep.subr.mxu0 0.0
    %6502 = vmatpush1.msra.mxu0 %v1244
    %6503 = vmatprep.subr.mxu0 0.0
    %6504 = vmatpush1.msra.mxu0 %v1243
    %6505 = vmatprep.subr.mxu0 0.0
    %6506 = vmatpush1.msra.mxu0 %v1242
    %6507 = vmatprep.subr.mxu0 0.0
    %6508 = vmatpush1.msra.mxu0 %v1241
    %6509 = vmatprep.subr.mxu0 0.0
    %6510 = vmatpush1.msra.mxu0 %v1240
    %6511 = vmatprep.subr.mxu0 0.0
    %6512 = vmatpush1.msra.mxu0 %v1239
    %6513 = vmatprep.subr.mxu0 0.0
    %6514 = vmatpush1.msra.mxu0 %v1238
    %6515 = vmatprep.subr.mxu0 0.0
    %6516 = vmatpush1.msra.mxu0 %v1237
    %6517 = vmatprep.subr.mxu0 0.0
    %6518 = vmatpush1.msra.mxu0 %v1236
    %6519 = vmatprep.subr.mxu0 0.0
    %6520 = vmatpush1.msra.mxu0 %v1235
    %6521 = vmatprep.subr.mxu0 0.0
    %6522 = vmatpush1.msra.mxu0 %v1234
    %6523 = vmatprep.subr.mxu0 0.0
    %6524 = vmatpush1.msra.mxu0 %v1233
    %6525 = vmatprep.subr.mxu0 0.0
    %6526 = vmatpush1.msra.mxu0 %v1232
    %6527 = vmatprep.subr.mxu0 0.0
    %6528 = vmatpush1.msra.mxu0 %v1231
    %6529 = vmatprep.subr.mxu0 0.0
    %6530 = vmatpush1.msra.mxu0 %v1230
    %6531 = vmatprep.subr.mxu0 0.0
    %6532 = vmatpush2.msra.mxu0 0.0
    %6533 = vmatprep.subr.mxu0 0.0
    %6534 = vmatpush2.msra.mxu0 0.0
    %6535 = vmatprep.subr.mxu0 0.0
    %6536 = vmatpush2.msra.mxu0 0.0
    %6537 = vmatprep.subr.mxu0 0.0
    %6538 = vmatpush2.msra.mxu0 0.0
    %6539 = vmatprep.subr.mxu0 0.0
    %6540 = vmatpush2.msra.mxu0 0.0
    %6541 = vmatprep.subr.mxu0 0.0
    %6542 = vmatpush2.msra.mxu0 0.0
    %6543 = vmatprep.subr.mxu0 0.0
    %6544 = vmatpush2.msra.mxu0 0.0
    %6545 = vmatprep.subr.mxu0 0.0
    %6546 = vmatpush2.msra.mxu0 0.0
    %6547 = vmatprep.subr.mxu0 0.0
    %6548 = vmatpush2.msra.mxu0 0.0
    %6549 = vmatprep.subr.mxu0 0.0
    %6550 = vmatpush2.msra.mxu0 0.0
    %6551 = vmatprep.subr.mxu0 0.0
    %6552 = vmatpush2.msra.mxu0 0.0
    %6553 = vmatprep.subr.mxu0 0.0
    %6554 = vmatpush2.msra.mxu0 0.0
    %6555 = vmatprep.subr.mxu0 0.0
    %6556 = vmatpush2.msra.mxu0 0.0
    %6557 = vmatprep.subr.mxu0 0.0
    %6558 = vmatpush2.msra.mxu0 0.0
    %6559 = vmatprep.subr.mxu0 0.0
    %6560 = vmatpush2.msra.mxu0 0.0
    %6561 = vmatprep.subr.mxu0 0.0
    %6562 = vmatpush2.msra.mxu0 0.0
    %6563 = vmatprep.mubr.f32.mxu0 0.0
    %6564 = vmatmul.mubr.f32.gmra.mxu0 %v6269
    %v6565 = vpop.f32.mrf.mxu0
    %v6566 = vadd.f32 0.0, %v6565
    %v6567 = vpop.f32.mrf.mxu0
    %6568 = vdwg.mxu0
    %v6569 = vadd.f32 %v6276, %v6566
    %v6570 = vmul.f32 %v6569, 0.5
    %v6571 = vtanh.pop %v6570
    %v6572 = vmul.f32 %v6571, 0.5
    %v6573 = vadd.f32 %v6572, 0.5
    %v6574 = vmul.f32 %v6426, %v6267
    %v6575 = vmul.f32 %v6351, %v6498
    %v6576 = vadd.f32 %v6574, %v6575
    %v6577 = vtanh.pop %v6576
    %v6578 = vmul.f32 %v6573, %v6577
    %s6579 = smul.u32 18, 4
    %s6580 = smul.addr %s6579, 8
    %s6581 = scalar_lea.vmem [#allocation2], %s6580
    %v6582 = vld [vmem:[%s6581] sm:$0xff]
    %v6583 = vld [vmem:[%s6581 + $0x8] sm:$0xff]
    %v6584 = vld [vmem:[%s6581 + $0x10] sm:$0xff]
    %v6585 = vld [vmem:[%s6581 + $0x18] sm:$0xff]
    %6586 = vmatprep.subr.mxu0 0.0
    %6587 = vmatpush1.msra.mxu0 %v975
    %6588 = vmatprep.subr.mxu0 0.0
    %6589 = vmatpush1.msra.mxu0 %v974
    %6590 = vmatprep.subr.mxu0 0.0
    %6591 = vmatpush1.msra.mxu0 %v973
    %6592 = vmatprep.subr.mxu0 0.0
    %6593 = vmatpush1.msra.mxu0 %v972
    %6594 = vmatprep.subr.mxu0 0.0
    %6595 = vmatpush1.msra.mxu0 %v971
    %6596 = vmatprep.subr.mxu0 0.0
    %6597 = vmatpush1.msra.mxu0 %v970
    %6598 = vmatprep.subr.mxu0 0.0
    %6599 = vmatpush1.msra.mxu0 %v969
    %6600 = vmatprep.subr.mxu0 0.0
    %6601 = vmatpush1.msra.mxu0 %v968
    %6602 = vmatprep.subr.mxu0 0.0
    %6603 = vmatpush1.msra.mxu0 %v967
    %6604 = vmatprep.subr.mxu0 0.0
    %6605 = vmatpush1.msra.mxu0 %v966
    %6606 = vmatprep.subr.mxu0 0.0
    %6607 = vmatpush1.msra.mxu0 %v965
    %6608 = vmatprep.subr.mxu0 0.0
    %6609 = vmatpush1.msra.mxu0 %v964
    %6610 = vmatprep.subr.mxu0 0.0
    %6611 = vmatpush1.msra.mxu0 %v963
    %6612 = vmatprep.subr.mxu0 0.0
    %6613 = vmatpush1.msra.mxu0 %v962
    %6614 = vmatprep.subr.mxu0 0.0
    %6615 = vmatpush1.msra.mxu0 %v961
    %6616 = vmatprep.subr.mxu0 0.0
    %6617 = vmatpush1.msra.mxu0 %v960
    %6618 = vmatprep.subr.mxu0 0.0
    %6619 = vmatpush2.msra.mxu0 0.0
    %6620 = vmatprep.subr.mxu0 0.0
    %6621 = vmatpush2.msra.mxu0 0.0
    %6622 = vmatprep.subr.mxu0 0.0
    %6623 = vmatpush2.msra.mxu0 0.0
    %6624 = vmatprep.subr.mxu0 0.0
    %6625 = vmatpush2.msra.mxu0 0.0
    %6626 = vmatprep.subr.mxu0 0.0
    %6627 = vmatpush2.msra.mxu0 0.0
    %6628 = vmatprep.subr.mxu0 0.0
    %6629 = vmatpush2.msra.mxu0 0.0
    %6630 = vmatprep.subr.mxu0 0.0
    %6631 = vmatpush2.msra.mxu0 0.0
    %6632 = vmatprep.subr.mxu0 0.0
    %6633 = vmatpush2.msra.mxu0 0.0
    %6634 = vmatprep.subr.mxu0 0.0
    %6635 = vmatpush2.msra.mxu0 0.0
    %6636 = vmatprep.subr.mxu0 0.0
    %6637 = vmatpush2.msra.mxu0 0.0
    %6638 = vmatprep.subr.mxu0 0.0
    %6639 = vmatpush2.msra.mxu0 0.0
    %6640 = vmatprep.subr.mxu0 0.0
    %6641 = vmatpush2.msra.mxu0 0.0
    %6642 = vmatprep.subr.mxu0 0.0
    %6643 = vmatpush2.msra.mxu0 0.0
    %6644 = vmatprep.subr.mxu0 0.0
    %6645 = vmatpush2.msra.mxu0 0.0
    %6646 = vmatprep.subr.mxu0 0.0
    %6647 = vmatpush2.msra.mxu0 0.0
    %6648 = vmatprep.subr.mxu0 0.0
    %6649 = vmatpush2.msra.mxu0 0.0
    %6650 = vmatprep.mubr.f32.mxu0 0.0
    %6651 = vmatmul.mubr.f32.gmra.mxu0 %v6578
    %v6652 = vpop.f32.mrf.mxu0
    %v6653 = vadd.f32 0.0, %v6652
    %v6654 = vpop.f32.mrf.mxu0
    %6655 = vdwg.mxu0
    %v6656 = vadd.f32 %v6582, %v6653
    %v6657 = vmul.f32 %v6656, 0.5
    %v6658 = vtanh.pop %v6657
    %v6659 = vmul.f32 %v6658, 0.5
    %v6660 = vadd.f32 %v6659, 0.5
    %6661 = vmatprep.subr.mxu0 0.0
    %6662 = vmatpush1.msra.mxu0 %v1066
    %6663 = vmatprep.subr.mxu0 0.0
    %6664 = vmatpush1.msra.mxu0 %v1065
    %6665 = vmatprep.subr.mxu0 0.0
    %6666 = vmatpush1.msra.mxu0 %v1064
    %6667 = vmatprep.subr.mxu0 0.0
    %6668 = vmatpush1.msra.mxu0 %v1063
    %6669 = vmatprep.subr.mxu0 0.0
    %6670 = vmatpush1.msra.mxu0 %v1062
    %6671 = vmatprep.subr.mxu0 0.0
    %6672 = vmatpush1.msra.mxu0 %v1061
    %6673 = vmatprep.subr.mxu0 0.0
    %6674 = vmatpush1.msra.mxu0 %v1060
    %6675 = vmatprep.subr.mxu0 0.0
    %6676 = vmatpush1.msra.mxu0 %v1059
    %6677 = vmatprep.subr.mxu0 0.0
    %6678 = vmatpush1.msra.mxu0 %v1058
    %6679 = vmatprep.subr.mxu0 0.0
    %6680 = vmatpush1.msra.mxu0 %v1057
    %6681 = vmatprep.subr.mxu0 0.0
    %6682 = vmatpush1.msra.mxu0 %v1056
    %6683 = vmatprep.subr.mxu0 0.0
    %6684 = vmatpush1.msra.mxu0 %v1055
    %6685 = vmatprep.subr.mxu0 0.0
    %6686 = vmatpush1.msra.mxu0 %v1054
    %6687 = vmatprep.subr.mxu0 0.0
    %6688 = vmatpush1.msra.mxu0 %v1053
    %6689 = vmatprep.subr.mxu0 0.0
    %6690 = vmatpush1.msra.mxu0 %v1052
    %6691 = vmatprep.subr.mxu0 0.0
    %6692 = vmatpush1.msra.mxu0 %v1051
    %6693 = vmatprep.subr.mxu0 0.0
    %6694 = vmatpush2.msra.mxu0 0.0
    %6695 = vmatprep.subr.mxu0 0.0
    %6696 = vmatpush2.msra.mxu0 0.0
    %6697 = vmatprep.subr.mxu0 0.0
    %6698 = vmatpush2.msra.mxu0 0.0
    %6699 = vmatprep.subr.mxu0 0.0
    %6700 = vmatpush2.msra.mxu0 0.0
    %6701 = vmatprep.subr.mxu0 0.0
    %6702 = vmatpush2.msra.mxu0 0.0
    %6703 = vmatprep.subr.mxu0 0.0
    %6704 = vmatpush2.msra.mxu0 0.0
    %6705 = vmatprep.subr.mxu0 0.0
    %6706 = vmatpush2.msra.mxu0 0.0
    %6707 = vmatprep.subr.mxu0 0.0
    %6708 = vmatpush2.msra.mxu0 0.0
    %6709 = vmatprep.subr.mxu0 0.0
    %6710 = vmatpush2.msra.mxu0 0.0
    %6711 = vmatprep.subr.mxu0 0.0
    %6712 = vmatpush2.msra.mxu0 0.0
    %6713 = vmatprep.subr.mxu0 0.0
    %6714 = vmatpush2.msra.mxu0 0.0
    %6715 = vmatprep.subr.mxu0 0.0
    %6716 = vmatpush2.msra.mxu0 0.0
    %6717 = vmatprep.subr.mxu0 0.0
    %6718 = vmatpush2.msra.mxu0 0.0
    %6719 = vmatprep.subr.mxu0 0.0
    %6720 = vmatpush2.msra.mxu0 0.0
    %6721 = vmatprep.subr.mxu0 0.0
    %6722 = vmatpush2.msra.mxu0 0.0
    %6723 = vmatprep.subr.mxu0 0.0
    %6724 = vmatpush2.msra.mxu0 0.0
    %6725 = vmatprep.mubr.f32.mxu0 0.0
    %6726 = vmatmul.mubr.f32.gmra.mxu0 %v6578
    %v6727 = vpop.f32.mrf.mxu0
    %v6728 = vadd.f32 0.0, %v6727
    %v6729 = vpop.f32.mrf.mxu0
    %6730 = vdwg.mxu0
    %v6731 = vadd.f32 %v6583, %v6728
    %v6732 = vmul.f32 %v6731, 0.5
    %v6733 = vtanh.pop %v6732
    %v6734 = vmul.f32 %v6733, 0.5
    %v6735 = vadd.f32 %v6734, 0.5
    %6736 = vmatprep.subr.mxu0 0.0
    %6737 = vmatpush1.msra.mxu0 %v1157
    %6738 = vmatprep.subr.mxu0 0.0
    %6739 = vmatpush1.msra.mxu0 %v1156
    %6740 = vmatprep.subr.mxu0 0.0
    %6741 = vmatpush1.msra.mxu0 %v1155
    %6742 = vmatprep.subr.mxu0 0.0
    %6743 = vmatpush1.msra.mxu0 %v1154
    %6744 = vmatprep.subr.mxu0 0.0
    %6745 = vmatpush1.msra.mxu0 %v1153
    %6746 = vmatprep.subr.mxu0 0.0
    %6747 = vmatpush1.msra.mxu0 %v1152
    %6748 = vmatprep.subr.mxu0 0.0
    %6749 = vmatpush1.msra.mxu0 %v1151
    %6750 = vmatprep.subr.mxu0 0.0
    %6751 = vmatpush1.msra.mxu0 %v1150
    %6752 = vmatprep.subr.mxu0 0.0
    %6753 = vmatpush1.msra.mxu0 %v1149
    %6754 = vmatprep.subr.mxu0 0.0
    %6755 = vmatpush1.msra.mxu0 %v1148
    %6756 = vmatprep.subr.mxu0 0.0
    %6757 = vmatpush1.msra.mxu0 %v1147
    %6758 = vmatprep.subr.mxu0 0.0
    %6759 = vmatpush1.msra.mxu0 %v1146
    %6760 = vmatprep.subr.mxu0 0.0
    %6761 = vmatpush1.msra.mxu0 %v1145
    %6762 = vmatprep.subr.mxu0 0.0
    %6763 = vmatpush1.msra.mxu0 %v1144
    %6764 = vmatprep.subr.mxu0 0.0
    %6765 = vmatpush1.msra.mxu0 %v1143
    %6766 = vmatprep.subr.mxu0 0.0
    %6767 = vmatpush1.msra.mxu0 %v1142
    %6768 = vmatprep.subr.mxu0 0.0
    %6769 = vmatpush2.msra.mxu0 0.0
    %6770 = vmatprep.subr.mxu0 0.0
    %6771 = vmatpush2.msra.mxu0 0.0
    %6772 = vmatprep.subr.mxu0 0.0
    %6773 = vmatpush2.msra.mxu0 0.0
    %6774 = vmatprep.subr.mxu0 0.0
    %6775 = vmatpush2.msra.mxu0 0.0
    %6776 = vmatprep.subr.mxu0 0.0
    %6777 = vmatpush2.msra.mxu0 0.0
    %6778 = vmatprep.subr.mxu0 0.0
    %6779 = vmatpush2.msra.mxu0 0.0
    %6780 = vmatprep.subr.mxu0 0.0
    %6781 = vmatpush2.msra.mxu0 0.0
    %6782 = vmatprep.subr.mxu0 0.0
    %6783 = vmatpush2.msra.mxu0 0.0
    %6784 = vmatprep.subr.mxu0 0.0
    %6785 = vmatpush2.msra.mxu0 0.0
    %6786 = vmatprep.subr.mxu0 0.0
    %6787 = vmatpush2.msra.mxu0 0.0
    %6788 = vmatprep.subr.mxu0 0.0
    %6789 = vmatpush2.msra.mxu0 0.0
    %6790 = vmatprep.subr.mxu0 0.0
    %6791 = vmatpush2.msra.mxu0 0.0
    %6792 = vmatprep.subr.mxu0 0.0
    %6793 = vmatpush2.msra.mxu0 0.0
    %6794 = vmatprep.subr.mxu0 0.0
    %6795 = vmatpush2.msra.mxu0 0.0
    %6796 = vmatprep.subr.mxu0 0.0
    %6797 = vmatpush2.msra.mxu0 0.0
    %6798 = vmatprep.subr.mxu0 0.0
    %6799 = vmatpush2.msra.mxu0 0.0
    %6800 = vmatprep.mubr.f32.mxu0 0.0
    %6801 = vmatmul.mubr.f32.gmra.mxu0 %v6578
    %v6802 = vpop.f32.mrf.mxu0
    %v6803 = vadd.f32 0.0, %v6802
    %v6804 = vpop.f32.mrf.mxu0
    %6805 = vdwg.mxu0
    %v6806 = vadd.f32 %v6584, %v6803
    %v6807 = vtanh.pop %v6806
    %6808 = vmatprep.subr.mxu0 0.0
    %6809 = vmatpush1.msra.mxu0 %v1245
    %6810 = vmatprep.subr.mxu0 0.0
    %6811 = vmatpush1.msra.mxu0 %v1244
    %6812 = vmatprep.subr.mxu0 0.0
    %6813 = vmatpush1.msra.mxu0 %v1243
    %6814 = vmatprep.subr.mxu0 0.0
    %6815 = vmatpush1.msra.mxu0 %v1242
    %6816 = vmatprep.subr.mxu0 0.0
    %6817 = vmatpush1.msra.mxu0 %v1241
    %6818 = vmatprep.subr.mxu0 0.0
    %6819 = vmatpush1.msra.mxu0 %v1240
    %6820 = vmatprep.subr.mxu0 0.0
    %6821 = vmatpush1.msra.mxu0 %v1239
    %6822 = vmatprep.subr.mxu0 0.0
    %6823 = vmatpush1.msra.mxu0 %v1238
    %6824 = vmatprep.subr.mxu0 0.0
    %6825 = vmatpush1.msra.mxu0 %v1237
    %6826 = vmatprep.subr.mxu0 0.0
    %6827 = vmatpush1.msra.mxu0 %v1236
    %6828 = vmatprep.subr.mxu0 0.0
    %6829 = vmatpush1.msra.mxu0 %v1235
    %6830 = vmatprep.subr.mxu0 0.0
    %6831 = vmatpush1.msra.mxu0 %v1234
    %6832 = vmatprep.subr.mxu0 0.0
    %6833 = vmatpush1.msra.mxu0 %v1233
    %6834 = vmatprep.subr.mxu0 0.0
    %6835 = vmatpush1.msra.mxu0 %v1232
    %6836 = vmatprep.subr.mxu0 0.0
    %6837 = vmatpush1.msra.mxu0 %v1231
    %6838 = vmatprep.subr.mxu0 0.0
    %6839 = vmatpush1.msra.mxu0 %v1230
    %6840 = vmatprep.subr.mxu0 0.0
    %6841 = vmatpush2.msra.mxu0 0.0
    %6842 = vmatprep.subr.mxu0 0.0
    %6843 = vmatpush2.msra.mxu0 0.0
    %6844 = vmatprep.subr.mxu0 0.0
    %6845 = vmatpush2.msra.mxu0 0.0
    %6846 = vmatprep.subr.mxu0 0.0
    %6847 = vmatpush2.msra.mxu0 0.0
    %6848 = vmatprep.subr.mxu0 0.0
    %6849 = vmatpush2.msra.mxu0 0.0
    %6850 = vmatprep.subr.mxu0 0.0
    %6851 = vmatpush2.msra.mxu0 0.0
    %6852 = vmatprep.subr.mxu0 0.0
    %6853 = vmatpush2.msra.mxu0 0.0
    %6854 = vmatprep.subr.mxu0 0.0
    %6855 = vmatpush2.msra.mxu0 0.0
    %6856 = vmatprep.subr.mxu0 0.0
    %6857 = vmatpush2.msra.mxu0 0.0
    %6858 = vmatprep.subr.mxu0 0.0
    %6859 = vmatpush2.msra.mxu0 0.0
    %6860 = vmatprep.subr.mxu0 0.0
    %6861 = vmatpush2.msra.mxu0 0.0
    %6862 = vmatprep.subr.mxu0 0.0
    %6863 = vmatpush2.msra.mxu0 0.0
    %6864 = vmatprep.subr.mxu0 0.0
    %6865 = vmatpush2.msra.mxu0 0.0
    %6866 = vmatprep.subr.mxu0 0.0
    %6867 = vmatpush2.msra.mxu0 0.0
    %6868 = vmatprep.subr.mxu0 0.0
    %6869 = vmatpush2.msra.mxu0 0.0
    %6870 = vmatprep.subr.mxu0 0.0
    %6871 = vmatpush2.msra.mxu0 0.0
    %6872 = vmatprep.mubr.f32.mxu0 0.0
    %6873 = vmatmul.mubr.f32.gmra.mxu0 %v6578
    %v6874 = vpop.f32.mrf.mxu0
    %v6875 = vadd.f32 0.0, %v6874
    %v6876 = vpop.f32.mrf.mxu0
    %6877 = vdwg.mxu0
    %v6878 = vadd.f32 %v6585, %v6875
    %v6879 = vmul.f32 %v6878, 0.5
    %v6880 = vtanh.pop %v6879
    %v6881 = vmul.f32 %v6880, 0.5
    %v6882 = vadd.f32 %v6881, 0.5
    %v6883 = vmul.f32 %v6735, %v6576
    %v6884 = vmul.f32 %v6660, %v6807
    %v6885 = vadd.f32 %v6883, %v6884
    %v6886 = vtanh.pop %v6885
    %v6887 = vmul.f32 %v6882, %v6886
    %s6888 = smul.u32 19, 4
    %s6889 = smul.addr %s6888, 8
    %s6890 = scalar_lea.vmem [#allocation2], %s6889
    %v6891 = vld [vmem:[%s6890] sm:$0xff]
    %v6892 = vld [vmem:[%s6890 + $0x8] sm:$0xff]
    %v6893 = vld [vmem:[%s6890 + $0x10] sm:$0xff]
    %v6894 = vld [vmem:[%s6890 + $0x18] sm:$0xff]
    %6895 = vmatprep.subr.mxu0 0.0
    %6896 = vmatpush1.msra.mxu0 %v975
    %6897 = vmatprep.subr.mxu0 0.0
    %6898 = vmatpush1.msra.mxu0 %v974
    %6899 = vmatprep.subr.mxu0 0.0
    %6900 = vmatpush1.msra.mxu0 %v973
    %6901 = vmatprep.subr.mxu0 0.0
    %6902 = vmatpush1.msra.mxu0 %v972
    %6903 = vmatprep.subr.mxu0 0.0
    %6904 = vmatpush1.msra.mxu0 %v971
    %6905 = vmatprep.subr.mxu0 0.0
    %6906 = vmatpush1.msra.mxu0 %v970
    %6907 = vmatprep.subr.mxu0 0.0
    %6908 = vmatpush1.msra.mxu0 %v969
    %6909 = vmatprep.subr.mxu0 0.0
    %6910 = vmatpush1.msra.mxu0 %v968
    %6911 = vmatprep.subr.mxu0 0.0
    %6912 = vmatpush1.msra.mxu0 %v967
    %6913 = vmatprep.subr.mxu0 0.0
    %6914 = vmatpush1.msra.mxu0 %v966
    %6915 = vmatprep.subr.mxu0 0.0
    %6916 = vmatpush1.msra.mxu0 %v965
    %6917 = vmatprep.subr.mxu0 0.0
    %6918 = vmatpush1.msra.mxu0 %v964
    %6919 = vmatprep.subr.mxu0 0.0
    %6920 = vmatpush1.msra.mxu0 %v963
    %6921 = vmatprep.subr.mxu0 0.0
    %6922 = vmatpush1.msra.mxu0 %v962
    %6923 = vmatprep.subr.mxu0 0.0
    %6924 = vmatpush1.msra.mxu0 %v961
    %6925 = vmatprep.subr.mxu0 0.0
    %6926 = vmatpush1.msra.mxu0 %v960
    %6927 = vmatprep.subr.mxu0 0.0
    %6928 = vmatpush2.msra.mxu0 0.0
    %6929 = vmatprep.subr.mxu0 0.0
    %6930 = vmatpush2.msra.mxu0 0.0
    %6931 = vmatprep.subr.mxu0 0.0
    %6932 = vmatpush2.msra.mxu0 0.0
    %6933 = vmatprep.subr.mxu0 0.0
    %6934 = vmatpush2.msra.mxu0 0.0
    %6935 = vmatprep.subr.mxu0 0.0
    %6936 = vmatpush2.msra.mxu0 0.0
    %6937 = vmatprep.subr.mxu0 0.0
    %6938 = vmatpush2.msra.mxu0 0.0
    %6939 = vmatprep.subr.mxu0 0.0
    %6940 = vmatpush2.msra.mxu0 0.0
    %6941 = vmatprep.subr.mxu0 0.0
    %6942 = vmatpush2.msra.mxu0 0.0
    %6943 = vmatprep.subr.mxu0 0.0
    %6944 = vmatpush2.msra.mxu0 0.0
    %6945 = vmatprep.subr.mxu0 0.0
    %6946 = vmatpush2.msra.mxu0 0.0
    %6947 = vmatprep.subr.mxu0 0.0
    %6948 = vmatpush2.msra.mxu0 0.0
    %6949 = vmatprep.subr.mxu0 0.0
    %6950 = vmatpush2.msra.mxu0 0.0
    %6951 = vmatprep.subr.mxu0 0.0
    %6952 = vmatpush2.msra.mxu0 0.0
    %6953 = vmatprep.subr.mxu0 0.0
    %6954 = vmatpush2.msra.mxu0 0.0
    %6955 = vmatprep.subr.mxu0 0.0
    %6956 = vmatpush2.msra.mxu0 0.0
    %6957 = vmatprep.subr.mxu0 0.0
    %6958 = vmatpush2.msra.mxu0 0.0
    %6959 = vmatprep.mubr.f32.mxu0 0.0
    %6960 = vmatmul.mubr.f32.gmra.mxu0 %v6887
    %v6961 = vpop.f32.mrf.mxu0
    %v6962 = vadd.f32 0.0, %v6961
    %v6963 = vpop.f32.mrf.mxu0
    %6964 = vdwg.mxu0
    %v6965 = vadd.f32 %v6891, %v6962
    %v6966 = vmul.f32 %v6965, 0.5
    %v6967 = vtanh.pop %v6966
    %v6968 = vmul.f32 %v6967, 0.5
    %v6969 = vadd.f32 %v6968, 0.5
    %6970 = vmatprep.subr.mxu0 0.0
    %6971 = vmatpush1.msra.mxu0 %v1066
    %6972 = vmatprep.subr.mxu0 0.0
    %6973 = vmatpush1.msra.mxu0 %v1065
    %6974 = vmatprep.subr.mxu0 0.0
    %6975 = vmatpush1.msra.mxu0 %v1064
    %6976 = vmatprep.subr.mxu0 0.0
    %6977 = vmatpush1.msra.mxu0 %v1063
    %6978 = vmatprep.subr.mxu0 0.0
    %6979 = vmatpush1.msra.mxu0 %v1062
    %6980 = vmatprep.subr.mxu0 0.0
    %6981 = vmatpush1.msra.mxu0 %v1061
    %6982 = vmatprep.subr.mxu0 0.0
    %6983 = vmatpush1.msra.mxu0 %v1060
    %6984 = vmatprep.subr.mxu0 0.0
    %6985 = vmatpush1.msra.mxu0 %v1059
    %6986 = vmatprep.subr.mxu0 0.0
    %6987 = vmatpush1.msra.mxu0 %v1058
    %6988 = vmatprep.subr.mxu0 0.0
    %6989 = vmatpush1.msra.mxu0 %v1057
    %6990 = vmatprep.subr.mxu0 0.0
    %6991 = vmatpush1.msra.mxu0 %v1056
    %6992 = vmatprep.subr.mxu0 0.0
    %6993 = vmatpush1.msra.mxu0 %v1055
    %6994 = vmatprep.subr.mxu0 0.0
    %6995 = vmatpush1.msra.mxu0 %v1054
    %6996 = vmatprep.subr.mxu0 0.0
    %6997 = vmatpush1.msra.mxu0 %v1053
    %6998 = vmatprep.subr.mxu0 0.0
    %6999 = vmatpush1.msra.mxu0 %v1052
    %7000 = vmatprep.subr.mxu0 0.0
    %7001 = vmatpush1.msra.mxu0 %v1051
    %7002 = vmatprep.subr.mxu0 0.0
    %7003 = vmatpush2.msra.mxu0 0.0
    %7004 = vmatprep.subr.mxu0 0.0
    %7005 = vmatpush2.msra.mxu0 0.0
    %7006 = vmatprep.subr.mxu0 0.0
    %7007 = vmatpush2.msra.mxu0 0.0
    %7008 = vmatprep.subr.mxu0 0.0
    %7009 = vmatpush2.msra.mxu0 0.0
    %7010 = vmatprep.subr.mxu0 0.0
    %7011 = vmatpush2.msra.mxu0 0.0
    %7012 = vmatprep.subr.mxu0 0.0
    %7013 = vmatpush2.msra.mxu0 0.0
    %7014 = vmatprep.subr.mxu0 0.0
    %7015 = vmatpush2.msra.mxu0 0.0
    %7016 = vmatprep.subr.mxu0 0.0
    %7017 = vmatpush2.msra.mxu0 0.0
    %7018 = vmatprep.subr.mxu0 0.0
    %7019 = vmatpush2.msra.mxu0 0.0
    %7020 = vmatprep.subr.mxu0 0.0
    %7021 = vmatpush2.msra.mxu0 0.0
    %7022 = vmatprep.subr.mxu0 0.0
    %7023 = vmatpush2.msra.mxu0 0.0
    %7024 = vmatprep.subr.mxu0 0.0
    %7025 = vmatpush2.msra.mxu0 0.0
    %7026 = vmatprep.subr.mxu0 0.0
    %7027 = vmatpush2.msra.mxu0 0.0
    %7028 = vmatprep.subr.mxu0 0.0
    %7029 = vmatpush2.msra.mxu0 0.0
    %7030 = vmatprep.subr.mxu0 0.0
    %7031 = vmatpush2.msra.mxu0 0.0
    %7032 = vmatprep.subr.mxu0 0.0
    %7033 = vmatpush2.msra.mxu0 0.0
    %7034 = vmatprep.mubr.f32.mxu0 0.0
    %7035 = vmatmul.mubr.f32.gmra.mxu0 %v6887
    %v7036 = vpop.f32.mrf.mxu0
    %v7037 = vadd.f32 0.0, %v7036
    %v7038 = vpop.f32.mrf.mxu0
    %7039 = vdwg.mxu0
    %v7040 = vadd.f32 %v6892, %v7037
    %v7041 = vmul.f32 %v7040, 0.5
    %v7042 = vtanh.pop %v7041
    %v7043 = vmul.f32 %v7042, 0.5
    %v7044 = vadd.f32 %v7043, 0.5
    %7045 = vmatprep.subr.mxu0 0.0
    %7046 = vmatpush1.msra.mxu0 %v1157
    %7047 = vmatprep.subr.mxu0 0.0
    %7048 = vmatpush1.msra.mxu0 %v1156
    %7049 = vmatprep.subr.mxu0 0.0
    %7050 = vmatpush1.msra.mxu0 %v1155
    %7051 = vmatprep.subr.mxu0 0.0
    %7052 = vmatpush1.msra.mxu0 %v1154
    %7053 = vmatprep.subr.mxu0 0.0
    %7054 = vmatpush1.msra.mxu0 %v1153
    %7055 = vmatprep.subr.mxu0 0.0
    %7056 = vmatpush1.msra.mxu0 %v1152
    %7057 = vmatprep.subr.mxu0 0.0
    %7058 = vmatpush1.msra.mxu0 %v1151
    %7059 = vmatprep.subr.mxu0 0.0
    %7060 = vmatpush1.msra.mxu0 %v1150
    %7061 = vmatprep.subr.mxu0 0.0
    %7062 = vmatpush1.msra.mxu0 %v1149
    %7063 = vmatprep.subr.mxu0 0.0
    %7064 = vmatpush1.msra.mxu0 %v1148
    %7065 = vmatprep.subr.mxu0 0.0
    %7066 = vmatpush1.msra.mxu0 %v1147
    %7067 = vmatprep.subr.mxu0 0.0
    %7068 = vmatpush1.msra.mxu0 %v1146
    %7069 = vmatprep.subr.mxu0 0.0
    %7070 = vmatpush1.msra.mxu0 %v1145
    %7071 = vmatprep.subr.mxu0 0.0
    %7072 = vmatpush1.msra.mxu0 %v1144
    %7073 = vmatprep.subr.mxu0 0.0
    %7074 = vmatpush1.msra.mxu0 %v1143
    %7075 = vmatprep.subr.mxu0 0.0
    %7076 = vmatpush1.msra.mxu0 %v1142
    %7077 = vmatprep.subr.mxu0 0.0
    %7078 = vmatpush2.msra.mxu0 0.0
    %7079 = vmatprep.subr.mxu0 0.0
    %7080 = vmatpush2.msra.mxu0 0.0
    %7081 = vmatprep.subr.mxu0 0.0
    %7082 = vmatpush2.msra.mxu0 0.0
    %7083 = vmatprep.subr.mxu0 0.0
    %7084 = vmatpush2.msra.mxu0 0.0
    %7085 = vmatprep.subr.mxu0 0.0
    %7086 = vmatpush2.msra.mxu0 0.0
    %7087 = vmatprep.subr.mxu0 0.0
    %7088 = vmatpush2.msra.mxu0 0.0
    %7089 = vmatprep.subr.mxu0 0.0
    %7090 = vmatpush2.msra.mxu0 0.0
    %7091 = vmatprep.subr.mxu0 0.0
    %7092 = vmatpush2.msra.mxu0 0.0
    %7093 = vmatprep.subr.mxu0 0.0
    %7094 = vmatpush2.msra.mxu0 0.0
    %7095 = vmatprep.subr.mxu0 0.0
    %7096 = vmatpush2.msra.mxu0 0.0
    %7097 = vmatprep.subr.mxu0 0.0
    %7098 = vmatpush2.msra.mxu0 0.0
    %7099 = vmatprep.subr.mxu0 0.0
    %7100 = vmatpush2.msra.mxu0 0.0
    %7101 = vmatprep.subr.mxu0 0.0
    %7102 = vmatpush2.msra.mxu0 0.0
    %7103 = vmatprep.subr.mxu0 0.0
    %7104 = vmatpush2.msra.mxu0 0.0
    %7105 = vmatprep.subr.mxu0 0.0
    %7106 = vmatpush2.msra.mxu0 0.0
    %7107 = vmatprep.subr.mxu0 0.0
    %7108 = vmatpush2.msra.mxu0 0.0
    %7109 = vmatprep.mubr.f32.mxu0 0.0
    %7110 = vmatmul.mubr.f32.gmra.mxu0 %v6887
    %v7111 = vpop.f32.mrf.mxu0
    %v7112 = vadd.f32 0.0, %v7111
    %v7113 = vpop.f32.mrf.mxu0
    %7114 = vdwg.mxu0
    %v7115 = vadd.f32 %v6893, %v7112
    %v7116 = vtanh.pop %v7115
    %7117 = vmatprep.subr.mxu0 0.0
    %7118 = vmatpush1.msra.mxu0 %v1245
    %7119 = vmatprep.subr.mxu0 0.0
    %7120 = vmatpush1.msra.mxu0 %v1244
    %7121 = vmatprep.subr.mxu0 0.0
    %7122 = vmatpush1.msra.mxu0 %v1243
    %7123 = vmatprep.subr.mxu0 0.0
    %7124 = vmatpush1.msra.mxu0 %v1242
    %7125 = vmatprep.subr.mxu0 0.0
    %7126 = vmatpush1.msra.mxu0 %v1241
    %7127 = vmatprep.subr.mxu0 0.0
    %7128 = vmatpush1.msra.mxu0 %v1240
    %7129 = vmatprep.subr.mxu0 0.0
    %7130 = vmatpush1.msra.mxu0 %v1239
    %7131 = vmatprep.subr.mxu0 0.0
    %7132 = vmatpush1.msra.mxu0 %v1238
    %7133 = vmatprep.subr.mxu0 0.0
    %7134 = vmatpush1.msra.mxu0 %v1237
    %7135 = vmatprep.subr.mxu0 0.0
    %7136 = vmatpush1.msra.mxu0 %v1236
    %7137 = vmatprep.subr.mxu0 0.0
    %7138 = vmatpush1.msra.mxu0 %v1235
    %7139 = vmatprep.subr.mxu0 0.0
    %7140 = vmatpush1.msra.mxu0 %v1234
    %7141 = vmatprep.subr.mxu0 0.0
    %7142 = vmatpush1.msra.mxu0 %v1233
    %7143 = vmatprep.subr.mxu0 0.0
    %7144 = vmatpush1.msra.mxu0 %v1232
    %7145 = vmatprep.subr.mxu0 0.0
    %7146 = vmatpush1.msra.mxu0 %v1231
    %7147 = vmatprep.subr.mxu0 0.0
    %7148 = vmatpush1.msra.mxu0 %v1230
    %7149 = vmatprep.subr.mxu0 0.0
    %7150 = vmatpush2.msra.mxu0 0.0
    %7151 = vmatprep.subr.mxu0 0.0
    %7152 = vmatpush2.msra.mxu0 0.0
    %7153 = vmatprep.subr.mxu0 0.0
    %7154 = vmatpush2.msra.mxu0 0.0
    %7155 = vmatprep.subr.mxu0 0.0
    %7156 = vmatpush2.msra.mxu0 0.0
    %7157 = vmatprep.subr.mxu0 0.0
    %7158 = vmatpush2.msra.mxu0 0.0
    %7159 = vmatprep.subr.mxu0 0.0
    %7160 = vmatpush2.msra.mxu0 0.0
    %7161 = vmatprep.subr.mxu0 0.0
    %7162 = vmatpush2.msra.mxu0 0.0
    %7163 = vmatprep.subr.mxu0 0.0
    %7164 = vmatpush2.msra.mxu0 0.0
    %7165 = vmatprep.subr.mxu0 0.0
    %7166 = vmatpush2.msra.mxu0 0.0
    %7167 = vmatprep.subr.mxu0 0.0
    %7168 = vmatpush2.msra.mxu0 0.0
    %7169 = vmatprep.subr.mxu0 0.0
    %7170 = vmatpush2.msra.mxu0 0.0
    %7171 = vmatprep.subr.mxu0 0.0
    %7172 = vmatpush2.msra.mxu0 0.0
    %7173 = vmatprep.subr.mxu0 0.0
    %7174 = vmatpush2.msra.mxu0 0.0
    %7175 = vmatprep.subr.mxu0 0.0
    %7176 = vmatpush2.msra.mxu0 0.0
    %7177 = vmatprep.subr.mxu0 0.0
    %7178 = vmatpush2.msra.mxu0 0.0
    %7179 = vmatprep.subr.mxu0 0.0
    %7180 = vmatpush2.msra.mxu0 0.0
    %7181 = vmatprep.mubr.f32.mxu0 0.0
    %7182 = vmatmul.mubr.f32.gmra.mxu0 %v6887
    %v7183 = vpop.f32.mrf.mxu0
    %v7184 = vadd.f32 0.0, %v7183
    %v7185 = vpop.f32.mrf.mxu0
    %7186 = vdwg.mxu0
    %v7187 = vadd.f32 %v6894, %v7184
    %v7188 = vmul.f32 %v7187, 0.5
    %v7189 = vtanh.pop %v7188
    %v7190 = vmul.f32 %v7189, 0.5
    %v7191 = vadd.f32 %v7190, 0.5
    %v7192 = vmul.f32 %v7044, %v6885
    %v7193 = vmul.f32 %v6969, %v7116
    %v7194 = vadd.f32 %v7192, %v7193
    %v7195 = vtanh.pop %v7194
    %v7196 = vmul.f32 %v7191, %v7195
    %s7197 = smul.u32 20, 4
    %s7198 = smul.addr %s7197, 8
    %s7199 = scalar_lea.vmem [#allocation2], %s7198
    %v7200 = vld [vmem:[%s7199] sm:$0xff]
    %v7201 = vld [vmem:[%s7199 + $0x8] sm:$0xff]
    %v7202 = vld [vmem:[%s7199 + $0x10] sm:$0xff]
    %v7203 = vld [vmem:[%s7199 + $0x18] sm:$0xff]
    %7204 = vmatprep.subr.mxu0 0.0
    %7205 = vmatpush1.msra.mxu0 %v975
    %7206 = vmatprep.subr.mxu0 0.0
    %7207 = vmatpush1.msra.mxu0 %v974
    %7208 = vmatprep.subr.mxu0 0.0
    %7209 = vmatpush1.msra.mxu0 %v973
    %7210 = vmatprep.subr.mxu0 0.0
    %7211 = vmatpush1.msra.mxu0 %v972
    %7212 = vmatprep.subr.mxu0 0.0
    %7213 = vmatpush1.msra.mxu0 %v971
    %7214 = vmatprep.subr.mxu0 0.0
    %7215 = vmatpush1.msra.mxu0 %v970
    %7216 = vmatprep.subr.mxu0 0.0
    %7217 = vmatpush1.msra.mxu0 %v969
    %7218 = vmatprep.subr.mxu0 0.0
    %7219 = vmatpush1.msra.mxu0 %v968
    %7220 = vmatprep.subr.mxu0 0.0
    %7221 = vmatpush1.msra.mxu0 %v967
    %7222 = vmatprep.subr.mxu0 0.0
    %7223 = vmatpush1.msra.mxu0 %v966
    %7224 = vmatprep.subr.mxu0 0.0
    %7225 = vmatpush1.msra.mxu0 %v965
    %7226 = vmatprep.subr.mxu0 0.0
    %7227 = vmatpush1.msra.mxu0 %v964
    %7228 = vmatprep.subr.mxu0 0.0
    %7229 = vmatpush1.msra.mxu0 %v963
    %7230 = vmatprep.subr.mxu0 0.0
    %7231 = vmatpush1.msra.mxu0 %v962
    %7232 = vmatprep.subr.mxu0 0.0
    %7233 = vmatpush1.msra.mxu0 %v961
    %7234 = vmatprep.subr.mxu0 0.0
    %7235 = vmatpush1.msra.mxu0 %v960
    %7236 = vmatprep.subr.mxu0 0.0
    %7237 = vmatpush2.msra.mxu0 0.0
    %7238 = vmatprep.subr.mxu0 0.0
    %7239 = vmatpush2.msra.mxu0 0.0
    %7240 = vmatprep.subr.mxu0 0.0
    %7241 = vmatpush2.msra.mxu0 0.0
    %7242 = vmatprep.subr.mxu0 0.0
    %7243 = vmatpush2.msra.mxu0 0.0
    %7244 = vmatprep.subr.mxu0 0.0
    %7245 = vmatpush2.msra.mxu0 0.0
    %7246 = vmatprep.subr.mxu0 0.0
    %7247 = vmatpush2.msra.mxu0 0.0
    %7248 = vmatprep.subr.mxu0 0.0
    %7249 = vmatpush2.msra.mxu0 0.0
    %7250 = vmatprep.subr.mxu0 0.0
    %7251 = vmatpush2.msra.mxu0 0.0
    %7252 = vmatprep.subr.mxu0 0.0
    %7253 = vmatpush2.msra.mxu0 0.0
    %7254 = vmatprep.subr.mxu0 0.0
    %7255 = vmatpush2.msra.mxu0 0.0
    %7256 = vmatprep.subr.mxu0 0.0
    %7257 = vmatpush2.msra.mxu0 0.0
    %7258 = vmatprep.subr.mxu0 0.0
    %7259 = vmatpush2.msra.mxu0 0.0
    %7260 = vmatprep.subr.mxu0 0.0
    %7261 = vmatpush2.msra.mxu0 0.0
    %7262 = vmatprep.subr.mxu0 0.0
    %7263 = vmatpush2.msra.mxu0 0.0
    %7264 = vmatprep.subr.mxu0 0.0
    %7265 = vmatpush2.msra.mxu0 0.0
    %7266 = vmatprep.subr.mxu0 0.0
    %7267 = vmatpush2.msra.mxu0 0.0
    %7268 = vmatprep.mubr.f32.mxu0 0.0
    %7269 = vmatmul.mubr.f32.gmra.mxu0 %v7196
    %v7270 = vpop.f32.mrf.mxu0
    %v7271 = vadd.f32 0.0, %v7270
    %v7272 = vpop.f32.mrf.mxu0
    %7273 = vdwg.mxu0
    %v7274 = vadd.f32 %v7200, %v7271
    %v7275 = vmul.f32 %v7274, 0.5
    %v7276 = vtanh.pop %v7275
    %v7277 = vmul.f32 %v7276, 0.5
    %v7278 = vadd.f32 %v7277, 0.5
    %7279 = vmatprep.subr.mxu0 0.0
    %7280 = vmatpush1.msra.mxu0 %v1066
    %7281 = vmatprep.subr.mxu0 0.0
    %7282 = vmatpush1.msra.mxu0 %v1065
    %7283 = vmatprep.subr.mxu0 0.0
    %7284 = vmatpush1.msra.mxu0 %v1064
    %7285 = vmatprep.subr.mxu0 0.0
    %7286 = vmatpush1.msra.mxu0 %v1063
    %7287 = vmatprep.subr.mxu0 0.0
    %7288 = vmatpush1.msra.mxu0 %v1062
    %7289 = vmatprep.subr.mxu0 0.0
    %7290 = vmatpush1.msra.mxu0 %v1061
    %7291 = vmatprep.subr.mxu0 0.0
    %7292 = vmatpush1.msra.mxu0 %v1060
    %7293 = vmatprep.subr.mxu0 0.0
    %7294 = vmatpush1.msra.mxu0 %v1059
    %7295 = vmatprep.subr.mxu0 0.0
    %7296 = vmatpush1.msra.mxu0 %v1058
    %7297 = vmatprep.subr.mxu0 0.0
    %7298 = vmatpush1.msra.mxu0 %v1057
    %7299 = vmatprep.subr.mxu0 0.0
    %7300 = vmatpush1.msra.mxu0 %v1056
    %7301 = vmatprep.subr.mxu0 0.0
    %7302 = vmatpush1.msra.mxu0 %v1055
    %7303 = vmatprep.subr.mxu0 0.0
    %7304 = vmatpush1.msra.mxu0 %v1054
    %7305 = vmatprep.subr.mxu0 0.0
    %7306 = vmatpush1.msra.mxu0 %v1053
    %7307 = vmatprep.subr.mxu0 0.0
    %7308 = vmatpush1.msra.mxu0 %v1052
    %7309 = vmatprep.subr.mxu0 0.0
    %7310 = vmatpush1.msra.mxu0 %v1051
    %7311 = vmatprep.subr.mxu0 0.0
    %7312 = vmatpush2.msra.mxu0 0.0
    %7313 = vmatprep.subr.mxu0 0.0
    %7314 = vmatpush2.msra.mxu0 0.0
    %7315 = vmatprep.subr.mxu0 0.0
    %7316 = vmatpush2.msra.mxu0 0.0
    %7317 = vmatprep.subr.mxu0 0.0
    %7318 = vmatpush2.msra.mxu0 0.0
    %7319 = vmatprep.subr.mxu0 0.0
    %7320 = vmatpush2.msra.mxu0 0.0
    %7321 = vmatprep.subr.mxu0 0.0
    %7322 = vmatpush2.msra.mxu0 0.0
    %7323 = vmatprep.subr.mxu0 0.0
    %7324 = vmatpush2.msra.mxu0 0.0
    %7325 = vmatprep.subr.mxu0 0.0
    %7326 = vmatpush2.msra.mxu0 0.0
    %7327 = vmatprep.subr.mxu0 0.0
    %7328 = vmatpush2.msra.mxu0 0.0
    %7329 = vmatprep.subr.mxu0 0.0
    %7330 = vmatpush2.msra.mxu0 0.0
    %7331 = vmatprep.subr.mxu0 0.0
    %7332 = vmatpush2.msra.mxu0 0.0
    %7333 = vmatprep.subr.mxu0 0.0
    %7334 = vmatpush2.msra.mxu0 0.0
    %7335 = vmatprep.subr.mxu0 0.0
    %7336 = vmatpush2.msra.mxu0 0.0
    %7337 = vmatprep.subr.mxu0 0.0
    %7338 = vmatpush2.msra.mxu0 0.0
    %7339 = vmatprep.subr.mxu0 0.0
    %7340 = vmatpush2.msra.mxu0 0.0
    %7341 = vmatprep.subr.mxu0 0.0
    %7342 = vmatpush2.msra.mxu0 0.0
    %7343 = vmatprep.mubr.f32.mxu0 0.0
    %7344 = vmatmul.mubr.f32.gmra.mxu0 %v7196
    %v7345 = vpop.f32.mrf.mxu0
    %v7346 = vadd.f32 0.0, %v7345
    %v7347 = vpop.f32.mrf.mxu0
    %7348 = vdwg.mxu0
    %v7349 = vadd.f32 %v7201, %v7346
    %v7350 = vmul.f32 %v7349, 0.5
    %v7351 = vtanh.pop %v7350
    %v7352 = vmul.f32 %v7351, 0.5
    %v7353 = vadd.f32 %v7352, 0.5
    %7354 = vmatprep.subr.mxu0 0.0
    %7355 = vmatpush1.msra.mxu0 %v1157
    %7356 = vmatprep.subr.mxu0 0.0
    %7357 = vmatpush1.msra.mxu0 %v1156
    %7358 = vmatprep.subr.mxu0 0.0
    %7359 = vmatpush1.msra.mxu0 %v1155
    %7360 = vmatprep.subr.mxu0 0.0
    %7361 = vmatpush1.msra.mxu0 %v1154
    %7362 = vmatprep.subr.mxu0 0.0
    %7363 = vmatpush1.msra.mxu0 %v1153
    %7364 = vmatprep.subr.mxu0 0.0
    %7365 = vmatpush1.msra.mxu0 %v1152
    %7366 = vmatprep.subr.mxu0 0.0
    %7367 = vmatpush1.msra.mxu0 %v1151
    %7368 = vmatprep.subr.mxu0 0.0
    %7369 = vmatpush1.msra.mxu0 %v1150
    %7370 = vmatprep.subr.mxu0 0.0
    %7371 = vmatpush1.msra.mxu0 %v1149
    %7372 = vmatprep.subr.mxu0 0.0
    %7373 = vmatpush1.msra.mxu0 %v1148
    %7374 = vmatprep.subr.mxu0 0.0
    %7375 = vmatpush1.msra.mxu0 %v1147
    %7376 = vmatprep.subr.mxu0 0.0
    %7377 = vmatpush1.msra.mxu0 %v1146
    %7378 = vmatprep.subr.mxu0 0.0
    %7379 = vmatpush1.msra.mxu0 %v1145
    %7380 = vmatprep.subr.mxu0 0.0
    %7381 = vmatpush1.msra.mxu0 %v1144
    %7382 = vmatprep.subr.mxu0 0.0
    %7383 = vmatpush1.msra.mxu0 %v1143
    %7384 = vmatprep.subr.mxu0 0.0
    %7385 = vmatpush1.msra.mxu0 %v1142
    %7386 = vmatprep.subr.mxu0 0.0
    %7387 = vmatpush2.msra.mxu0 0.0
    %7388 = vmatprep.subr.mxu0 0.0
    %7389 = vmatpush2.msra.mxu0 0.0
    %7390 = vmatprep.subr.mxu0 0.0
    %7391 = vmatpush2.msra.mxu0 0.0
    %7392 = vmatprep.subr.mxu0 0.0
    %7393 = vmatpush2.msra.mxu0 0.0
    %7394 = vmatprep.subr.mxu0 0.0
    %7395 = vmatpush2.msra.mxu0 0.0
    %7396 = vmatprep.subr.mxu0 0.0
    %7397 = vmatpush2.msra.mxu0 0.0
    %7398 = vmatprep.subr.mxu0 0.0
    %7399 = vmatpush2.msra.mxu0 0.0
    %7400 = vmatprep.subr.mxu0 0.0
    %7401 = vmatpush2.msra.mxu0 0.0
    %7402 = vmatprep.subr.mxu0 0.0
    %7403 = vmatpush2.msra.mxu0 0.0
    %7404 = vmatprep.subr.mxu0 0.0
    %7405 = vmatpush2.msra.mxu0 0.0
    %7406 = vmatprep.subr.mxu0 0.0
    %7407 = vmatpush2.msra.mxu0 0.0
    %7408 = vmatprep.subr.mxu0 0.0
    %7409 = vmatpush2.msra.mxu0 0.0
    %7410 = vmatprep.subr.mxu0 0.0
    %7411 = vmatpush2.msra.mxu0 0.0
    %7412 = vmatprep.subr.mxu0 0.0
    %7413 = vmatpush2.msra.mxu0 0.0
    %7414 = vmatprep.subr.mxu0 0.0
    %7415 = vmatpush2.msra.mxu0 0.0
    %7416 = vmatprep.subr.mxu0 0.0
    %7417 = vmatpush2.msra.mxu0 0.0
    %7418 = vmatprep.mubr.f32.mxu0 0.0
    %7419 = vmatmul.mubr.f32.gmra.mxu0 %v7196
    %v7420 = vpop.f32.mrf.mxu0
    %v7421 = vadd.f32 0.0, %v7420
    %v7422 = vpop.f32.mrf.mxu0
    %7423 = vdwg.mxu0
    %v7424 = vadd.f32 %v7202, %v7421
    %v7425 = vtanh.pop %v7424
    %7426 = vmatprep.subr.mxu0 0.0
    %7427 = vmatpush1.msra.mxu0 %v1245
    %7428 = vmatprep.subr.mxu0 0.0
    %7429 = vmatpush1.msra.mxu0 %v1244
    %7430 = vmatprep.subr.mxu0 0.0
    %7431 = vmatpush1.msra.mxu0 %v1243
    %7432 = vmatprep.subr.mxu0 0.0
    %7433 = vmatpush1.msra.mxu0 %v1242
    %7434 = vmatprep.subr.mxu0 0.0
    %7435 = vmatpush1.msra.mxu0 %v1241
    %7436 = vmatprep.subr.mxu0 0.0
    %7437 = vmatpush1.msra.mxu0 %v1240
    %7438 = vmatprep.subr.mxu0 0.0
    %7439 = vmatpush1.msra.mxu0 %v1239
    %7440 = vmatprep.subr.mxu0 0.0
    %7441 = vmatpush1.msra.mxu0 %v1238
    %7442 = vmatprep.subr.mxu0 0.0
    %7443 = vmatpush1.msra.mxu0 %v1237
    %7444 = vmatprep.subr.mxu0 0.0
    %7445 = vmatpush1.msra.mxu0 %v1236
    %7446 = vmatprep.subr.mxu0 0.0
    %7447 = vmatpush1.msra.mxu0 %v1235
    %7448 = vmatprep.subr.mxu0 0.0
    %7449 = vmatpush1.msra.mxu0 %v1234
    %7450 = vmatprep.subr.mxu0 0.0
    %7451 = vmatpush1.msra.mxu0 %v1233
    %7452 = vmatprep.subr.mxu0 0.0
    %7453 = vmatpush1.msra.mxu0 %v1232
    %7454 = vmatprep.subr.mxu0 0.0
    %7455 = vmatpush1.msra.mxu0 %v1231
    %7456 = vmatprep.subr.mxu0 0.0
    %7457 = vmatpush1.msra.mxu0 %v1230
    %7458 = vmatprep.subr.mxu0 0.0
    %7459 = vmatpush2.msra.mxu0 0.0
    %7460 = vmatprep.subr.mxu0 0.0
    %7461 = vmatpush2.msra.mxu0 0.0
    %7462 = vmatprep.subr.mxu0 0.0
    %7463 = vmatpush2.msra.mxu0 0.0
    %7464 = vmatprep.subr.mxu0 0.0
    %7465 = vmatpush2.msra.mxu0 0.0
    %7466 = vmatprep.subr.mxu0 0.0
    %7467 = vmatpush2.msra.mxu0 0.0
    %7468 = vmatprep.subr.mxu0 0.0
    %7469 = vmatpush2.msra.mxu0 0.0
    %7470 = vmatprep.subr.mxu0 0.0
    %7471 = vmatpush2.msra.mxu0 0.0
    %7472 = vmatprep.subr.mxu0 0.0
    %7473 = vmatpush2.msra.mxu0 0.0
    %7474 = vmatprep.subr.mxu0 0.0
    %7475 = vmatpush2.msra.mxu0 0.0
    %7476 = vmatprep.subr.mxu0 0.0
    %7477 = vmatpush2.msra.mxu0 0.0
    %7478 = vmatprep.subr.mxu0 0.0
    %7479 = vmatpush2.msra.mxu0 0.0
    %7480 = vmatprep.subr.mxu0 0.0
    %7481 = vmatpush2.msra.mxu0 0.0
    %7482 = vmatprep.subr.mxu0 0.0
    %7483 = vmatpush2.msra.mxu0 0.0
    %7484 = vmatprep.subr.mxu0 0.0
    %7485 = vmatpush2.msra.mxu0 0.0
    %7486 = vmatprep.subr.mxu0 0.0
    %7487 = vmatpush2.msra.mxu0 0.0
    %7488 = vmatprep.subr.mxu0 0.0
    %7489 = vmatpush2.msra.mxu0 0.0
    %7490 = vmatprep.mubr.f32.mxu0 0.0
    %7491 = vmatmul.mubr.f32.gmra.mxu0 %v7196
    %v7492 = vpop.f32.mrf.mxu0
    %v7493 = vadd.f32 0.0, %v7492
    %v7494 = vpop.f32.mrf.mxu0
    %7495 = vdwg.mxu0
    %v7496 = vadd.f32 %v7203, %v7493
    %v7497 = vmul.f32 %v7496, 0.5
    %v7498 = vtanh.pop %v7497
    %v7499 = vmul.f32 %v7498, 0.5
    %v7500 = vadd.f32 %v7499, 0.5
    %v7501 = vmul.f32 %v7353, %v7194
    %v7502 = vmul.f32 %v7278, %v7425
    %v7503 = vadd.f32 %v7501, %v7502
    %v7504 = vtanh.pop %v7503
    %v7505 = vmul.f32 %v7500, %v7504
    %s7506 = smul.u32 21, 4
    %s7507 = smul.addr %s7506, 8
    %s7508 = scalar_lea.vmem [#allocation2], %s7507
    %v7509 = vld [vmem:[%s7508] sm:$0xff]
    %v7510 = vld [vmem:[%s7508 + $0x8] sm:$0xff]
    %v7511 = vld [vmem:[%s7508 + $0x10] sm:$0xff]
    %v7512 = vld [vmem:[%s7508 + $0x18] sm:$0xff]
    %7513 = vmatprep.subr.mxu0 0.0
    %7514 = vmatpush1.msra.mxu0 %v975
    %7515 = vmatprep.subr.mxu0 0.0
    %7516 = vmatpush1.msra.mxu0 %v974
    %7517 = vmatprep.subr.mxu0 0.0
    %7518 = vmatpush1.msra.mxu0 %v973
    %7519 = vmatprep.subr.mxu0 0.0
    %7520 = vmatpush1.msra.mxu0 %v972
    %7521 = vmatprep.subr.mxu0 0.0
    %7522 = vmatpush1.msra.mxu0 %v971
    %7523 = vmatprep.subr.mxu0 0.0
    %7524 = vmatpush1.msra.mxu0 %v970
    %7525 = vmatprep.subr.mxu0 0.0
    %7526 = vmatpush1.msra.mxu0 %v969
    %7527 = vmatprep.subr.mxu0 0.0
    %7528 = vmatpush1.msra.mxu0 %v968
    %7529 = vmatprep.subr.mxu0 0.0
    %7530 = vmatpush1.msra.mxu0 %v967
    %7531 = vmatprep.subr.mxu0 0.0
    %7532 = vmatpush1.msra.mxu0 %v966
    %7533 = vmatprep.subr.mxu0 0.0
    %7534 = vmatpush1.msra.mxu0 %v965
    %7535 = vmatprep.subr.mxu0 0.0
    %7536 = vmatpush1.msra.mxu0 %v964
    %7537 = vmatprep.subr.mxu0 0.0
    %7538 = vmatpush1.msra.mxu0 %v963
    %7539 = vmatprep.subr.mxu0 0.0
    %7540 = vmatpush1.msra.mxu0 %v962
    %7541 = vmatprep.subr.mxu0 0.0
    %7542 = vmatpush1.msra.mxu0 %v961
    %7543 = vmatprep.subr.mxu0 0.0
    %7544 = vmatpush1.msra.mxu0 %v960
    %7545 = vmatprep.subr.mxu0 0.0
    %7546 = vmatpush2.msra.mxu0 0.0
    %7547 = vmatprep.subr.mxu0 0.0
    %7548 = vmatpush2.msra.mxu0 0.0
    %7549 = vmatprep.subr.mxu0 0.0
    %7550 = vmatpush2.msra.mxu0 0.0
    %7551 = vmatprep.subr.mxu0 0.0
    %7552 = vmatpush2.msra.mxu0 0.0
    %7553 = vmatprep.subr.mxu0 0.0
    %7554 = vmatpush2.msra.mxu0 0.0
    %7555 = vmatprep.subr.mxu0 0.0
    %7556 = vmatpush2.msra.mxu0 0.0
    %7557 = vmatprep.subr.mxu0 0.0
    %7558 = vmatpush2.msra.mxu0 0.0
    %7559 = vmatprep.subr.mxu0 0.0
    %7560 = vmatpush2.msra.mxu0 0.0
    %7561 = vmatprep.subr.mxu0 0.0
    %7562 = vmatpush2.msra.mxu0 0.0
    %7563 = vmatprep.subr.mxu0 0.0
    %7564 = vmatpush2.msra.mxu0 0.0
    %7565 = vmatprep.subr.mxu0 0.0
    %7566 = vmatpush2.msra.mxu0 0.0
    %7567 = vmatprep.subr.mxu0 0.0
    %7568 = vmatpush2.msra.mxu0 0.0
    %7569 = vmatprep.subr.mxu0 0.0
    %7570 = vmatpush2.msra.mxu0 0.0
    %7571 = vmatprep.subr.mxu0 0.0
    %7572 = vmatpush2.msra.mxu0 0.0
    %7573 = vmatprep.subr.mxu0 0.0
    %7574 = vmatpush2.msra.mxu0 0.0
    %7575 = vmatprep.subr.mxu0 0.0
    %7576 = vmatpush2.msra.mxu0 0.0
    %7577 = vmatprep.mubr.f32.mxu0 0.0
    %7578 = vmatmul.mubr.f32.gmra.mxu0 %v7505
    %v7579 = vpop.f32.mrf.mxu0
    %v7580 = vadd.f32 0.0, %v7579
    %v7581 = vpop.f32.mrf.mxu0
    %7582 = vdwg.mxu0
    %v7583 = vadd.f32 %v7509, %v7580
    %v7584 = vmul.f32 %v7583, 0.5
    %v7585 = vtanh.pop %v7584
    %v7586 = vmul.f32 %v7585, 0.5
    %v7587 = vadd.f32 %v7586, 0.5
    %7588 = vmatprep.subr.mxu0 0.0
    %7589 = vmatpush1.msra.mxu0 %v1066
    %7590 = vmatprep.subr.mxu0 0.0
    %7591 = vmatpush1.msra.mxu0 %v1065
    %7592 = vmatprep.subr.mxu0 0.0
    %7593 = vmatpush1.msra.mxu0 %v1064
    %7594 = vmatprep.subr.mxu0 0.0
    %7595 = vmatpush1.msra.mxu0 %v1063
    %7596 = vmatprep.subr.mxu0 0.0
    %7597 = vmatpush1.msra.mxu0 %v1062
    %7598 = vmatprep.subr.mxu0 0.0
    %7599 = vmatpush1.msra.mxu0 %v1061
    %7600 = vmatprep.subr.mxu0 0.0
    %7601 = vmatpush1.msra.mxu0 %v1060
    %7602 = vmatprep.subr.mxu0 0.0
    %7603 = vmatpush1.msra.mxu0 %v1059
    %7604 = vmatprep.subr.mxu0 0.0
    %7605 = vmatpush1.msra.mxu0 %v1058
    %7606 = vmatprep.subr.mxu0 0.0
    %7607 = vmatpush1.msra.mxu0 %v1057
    %7608 = vmatprep.subr.mxu0 0.0
    %7609 = vmatpush1.msra.mxu0 %v1056
    %7610 = vmatprep.subr.mxu0 0.0
    %7611 = vmatpush1.msra.mxu0 %v1055
    %7612 = vmatprep.subr.mxu0 0.0
    %7613 = vmatpush1.msra.mxu0 %v1054
    %7614 = vmatprep.subr.mxu0 0.0
    %7615 = vmatpush1.msra.mxu0 %v1053
    %7616 = vmatprep.subr.mxu0 0.0
    %7617 = vmatpush1.msra.mxu0 %v1052
    %7618 = vmatprep.subr.mxu0 0.0
    %7619 = vmatpush1.msra.mxu0 %v1051
    %7620 = vmatprep.subr.mxu0 0.0
    %7621 = vmatpush2.msra.mxu0 0.0
    %7622 = vmatprep.subr.mxu0 0.0
    %7623 = vmatpush2.msra.mxu0 0.0
    %7624 = vmatprep.subr.mxu0 0.0
    %7625 = vmatpush2.msra.mxu0 0.0
    %7626 = vmatprep.subr.mxu0 0.0
    %7627 = vmatpush2.msra.mxu0 0.0
    %7628 = vmatprep.subr.mxu0 0.0
    %7629 = vmatpush2.msra.mxu0 0.0
    %7630 = vmatprep.subr.mxu0 0.0
    %7631 = vmatpush2.msra.mxu0 0.0
    %7632 = vmatprep.subr.mxu0 0.0
    %7633 = vmatpush2.msra.mxu0 0.0
    %7634 = vmatprep.subr.mxu0 0.0
    %7635 = vmatpush2.msra.mxu0 0.0
    %7636 = vmatprep.subr.mxu0 0.0
    %7637 = vmatpush2.msra.mxu0 0.0
    %7638 = vmatprep.subr.mxu0 0.0
    %7639 = vmatpush2.msra.mxu0 0.0
    %7640 = vmatprep.subr.mxu0 0.0
    %7641 = vmatpush2.msra.mxu0 0.0
    %7642 = vmatprep.subr.mxu0 0.0
    %7643 = vmatpush2.msra.mxu0 0.0
    %7644 = vmatprep.subr.mxu0 0.0
    %7645 = vmatpush2.msra.mxu0 0.0
    %7646 = vmatprep.subr.mxu0 0.0
    %7647 = vmatpush2.msra.mxu0 0.0
    %7648 = vmatprep.subr.mxu0 0.0
    %7649 = vmatpush2.msra.mxu0 0.0
    %7650 = vmatprep.subr.mxu0 0.0
    %7651 = vmatpush2.msra.mxu0 0.0
    %7652 = vmatprep.mubr.f32.mxu0 0.0
    %7653 = vmatmul.mubr.f32.gmra.mxu0 %v7505
    %v7654 = vpop.f32.mrf.mxu0
    %v7655 = vadd.f32 0.0, %v7654
    %v7656 = vpop.f32.mrf.mxu0
    %7657 = vdwg.mxu0
    %v7658 = vadd.f32 %v7510, %v7655
    %v7659 = vmul.f32 %v7658, 0.5
    %v7660 = vtanh.pop %v7659
    %v7661 = vmul.f32 %v7660, 0.5
    %v7662 = vadd.f32 %v7661, 0.5
    %7663 = vmatprep.subr.mxu0 0.0
    %7664 = vmatpush1.msra.mxu0 %v1157
    %7665 = vmatprep.subr.mxu0 0.0
    %7666 = vmatpush1.msra.mxu0 %v1156
    %7667 = vmatprep.subr.mxu0 0.0
    %7668 = vmatpush1.msra.mxu0 %v1155
    %7669 = vmatprep.subr.mxu0 0.0
    %7670 = vmatpush1.msra.mxu0 %v1154
    %7671 = vmatprep.subr.mxu0 0.0
    %7672 = vmatpush1.msra.mxu0 %v1153
    %7673 = vmatprep.subr.mxu0 0.0
    %7674 = vmatpush1.msra.mxu0 %v1152
    %7675 = vmatprep.subr.mxu0 0.0
    %7676 = vmatpush1.msra.mxu0 %v1151
    %7677 = vmatprep.subr.mxu0 0.0
    %7678 = vmatpush1.msra.mxu0 %v1150
    %7679 = vmatprep.subr.mxu0 0.0
    %7680 = vmatpush1.msra.mxu0 %v1149
    %7681 = vmatprep.subr.mxu0 0.0
    %7682 = vmatpush1.msra.mxu0 %v1148
    %7683 = vmatprep.subr.mxu0 0.0
    %7684 = vmatpush1.msra.mxu0 %v1147
    %7685 = vmatprep.subr.mxu0 0.0
    %7686 = vmatpush1.msra.mxu0 %v1146
    %7687 = vmatprep.subr.mxu0 0.0
    %7688 = vmatpush1.msra.mxu0 %v1145
    %7689 = vmatprep.subr.mxu0 0.0
    %7690 = vmatpush1.msra.mxu0 %v1144
    %7691 = vmatprep.subr.mxu0 0.0
    %7692 = vmatpush1.msra.mxu0 %v1143
    %7693 = vmatprep.subr.mxu0 0.0
    %7694 = vmatpush1.msra.mxu0 %v1142
    %7695 = vmatprep.subr.mxu0 0.0
    %7696 = vmatpush2.msra.mxu0 0.0
    %7697 = vmatprep.subr.mxu0 0.0
    %7698 = vmatpush2.msra.mxu0 0.0
    %7699 = vmatprep.subr.mxu0 0.0
    %7700 = vmatpush2.msra.mxu0 0.0
    %7701 = vmatprep.subr.mxu0 0.0
    %7702 = vmatpush2.msra.mxu0 0.0
    %7703 = vmatprep.subr.mxu0 0.0
    %7704 = vmatpush2.msra.mxu0 0.0
    %7705 = vmatprep.subr.mxu0 0.0
    %7706 = vmatpush2.msra.mxu0 0.0
    %7707 = vmatprep.subr.mxu0 0.0
    %7708 = vmatpush2.msra.mxu0 0.0
    %7709 = vmatprep.subr.mxu0 0.0
    %7710 = vmatpush2.msra.mxu0 0.0
    %7711 = vmatprep.subr.mxu0 0.0
    %7712 = vmatpush2.msra.mxu0 0.0
    %7713 = vmatprep.subr.mxu0 0.0
    %7714 = vmatpush2.msra.mxu0 0.0
    %7715 = vmatprep.subr.mxu0 0.0
    %7716 = vmatpush2.msra.mxu0 0.0
    %7717 = vmatprep.subr.mxu0 0.0
    %7718 = vmatpush2.msra.mxu0 0.0
    %7719 = vmatprep.subr.mxu0 0.0
    %7720 = vmatpush2.msra.mxu0 0.0
    %7721 = vmatprep.subr.mxu0 0.0
    %7722 = vmatpush2.msra.mxu0 0.0
    %7723 = vmatprep.subr.mxu0 0.0
    %7724 = vmatpush2.msra.mxu0 0.0
    %7725 = vmatprep.subr.mxu0 0.0
    %7726 = vmatpush2.msra.mxu0 0.0
    %7727 = vmatprep.mubr.f32.mxu0 0.0
    %7728 = vmatmul.mubr.f32.gmra.mxu0 %v7505
    %v7729 = vpop.f32.mrf.mxu0
    %v7730 = vadd.f32 0.0, %v7729
    %v7731 = vpop.f32.mrf.mxu0
    %7732 = vdwg.mxu0
    %v7733 = vadd.f32 %v7511, %v7730
    %v7734 = vtanh.pop %v7733
    %7735 = vmatprep.subr.mxu0 0.0
    %7736 = vmatpush1.msra.mxu0 %v1245
    %7737 = vmatprep.subr.mxu0 0.0
    %7738 = vmatpush1.msra.mxu0 %v1244
    %7739 = vmatprep.subr.mxu0 0.0
    %7740 = vmatpush1.msra.mxu0 %v1243
    %7741 = vmatprep.subr.mxu0 0.0
    %7742 = vmatpush1.msra.mxu0 %v1242
    %7743 = vmatprep.subr.mxu0 0.0
    %7744 = vmatpush1.msra.mxu0 %v1241
    %7745 = vmatprep.subr.mxu0 0.0
    %7746 = vmatpush1.msra.mxu0 %v1240
    %7747 = vmatprep.subr.mxu0 0.0
    %7748 = vmatpush1.msra.mxu0 %v1239
    %7749 = vmatprep.subr.mxu0 0.0
    %7750 = vmatpush1.msra.mxu0 %v1238
    %7751 = vmatprep.subr.mxu0 0.0
    %7752 = vmatpush1.msra.mxu0 %v1237
    %7753 = vmatprep.subr.mxu0 0.0
    %7754 = vmatpush1.msra.mxu0 %v1236
    %7755 = vmatprep.subr.mxu0 0.0
    %7756 = vmatpush1.msra.mxu0 %v1235
    %7757 = vmatprep.subr.mxu0 0.0
    %7758 = vmatpush1.msra.mxu0 %v1234
    %7759 = vmatprep.subr.mxu0 0.0
    %7760 = vmatpush1.msra.mxu0 %v1233
    %7761 = vmatprep.subr.mxu0 0.0
    %7762 = vmatpush1.msra.mxu0 %v1232
    %7763 = vmatprep.subr.mxu0 0.0
    %7764 = vmatpush1.msra.mxu0 %v1231
    %7765 = vmatprep.subr.mxu0 0.0
    %7766 = vmatpush1.msra.mxu0 %v1230
    %7767 = vmatprep.subr.mxu0 0.0
    %7768 = vmatpush2.msra.mxu0 0.0
    %7769 = vmatprep.subr.mxu0 0.0
    %7770 = vmatpush2.msra.mxu0 0.0
    %7771 = vmatprep.subr.mxu0 0.0
    %7772 = vmatpush2.msra.mxu0 0.0
    %7773 = vmatprep.subr.mxu0 0.0
    %7774 = vmatpush2.msra.mxu0 0.0
    %7775 = vmatprep.subr.mxu0 0.0
    %7776 = vmatpush2.msra.mxu0 0.0
    %7777 = vmatprep.subr.mxu0 0.0
    %7778 = vmatpush2.msra.mxu0 0.0
    %7779 = vmatprep.subr.mxu0 0.0
    %7780 = vmatpush2.msra.mxu0 0.0
    %7781 = vmatprep.subr.mxu0 0.0
    %7782 = vmatpush2.msra.mxu0 0.0
    %7783 = vmatprep.subr.mxu0 0.0
    %7784 = vmatpush2.msra.mxu0 0.0
    %7785 = vmatprep.subr.mxu0 0.0
    %7786 = vmatpush2.msra.mxu0 0.0
    %7787 = vmatprep.subr.mxu0 0.0
    %7788 = vmatpush2.msra.mxu0 0.0
    %7789 = vmatprep.subr.mxu0 0.0
    %7790 = vmatpush2.msra.mxu0 0.0
    %7791 = vmatprep.subr.mxu0 0.0
    %7792 = vmatpush2.msra.mxu0 0.0
    %7793 = vmatprep.subr.mxu0 0.0
    %7794 = vmatpush2.msra.mxu0 0.0
    %7795 = vmatprep.subr.mxu0 0.0
    %7796 = vmatpush2.msra.mxu0 0.0
    %7797 = vmatprep.subr.mxu0 0.0
    %7798 = vmatpush2.msra.mxu0 0.0
    %7799 = vmatprep.mubr.f32.mxu0 0.0
    %7800 = vmatmul.mubr.f32.gmra.mxu0 %v7505
    %v7801 = vpop.f32.mrf.mxu0
    %v7802 = vadd.f32 0.0, %v7801
    %v7803 = vpop.f32.mrf.mxu0
    %7804 = vdwg.mxu0
    %v7805 = vadd.f32 %v7512, %v7802
    %v7806 = vmul.f32 %v7805, 0.5
    %v7807 = vtanh.pop %v7806
    %v7808 = vmul.f32 %v7807, 0.5
    %v7809 = vadd.f32 %v7808, 0.5
    %v7810 = vmul.f32 %v7662, %v7503
    %v7811 = vmul.f32 %v7587, %v7734
    %v7812 = vadd.f32 %v7810, %v7811
    %v7813 = vtanh.pop %v7812
    %v7814 = vmul.f32 %v7809, %v7813
    %s7815 = smul.u32 22, 4
    %s7816 = smul.addr %s7815, 8
    %s7817 = scalar_lea.vmem [#allocation2], %s7816
    %v7818 = vld [vmem:[%s7817] sm:$0xff]
    %v7819 = vld [vmem:[%s7817 + $0x8] sm:$0xff]
    %v7820 = vld [vmem:[%s7817 + $0x10] sm:$0xff]
    %v7821 = vld [vmem:[%s7817 + $0x18] sm:$0xff]
    %7822 = vmatprep.subr.mxu0 0.0
    %7823 = vmatpush1.msra.mxu0 %v975
    %7824 = vmatprep.subr.mxu0 0.0
    %7825 = vmatpush1.msra.mxu0 %v974
    %7826 = vmatprep.subr.mxu0 0.0
    %7827 = vmatpush1.msra.mxu0 %v973
    %7828 = vmatprep.subr.mxu0 0.0
    %7829 = vmatpush1.msra.mxu0 %v972
    %7830 = vmatprep.subr.mxu0 0.0
    %7831 = vmatpush1.msra.mxu0 %v971
    %7832 = vmatprep.subr.mxu0 0.0
    %7833 = vmatpush1.msra.mxu0 %v970
    %7834 = vmatprep.subr.mxu0 0.0
    %7835 = vmatpush1.msra.mxu0 %v969
    %7836 = vmatprep.subr.mxu0 0.0
    %7837 = vmatpush1.msra.mxu0 %v968
    %7838 = vmatprep.subr.mxu0 0.0
    %7839 = vmatpush1.msra.mxu0 %v967
    %7840 = vmatprep.subr.mxu0 0.0
    %7841 = vmatpush1.msra.mxu0 %v966
    %7842 = vmatprep.subr.mxu0 0.0
    %7843 = vmatpush1.msra.mxu0 %v965
    %7844 = vmatprep.subr.mxu0 0.0
    %7845 = vmatpush1.msra.mxu0 %v964
    %7846 = vmatprep.subr.mxu0 0.0
    %7847 = vmatpush1.msra.mxu0 %v963
    %7848 = vmatprep.subr.mxu0 0.0
    %7849 = vmatpush1.msra.mxu0 %v962
    %7850 = vmatprep.subr.mxu0 0.0
    %7851 = vmatpush1.msra.mxu0 %v961
    %7852 = vmatprep.subr.mxu0 0.0
    %7853 = vmatpush1.msra.mxu0 %v960
    %7854 = vmatprep.subr.mxu0 0.0
    %7855 = vmatpush2.msra.mxu0 0.0
    %7856 = vmatprep.subr.mxu0 0.0
    %7857 = vmatpush2.msra.mxu0 0.0
    %7858 = vmatprep.subr.mxu0 0.0
    %7859 = vmatpush2.msra.mxu0 0.0
    %7860 = vmatprep.subr.mxu0 0.0
    %7861 = vmatpush2.msra.mxu0 0.0
    %7862 = vmatprep.subr.mxu0 0.0
    %7863 = vmatpush2.msra.mxu0 0.0
    %7864 = vmatprep.subr.mxu0 0.0
    %7865 = vmatpush2.msra.mxu0 0.0
    %7866 = vmatprep.subr.mxu0 0.0
    %7867 = vmatpush2.msra.mxu0 0.0
    %7868 = vmatprep.subr.mxu0 0.0
    %7869 = vmatpush2.msra.mxu0 0.0
    %7870 = vmatprep.subr.mxu0 0.0
    %7871 = vmatpush2.msra.mxu0 0.0
    %7872 = vmatprep.subr.mxu0 0.0
    %7873 = vmatpush2.msra.mxu0 0.0
    %7874 = vmatprep.subr.mxu0 0.0
    %7875 = vmatpush2.msra.mxu0 0.0
    %7876 = vmatprep.subr.mxu0 0.0
    %7877 = vmatpush2.msra.mxu0 0.0
    %7878 = vmatprep.subr.mxu0 0.0
    %7879 = vmatpush2.msra.mxu0 0.0
    %7880 = vmatprep.subr.mxu0 0.0
    %7881 = vmatpush2.msra.mxu0 0.0
    %7882 = vmatprep.subr.mxu0 0.0
    %7883 = vmatpush2.msra.mxu0 0.0
    %7884 = vmatprep.subr.mxu0 0.0
    %7885 = vmatpush2.msra.mxu0 0.0
    %7886 = vmatprep.mubr.f32.mxu0 0.0
    %7887 = vmatmul.mubr.f32.gmra.mxu0 %v7814
    %v7888 = vpop.f32.mrf.mxu0
    %v7889 = vadd.f32 0.0, %v7888
    %v7890 = vpop.f32.mrf.mxu0
    %7891 = vdwg.mxu0
    %v7892 = vadd.f32 %v7818, %v7889
    %v7893 = vmul.f32 %v7892, 0.5
    %v7894 = vtanh.pop %v7893
    %v7895 = vmul.f32 %v7894, 0.5
    %v7896 = vadd.f32 %v7895, 0.5
    %7897 = vmatprep.subr.mxu0 0.0
    %7898 = vmatpush1.msra.mxu0 %v1066
    %7899 = vmatprep.subr.mxu0 0.0
    %7900 = vmatpush1.msra.mxu0 %v1065
    %7901 = vmatprep.subr.mxu0 0.0
    %7902 = vmatpush1.msra.mxu0 %v1064
    %7903 = vmatprep.subr.mxu0 0.0
    %7904 = vmatpush1.msra.mxu0 %v1063
    %7905 = vmatprep.subr.mxu0 0.0
    %7906 = vmatpush1.msra.mxu0 %v1062
    %7907 = vmatprep.subr.mxu0 0.0
    %7908 = vmatpush1.msra.mxu0 %v1061
    %7909 = vmatprep.subr.mxu0 0.0
    %7910 = vmatpush1.msra.mxu0 %v1060
    %7911 = vmatprep.subr.mxu0 0.0
    %7912 = vmatpush1.msra.mxu0 %v1059
    %7913 = vmatprep.subr.mxu0 0.0
    %7914 = vmatpush1.msra.mxu0 %v1058
    %7915 = vmatprep.subr.mxu0 0.0
    %7916 = vmatpush1.msra.mxu0 %v1057
    %7917 = vmatprep.subr.mxu0 0.0
    %7918 = vmatpush1.msra.mxu0 %v1056
    %7919 = vmatprep.subr.mxu0 0.0
    %7920 = vmatpush1.msra.mxu0 %v1055
    %7921 = vmatprep.subr.mxu0 0.0
    %7922 = vmatpush1.msra.mxu0 %v1054
    %7923 = vmatprep.subr.mxu0 0.0
    %7924 = vmatpush1.msra.mxu0 %v1053
    %7925 = vmatprep.subr.mxu0 0.0
    %7926 = vmatpush1.msra.mxu0 %v1052
    %7927 = vmatprep.subr.mxu0 0.0
    %7928 = vmatpush1.msra.mxu0 %v1051
    %7929 = vmatprep.subr.mxu0 0.0
    %7930 = vmatpush2.msra.mxu0 0.0
    %7931 = vmatprep.subr.mxu0 0.0
    %7932 = vmatpush2.msra.mxu0 0.0
    %7933 = vmatprep.subr.mxu0 0.0
    %7934 = vmatpush2.msra.mxu0 0.0
    %7935 = vmatprep.subr.mxu0 0.0
    %7936 = vmatpush2.msra.mxu0 0.0
    %7937 = vmatprep.subr.mxu0 0.0
    %7938 = vmatpush2.msra.mxu0 0.0
    %7939 = vmatprep.subr.mxu0 0.0
    %7940 = vmatpush2.msra.mxu0 0.0
    %7941 = vmatprep.subr.mxu0 0.0
    %7942 = vmatpush2.msra.mxu0 0.0
    %7943 = vmatprep.subr.mxu0 0.0
    %7944 = vmatpush2.msra.mxu0 0.0
    %7945 = vmatprep.subr.mxu0 0.0
    %7946 = vmatpush2.msra.mxu0 0.0
    %7947 = vmatprep.subr.mxu0 0.0
    %7948 = vmatpush2.msra.mxu0 0.0
    %7949 = vmatprep.subr.mxu0 0.0
    %7950 = vmatpush2.msra.mxu0 0.0
    %7951 = vmatprep.subr.mxu0 0.0
    %7952 = vmatpush2.msra.mxu0 0.0
    %7953 = vmatprep.subr.mxu0 0.0
    %7954 = vmatpush2.msra.mxu0 0.0
    %7955 = vmatprep.subr.mxu0 0.0
    %7956 = vmatpush2.msra.mxu0 0.0
    %7957 = vmatprep.subr.mxu0 0.0
    %7958 = vmatpush2.msra.mxu0 0.0
    %7959 = vmatprep.subr.mxu0 0.0
    %7960 = vmatpush2.msra.mxu0 0.0
    %7961 = vmatprep.mubr.f32.mxu0 0.0
    %7962 = vmatmul.mubr.f32.gmra.mxu0 %v7814
    %v7963 = vpop.f32.mrf.mxu0
    %v7964 = vadd.f32 0.0, %v7963
    %v7965 = vpop.f32.mrf.mxu0
    %7966 = vdwg.mxu0
    %v7967 = vadd.f32 %v7819, %v7964
    %v7968 = vmul.f32 %v7967, 0.5
    %v7969 = vtanh.pop %v7968
    %v7970 = vmul.f32 %v7969, 0.5
    %v7971 = vadd.f32 %v7970, 0.5
    %7972 = vmatprep.subr.mxu0 0.0
    %7973 = vmatpush1.msra.mxu0 %v1157
    %7974 = vmatprep.subr.mxu0 0.0
    %7975 = vmatpush1.msra.mxu0 %v1156
    %7976 = vmatprep.subr.mxu0 0.0
    %7977 = vmatpush1.msra.mxu0 %v1155
    %7978 = vmatprep.subr.mxu0 0.0
    %7979 = vmatpush1.msra.mxu0 %v1154
    %7980 = vmatprep.subr.mxu0 0.0
    %7981 = vmatpush1.msra.mxu0 %v1153
    %7982 = vmatprep.subr.mxu0 0.0
    %7983 = vmatpush1.msra.mxu0 %v1152
    %7984 = vmatprep.subr.mxu0 0.0
    %7985 = vmatpush1.msra.mxu0 %v1151
    %7986 = vmatprep.subr.mxu0 0.0
    %7987 = vmatpush1.msra.mxu0 %v1150
    %7988 = vmatprep.subr.mxu0 0.0
    %7989 = vmatpush1.msra.mxu0 %v1149
    %7990 = vmatprep.subr.mxu0 0.0
    %7991 = vmatpush1.msra.mxu0 %v1148
    %7992 = vmatprep.subr.mxu0 0.0
    %7993 = vmatpush1.msra.mxu0 %v1147
    %7994 = vmatprep.subr.mxu0 0.0
    %7995 = vmatpush1.msra.mxu0 %v1146
    %7996 = vmatprep.subr.mxu0 0.0
    %7997 = vmatpush1.msra.mxu0 %v1145
    %7998 = vmatprep.subr.mxu0 0.0
    %7999 = vmatpush1.msra.mxu0 %v1144
    %8000 = vmatprep.subr.mxu0 0.0
    %8001 = vmatpush1.msra.mxu0 %v1143
    %8002 = vmatprep.subr.mxu0 0.0
    %8003 = vmatpush1.msra.mxu0 %v1142
    %8004 = vmatprep.subr.mxu0 0.0
    %8005 = vmatpush2.msra.mxu0 0.0
    %8006 = vmatprep.subr.mxu0 0.0
    %8007 = vmatpush2.msra.mxu0 0.0
    %8008 = vmatprep.subr.mxu0 0.0
    %8009 = vmatpush2.msra.mxu0 0.0
    %8010 = vmatprep.subr.mxu0 0.0
    %8011 = vmatpush2.msra.mxu0 0.0
    %8012 = vmatprep.subr.mxu0 0.0
    %8013 = vmatpush2.msra.mxu0 0.0
    %8014 = vmatprep.subr.mxu0 0.0
    %8015 = vmatpush2.msra.mxu0 0.0
    %8016 = vmatprep.subr.mxu0 0.0
    %8017 = vmatpush2.msra.mxu0 0.0
    %8018 = vmatprep.subr.mxu0 0.0
    %8019 = vmatpush2.msra.mxu0 0.0
    %8020 = vmatprep.subr.mxu0 0.0
    %8021 = vmatpush2.msra.mxu0 0.0
    %8022 = vmatprep.subr.mxu0 0.0
    %8023 = vmatpush2.msra.mxu0 0.0
    %8024 = vmatprep.subr.mxu0 0.0
    %8025 = vmatpush2.msra.mxu0 0.0
    %8026 = vmatprep.subr.mxu0 0.0
    %8027 = vmatpush2.msra.mxu0 0.0
    %8028 = vmatprep.subr.mxu0 0.0
    %8029 = vmatpush2.msra.mxu0 0.0
    %8030 = vmatprep.subr.mxu0 0.0
    %8031 = vmatpush2.msra.mxu0 0.0
    %8032 = vmatprep.subr.mxu0 0.0
    %8033 = vmatpush2.msra.mxu0 0.0
    %8034 = vmatprep.subr.mxu0 0.0
    %8035 = vmatpush2.msra.mxu0 0.0
    %8036 = vmatprep.mubr.f32.mxu0 0.0
    %8037 = vmatmul.mubr.f32.gmra.mxu0 %v7814
    %v8038 = vpop.f32.mrf.mxu0
    %v8039 = vadd.f32 0.0, %v8038
    %v8040 = vpop.f32.mrf.mxu0
    %8041 = vdwg.mxu0
    %v8042 = vadd.f32 %v7820, %v8039
    %v8043 = vtanh.pop %v8042
    %8044 = vmatprep.subr.mxu0 0.0
    %8045 = vmatpush1.msra.mxu0 %v1245
    %8046 = vmatprep.subr.mxu0 0.0
    %8047 = vmatpush1.msra.mxu0 %v1244
    %8048 = vmatprep.subr.mxu0 0.0
    %8049 = vmatpush1.msra.mxu0 %v1243
    %8050 = vmatprep.subr.mxu0 0.0
    %8051 = vmatpush1.msra.mxu0 %v1242
    %8052 = vmatprep.subr.mxu0 0.0
    %8053 = vmatpush1.msra.mxu0 %v1241
    %8054 = vmatprep.subr.mxu0 0.0
    %8055 = vmatpush1.msra.mxu0 %v1240
    %8056 = vmatprep.subr.mxu0 0.0
    %8057 = vmatpush1.msra.mxu0 %v1239
    %8058 = vmatprep.subr.mxu0 0.0
    %8059 = vmatpush1.msra.mxu0 %v1238
    %8060 = vmatprep.subr.mxu0 0.0
    %8061 = vmatpush1.msra.mxu0 %v1237
    %8062 = vmatprep.subr.mxu0 0.0
    %8063 = vmatpush1.msra.mxu0 %v1236
    %8064 = vmatprep.subr.mxu0 0.0
    %8065 = vmatpush1.msra.mxu0 %v1235
    %8066 = vmatprep.subr.mxu0 0.0
    %8067 = vmatpush1.msra.mxu0 %v1234
    %8068 = vmatprep.subr.mxu0 0.0
    %8069 = vmatpush1.msra.mxu0 %v1233
    %8070 = vmatprep.subr.mxu0 0.0
    %8071 = vmatpush1.msra.mxu0 %v1232
    %8072 = vmatprep.subr.mxu0 0.0
    %8073 = vmatpush1.msra.mxu0 %v1231
    %8074 = vmatprep.subr.mxu0 0.0
    %8075 = vmatpush1.msra.mxu0 %v1230
    %8076 = vmatprep.subr.mxu0 0.0
    %8077 = vmatpush2.msra.mxu0 0.0
    %8078 = vmatprep.subr.mxu0 0.0
    %8079 = vmatpush2.msra.mxu0 0.0
    %8080 = vmatprep.subr.mxu0 0.0
    %8081 = vmatpush2.msra.mxu0 0.0
    %8082 = vmatprep.subr.mxu0 0.0
    %8083 = vmatpush2.msra.mxu0 0.0
    %8084 = vmatprep.subr.mxu0 0.0
    %8085 = vmatpush2.msra.mxu0 0.0
    %8086 = vmatprep.subr.mxu0 0.0
    %8087 = vmatpush2.msra.mxu0 0.0
    %8088 = vmatprep.subr.mxu0 0.0
    %8089 = vmatpush2.msra.mxu0 0.0
    %8090 = vmatprep.subr.mxu0 0.0
    %8091 = vmatpush2.msra.mxu0 0.0
    %8092 = vmatprep.subr.mxu0 0.0
    %8093 = vmatpush2.msra.mxu0 0.0
    %8094 = vmatprep.subr.mxu0 0.0
    %8095 = vmatpush2.msra.mxu0 0.0
    %8096 = vmatprep.subr.mxu0 0.0
    %8097 = vmatpush2.msra.mxu0 0.0
    %8098 = vmatprep.subr.mxu0 0.0
    %8099 = vmatpush2.msra.mxu0 0.0
    %8100 = vmatprep.subr.mxu0 0.0
    %8101 = vmatpush2.msra.mxu0 0.0
    %8102 = vmatprep.subr.mxu0 0.0
    %8103 = vmatpush2.msra.mxu0 0.0
    %8104 = vmatprep.subr.mxu0 0.0
    %8105 = vmatpush2.msra.mxu0 0.0
    %8106 = vmatprep.subr.mxu0 0.0
    %8107 = vmatpush2.msra.mxu0 0.0
    %8108 = vmatprep.mubr.f32.mxu0 0.0
    %8109 = vmatmul.mubr.f32.gmra.mxu0 %v7814
    %v8110 = vpop.f32.mrf.mxu0
    %v8111 = vadd.f32 0.0, %v8110
    %v8112 = vpop.f32.mrf.mxu0
    %8113 = vdwg.mxu0
    %v8114 = vadd.f32 %v7821, %v8111
    %v8115 = vmul.f32 %v8114, 0.5
    %v8116 = vtanh.pop %v8115
    %v8117 = vmul.f32 %v8116, 0.5
    %v8118 = vadd.f32 %v8117, 0.5
    %v8119 = vmul.f32 %v7971, %v7812
    %v8120 = vmul.f32 %v7896, %v8043
    %v8121 = vadd.f32 %v8119, %v8120
    %v8122 = vtanh.pop %v8121
    %v8123 = vmul.f32 %v8118, %v8122
    %s8124 = smul.u32 23, 4
    %s8125 = smul.addr %s8124, 8
    %s8126 = scalar_lea.vmem [#allocation2], %s8125
    %v8127 = vld [vmem:[%s8126] sm:$0xff]
    %v8128 = vld [vmem:[%s8126 + $0x8] sm:$0xff]
    %v8129 = vld [vmem:[%s8126 + $0x10] sm:$0xff]
    %v8130 = vld [vmem:[%s8126 + $0x18] sm:$0xff]
    %8131 = vmatprep.subr.mxu0 0.0
    %8132 = vmatpush1.msra.mxu0 %v975
    %8133 = vmatprep.subr.mxu0 0.0
    %8134 = vmatpush1.msra.mxu0 %v974
    %8135 = vmatprep.subr.mxu0 0.0
    %8136 = vmatpush1.msra.mxu0 %v973
    %8137 = vmatprep.subr.mxu0 0.0
    %8138 = vmatpush1.msra.mxu0 %v972
    %8139 = vmatprep.subr.mxu0 0.0
    %8140 = vmatpush1.msra.mxu0 %v971
    %8141 = vmatprep.subr.mxu0 0.0
    %8142 = vmatpush1.msra.mxu0 %v970
    %8143 = vmatprep.subr.mxu0 0.0
    %8144 = vmatpush1.msra.mxu0 %v969
    %8145 = vmatprep.subr.mxu0 0.0
    %8146 = vmatpush1.msra.mxu0 %v968
    %8147 = vmatprep.subr.mxu0 0.0
    %8148 = vmatpush1.msra.mxu0 %v967
    %8149 = vmatprep.subr.mxu0 0.0
    %8150 = vmatpush1.msra.mxu0 %v966
    %8151 = vmatprep.subr.mxu0 0.0
    %8152 = vmatpush1.msra.mxu0 %v965
    %8153 = vmatprep.subr.mxu0 0.0
    %8154 = vmatpush1.msra.mxu0 %v964
    %8155 = vmatprep.subr.mxu0 0.0
    %8156 = vmatpush1.msra.mxu0 %v963
    %8157 = vmatprep.subr.mxu0 0.0
    %8158 = vmatpush1.msra.mxu0 %v962
    %8159 = vmatprep.subr.mxu0 0.0
    %8160 = vmatpush1.msra.mxu0 %v961
    %8161 = vmatprep.subr.mxu0 0.0
    %8162 = vmatpush1.msra.mxu0 %v960
    %8163 = vmatprep.subr.mxu0 0.0
    %8164 = vmatpush2.msra.mxu0 0.0
    %8165 = vmatprep.subr.mxu0 0.0
    %8166 = vmatpush2.msra.mxu0 0.0
    %8167 = vmatprep.subr.mxu0 0.0
    %8168 = vmatpush2.msra.mxu0 0.0
    %8169 = vmatprep.subr.mxu0 0.0
    %8170 = vmatpush2.msra.mxu0 0.0
    %8171 = vmatprep.subr.mxu0 0.0
    %8172 = vmatpush2.msra.mxu0 0.0
    %8173 = vmatprep.subr.mxu0 0.0
    %8174 = vmatpush2.msra.mxu0 0.0
    %8175 = vmatprep.subr.mxu0 0.0
    %8176 = vmatpush2.msra.mxu0 0.0
    %8177 = vmatprep.subr.mxu0 0.0
    %8178 = vmatpush2.msra.mxu0 0.0
    %8179 = vmatprep.subr.mxu0 0.0
    %8180 = vmatpush2.msra.mxu0 0.0
    %8181 = vmatprep.subr.mxu0 0.0
    %8182 = vmatpush2.msra.mxu0 0.0
    %8183 = vmatprep.subr.mxu0 0.0
    %8184 = vmatpush2.msra.mxu0 0.0
    %8185 = vmatprep.subr.mxu0 0.0
    %8186 = vmatpush2.msra.mxu0 0.0
    %8187 = vmatprep.subr.mxu0 0.0
    %8188 = vmatpush2.msra.mxu0 0.0
    %8189 = vmatprep.subr.mxu0 0.0
    %8190 = vmatpush2.msra.mxu0 0.0
    %8191 = vmatprep.subr.mxu0 0.0
    %8192 = vmatpush2.msra.mxu0 0.0
    %8193 = vmatprep.subr.mxu0 0.0
    %8194 = vmatpush2.msra.mxu0 0.0
    %8195 = vmatprep.mubr.f32.mxu0 0.0
    %8196 = vmatmul.mubr.f32.gmra.mxu0 %v8123
    %v8197 = vpop.f32.mrf.mxu0
    %v8198 = vadd.f32 0.0, %v8197
    %v8199 = vpop.f32.mrf.mxu0
    %8200 = vdwg.mxu0
    %v8201 = vadd.f32 %v8127, %v8198
    %v8202 = vmul.f32 %v8201, 0.5
    %v8203 = vtanh.pop %v8202
    %v8204 = vmul.f32 %v8203, 0.5
    %v8205 = vadd.f32 %v8204, 0.5
    %8206 = vmatprep.subr.mxu0 0.0
    %8207 = vmatpush1.msra.mxu0 %v1066
    %8208 = vmatprep.subr.mxu0 0.0
    %8209 = vmatpush1.msra.mxu0 %v1065
    %8210 = vmatprep.subr.mxu0 0.0
    %8211 = vmatpush1.msra.mxu0 %v1064
    %8212 = vmatprep.subr.mxu0 0.0
    %8213 = vmatpush1.msra.mxu0 %v1063
    %8214 = vmatprep.subr.mxu0 0.0
    %8215 = vmatpush1.msra.mxu0 %v1062
    %8216 = vmatprep.subr.mxu0 0.0
    %8217 = vmatpush1.msra.mxu0 %v1061
    %8218 = vmatprep.subr.mxu0 0.0
    %8219 = vmatpush1.msra.mxu0 %v1060
    %8220 = vmatprep.subr.mxu0 0.0
    %8221 = vmatpush1.msra.mxu0 %v1059
    %8222 = vmatprep.subr.mxu0 0.0
    %8223 = vmatpush1.msra.mxu0 %v1058
    %8224 = vmatprep.subr.mxu0 0.0
    %8225 = vmatpush1.msra.mxu0 %v1057
    %8226 = vmatprep.subr.mxu0 0.0
    %8227 = vmatpush1.msra.mxu0 %v1056
    %8228 = vmatprep.subr.mxu0 0.0
    %8229 = vmatpush1.msra.mxu0 %v1055
    %8230 = vmatprep.subr.mxu0 0.0
    %8231 = vmatpush1.msra.mxu0 %v1054
    %8232 = vmatprep.subr.mxu0 0.0
    %8233 = vmatpush1.msra.mxu0 %v1053
    %8234 = vmatprep.subr.mxu0 0.0
    %8235 = vmatpush1.msra.mxu0 %v1052
    %8236 = vmatprep.subr.mxu0 0.0
    %8237 = vmatpush1.msra.mxu0 %v1051
    %8238 = vmatprep.subr.mxu0 0.0
    %8239 = vmatpush2.msra.mxu0 0.0
    %8240 = vmatprep.subr.mxu0 0.0
    %8241 = vmatpush2.msra.mxu0 0.0
    %8242 = vmatprep.subr.mxu0 0.0
    %8243 = vmatpush2.msra.mxu0 0.0
    %8244 = vmatprep.subr.mxu0 0.0
    %8245 = vmatpush2.msra.mxu0 0.0
    %8246 = vmatprep.subr.mxu0 0.0
    %8247 = vmatpush2.msra.mxu0 0.0
    %8248 = vmatprep.subr.mxu0 0.0
    %8249 = vmatpush2.msra.mxu0 0.0
    %8250 = vmatprep.subr.mxu0 0.0
    %8251 = vmatpush2.msra.mxu0 0.0
    %8252 = vmatprep.subr.mxu0 0.0
    %8253 = vmatpush2.msra.mxu0 0.0
    %8254 = vmatprep.subr.mxu0 0.0
    %8255 = vmatpush2.msra.mxu0 0.0
    %8256 = vmatprep.subr.mxu0 0.0
    %8257 = vmatpush2.msra.mxu0 0.0
    %8258 = vmatprep.subr.mxu0 0.0
    %8259 = vmatpush2.msra.mxu0 0.0
    %8260 = vmatprep.subr.mxu0 0.0
    %8261 = vmatpush2.msra.mxu0 0.0
    %8262 = vmatprep.subr.mxu0 0.0
    %8263 = vmatpush2.msra.mxu0 0.0
    %8264 = vmatprep.subr.mxu0 0.0
    %8265 = vmatpush2.msra.mxu0 0.0
    %8266 = vmatprep.subr.mxu0 0.0
    %8267 = vmatpush2.msra.mxu0 0.0
    %8268 = vmatprep.subr.mxu0 0.0
    %8269 = vmatpush2.msra.mxu0 0.0
    %8270 = vmatprep.mubr.f32.mxu0 0.0
    %8271 = vmatmul.mubr.f32.gmra.mxu0 %v8123
    %v8272 = vpop.f32.mrf.mxu0
    %v8273 = vadd.f32 0.0, %v8272
    %v8274 = vpop.f32.mrf.mxu0
    %8275 = vdwg.mxu0
    %v8276 = vadd.f32 %v8128, %v8273
    %v8277 = vmul.f32 %v8276, 0.5
    %v8278 = vtanh.pop %v8277
    %v8279 = vmul.f32 %v8278, 0.5
    %v8280 = vadd.f32 %v8279, 0.5
    %8281 = vmatprep.subr.mxu0 0.0
    %8282 = vmatpush1.msra.mxu0 %v1157
    %8283 = vmatprep.subr.mxu0 0.0
    %8284 = vmatpush1.msra.mxu0 %v1156
    %8285 = vmatprep.subr.mxu0 0.0
    %8286 = vmatpush1.msra.mxu0 %v1155
    %8287 = vmatprep.subr.mxu0 0.0
    %8288 = vmatpush1.msra.mxu0 %v1154
    %8289 = vmatprep.subr.mxu0 0.0
    %8290 = vmatpush1.msra.mxu0 %v1153
    %8291 = vmatprep.subr.mxu0 0.0
    %8292 = vmatpush1.msra.mxu0 %v1152
    %8293 = vmatprep.subr.mxu0 0.0
    %8294 = vmatpush1.msra.mxu0 %v1151
    %8295 = vmatprep.subr.mxu0 0.0
    %8296 = vmatpush1.msra.mxu0 %v1150
    %8297 = vmatprep.subr.mxu0 0.0
    %8298 = vmatpush1.msra.mxu0 %v1149
    %8299 = vmatprep.subr.mxu0 0.0
    %8300 = vmatpush1.msra.mxu0 %v1148
    %8301 = vmatprep.subr.mxu0 0.0
    %8302 = vmatpush1.msra.mxu0 %v1147
    %8303 = vmatprep.subr.mxu0 0.0
    %8304 = vmatpush1.msra.mxu0 %v1146
    %8305 = vmatprep.subr.mxu0 0.0
    %8306 = vmatpush1.msra.mxu0 %v1145
    %8307 = vmatprep.subr.mxu0 0.0
    %8308 = vmatpush1.msra.mxu0 %v1144
    %8309 = vmatprep.subr.mxu0 0.0
    %8310 = vmatpush1.msra.mxu0 %v1143
    %8311 = vmatprep.subr.mxu0 0.0
    %8312 = vmatpush1.msra.mxu0 %v1142
    %8313 = vmatprep.subr.mxu0 0.0
    %8314 = vmatpush2.msra.mxu0 0.0
    %8315 = vmatprep.subr.mxu0 0.0
    %8316 = vmatpush2.msra.mxu0 0.0
    %8317 = vmatprep.subr.mxu0 0.0
    %8318 = vmatpush2.msra.mxu0 0.0
    %8319 = vmatprep.subr.mxu0 0.0
    %8320 = vmatpush2.msra.mxu0 0.0
    %8321 = vmatprep.subr.mxu0 0.0
    %8322 = vmatpush2.msra.mxu0 0.0
    %8323 = vmatprep.subr.mxu0 0.0
    %8324 = vmatpush2.msra.mxu0 0.0
    %8325 = vmatprep.subr.mxu0 0.0
    %8326 = vmatpush2.msra.mxu0 0.0
    %8327 = vmatprep.subr.mxu0 0.0
    %8328 = vmatpush2.msra.mxu0 0.0
    %8329 = vmatprep.subr.mxu0 0.0
    %8330 = vmatpush2.msra.mxu0 0.0
    %8331 = vmatprep.subr.mxu0 0.0
    %8332 = vmatpush2.msra.mxu0 0.0
    %8333 = vmatprep.subr.mxu0 0.0
    %8334 = vmatpush2.msra.mxu0 0.0
    %8335 = vmatprep.subr.mxu0 0.0
    %8336 = vmatpush2.msra.mxu0 0.0
    %8337 = vmatprep.subr.mxu0 0.0
    %8338 = vmatpush2.msra.mxu0 0.0
    %8339 = vmatprep.subr.mxu0 0.0
    %8340 = vmatpush2.msra.mxu0 0.0
    %8341 = vmatprep.subr.mxu0 0.0
    %8342 = vmatpush2.msra.mxu0 0.0
    %8343 = vmatprep.subr.mxu0 0.0
    %8344 = vmatpush2.msra.mxu0 0.0
    %8345 = vmatprep.mubr.f32.mxu0 0.0
    %8346 = vmatmul.mubr.f32.gmra.mxu0 %v8123
    %v8347 = vpop.f32.mrf.mxu0
    %v8348 = vadd.f32 0.0, %v8347
    %v8349 = vpop.f32.mrf.mxu0
    %8350 = vdwg.mxu0
    %v8351 = vadd.f32 %v8129, %v8348
    %v8352 = vtanh.pop %v8351
    %8353 = vmatprep.subr.mxu0 0.0
    %8354 = vmatpush1.msra.mxu0 %v1245
    %8355 = vmatprep.subr.mxu0 0.0
    %8356 = vmatpush1.msra.mxu0 %v1244
    %8357 = vmatprep.subr.mxu0 0.0
    %8358 = vmatpush1.msra.mxu0 %v1243
    %8359 = vmatprep.subr.mxu0 0.0
    %8360 = vmatpush1.msra.mxu0 %v1242
    %8361 = vmatprep.subr.mxu0 0.0
    %8362 = vmatpush1.msra.mxu0 %v1241
    %8363 = vmatprep.subr.mxu0 0.0
    %8364 = vmatpush1.msra.mxu0 %v1240
    %8365 = vmatprep.subr.mxu0 0.0
    %8366 = vmatpush1.msra.mxu0 %v1239
    %8367 = vmatprep.subr.mxu0 0.0
    %8368 = vmatpush1.msra.mxu0 %v1238
    %8369 = vmatprep.subr.mxu0 0.0
    %8370 = vmatpush1.msra.mxu0 %v1237
    %8371 = vmatprep.subr.mxu0 0.0
    %8372 = vmatpush1.msra.mxu0 %v1236
    %8373 = vmatprep.subr.mxu0 0.0
    %8374 = vmatpush1.msra.mxu0 %v1235
    %8375 = vmatprep.subr.mxu0 0.0
    %8376 = vmatpush1.msra.mxu0 %v1234
    %8377 = vmatprep.subr.mxu0 0.0
    %8378 = vmatpush1.msra.mxu0 %v1233
    %8379 = vmatprep.subr.mxu0 0.0
    %8380 = vmatpush1.msra.mxu0 %v1232
    %8381 = vmatprep.subr.mxu0 0.0
    %8382 = vmatpush1.msra.mxu0 %v1231
    %8383 = vmatprep.subr.mxu0 0.0
    %8384 = vmatpush1.msra.mxu0 %v1230
    %8385 = vmatprep.subr.mxu0 0.0
    %8386 = vmatpush2.msra.mxu0 0.0
    %8387 = vmatprep.subr.mxu0 0.0
    %8388 = vmatpush2.msra.mxu0 0.0
    %8389 = vmatprep.subr.mxu0 0.0
    %8390 = vmatpush2.msra.mxu0 0.0
    %8391 = vmatprep.subr.mxu0 0.0
    %8392 = vmatpush2.msra.mxu0 0.0
    %8393 = vmatprep.subr.mxu0 0.0
    %8394 = vmatpush2.msra.mxu0 0.0
    %8395 = vmatprep.subr.mxu0 0.0
    %8396 = vmatpush2.msra.mxu0 0.0
    %8397 = vmatprep.subr.mxu0 0.0
    %8398 = vmatpush2.msra.mxu0 0.0
    %8399 = vmatprep.subr.mxu0 0.0
    %8400 = vmatpush2.msra.mxu0 0.0
    %8401 = vmatprep.subr.mxu0 0.0
    %8402 = vmatpush2.msra.mxu0 0.0
    %8403 = vmatprep.subr.mxu0 0.0
    %8404 = vmatpush2.msra.mxu0 0.0
    %8405 = vmatprep.subr.mxu0 0.0
    %8406 = vmatpush2.msra.mxu0 0.0
    %8407 = vmatprep.subr.mxu0 0.0
    %8408 = vmatpush2.msra.mxu0 0.0
    %8409 = vmatprep.subr.mxu0 0.0
    %8410 = vmatpush2.msra.mxu0 0.0
    %8411 = vmatprep.subr.mxu0 0.0
    %8412 = vmatpush2.msra.mxu0 0.0
    %8413 = vmatprep.subr.mxu0 0.0
    %8414 = vmatpush2.msra.mxu0 0.0
    %8415 = vmatprep.subr.mxu0 0.0
    %8416 = vmatpush2.msra.mxu0 0.0
    %8417 = vmatprep.mubr.f32.mxu0 0.0
    %8418 = vmatmul.mubr.f32.gmra.mxu0 %v8123
    %v8419 = vpop.f32.mrf.mxu0
    %v8420 = vadd.f32 0.0, %v8419
    %v8421 = vpop.f32.mrf.mxu0
    %8422 = vdwg.mxu0
    %v8423 = vadd.f32 %v8130, %v8420
    %v8424 = vmul.f32 %v8423, 0.5
    %v8425 = vtanh.pop %v8424
    %v8426 = vmul.f32 %v8425, 0.5
    %v8427 = vadd.f32 %v8426, 0.5
    %v8428 = vmul.f32 %v8280, %v8121
    %v8429 = vmul.f32 %v8205, %v8352
    %v8430 = vadd.f32 %v8428, %v8429
    %v8431 = vtanh.pop %v8430
    %v8432 = vmul.f32 %v8427, %v8431
    %s8433 = smul.u32 24, 4
    %s8434 = smul.addr %s8433, 8
    %s8435 = scalar_lea.vmem [#allocation2], %s8434
    %v8436 = vld [vmem:[%s8435] sm:$0xff]
    %v8437 = vld [vmem:[%s8435 + $0x8] sm:$0xff]
    %v8438 = vld [vmem:[%s8435 + $0x10] sm:$0xff]
    %v8439 = vld [vmem:[%s8435 + $0x18] sm:$0xff]
    %8440 = vmatprep.subr.mxu0 0.0
    %8441 = vmatpush1.msra.mxu0 %v975
    %8442 = vmatprep.subr.mxu0 0.0
    %8443 = vmatpush1.msra.mxu0 %v974
    %8444 = vmatprep.subr.mxu0 0.0
    %8445 = vmatpush1.msra.mxu0 %v973
    %8446 = vmatprep.subr.mxu0 0.0
    %8447 = vmatpush1.msra.mxu0 %v972
    %8448 = vmatprep.subr.mxu0 0.0
    %8449 = vmatpush1.msra.mxu0 %v971
    %8450 = vmatprep.subr.mxu0 0.0
    %8451 = vmatpush1.msra.mxu0 %v970
    %8452 = vmatprep.subr.mxu0 0.0
    %8453 = vmatpush1.msra.mxu0 %v969
    %8454 = vmatprep.subr.mxu0 0.0
    %8455 = vmatpush1.msra.mxu0 %v968
    %8456 = vmatprep.subr.mxu0 0.0
    %8457 = vmatpush1.msra.mxu0 %v967
    %8458 = vmatprep.subr.mxu0 0.0
    %8459 = vmatpush1.msra.mxu0 %v966
    %8460 = vmatprep.subr.mxu0 0.0
    %8461 = vmatpush1.msra.mxu0 %v965
    %8462 = vmatprep.subr.mxu0 0.0
    %8463 = vmatpush1.msra.mxu0 %v964
    %8464 = vmatprep.subr.mxu0 0.0
    %8465 = vmatpush1.msra.mxu0 %v963
    %8466 = vmatprep.subr.mxu0 0.0
    %8467 = vmatpush1.msra.mxu0 %v962
    %8468 = vmatprep.subr.mxu0 0.0
    %8469 = vmatpush1.msra.mxu0 %v961
    %8470 = vmatprep.subr.mxu0 0.0
    %8471 = vmatpush1.msra.mxu0 %v960
    %8472 = vmatprep.subr.mxu0 0.0
    %8473 = vmatpush2.msra.mxu0 0.0
    %8474 = vmatprep.subr.mxu0 0.0
    %8475 = vmatpush2.msra.mxu0 0.0
    %8476 = vmatprep.subr.mxu0 0.0
    %8477 = vmatpush2.msra.mxu0 0.0
    %8478 = vmatprep.subr.mxu0 0.0
    %8479 = vmatpush2.msra.mxu0 0.0
    %8480 = vmatprep.subr.mxu0 0.0
    %8481 = vmatpush2.msra.mxu0 0.0
    %8482 = vmatprep.subr.mxu0 0.0
    %8483 = vmatpush2.msra.mxu0 0.0
    %8484 = vmatprep.subr.mxu0 0.0
    %8485 = vmatpush2.msra.mxu0 0.0
    %8486 = vmatprep.subr.mxu0 0.0
    %8487 = vmatpush2.msra.mxu0 0.0
    %8488 = vmatprep.subr.mxu0 0.0
    %8489 = vmatpush2.msra.mxu0 0.0
    %8490 = vmatprep.subr.mxu0 0.0
    %8491 = vmatpush2.msra.mxu0 0.0
    %8492 = vmatprep.subr.mxu0 0.0
    %8493 = vmatpush2.msra.mxu0 0.0
    %8494 = vmatprep.subr.mxu0 0.0
    %8495 = vmatpush2.msra.mxu0 0.0
    %8496 = vmatprep.subr.mxu0 0.0
    %8497 = vmatpush2.msra.mxu0 0.0
    %8498 = vmatprep.subr.mxu0 0.0
    %8499 = vmatpush2.msra.mxu0 0.0
    %8500 = vmatprep.subr.mxu0 0.0
    %8501 = vmatpush2.msra.mxu0 0.0
    %8502 = vmatprep.subr.mxu0 0.0
    %8503 = vmatpush2.msra.mxu0 0.0
    %8504 = vmatprep.mubr.f32.mxu0 0.0
    %8505 = vmatmul.mubr.f32.gmra.mxu0 %v8432
    %v8506 = vpop.f32.mrf.mxu0
    %v8507 = vadd.f32 0.0, %v8506
    %v8508 = vpop.f32.mrf.mxu0
    %8509 = vdwg.mxu0
    %v8510 = vadd.f32 %v8436, %v8507
    %v8511 = vmul.f32 %v8510, 0.5
    %v8512 = vtanh.pop %v8511
    %v8513 = vmul.f32 %v8512, 0.5
    %v8514 = vadd.f32 %v8513, 0.5
    %8515 = vmatprep.subr.mxu0 0.0
    %8516 = vmatpush1.msra.mxu0 %v1066
    %8517 = vmatprep.subr.mxu0 0.0
    %8518 = vmatpush1.msra.mxu0 %v1065
    %8519 = vmatprep.subr.mxu0 0.0
    %8520 = vmatpush1.msra.mxu0 %v1064
    %8521 = vmatprep.subr.mxu0 0.0
    %8522 = vmatpush1.msra.mxu0 %v1063
    %8523 = vmatprep.subr.mxu0 0.0
    %8524 = vmatpush1.msra.mxu0 %v1062
    %8525 = vmatprep.subr.mxu0 0.0
    %8526 = vmatpush1.msra.mxu0 %v1061
    %8527 = vmatprep.subr.mxu0 0.0
    %8528 = vmatpush1.msra.mxu0 %v1060
    %8529 = vmatprep.subr.mxu0 0.0
    %8530 = vmatpush1.msra.mxu0 %v1059
    %8531 = vmatprep.subr.mxu0 0.0
    %8532 = vmatpush1.msra.mxu0 %v1058
    %8533 = vmatprep.subr.mxu0 0.0
    %8534 = vmatpush1.msra.mxu0 %v1057
    %8535 = vmatprep.subr.mxu0 0.0
    %8536 = vmatpush1.msra.mxu0 %v1056
    %8537 = vmatprep.subr.mxu0 0.0
    %8538 = vmatpush1.msra.mxu0 %v1055
    %8539 = vmatprep.subr.mxu0 0.0
    %8540 = vmatpush1.msra.mxu0 %v1054
    %8541 = vmatprep.subr.mxu0 0.0
    %8542 = vmatpush1.msra.mxu0 %v1053
    %8543 = vmatprep.subr.mxu0 0.0
    %8544 = vmatpush1.msra.mxu0 %v1052
    %8545 = vmatprep.subr.mxu0 0.0
    %8546 = vmatpush1.msra.mxu0 %v1051
    %8547 = vmatprep.subr.mxu0 0.0
    %8548 = vmatpush2.msra.mxu0 0.0
    %8549 = vmatprep.subr.mxu0 0.0
    %8550 = vmatpush2.msra.mxu0 0.0
    %8551 = vmatprep.subr.mxu0 0.0
    %8552 = vmatpush2.msra.mxu0 0.0
    %8553 = vmatprep.subr.mxu0 0.0
    %8554 = vmatpush2.msra.mxu0 0.0
    %8555 = vmatprep.subr.mxu0 0.0
    %8556 = vmatpush2.msra.mxu0 0.0
    %8557 = vmatprep.subr.mxu0 0.0
    %8558 = vmatpush2.msra.mxu0 0.0
    %8559 = vmatprep.subr.mxu0 0.0
    %8560 = vmatpush2.msra.mxu0 0.0
    %8561 = vmatprep.subr.mxu0 0.0
    %8562 = vmatpush2.msra.mxu0 0.0
    %8563 = vmatprep.subr.mxu0 0.0
    %8564 = vmatpush2.msra.mxu0 0.0
    %8565 = vmatprep.subr.mxu0 0.0
    %8566 = vmatpush2.msra.mxu0 0.0
    %8567 = vmatprep.subr.mxu0 0.0
    %8568 = vmatpush2.msra.mxu0 0.0
    %8569 = vmatprep.subr.mxu0 0.0
    %8570 = vmatpush2.msra.mxu0 0.0
    %8571 = vmatprep.subr.mxu0 0.0
    %8572 = vmatpush2.msra.mxu0 0.0
    %8573 = vmatprep.subr.mxu0 0.0
    %8574 = vmatpush2.msra.mxu0 0.0
    %8575 = vmatprep.subr.mxu0 0.0
    %8576 = vmatpush2.msra.mxu0 0.0
    %8577 = vmatprep.subr.mxu0 0.0
    %8578 = vmatpush2.msra.mxu0 0.0
    %8579 = vmatprep.mubr.f32.mxu0 0.0
    %8580 = vmatmul.mubr.f32.gmra.mxu0 %v8432
    %v8581 = vpop.f32.mrf.mxu0
    %v8582 = vadd.f32 0.0, %v8581
    %v8583 = vpop.f32.mrf.mxu0
    %8584 = vdwg.mxu0
    %v8585 = vadd.f32 %v8437, %v8582
    %v8586 = vmul.f32 %v8585, 0.5
    %v8587 = vtanh.pop %v8586
    %v8588 = vmul.f32 %v8587, 0.5
    %v8589 = vadd.f32 %v8588, 0.5
    %8590 = vmatprep.subr.mxu0 0.0
    %8591 = vmatpush1.msra.mxu0 %v1157
    %8592 = vmatprep.subr.mxu0 0.0
    %8593 = vmatpush1.msra.mxu0 %v1156
    %8594 = vmatprep.subr.mxu0 0.0
    %8595 = vmatpush1.msra.mxu0 %v1155
    %8596 = vmatprep.subr.mxu0 0.0
    %8597 = vmatpush1.msra.mxu0 %v1154
    %8598 = vmatprep.subr.mxu0 0.0
    %8599 = vmatpush1.msra.mxu0 %v1153
    %8600 = vmatprep.subr.mxu0 0.0
    %8601 = vmatpush1.msra.mxu0 %v1152
    %8602 = vmatprep.subr.mxu0 0.0
    %8603 = vmatpush1.msra.mxu0 %v1151
    %8604 = vmatprep.subr.mxu0 0.0
    %8605 = vmatpush1.msra.mxu0 %v1150
    %8606 = vmatprep.subr.mxu0 0.0
    %8607 = vmatpush1.msra.mxu0 %v1149
    %8608 = vmatprep.subr.mxu0 0.0
    %8609 = vmatpush1.msra.mxu0 %v1148
    %8610 = vmatprep.subr.mxu0 0.0
    %8611 = vmatpush1.msra.mxu0 %v1147
    %8612 = vmatprep.subr.mxu0 0.0
    %8613 = vmatpush1.msra.mxu0 %v1146
    %8614 = vmatprep.subr.mxu0 0.0
    %8615 = vmatpush1.msra.mxu0 %v1145
    %8616 = vmatprep.subr.mxu0 0.0
    %8617 = vmatpush1.msra.mxu0 %v1144
    %8618 = vmatprep.subr.mxu0 0.0
    %8619 = vmatpush1.msra.mxu0 %v1143
    %8620 = vmatprep.subr.mxu0 0.0
    %8621 = vmatpush1.msra.mxu0 %v1142
    %8622 = vmatprep.subr.mxu0 0.0
    %8623 = vmatpush2.msra.mxu0 0.0
    %8624 = vmatprep.subr.mxu0 0.0
    %8625 = vmatpush2.msra.mxu0 0.0
    %8626 = vmatprep.subr.mxu0 0.0
    %8627 = vmatpush2.msra.mxu0 0.0
    %8628 = vmatprep.subr.mxu0 0.0
    %8629 = vmatpush2.msra.mxu0 0.0
    %8630 = vmatprep.subr.mxu0 0.0
    %8631 = vmatpush2.msra.mxu0 0.0
    %8632 = vmatprep.subr.mxu0 0.0
    %8633 = vmatpush2.msra.mxu0 0.0
    %8634 = vmatprep.subr.mxu0 0.0
    %8635 = vmatpush2.msra.mxu0 0.0
    %8636 = vmatprep.subr.mxu0 0.0
    %8637 = vmatpush2.msra.mxu0 0.0
    %8638 = vmatprep.subr.mxu0 0.0
    %8639 = vmatpush2.msra.mxu0 0.0
    %8640 = vmatprep.subr.mxu0 0.0
    %8641 = vmatpush2.msra.mxu0 0.0
    %8642 = vmatprep.subr.mxu0 0.0
    %8643 = vmatpush2.msra.mxu0 0.0
    %8644 = vmatprep.subr.mxu0 0.0
    %8645 = vmatpush2.msra.mxu0 0.0
    %8646 = vmatprep.subr.mxu0 0.0
    %8647 = vmatpush2.msra.mxu0 0.0
    %8648 = vmatprep.subr.mxu0 0.0
    %8649 = vmatpush2.msra.mxu0 0.0
    %8650 = vmatprep.subr.mxu0 0.0
    %8651 = vmatpush2.msra.mxu0 0.0
    %8652 = vmatprep.subr.mxu0 0.0
    %8653 = vmatpush2.msra.mxu0 0.0
    %8654 = vmatprep.mubr.f32.mxu0 0.0
    %8655 = vmatmul.mubr.f32.gmra.mxu0 %v8432
    %v8656 = vpop.f32.mrf.mxu0
    %v8657 = vadd.f32 0.0, %v8656
    %v8658 = vpop.f32.mrf.mxu0
    %8659 = vdwg.mxu0
    %v8660 = vadd.f32 %v8438, %v8657
    %v8661 = vtanh.pop %v8660
    %8662 = vmatprep.subr.mxu0 0.0
    %8663 = vmatpush1.msra.mxu0 %v1245
    %8664 = vmatprep.subr.mxu0 0.0
    %8665 = vmatpush1.msra.mxu0 %v1244
    %8666 = vmatprep.subr.mxu0 0.0
    %8667 = vmatpush1.msra.mxu0 %v1243
    %8668 = vmatprep.subr.mxu0 0.0
    %8669 = vmatpush1.msra.mxu0 %v1242
    %8670 = vmatprep.subr.mxu0 0.0
    %8671 = vmatpush1.msra.mxu0 %v1241
    %8672 = vmatprep.subr.mxu0 0.0
    %8673 = vmatpush1.msra.mxu0 %v1240
    %8674 = vmatprep.subr.mxu0 0.0
    %8675 = vmatpush1.msra.mxu0 %v1239
    %8676 = vmatprep.subr.mxu0 0.0
    %8677 = vmatpush1.msra.mxu0 %v1238
    %8678 = vmatprep.subr.mxu0 0.0
    %8679 = vmatpush1.msra.mxu0 %v1237
    %8680 = vmatprep.subr.mxu0 0.0
    %8681 = vmatpush1.msra.mxu0 %v1236
    %8682 = vmatprep.subr.mxu0 0.0
    %8683 = vmatpush1.msra.mxu0 %v1235
    %8684 = vmatprep.subr.mxu0 0.0
    %8685 = vmatpush1.msra.mxu0 %v1234
    %8686 = vmatprep.subr.mxu0 0.0
    %8687 = vmatpush1.msra.mxu0 %v1233
    %8688 = vmatprep.subr.mxu0 0.0
    %8689 = vmatpush1.msra.mxu0 %v1232
    %8690 = vmatprep.subr.mxu0 0.0
    %8691 = vmatpush1.msra.mxu0 %v1231
    %8692 = vmatprep.subr.mxu0 0.0
    %8693 = vmatpush1.msra.mxu0 %v1230
    %8694 = vmatprep.subr.mxu0 0.0
    %8695 = vmatpush2.msra.mxu0 0.0
    %8696 = vmatprep.subr.mxu0 0.0
    %8697 = vmatpush2.msra.mxu0 0.0
    %8698 = vmatprep.subr.mxu0 0.0
    %8699 = vmatpush2.msra.mxu0 0.0
    %8700 = vmatprep.subr.mxu0 0.0
    %8701 = vmatpush2.msra.mxu0 0.0
    %8702 = vmatprep.subr.mxu0 0.0
    %8703 = vmatpush2.msra.mxu0 0.0
    %8704 = vmatprep.subr.mxu0 0.0
    %8705 = vmatpush2.msra.mxu0 0.0
    %8706 = vmatprep.subr.mxu0 0.0
    %8707 = vmatpush2.msra.mxu0 0.0
    %8708 = vmatprep.subr.mxu0 0.0
    %8709 = vmatpush2.msra.mxu0 0.0
    %8710 = vmatprep.subr.mxu0 0.0
    %8711 = vmatpush2.msra.mxu0 0.0
    %8712 = vmatprep.subr.mxu0 0.0
    %8713 = vmatpush2.msra.mxu0 0.0
    %8714 = vmatprep.subr.mxu0 0.0
    %8715 = vmatpush2.msra.mxu0 0.0
    %8716 = vmatprep.subr.mxu0 0.0
    %8717 = vmatpush2.msra.mxu0 0.0
    %8718 = vmatprep.subr.mxu0 0.0
    %8719 = vmatpush2.msra.mxu0 0.0
    %8720 = vmatprep.subr.mxu0 0.0
    %8721 = vmatpush2.msra.mxu0 0.0
    %8722 = vmatprep.subr.mxu0 0.0
    %8723 = vmatpush2.msra.mxu0 0.0
    %8724 = vmatprep.subr.mxu0 0.0
    %8725 = vmatpush2.msra.mxu0 0.0
    %8726 = vmatprep.mubr.f32.mxu0 0.0
    %8727 = vmatmul.mubr.f32.gmra.mxu0 %v8432
    %v8728 = vpop.f32.mrf.mxu0
    %v8729 = vadd.f32 0.0, %v8728
    %v8730 = vpop.f32.mrf.mxu0
    %8731 = vdwg.mxu0
    %v8732 = vadd.f32 %v8439, %v8729
    %v8733 = vmul.f32 %v8732, 0.5
    %v8734 = vtanh.pop %v8733
    %v8735 = vmul.f32 %v8734, 0.5
    %v8736 = vadd.f32 %v8735, 0.5
    %v8737 = vmul.f32 %v8589, %v8430
    %v8738 = vmul.f32 %v8514, %v8661
    %v8739 = vadd.f32 %v8737, %v8738
    %v8740 = vtanh.pop %v8739
    %v8741 = vmul.f32 %v8736, %v8740
    %s8742 = smul.u32 128, 1
    %s8743 = sshll.u32 %s8742, 4
    %8744 = dma.done %s187, %s8743
    %s8745 = smul.u32 1, 1
    %s8746 = sshll.u32 %s8745, 4
    %8747 = dma.done %s261, %s8746
    %v8748 = vld [vmem:[#allocation4] sm:$0xff]
    %v8749 = vld [vmem:[#allocation4 + $0x8] sm:$0xff]
    %v8750 = vld [vmem:[#allocation4 + $0x10] sm:$0xff]
    %v8751 = vld [vmem:[#allocation4 + $0x18] sm:$0xff]
    %v8752 = vld [vmem:[#allocation4 + $0x20] sm:$0xff]
    %v8753 = vld [vmem:[#allocation4 + $0x28] sm:$0xff]
    %v8754 = vld [vmem:[#allocation4 + $0x30] sm:$0xff]
    %v8755 = vld [vmem:[#allocation4 + $0x38] sm:$0xff]
    %v8756 = vld [vmem:[#allocation4 + $0x40] sm:$0xff]
    %v8757 = vld [vmem:[#allocation4 + $0x48] sm:$0xff]
    %v8758 = vld [vmem:[#allocation4 + $0x50] sm:$0xff]
    %v8759 = vld [vmem:[#allocation4 + $0x58] sm:$0xff]
    %v8760 = vld [vmem:[#allocation4 + $0x60] sm:$0xff]
    %v8761 = vld [vmem:[#allocation4 + $0x68] sm:$0xff]
    %v8762 = vld [vmem:[#allocation4 + $0x70] sm:$0xff]
    %v8763 = vld [vmem:[#allocation4 + $0x78] sm:$0xff]
    %v8764 = vld [vmem:[#allocation5] sm:$0x1]
    %v8766 = vlaneseq
    %v8767 = vshrl.u32 %v8766, 7
    %v8768 = vsub.s32 0, %v8767
    %v8769 = vrot.slane %v8764, %v8768
    %8771 = vmatprep.subr.mxu0 0.0
    %8772 = vmatpush1.msra.mxu0 %v8763
    %8773 = vmatprep.subr.mxu0 0.0
    %8774 = vmatpush1.msra.mxu0 %v8762
    %8775 = vmatprep.subr.mxu0 0.0
    %8776 = vmatpush1.msra.mxu0 %v8761
    %8777 = vmatprep.subr.mxu0 0.0
    %8778 = vmatpush1.msra.mxu0 %v8760
    %8779 = vmatprep.subr.mxu0 0.0
    %8780 = vmatpush1.msra.mxu0 %v8759
    %8781 = vmatprep.subr.mxu0 0.0
    %8782 = vmatpush1.msra.mxu0 %v8758
    %8783 = vmatprep.subr.mxu0 0.0
    %8784 = vmatpush1.msra.mxu0 %v8757
    %8785 = vmatprep.subr.mxu0 0.0
    %8786 = vmatpush1.msra.mxu0 %v8756
    %8787 = vmatprep.subr.mxu0 0.0
    %8788 = vmatpush1.msra.mxu0 %v8755
    %8789 = vmatprep.subr.mxu0 0.0
    %8790 = vmatpush1.msra.mxu0 %v8754
    %8791 = vmatprep.subr.mxu0 0.0
    %8792 = vmatpush1.msra.mxu0 %v8753
    %8793 = vmatprep.subr.mxu0 0.0
    %8794 = vmatpush1.msra.mxu0 %v8752
    %8795 = vmatprep.subr.mxu0 0.0
    %8796 = vmatpush1.msra.mxu0 %v8751
    %8797 = vmatprep.subr.mxu0 0.0
    %8798 = vmatpush1.msra.mxu0 %v8750
    %8799 = vmatprep.subr.mxu0 0.0
    %8800 = vmatpush1.msra.mxu0 %v8749
    %8801 = vmatprep.subr.mxu0 0.0
    %8802 = vmatpush1.msra.mxu0 %v8748
    %8803 = vmatprep.subr.mxu0 0.0
    %8804 = vmatpush2.msra.mxu0 0.0
    %8805 = vmatprep.subr.mxu0 0.0
    %8806 = vmatpush2.msra.mxu0 0.0
    %8807 = vmatprep.subr.mxu0 0.0
    %8808 = vmatpush2.msra.mxu0 0.0
    %8809 = vmatprep.subr.mxu0 0.0
    %8810 = vmatpush2.msra.mxu0 0.0
    %8811 = vmatprep.subr.mxu0 0.0
    %8812 = vmatpush2.msra.mxu0 0.0
    %8813 = vmatprep.subr.mxu0 0.0
    %8814 = vmatpush2.msra.mxu0 0.0
    %8815 = vmatprep.subr.mxu0 0.0
    %8816 = vmatpush2.msra.mxu0 0.0
    %8817 = vmatprep.subr.mxu0 0.0
    %8818 = vmatpush2.msra.mxu0 0.0
    %8819 = vmatprep.subr.mxu0 0.0
    %8820 = vmatpush2.msra.mxu0 0.0
    %8821 = vmatprep.subr.mxu0 0.0
    %8822 = vmatpush2.msra.mxu0 0.0
    %8823 = vmatprep.subr.mxu0 0.0
    %8824 = vmatpush2.msra.mxu0 0.0
    %8825 = vmatprep.subr.mxu0 0.0
    %8826 = vmatpush2.msra.mxu0 0.0
    %8827 = vmatprep.subr.mxu0 0.0
    %8828 = vmatpush2.msra.mxu0 0.0
    %8829 = vmatprep.subr.mxu0 0.0
    %8830 = vmatpush2.msra.mxu0 0.0
    %8831 = vmatprep.subr.mxu0 0.0
    %8832 = vmatpush2.msra.mxu0 0.0
    %8833 = vmatprep.subr.mxu0 0.0
    %8834 = vmatpush2.msra.mxu0 0.0
    %8835 = vmatprep.mubr.f32.mxu0 0.0
    %8836 = vmatmul.mubr.f32.gmra.mxu0 %v8741
    %v8837 = vpop.f32.mrf.mxu0
    %v8838 = vadd.f32 %v8769, %v8837
    %v8839 = vpop.f32.mrf.mxu0
    %8840 = vdwg.mxu0
    %8841 = vst [vmem:[#allocation7] sm:$0xff] %v8838
    // Predicated region
    $region112: #{rnn_model_forward.1} parent=1 // pred_check
      _
    $region113: #{rnn_model_forward.1} parent=1 // pred_check_branch
      %8843 = sbr.rel (0) target = $region115
    $region114: #{rnn_model_forward.1} parent=1 // pred_region
      %s8845 = ssub.s32 128, 128
      %8846 = vsyncadd [#allocation8], %s8845
      %s8848 = sshll.u32 [#allocation7], 4
      %s8849 = int_to_ptr.vmem [resolvable:$true] %s8848
      %8851 = dma.vmem_to_hbm [thread:$0]  %s8849, 128, %s6, [#allocation8]
    $region115: #{rnn_model_forward.1} parent=1 // pred_fallthru
      _
    // Predicated region
    $region116: #{rnn_model_forward.1} parent=1 // pred_check
      _
    $region117: #{rnn_model_forward.1} parent=1 // pred_check_branch
      %8853 = sbr.rel (0) target = $region119
    $region118: #{rnn_model_forward.1} parent=1 // pred_region
      %8854 = dma.done [#allocation8], 128
    $region119: #{rnn_model_forward.1} parent=1 // pred_fallthru
      _
    %8855 = vsyncpa [#allocation8], 1
  %8856 = vsyncmov [#allocation6]
  %s8857 = vpop.sfrf %8856
  %p8858 = scmp.eq.s32.totalorder %s8857, 0
  %p8859 = pneg %p8858
  %8861 = shalt.err (%p8859)
  %s8862 = scalar_lea.sflag [#allocation6], 1
  %8863 = vsyncmov %s8862
  %s8864 = vpop.sfrf %8863
  %p8865 = scmp.eq.s32.totalorder %s8864, 0
  %p8866 = pneg %p8865
  %8868 = shalt.err (%p8866)
  %s8869 = scalar_lea.sflag [#allocation6], 2
  %8870 = vsyncmov %s8869
  %s8871 = vpop.sfrf %8870
  %p8872 = scmp.eq.s32.totalorder %s8871, 0
  %p8873 = pneg %p8872
  %8875 = shalt.err (%p8873)

</llo_original>
